<compile_context>
chip_gen: v5e
topology: v5e:2x2
jax: 0.10.0
libtpu: 0.0.40
codegen_flags: <defaults>
</compile_context>

<pallas_src>
import functools

import numpy as np
import jax
import jax.numpy as jnp
from jax.experimental import pallas as pl
from jax.experimental.pallas import tpu as pltpu

KP = 128  # lane-padded contraction (input-channel) dim: Cin + C = 96 -> 128


def _make_gru_kernel(Bt, H, W, Cin, C, tm):
    """Builds the fused conv-GRU kernel body for static shapes."""
    RH = tm // W          # image rows per M-chunk
    Kc = Cin + C          # real (unpadded) contraction size

    def kernel(x_ref, hx_ref, w_ref, b_ref, out_ref, pad_ref):
        # Blocks:
        #   x_ref  : (Bt, H, W, Cin)        f32  Unet features
        #   hx_ref : (Bt, H, W, C)          f32  hidden state
        #   w_ref  : (3, 3, KP, 4C)         bf16 fused conv weight (K zero-padded)
        #   b_ref  : (1, 4C)                f32  fused bias
        #   out_ref: (Bt, H, W, C)          f32
        #   pad_ref: (Bt, H+2, W+2, KP)     f32  VMEM scratch: zero-padded [x|hx|0]
        f32 = jnp.float32

        # ---------------- pad-scratch fill ----------------
        # Zero only the halo; interior is fully overwritten every step.
        # (Do NOT guard this on program_id()==0: under the "parallel" batch
        #  axis each TensorCore has its own scratch.)
        zrow = jnp.zeros((1, W + 2, KP), f32)
        zcol = jnp.zeros((H, 2, KP), f32)
        for b in range(Bt):
            pad_ref[b, 0:1, :, :] = zrow                  # top halo row
            pad_ref[b, H + 1:H + 2, :, :] = zrow          # bottom halo row
            pad_ref[b, 1:H + 1, 0:2, :] = zcol            # cols 0,1 (1 refilled)
            pad_ref[b, 1:H + 1, W:W + 2, :] = zcol        # cols W,W+1 (W refilled)
            # Interior: [x | hx | 0] across the lane-padded 128 channels.
            pad_ref[b, 1:H + 1, 1:W + 1, 0:Cin] = x_ref[b, :, :, :]
            pad_ref[b, 1:H + 1, 1:W + 1, Cin:KP] = jnp.concatenate(
                [hx_ref[b, :, :, :], jnp.zeros((H, W, KP - Kc), f32)], axis=-1)

        # ---------------- fused 3x3 conv + GRU gates ----------------
        # 3x3 "same" conv = 9 shifted (tm, 128) @ (128, 128) bf16 MXU matmuls
        # per M-chunk, accumulated in registers (no acc VMEM round trips).
        for b in range(Bt):
            for y0 in range(0, H, RH):
                # Register accumulator seeded with the fused bias
                # (kept per-chunk so only 1 vreg of bias stays live).
                acc = jnp.broadcast_to(b_ref[...], (tm, 4 * C))
                for ky in range(3):
                    for kx in range(3):
                        # (RH, W, KP) window: leading-dim row offset is free,
                        # W offset is a shifted f32 sublane load, lanes are
                        # dense (128).  The reshape only collapses leading
                        # dims over whole (8,128) tiles -> no relayout copy.
                        tap = pad_ref[b, y0 + ky:y0 + ky + RH, kx:kx + W, :]
                        tap = tap.reshape(tm, KP).astype(jnp.bfloat16)
                        acc = acc + jnp.dot(tap, w_ref[ky, kx, :, :],
                                            preferred_element_type=f32)

                # Gate epilogue for this chunk (all f32 in registers).
                reset_g = jax.nn.sigmoid(acc[:, :C])            # x_r + h_r + b_r
                update_g = jax.nn.sigmoid(acc[:, C:2 * C])      # x_u + h_u + b_u
                new_g = jnp.tanh(acc[:, 2 * C:3 * C] + reset_g * acc[:, 3 * C:])
                hx_c = hx_ref[b, y0:y0 + RH, :, :].reshape(tm, C)
                hy = update_g * hx_c + (1.0 - update_g) * new_g
                # TODO(synk): output stays (RH, W, C) with C=32 (<128 lanes);
                # the lane-dense (RH, W*C) relayout was deliberately skipped
                # (sublane->lane reshape lowering risk; ~32 KiB per element).
                out_ref[b, y0:y0 + RH, :, :] = (
                    hy.reshape(RH, W, C).astype(out_ref.dtype))

    return kernel


def _fuse_gru_conv_params(wx, wh, bx, bh):
    """Fused (3, 3, KP, 4C) bf16 weight and (1, 4C) f32 bias.

    K rows:   [0:Cin] = x weights, [Cin:Cin+C] = h weights, rest zero padding.
    N groups: [wx_r + wh_r | wx_u + wh_u | wx_new | wh_new]  (the two "new"
    contributions stay separate because of the reset gate).
    """
    kh, kw, Cin, three_c = wx.shape
    C = three_c // 3
    w = jnp.zeros((kh, kw, KP, 4 * C), jnp.float32)
    w = w.at[:, :, :Cin, :2 * C].set(wx[:, :, :, :2 * C])          # x reset|update
    w = w.at[:, :, Cin:Cin + C, :2 * C].set(wh[:, :, :, :2 * C])   # h reset|update
    w = w.at[:, :, :Cin, 2 * C:3 * C].set(wx[:, :, :, 2 * C:])     # x new
    w = w.at[:, :, Cin:Cin + C, 3 * C:].set(wh[:, :, :, 2 * C:])   # h new
    b = jnp.concatenate([bx[:2 * C] + bh[:2 * C], bx[2 * C:], bh[2 * C:]])
    return w.astype(jnp.bfloat16), b.reshape(1, 4 * C).astype(jnp.float32)


@functools.partial(jax.jit, static_argnames=("batch_block", "tm"))
def conv2d_gru_cell(x, hx, wx, wh, bx, bh, batch_block=None, tm=128):
    """x: (B, H, W, Cin) NHWC, hx: (B, H, W, C). Returns hy: (B, H, W, C)."""
    B, H, W, Cin = x.shape
    C = hx.shape[-1]
    assert Cin + C <= KP, "contraction dim must fit in one 128-lane vreg"

    Bt = batch_block if batch_block is not None else min(B, 4)
    assert B % Bt == 0, "batch must be divisible by batch_block"
    tm = min(tm, H * W)
    assert tm % W == 0 and H % (tm // W) == 0, "tm must cover whole image rows"

    w_cat, b_cat = _fuse_gru_conv_params(wx, wh, bx, bh)
    kernel = _make_gru_kernel(Bt, H, W, Cin, C, tm)

    return pl.pallas_call(
        kernel,
        out_shape=jax.ShapeDtypeStruct((B, H, W, C), x.dtype),
        grid=(B // Bt,),
        in_specs=[
            pl.BlockSpec((Bt, H, W, Cin), lambda i: (i, 0, 0, 0)),
            pl.BlockSpec((Bt, H, W, C), lambda i: (i, 0, 0, 0)),
            pl.BlockSpec((3, 3, KP, 4 * C), lambda i: (0, 0, 0, 0)),
            pl.BlockSpec((1, 4 * C), lambda i: (0, 0)),
        ],
        out_specs=pl.BlockSpec((Bt, H, W, C), lambda i: (i, 0, 0, 0)),
        scratch_shapes=[
            pltpu.VMEM((Bt, H + 2, W + 2, KP), jnp.float32),  # padded [x|hx|0]
        ],
        compiler_params=pltpu.CompilerParams(
            dimension_semantics=("parallel",)),  # batch blocks over megacore
    )(x, hx, w_cat, b_cat)


def _reference_forward(x, hx, wx, wh, bx, bh):
    """Pure-JAX f32 reference matching the PyTorch forward semantics (NHWC)."""
    dn = ("NHWC", "HWIO", "NHWC")
    xt = jax.lax.conv_general_dilated(x, wx, (1, 1), "SAME",
                                      dimension_numbers=dn) + bx
    ht = jax.lax.conv_general_dilated(hx, wh, (1, 1), "SAME",
                                      dimension_numbers=dn) + bh
    C = hx.shape[-1]
    x_reset, x_upd, x_new = xt[..., :C], xt[..., C:2 * C], xt[..., 2 * C:]
    h_reset, h_upd, h_new = ht[..., :C], ht[..., C:2 * C], ht[..., 2 * C:]
    reset_gate = jax.nn.sigmoid(x_reset + h_reset)
    update_gate = jax.nn.sigmoid(x_upd + h_upd)
    new_gate = jnp.tanh(x_new + reset_gate * h_new)
    return update_gate * hx + (1.0 - update_gate) * new_gate


if __name__ == "__main__":
    # Shapes consistent with the module: input_size=64 channels (the frozen
    # Unet's output), hidden_size=32, 3x3 kernel, small spatial extent.
    B, Cin, C, H, W = 2, 64, 32, 16, 16

    key = jax.random.PRNGKey(0)
    k_x, k_h, k_wx, k_wh, k_bx, k_bh = jax.random.split(key, 6)

    # Stands in for the (frozen, undefined) Unet output.
    x = jax.random.uniform(k_x, (B, H, W, Cin), jnp.float32)
    # forward() with hx=None -> zeros hidden state; also test a nonzero hidden.
    hx_zero = jnp.zeros((B, H, W, C), jnp.float32)
    hx_rand = jax.random.uniform(k_h, (B, H, W, C), jnp.float32, -1.0, 1.0)

    # reset_parameters(): uniform(-std, std), std = 1/sqrt(hidden_size)
    std = 1.0 / np.sqrt(C)
    wx = jax.random.uniform(k_wx, (3, 3, Cin, 3 * C), jnp.float32, -std, std)
    wh = jax.random.uniform(k_wh, (3, 3, C, 3 * C), jnp.float32, -std, std)
    bx = jax.random.uniform(k_bx, (3 * C,), jnp.float32, -std, std)
    bh = jax.random.uniform(k_bh, (3 * C,), jnp.float32, -std, std)

    for hx in (hx_zero, hx_rand):
        hy = conv2d_gru_cell(x, hx, wx, wh, bx, bh, batch_block=2, tm=128)
        jax.block_until_ready(hy)
        hy_ref = _reference_forward(x, hx, wx, wh, bx, bh)
        # bf16 MXU operands with f32 accumulation -> loosened tolerance.
        np.testing.assert_allclose(np.asarray(hy), np.asarray(hy_ref),
                                   rtol=2e-2, atol=2e-2)
    print("KERNEL_OK")
</pallas_src>

<mosaic_0001>
module attributes {stable_mosaic.version = 11 : i64} {
  func.func @kernel(%arg0: i32, %arg1: memref<2x16x16x64xf32, #tpu.memory_space<vmem>>, %arg2: memref<2x16x16x32xf32, #tpu.memory_space<vmem>>, %arg3: memref<3x3x128x128xbf16, #tpu.memory_space<vmem>>, %arg4: memref<1x128xf32, #tpu.memory_space<vmem>>, %arg5: memref<2x16x16x32xf32, #tpu.memory_space<vmem>>, %arg6: memref<2x18x18x128xf32, #tpu.memory_space<vmem>>) attributes {dimension_semantics = [#tpu.dimension_semantics<parallel>], iteration_bounds = array<i64: 1>, scalar_prefetch = 0 : i64, scratch_operands = 1 : i64, tpu.core_type = #tpu.core_type<tc>, window_params = [{transform_indices = @transform_0, window_bounds = array<i64: 2, 16, 16, 64>}, {transform_indices = @transform_1, window_bounds = array<i64: 2, 16, 16, 32>}, {pipeline_mode = #tpu.pipeline_mode<synchronous>, transform_indices = @transform_2, window_bounds = array<i64: 3, 3, 128, 128>}, {pipeline_mode = #tpu.pipeline_mode<synchronous>, transform_indices = @transform_3, window_bounds = array<i64: 1, 128>}, {transform_indices = @transform_4, window_bounds = array<i64: 2, 16, 16, 32>}]} {
    %cst = arith.constant 0.000000e+00 : f32
    %0 = vector.broadcast %cst : f32 to vector<1x18x128xf32>
    %cst_0 = arith.constant 0.000000e+00 : f32
    %1 = vector.broadcast %cst_0 : f32 to vector<16x2x128xf32>
    %c0 = arith.constant 0 : index
    %c0_1 = arith.constant 0 : index
    %c0_2 = arith.constant 0 : index
    %c0_3 = arith.constant 0 : index
    %2 = vector.load %arg6[%c0, %c0_1, %c0_2, %c0_3] : memref<2x18x18x128xf32, #tpu.memory_space<vmem>>, vector<1x1x18x128xf32>
    %3 = vector.shape_cast %2 : vector<1x1x18x128xf32> to vector<1x18x128xf32>
    %4 = vector.shape_cast %0 : vector<1x18x128xf32> to vector<1x1x18x128xf32>
    tpu.vector_store %arg6[%c0, %c0_1, %c0_2, %c0_3], %4 {strides = array<i32>} : memref<2x18x18x128xf32, #tpu.memory_space<vmem>>, vector<1x1x18x128xf32>,
    %c0_4 = arith.constant 0 : index
    %c17 = arith.constant 17 : index
    %c0_5 = arith.constant 0 : index
    %c0_6 = arith.constant 0 : index
    %5 = vector.load %arg6[%c0_4, %c17, %c0_5, %c0_6] : memref<2x18x18x128xf32, #tpu.memory_space<vmem>>, vector<1x1x18x128xf32>
    %6 = vector.shape_cast %5 : vector<1x1x18x128xf32> to vector<1x18x128xf32>
    %7 = vector.shape_cast %0 : vector<1x18x128xf32> to vector<1x1x18x128xf32>
    tpu.vector_store %arg6[%c0_4, %c17, %c0_5, %c0_6], %7 {strides = array<i32>} : memref<2x18x18x128xf32, #tpu.memory_space<vmem>>, vector<1x1x18x128xf32>,
    %c0_7 = arith.constant 0 : index
    %c1 = arith.constant 1 : index
    %c0_8 = arith.constant 0 : index
    %c0_9 = arith.constant 0 : index
    %8 = vector.load %arg6[%c0_7, %c1, %c0_8, %c0_9] : memref<2x18x18x128xf32, #tpu.memory_space<vmem>>, vector<1x16x2x128xf32>
    %9 = vector.shape_cast %8 : vector<1x16x2x128xf32> to vector<16x2x128xf32>
    %10 = vector.shape_cast %1 : vector<16x2x128xf32> to vector<1x16x2x128xf32>
    tpu.vector_store %arg6[%c0_7, %c1, %c0_8, %c0_9], %10 {strides = array<i32>} : memref<2x18x18x128xf32, #tpu.memory_space<vmem>>, vector<1x16x2x128xf32>,
    %c0_10 = arith.constant 0 : index
    %c1_11 = arith.constant 1 : index
    %c16 = arith.constant 16 : index
    %c0_12 = arith.constant 0 : index
    %11 = vector.load %arg6[%c0_10, %c1_11, %c16, %c0_12] : memref<2x18x18x128xf32, #tpu.memory_space<vmem>>, vector<1x16x2x128xf32>
    %12 = vector.shape_cast %11 : vector<1x16x2x128xf32> to vector<16x2x128xf32>
    %13 = vector.shape_cast %1 : vector<16x2x128xf32> to vector<1x16x2x128xf32>
    tpu.vector_store %arg6[%c0_10, %c1_11, %c16, %c0_12], %13 {strides = array<i32>} : memref<2x18x18x128xf32, #tpu.memory_space<vmem>>, vector<1x16x2x128xf32>,
    %c0_13 = arith.constant 0 : index
    %c0_14 = arith.constant 0 : index
    %c0_15 = arith.constant 0 : index
    %c0_16 = arith.constant 0 : index
    %14 = vector.load %arg1[%c0_13, %c0_14, %c0_15, %c0_16] : memref<2x16x16x64xf32, #tpu.memory_space<vmem>>, vector<1x16x16x64xf32>
    %15 = vector.shape_cast %14 : vector<1x16x16x64xf32> to vector<16x16x64xf32>
    %c0_17 = arith.constant 0 : index
    %c1_18 = arith.constant 1 : index
    %c1_19 = arith.constant 1 : index
    %c0_20 = arith.constant 0 : index
    %16 = vector.load %arg6[%c0_17, %c1_18, %c1_19, %c0_20] : memref<2x18x18x128xf32, #tpu.memory_space<vmem>>, vector<1x16x16x64xf32>
    %17 = vector.shape_cast %16 : vector<1x16x16x64xf32> to vector<16x16x64xf32>
    %18 = vector.shape_cast %15 : vector<16x16x64xf32> to vector<1x16x16x64xf32>
    tpu.vector_store %arg6[%c0_17, %c1_18, %c1_19, %c0_20], %18 {strides = array<i32>} : memref<2x18x18x128xf32, #tpu.memory_space<vmem>>, vector<1x16x16x64xf32>,
    %c0_21 = arith.constant 0 : index
    %c0_22 = arith.constant 0 : index
    %c0_23 = arith.constant 0 : index
    %c0_24 = arith.constant 0 : index
    %19 = vector.load %arg2[%c0_21, %c0_22, %c0_23, %c0_24] : memref<2x16x16x32xf32, #tpu.memory_space<vmem>>, vector<1x16x16x32xf32>
    %20 = vector.shape_cast %19 : vector<1x16x16x32xf32> to vector<16x16x32xf32>
    %cst_25 = arith.constant 0.000000e+00 : f32
    %21 = vector.broadcast %cst_25 : f32 to vector<16x16x32xf32>
    %22 = tpu.concatenate %20, %21 in 2 : vector<16x16x32xf32>, vector<16x16x32xf32> -> vector<16x16x64xf32>
    %c0_26 = arith.constant 0 : index
    %c1_27 = arith.constant 1 : index
    %c1_28 = arith.constant 1 : index
    %c64 = arith.constant 64 : index
    %23 = vector.load %arg6[%c0_26, %c1_27, %c1_28, %c64] : memref<2x18x18x128xf32, #tpu.memory_space<vmem>>, vector<1x16x16x64xf32>
    %24 = vector.shape_cast %23 : vector<1x16x16x64xf32> to vector<16x16x64xf32>
    %25 = vector.shape_cast %22 : vector<16x16x64xf32> to vector<1x16x16x64xf32>
    tpu.vector_store %arg6[%c0_26, %c1_27, %c1_28, %c64], %25 {strides = array<i32>} : memref<2x18x18x128xf32, #tpu.memory_space<vmem>>, vector<1x16x16x64xf32>,
    %c1_29 = arith.constant 1 : index
    %c0_30 = arith.constant 0 : index
    %c0_31 = arith.constant 0 : index
    %c0_32 = arith.constant 0 : index
    %26 = vector.load %arg6[%c1_29, %c0_30, %c0_31, %c0_32] : memref<2x18x18x128xf32, #tpu.memory_space<vmem>>, vector<1x1x18x128xf32>
    %27 = vector.shape_cast %26 : vector<1x1x18x128xf32> to vector<1x18x128xf32>
    %28 = vector.shape_cast %0 : vector<1x18x128xf32> to vector<1x1x18x128xf32>
    tpu.vector_store %arg6[%c1_29, %c0_30, %c0_31, %c0_32], %28 {strides = array<i32>} : memref<2x18x18x128xf32, #tpu.memory_space<vmem>>, vector<1x1x18x128xf32>,
    %c1_33 = arith.constant 1 : index
    %c17_34 = arith.constant 17 : index
    %c0_35 = arith.constant 0 : index
    %c0_36 = arith.constant 0 : index
    %29 = vector.load %arg6[%c1_33, %c17_34, %c0_35, %c0_36] : memref<2x18x18x128xf32, #tpu.memory_space<vmem>>, vector<1x1x18x128xf32>
    %30 = vector.shape_cast %29 : vector<1x1x18x128xf32> to vector<1x18x128xf32>
    %31 = vector.shape_cast %0 : vector<1x18x128xf32> to vector<1x1x18x128xf32>
    tpu.vector_store %arg6[%c1_33, %c17_34, %c0_35, %c0_36], %31 {strides = array<i32>} : memref<2x18x18x128xf32, #tpu.memory_space<vmem>>, vector<1x1x18x128xf32>,
    %c1_37 = arith.constant 1 : index
    %c1_38 = arith.constant 1 : index
    %c0_39 = arith.constant 0 : index
    %c0_40 = arith.constant 0 : index
    %32 = vector.load %arg6[%c1_37, %c1_38, %c0_39, %c0_40] : memref<2x18x18x128xf32, #tpu.memory_space<vmem>>, vector<1x16x2x128xf32>
    %33 = vector.shape_cast %32 : vector<1x16x2x128xf32> to vector<16x2x128xf32>
    %34 = vector.shape_cast %1 : vector<16x2x128xf32> to vector<1x16x2x128xf32>
    tpu.vector_store %arg6[%c1_37, %c1_38, %c0_39, %c0_40], %34 {strides = array<i32>} : memref<2x18x18x128xf32, #tpu.memory_space<vmem>>, vector<1x16x2x128xf32>,
    %c1_41 = arith.constant 1 : index
    %c1_42 = arith.constant 1 : index
    %c16_43 = arith.constant 16 : index
    %c0_44 = arith.constant 0 : index
    %35 = vector.load %arg6[%c1_41, %c1_42, %c16_43, %c0_44] : memref<2x18x18x128xf32, #tpu.memory_space<vmem>>, vector<1x16x2x128xf32>
    %36 = vector.shape_cast %35 : vector<1x16x2x128xf32> to vector<16x2x128xf32>
    %37 = vector.shape_cast %1 : vector<16x2x128xf32> to vector<1x16x2x128xf32>
    tpu.vector_store %arg6[%c1_41, %c1_42, %c16_43, %c0_44], %37 {strides = array<i32>} : memref<2x18x18x128xf32, #tpu.memory_space<vmem>>, vector<1x16x2x128xf32>,
    %c1_45 = arith.constant 1 : index
    %c0_46 = arith.constant 0 : index
    %c0_47 = arith.constant 0 : index
    %c0_48 = arith.constant 0 : index
    %38 = vector.load %arg1[%c1_45, %c0_46, %c0_47, %c0_48] : memref<2x16x16x64xf32, #tpu.memory_space<vmem>>, vector<1x16x16x64xf32>
    %39 = vector.shape_cast %38 : vector<1x16x16x64xf32> to vector<16x16x64xf32>
    %c1_49 = arith.constant 1 : index
    %c1_50 = arith.constant 1 : index
    %c1_51 = arith.constant 1 : index
    %c0_52 = arith.constant 0 : index
    %40 = vector.load %arg6[%c1_49, %c1_50, %c1_51, %c0_52] : memref<2x18x18x128xf32, #tpu.memory_space<vmem>>, vector<1x16x16x64xf32>
    %41 = vector.shape_cast %40 : vector<1x16x16x64xf32> to vector<16x16x64xf32>
    %42 = vector.shape_cast %39 : vector<16x16x64xf32> to vector<1x16x16x64xf32>
    tpu.vector_store %arg6[%c1_49, %c1_50, %c1_51, %c0_52], %42 {strides = array<i32>} : memref<2x18x18x128xf32, #tpu.memory_space<vmem>>, vector<1x16x16x64xf32>,
    %c1_53 = arith.constant 1 : index
    %c0_54 = arith.constant 0 : index
    %c0_55 = arith.constant 0 : index
    %c0_56 = arith.constant 0 : index
    %43 = vector.load %arg2[%c1_53, %c0_54, %c0_55, %c0_56] : memref<2x16x16x32xf32, #tpu.memory_space<vmem>>, vector<1x16x16x32xf32>
    %44 = vector.shape_cast %43 : vector<1x16x16x32xf32> to vector<16x16x32xf32>
    %cst_57 = arith.constant 0.000000e+00 : f32
    %45 = vector.broadcast %cst_57 : f32 to vector<16x16x32xf32>
    %46 = tpu.concatenate %44, %45 in 2 : vector<16x16x32xf32>, vector<16x16x32xf32> -> vector<16x16x64xf32>
    %c1_58 = arith.constant 1 : index
    %c1_59 = arith.constant 1 : index
    %c1_60 = arith.constant 1 : index
    %c64_61 = arith.constant 64 : index
    %47 = vector.load %arg6[%c1_58, %c1_59, %c1_60, %c64_61] : memref<2x18x18x128xf32, #tpu.memory_space<vmem>>, vector<1x16x16x64xf32>
    %48 = vector.shape_cast %47 : vector<1x16x16x64xf32> to vector<16x16x64xf32>
    %49 = vector.shape_cast %46 : vector<16x16x64xf32> to vector<1x16x16x64xf32>
    tpu.vector_store %arg6[%c1_58, %c1_59, %c1_60, %c64_61], %49 {strides = array<i32>} : memref<2x18x18x128xf32, #tpu.memory_space<vmem>>, vector<1x16x16x64xf32>,
    %c0_62 = arith.constant 0 : index
    %c0_63 = arith.constant 0 : index
    %50 = vector.load %arg4[%c0_62, %c0_63] : memref<1x128xf32, #tpu.memory_space<vmem>>, vector<1x128xf32>
    %51 = vector.shape_cast %50 : vector<1x128xf32> to vector<1x128xf32>
    %52 = vector.broadcast %51 : vector<1x128xf32> to vector<128x128xf32>
    %c0_64 = arith.constant 0 : index
    %c0_65 = arith.constant 0 : index
    %c0_66 = arith.constant 0 : index
    %c0_67 = arith.constant 0 : index
    %53 = vector.load %arg6[%c0_64, %c0_65, %c0_66, %c0_67] : memref<2x18x18x128xf32, #tpu.memory_space<vmem>>, vector<1x8x16x128xf32>
    %54 = vector.shape_cast %53 : vector<1x8x16x128xf32> to vector<8x16x128xf32>
    %55 = vector.shape_cast %54 : vector<8x16x128xf32> to vector<128x128xf32>
    %56 = arith.truncf %55 : vector<128x128xf32> to vector<128x128xbf16>
    %c0_68 = arith.constant 0 : index
    %c0_69 = arith.constant 0 : index
    %c0_70 = arith.constant 0 : index
    %c0_71 = arith.constant 0 : index
    %57 = vector.load %arg3[%c0_68, %c0_69, %c0_70, %c0_71] : memref<3x3x128x128xbf16, #tpu.memory_space<vmem>>, vector<1x1x128x128xbf16>
    %58 = vector.shape_cast %57 : vector<1x1x128x128xbf16> to vector<128x128xbf16>
    %cst_72 = arith.constant dense<0.000000e+00> : vector<128x128xf32>
    %59 = tpu.matmul %56, %58, %cst_72 {dimension_numbers = #tpu.dot_dimension_numbers<[1], [0], [0], [1], [0, 0, 1, 1], [], []>} : vector<128x128xbf16>, vector<128x128xbf16>, vector<128x128xf32> -> vector<128x128xf32>
    %60 = arith.addf %52, %59 : vector<128x128xf32>
    %c0_73 = arith.constant 0 : index
    %c0_74 = arith.constant 0 : index
    %c1_75 = arith.constant 1 : index
    %c0_76 = arith.constant 0 : index
    %61 = vector.load %arg6[%c0_73, %c0_74, %c1_75, %c0_76] : memref<2x18x18x128xf32, #tpu.memory_space<vmem>>, vector<1x8x16x128xf32>
    %62 = vector.shape_cast %61 : vector<1x8x16x128xf32> to vector<8x16x128xf32>
    %63 = vector.shape_cast %62 : vector<8x16x128xf32> to vector<128x128xf32>
    %64 = arith.truncf %63 : vector<128x128xf32> to vector<128x128xbf16>
    %c0_77 = arith.constant 0 : index
    %c1_78 = arith.constant 1 : index
    %c0_79 = arith.constant 0 : index
    %c0_80 = arith.constant 0 : index
    %65 = vector.load %arg3[%c0_77, %c1_78, %c0_79, %c0_80] : memref<3x3x128x128xbf16, #tpu.memory_space<vmem>>, vector<1x1x128x128xbf16>
    %66 = vector.shape_cast %65 : vector<1x1x128x128xbf16> to vector<128x128xbf16>
    %cst_81 = arith.constant dense<0.000000e+00> : vector<128x128xf32>
    %67 = tpu.matmul %64, %66, %cst_81 {dimension_numbers = #tpu.dot_dimension_numbers<[1], [0], [0], [1], [0, 0, 1, 1], [], []>} : vector<128x128xbf16>, vector<128x128xbf16>, vector<128x128xf32> -> vector<128x128xf32>
    %68 = arith.addf %60, %67 : vector<128x128xf32>
    %c0_82 = arith.constant 0 : index
    %c0_83 = arith.constant 0 : index
    %c2 = arith.constant 2 : index
    %c0_84 = arith.constant 0 : index
    %69 = vector.load %arg6[%c0_82, %c0_83, %c2, %c0_84] : memref<2x18x18x128xf32, #tpu.memory_space<vmem>>, vector<1x8x16x128xf32>
    %70 = vector.shape_cast %69 : vector<1x8x16x128xf32> to vector<8x16x128xf32>
    %71 = vector.shape_cast %70 : vector<8x16x128xf32> to vector<128x128xf32>
    %72 = arith.truncf %71 : vector<128x128xf32> to vector<128x128xbf16>
    %c0_85 = arith.constant 0 : index
    %c2_86 = arith.constant 2 : index
    %c0_87 = arith.constant 0 : index
    %c0_88 = arith.constant 0 : index
    %73 = vector.load %arg3[%c0_85, %c2_86, %c0_87, %c0_88] : memref<3x3x128x128xbf16, #tpu.memory_space<vmem>>, vector<1x1x128x128xbf16>
    %74 = vector.shape_cast %73 : vector<1x1x128x128xbf16> to vector<128x128xbf16>
    %cst_89 = arith.constant dense<0.000000e+00> : vector<128x128xf32>
    %75 = tpu.matmul %72, %74, %cst_89 {dimension_numbers = #tpu.dot_dimension_numbers<[1], [0], [0], [1], [0, 0, 1, 1], [], []>} : vector<128x128xbf16>, vector<128x128xbf16>, vector<128x128xf32> -> vector<128x128xf32>
    %76 = arith.addf %68, %75 : vector<128x128xf32>
    %c0_90 = arith.constant 0 : index
    %c1_91 = arith.constant 1 : index
    %c0_92 = arith.constant 0 : index
    %c0_93 = arith.constant 0 : index
    %77 = vector.load %arg6[%c0_90, %c1_91, %c0_92, %c0_93] : memref<2x18x18x128xf32, #tpu.memory_space<vmem>>, vector<1x8x16x128xf32>
    %78 = vector.shape_cast %77 : vector<1x8x16x128xf32> to vector<8x16x128xf32>
    %79 = vector.shape_cast %78 : vector<8x16x128xf32> to vector<128x128xf32>
    %80 = arith.truncf %79 : vector<128x128xf32> to vector<128x128xbf16>
    %c1_94 = arith.constant 1 : index
    %c0_95 = arith.constant 0 : index
    %c0_96 = arith.constant 0 : index
    %c0_97 = arith.constant 0 : index
    %81 = vector.load %arg3[%c1_94, %c0_95, %c0_96, %c0_97] : memref<3x3x128x128xbf16, #tpu.memory_space<vmem>>, vector<1x1x128x128xbf16>
    %82 = vector.shape_cast %81 : vector<1x1x128x128xbf16> to vector<128x128xbf16>
    %cst_98 = arith.constant dense<0.000000e+00> : vector<128x128xf32>
    %83 = tpu.matmul %80, %82, %cst_98 {dimension_numbers = #tpu.dot_dimension_numbers<[1], [0], [0], [1], [0, 0, 1, 1], [], []>} : vector<128x128xbf16>, vector<128x128xbf16>, vector<128x128xf32> -> vector<128x128xf32>
    %84 = arith.addf %76, %83 : vector<128x128xf32>
    %c0_99 = arith.constant 0 : index
    %c1_100 = arith.constant 1 : index
    %c1_101 = arith.constant 1 : index
    %c0_102 = arith.constant 0 : index
    %85 = vector.load %arg6[%c0_99, %c1_100, %c1_101, %c0_102] : memref<2x18x18x128xf32, #tpu.memory_space<vmem>>, vector<1x8x16x128xf32>
    %86 = vector.shape_cast %85 : vector<1x8x16x128xf32> to vector<8x16x128xf32>
    %87 = vector.shape_cast %86 : vector<8x16x128xf32> to vector<128x128xf32>
    %88 = arith.truncf %87 : vector<128x128xf32> to vector<128x128xbf16>
    %c1_103 = arith.constant 1 : index
    %c1_104 = arith.constant 1 : index
    %c0_105 = arith.constant 0 : index
    %c0_106 = arith.constant 0 : index
    %89 = vector.load %arg3[%c1_103, %c1_104, %c0_105, %c0_106] : memref<3x3x128x128xbf16, #tpu.memory_space<vmem>>, vector<1x1x128x128xbf16>
    %90 = vector.shape_cast %89 : vector<1x1x128x128xbf16> to vector<128x128xbf16>
    %cst_107 = arith.constant dense<0.000000e+00> : vector<128x128xf32>
    %91 = tpu.matmul %88, %90, %cst_107 {dimension_numbers = #tpu.dot_dimension_numbers<[1], [0], [0], [1], [0, 0, 1, 1], [], []>} : vector<128x128xbf16>, vector<128x128xbf16>, vector<128x128xf32> -> vector<128x128xf32>
    %92 = arith.addf %84, %91 : vector<128x128xf32>
    %c0_108 = arith.constant 0 : index
    %c1_109 = arith.constant 1 : index
    %c2_110 = arith.constant 2 : index
    %c0_111 = arith.constant 0 : index
    %93 = vector.load %arg6[%c0_108, %c1_109, %c2_110, %c0_111] : memref<2x18x18x128xf32, #tpu.memory_space<vmem>>, vector<1x8x16x128xf32>
    %94 = vector.shape_cast %93 : vector<1x8x16x128xf32> to vector<8x16x128xf32>
    %95 = vector.shape_cast %94 : vector<8x16x128xf32> to vector<128x128xf32>
    %96 = arith.truncf %95 : vector<128x128xf32> to vector<128x128xbf16>
    %c1_112 = arith.constant 1 : index
    %c2_113 = arith.constant 2 : index
    %c0_114 = arith.constant 0 : index
    %c0_115 = arith.constant 0 : index
    %97 = vector.load %arg3[%c1_112, %c2_113, %c0_114, %c0_115] : memref<3x3x128x128xbf16, #tpu.memory_space<vmem>>, vector<1x1x128x128xbf16>
    %98 = vector.shape_cast %97 : vector<1x1x128x128xbf16> to vector<128x128xbf16>
    %cst_116 = arith.constant dense<0.000000e+00> : vector<128x128xf32>
    %99 = tpu.matmul %96, %98, %cst_116 {dimension_numbers = #tpu.dot_dimension_numbers<[1], [0], [0], [1], [0, 0, 1, 1], [], []>} : vector<128x128xbf16>, vector<128x128xbf16>, vector<128x128xf32> -> vector<128x128xf32>
    %100 = arith.addf %92, %99 : vector<128x128xf32>
    %c0_117 = arith.constant 0 : index
    %c2_118 = arith.constant 2 : index
    %c0_119 = arith.constant 0 : index
    %c0_120 = arith.constant 0 : index
    %101 = vector.load %arg6[%c0_117, %c2_118, %c0_119, %c0_120] : memref<2x18x18x128xf32, #tpu.memory_space<vmem>>, vector<1x8x16x128xf32>
    %102 = vector.shape_cast %101 : vector<1x8x16x128xf32> to vector<8x16x128xf32>
    %103 = vector.shape_cast %102 : vector<8x16x128xf32> to vector<128x128xf32>
    %104 = arith.truncf %103 : vector<128x128xf32> to vector<128x128xbf16>
    %c2_121 = arith.constant 2 : index
    %c0_122 = arith.constant 0 : index
    %c0_123 = arith.constant 0 : index
    %c0_124 = arith.constant 0 : index
    %105 = vector.load %arg3[%c2_121, %c0_122, %c0_123, %c0_124] : memref<3x3x128x128xbf16, #tpu.memory_space<vmem>>, vector<1x1x128x128xbf16>
    %106 = vector.shape_cast %105 : vector<1x1x128x128xbf16> to vector<128x128xbf16>
    %cst_125 = arith.constant dense<0.000000e+00> : vector<128x128xf32>
    %107 = tpu.matmul %104, %106, %cst_125 {dimension_numbers = #tpu.dot_dimension_numbers<[1], [0], [0], [1], [0, 0, 1, 1], [], []>} : vector<128x128xbf16>, vector<128x128xbf16>, vector<128x128xf32> -> vector<128x128xf32>
    %108 = arith.addf %100, %107 : vector<128x128xf32>
    %c0_126 = arith.constant 0 : index
    %c2_127 = arith.constant 2 : index
    %c1_128 = arith.constant 1 : index
    %c0_129 = arith.constant 0 : index
    %109 = vector.load %arg6[%c0_126, %c2_127, %c1_128, %c0_129] : memref<2x18x18x128xf32, #tpu.memory_space<vmem>>, vector<1x8x16x128xf32>
    %110 = vector.shape_cast %109 : vector<1x8x16x128xf32> to vector<8x16x128xf32>
    %111 = vector.shape_cast %110 : vector<8x16x128xf32> to vector<128x128xf32>
    %112 = arith.truncf %111 : vector<128x128xf32> to vector<128x128xbf16>
    %c2_130 = arith.constant 2 : index
    %c1_131 = arith.constant 1 : index
    %c0_132 = arith.constant 0 : index
    %c0_133 = arith.constant 0 : index
    %113 = vector.load %arg3[%c2_130, %c1_131, %c0_132, %c0_133] : memref<3x3x128x128xbf16, #tpu.memory_space<vmem>>, vector<1x1x128x128xbf16>
    %114 = vector.shape_cast %113 : vector<1x1x128x128xbf16> to vector<128x128xbf16>
    %cst_134 = arith.constant dense<0.000000e+00> : vector<128x128xf32>
    %115 = tpu.matmul %112, %114, %cst_134 {dimension_numbers = #tpu.dot_dimension_numbers<[1], [0], [0], [1], [0, 0, 1, 1], [], []>} : vector<128x128xbf16>, vector<128x128xbf16>, vector<128x128xf32> -> vector<128x128xf32>
    %116 = arith.addf %108, %115 : vector<128x128xf32>
    %c0_135 = arith.constant 0 : index
    %c2_136 = arith.constant 2 : index
    %c2_137 = arith.constant 2 : index
    %c0_138 = arith.constant 0 : index
    %117 = vector.load %arg6[%c0_135, %c2_136, %c2_137, %c0_138] : memref<2x18x18x128xf32, #tpu.memory_space<vmem>>, vector<1x8x16x128xf32>
    %118 = vector.shape_cast %117 : vector<1x8x16x128xf32> to vector<8x16x128xf32>
    %119 = vector.shape_cast %118 : vector<8x16x128xf32> to vector<128x128xf32>
    %120 = arith.truncf %119 : vector<128x128xf32> to vector<128x128xbf16>
    %c2_139 = arith.constant 2 : index
    %c2_140 = arith.constant 2 : index
    %c0_141 = arith.constant 0 : index
    %c0_142 = arith.constant 0 : index
    %121 = vector.load %arg3[%c2_139, %c2_140, %c0_141, %c0_142] : memref<3x3x128x128xbf16, #tpu.memory_space<vmem>>, vector<1x1x128x128xbf16>
    %122 = vector.shape_cast %121 : vector<1x1x128x128xbf16> to vector<128x128xbf16>
    %cst_143 = arith.constant dense<0.000000e+00> : vector<128x128xf32>
    %123 = tpu.matmul %120, %122, %cst_143 {dimension_numbers = #tpu.dot_dimension_numbers<[1], [0], [0], [1], [0, 0, 1, 1], [], []>} : vector<128x128xbf16>, vector<128x128xbf16>, vector<128x128xf32> -> vector<128x128xf32>
    %124 = arith.addf %116, %123 : vector<128x128xf32>
    %125 = vector.extract_strided_slice %124 {offsets = [0, 0], sizes = [128, 32], strides = [1, 1]} : vector<128x128xf32> to vector<128x32xf32>
    %126 = arith.negf %125 : vector<128x32xf32>
    %127 = math.exp %126 : vector<128x32xf32>
    %cst_144 = arith.constant 1.000000e+00 : f32
    %128 = vector.broadcast %cst_144 : f32 to vector<128x32xf32>
    %129 = arith.addf %128, %127 : vector<128x32xf32>
    %130 = arith.divf %128, %129 : vector<128x32xf32>
    %131 = vector.extract_strided_slice %124 {offsets = [0, 32], sizes = [128, 32], strides = [1, 1]} : vector<128x128xf32> to vector<128x32xf32>
    %132 = arith.negf %131 : vector<128x32xf32>
    %133 = math.exp %132 : vector<128x32xf32>
    %cst_145 = arith.constant 1.000000e+00 : f32
    %134 = vector.broadcast %cst_145 : f32 to vector<128x32xf32>
    %135 = arith.addf %134, %133 : vector<128x32xf32>
    %136 = arith.divf %134, %135 : vector<128x32xf32>
    %137 = vector.extract_strided_slice %124 {offsets = [0, 64], sizes = [128, 32], strides = [1, 1]} : vector<128x128xf32> to vector<128x32xf32>
    %138 = vector.extract_strided_slice %124 {offsets = [0, 96], sizes = [128, 32], strides = [1, 1]} : vector<128x128xf32> to vector<128x32xf32>
    %139 = arith.mulf %130, %138 : vector<128x32xf32>
    %140 = arith.addf %137, %139 : vector<128x32xf32>
    %141 = math.tanh %140 : vector<128x32xf32>
    %c0_146 = arith.constant 0 : index
    %c0_147 = arith.constant 0 : index
    %c0_148 = arith.constant 0 : index
    %c0_149 = arith.constant 0 : index
    %142 = vector.load %arg2[%c0_146, %c0_147, %c0_148, %c0_149] : memref<2x16x16x32xf32, #tpu.memory_space<vmem>>, vector<1x8x16x32xf32>
    %143 = vector.shape_cast %142 : vector<1x8x16x32xf32> to vector<8x16x32xf32>
    %144 = vector.shape_cast %143 : vector<8x16x32xf32> to vector<128x32xf32>
    %145 = arith.mulf %136, %144 : vector<128x32xf32>
    %cst_150 = arith.constant 1.000000e+00 : f32
    %146 = vector.broadcast %cst_150 : f32 to vector<128x32xf32>
    %147 = arith.subf %146, %136 : vector<128x32xf32>
    %148 = arith.mulf %147, %141 : vector<128x32xf32>
    %149 = arith.addf %145, %148 : vector<128x32xf32>
    %150 = vector.shape_cast %149 : vector<128x32xf32> to vector<8x16x32xf32>
    %c0_151 = arith.constant 0 : index
    %c0_152 = arith.constant 0 : index
    %c0_153 = arith.constant 0 : index
    %c0_154 = arith.constant 0 : index
    %151 = vector.load %arg5[%c0_151, %c0_152, %c0_153, %c0_154] : memref<2x16x16x32xf32, #tpu.memory_space<vmem>>, vector<1x8x16x32xf32>
    %152 = vector.shape_cast %151 : vector<1x8x16x32xf32> to vector<8x16x32xf32>
    %153 = vector.shape_cast %150 : vector<8x16x32xf32> to vector<1x8x16x32xf32>
    tpu.vector_store %arg5[%c0_151, %c0_152, %c0_153, %c0_154], %153 {strides = array<i32>} : memref<2x16x16x32xf32, #tpu.memory_space<vmem>>, vector<1x8x16x32xf32>,
    %c0_155 = arith.constant 0 : index
    %c0_156 = arith.constant 0 : index
    %154 = vector.load %arg4[%c0_155, %c0_156] : memref<1x128xf32, #tpu.memory_space<vmem>>, vector<1x128xf32>
    %155 = vector.shape_cast %154 : vector<1x128xf32> to vector<1x128xf32>
    %156 = vector.broadcast %155 : vector<1x128xf32> to vector<128x128xf32>
    %c0_157 = arith.constant 0 : index
    %c8 = arith.constant 8 : index
    %c0_158 = arith.constant 0 : index
    %c0_159 = arith.constant 0 : index
    %157 = vector.load %arg6[%c0_157, %c8, %c0_158, %c0_159] : memref<2x18x18x128xf32, #tpu.memory_space<vmem>>, vector<1x8x16x128xf32>
    %158 = vector.shape_cast %157 : vector<1x8x16x128xf32> to vector<8x16x128xf32>
    %159 = vector.shape_cast %158 : vector<8x16x128xf32> to vector<128x128xf32>
    %160 = arith.truncf %159 : vector<128x128xf32> to vector<128x128xbf16>
    %c0_160 = arith.constant 0 : index
    %c0_161 = arith.constant 0 : index
    %c0_162 = arith.constant 0 : index
    %c0_163 = arith.constant 0 : index
    %161 = vector.load %arg3[%c0_160, %c0_161, %c0_162, %c0_163] : memref<3x3x128x128xbf16, #tpu.memory_space<vmem>>, vector<1x1x128x128xbf16>
    %162 = vector.shape_cast %161 : vector<1x1x128x128xbf16> to vector<128x128xbf16>
    %cst_164 = arith.constant dense<0.000000e+00> : vector<128x128xf32>
    %163 = tpu.matmul %160, %162, %cst_164 {dimension_numbers = #tpu.dot_dimension_numbers<[1], [0], [0], [1], [0, 0, 1, 1], [], []>} : vector<128x128xbf16>, vector<128x128xbf16>, vector<128x128xf32> -> vector<128x128xf32>
    %164 = arith.addf %156, %163 : vector<128x128xf32>
    %c0_165 = arith.constant 0 : index
    %c8_166 = arith.constant 8 : index
    %c1_167 = arith.constant 1 : index
    %c0_168 = arith.constant 0 : index
    %165 = vector.load %arg6[%c0_165, %c8_166, %c1_167, %c0_168] : memref<2x18x18x128xf32, #tpu.memory_space<vmem>>, vector<1x8x16x128xf32>
    %166 = vector.shape_cast %165 : vector<1x8x16x128xf32> to vector<8x16x128xf32>
    %167 = vector.shape_cast %166 : vector<8x16x128xf32> to vector<128x128xf32>
    %168 = arith.truncf %167 : vector<128x128xf32> to vector<128x128xbf16>
    %c0_169 = arith.constant 0 : index
    %c1_170 = arith.constant 1 : index
    %c0_171 = arith.constant 0 : index
    %c0_172 = arith.constant 0 : index
    %169 = vector.load %arg3[%c0_169, %c1_170, %c0_171, %c0_172] : memref<3x3x128x128xbf16, #tpu.memory_space<vmem>>, vector<1x1x128x128xbf16>
    %170 = vector.shape_cast %169 : vector<1x1x128x128xbf16> to vector<128x128xbf16>
    %cst_173 = arith.constant dense<0.000000e+00> : vector<128x128xf32>
    %171 = tpu.matmul %168, %170, %cst_173 {dimension_numbers = #tpu.dot_dimension_numbers<[1], [0], [0], [1], [0, 0, 1, 1], [], []>} : vector<128x128xbf16>, vector<128x128xbf16>, vector<128x128xf32> -> vector<128x128xf32>
    %172 = arith.addf %164, %171 : vector<128x128xf32>
    %c0_174 = arith.constant 0 : index
    %c8_175 = arith.constant 8 : index
    %c2_176 = arith.constant 2 : index
    %c0_177 = arith.constant 0 : index
    %173 = vector.load %arg6[%c0_174, %c8_175, %c2_176, %c0_177] : memref<2x18x18x128xf32, #tpu.memory_space<vmem>>, vector<1x8x16x128xf32>
    %174 = vector.shape_cast %173 : vector<1x8x16x128xf32> to vector<8x16x128xf32>
    %175 = vector.shape_cast %174 : vector<8x16x128xf32> to vector<128x128xf32>
    %176 = arith.truncf %175 : vector<128x128xf32> to vector<128x128xbf16>
    %c0_178 = arith.constant 0 : index
    %c2_179 = arith.constant 2 : index
    %c0_180 = arith.constant 0 : index
    %c0_181 = arith.constant 0 : index
    %177 = vector.load %arg3[%c0_178, %c2_179, %c0_180, %c0_181] : memref<3x3x128x128xbf16, #tpu.memory_space<vmem>>, vector<1x1x128x128xbf16>
    %178 = vector.shape_cast %177 : vector<1x1x128x128xbf16> to vector<128x128xbf16>
    %cst_182 = arith.constant dense<0.000000e+00> : vector<128x128xf32>
    %179 = tpu.matmul %176, %178, %cst_182 {dimension_numbers = #tpu.dot_dimension_numbers<[1], [0], [0], [1], [0, 0, 1, 1], [], []>} : vector<128x128xbf16>, vector<128x128xbf16>, vector<128x128xf32> -> vector<128x128xf32>
    %180 = arith.addf %172, %179 : vector<128x128xf32>
    %c0_183 = arith.constant 0 : index
    %c9 = arith.constant 9 : index
    %c0_184 = arith.constant 0 : index
    %c0_185 = arith.constant 0 : index
    %181 = vector.load %arg6[%c0_183, %c9, %c0_184, %c0_185] : memref<2x18x18x128xf32, #tpu.memory_space<vmem>>, vector<1x8x16x128xf32>
    %182 = vector.shape_cast %181 : vector<1x8x16x128xf32> to vector<8x16x128xf32>
    %183 = vector.shape_cast %182 : vector<8x16x128xf32> to vector<128x128xf32>
    %184 = arith.truncf %183 : vector<128x128xf32> to vector<128x128xbf16>
    %c1_186 = arith.constant 1 : index
    %c0_187 = arith.constant 0 : index
    %c0_188 = arith.constant 0 : index
    %c0_189 = arith.constant 0 : index
    %185 = vector.load %arg3[%c1_186, %c0_187, %c0_188, %c0_189] : memref<3x3x128x128xbf16, #tpu.memory_space<vmem>>, vector<1x1x128x128xbf16>
    %186 = vector.shape_cast %185 : vector<1x1x128x128xbf16> to vector<128x128xbf16>
    %cst_190 = arith.constant dense<0.000000e+00> : vector<128x128xf32>
    %187 = tpu.matmul %184, %186, %cst_190 {dimension_numbers = #tpu.dot_dimension_numbers<[1], [0], [0], [1], [0, 0, 1, 1], [], []>} : vector<128x128xbf16>, vector<128x128xbf16>, vector<128x128xf32> -> vector<128x128xf32>
    %188 = arith.addf %180, %187 : vector<128x128xf32>
    %c0_191 = arith.constant 0 : index
    %c9_192 = arith.constant 9 : index
    %c1_193 = arith.constant 1 : index
    %c0_194 = arith.constant 0 : index
    %189 = vector.load %arg6[%c0_191, %c9_192, %c1_193, %c0_194] : memref<2x18x18x128xf32, #tpu.memory_space<vmem>>, vector<1x8x16x128xf32>
    %190 = vector.shape_cast %189 : vector<1x8x16x128xf32> to vector<8x16x128xf32>
    %191 = vector.shape_cast %190 : vector<8x16x128xf32> to vector<128x128xf32>
    %192 = arith.truncf %191 : vector<128x128xf32> to vector<128x128xbf16>
    %c1_195 = arith.constant 1 : index
    %c1_196 = arith.constant 1 : index
    %c0_197 = arith.constant 0 : index
    %c0_198 = arith.constant 0 : index
    %193 = vector.load %arg3[%c1_195, %c1_196, %c0_197, %c0_198] : memref<3x3x128x128xbf16, #tpu.memory_space<vmem>>, vector<1x1x128x128xbf16>
    %194 = vector.shape_cast %193 : vector<1x1x128x128xbf16> to vector<128x128xbf16>
    %cst_199 = arith.constant dense<0.000000e+00> : vector<128x128xf32>
    %195 = tpu.matmul %192, %194, %cst_199 {dimension_numbers = #tpu.dot_dimension_numbers<[1], [0], [0], [1], [0, 0, 1, 1], [], []>} : vector<128x128xbf16>, vector<128x128xbf16>, vector<128x128xf32> -> vector<128x128xf32>
    %196 = arith.addf %188, %195 : vector<128x128xf32>
    %c0_200 = arith.constant 0 : index
    %c9_201 = arith.constant 9 : index
    %c2_202 = arith.constant 2 : index
    %c0_203 = arith.constant 0 : index
    %197 = vector.load %arg6[%c0_200, %c9_201, %c2_202, %c0_203] : memref<2x18x18x128xf32, #tpu.memory_space<vmem>>, vector<1x8x16x128xf32>
    %198 = vector.shape_cast %197 : vector<1x8x16x128xf32> to vector<8x16x128xf32>
    %199 = vector.shape_cast %198 : vector<8x16x128xf32> to vector<128x128xf32>
    %200 = arith.truncf %199 : vector<128x128xf32> to vector<128x128xbf16>
    %c1_204 = arith.constant 1 : index
    %c2_205 = arith.constant 2 : index
    %c0_206 = arith.constant 0 : index
    %c0_207 = arith.constant 0 : index
    %201 = vector.load %arg3[%c1_204, %c2_205, %c0_206, %c0_207] : memref<3x3x128x128xbf16, #tpu.memory_space<vmem>>, vector<1x1x128x128xbf16>
    %202 = vector.shape_cast %201 : vector<1x1x128x128xbf16> to vector<128x128xbf16>
    %cst_208 = arith.constant dense<0.000000e+00> : vector<128x128xf32>
    %203 = tpu.matmul %200, %202, %cst_208 {dimension_numbers = #tpu.dot_dimension_numbers<[1], [0], [0], [1], [0, 0, 1, 1], [], []>} : vector<128x128xbf16>, vector<128x128xbf16>, vector<128x128xf32> -> vector<128x128xf32>
    %204 = arith.addf %196, %203 : vector<128x128xf32>
    %c0_209 = arith.constant 0 : index
    %c10 = arith.constant 10 : index
    %c0_210 = arith.constant 0 : index
    %c0_211 = arith.constant 0 : index
    %205 = vector.load %arg6[%c0_209, %c10, %c0_210, %c0_211] : memref<2x18x18x128xf32, #tpu.memory_space<vmem>>, vector<1x8x16x128xf32>
    %206 = vector.shape_cast %205 : vector<1x8x16x128xf32> to vector<8x16x128xf32>
    %207 = vector.shape_cast %206 : vector<8x16x128xf32> to vector<128x128xf32>
    %208 = arith.truncf %207 : vector<128x128xf32> to vector<128x128xbf16>
    %c2_212 = arith.constant 2 : index
    %c0_213 = arith.constant 0 : index
    %c0_214 = arith.constant 0 : index
    %c0_215 = arith.constant 0 : index
    %209 = vector.load %arg3[%c2_212, %c0_213, %c0_214, %c0_215] : memref<3x3x128x128xbf16, #tpu.memory_space<vmem>>, vector<1x1x128x128xbf16>
    %210 = vector.shape_cast %209 : vector<1x1x128x128xbf16> to vector<128x128xbf16>
    %cst_216 = arith.constant dense<0.000000e+00> : vector<128x128xf32>
    %211 = tpu.matmul %208, %210, %cst_216 {dimension_numbers = #tpu.dot_dimension_numbers<[1], [0], [0], [1], [0, 0, 1, 1], [], []>} : vector<128x128xbf16>, vector<128x128xbf16>, vector<128x128xf32> -> vector<128x128xf32>
    %212 = arith.addf %204, %211 : vector<128x128xf32>
    %c0_217 = arith.constant 0 : index
    %c10_218 = arith.constant 10 : index
    %c1_219 = arith.constant 1 : index
    %c0_220 = arith.constant 0 : index
    %213 = vector.load %arg6[%c0_217, %c10_218, %c1_219, %c0_220] : memref<2x18x18x128xf32, #tpu.memory_space<vmem>>, vector<1x8x16x128xf32>
    %214 = vector.shape_cast %213 : vector<1x8x16x128xf32> to vector<8x16x128xf32>
    %215 = vector.shape_cast %214 : vector<8x16x128xf32> to vector<128x128xf32>
    %216 = arith.truncf %215 : vector<128x128xf32> to vector<128x128xbf16>
    %c2_221 = arith.constant 2 : index
    %c1_222 = arith.constant 1 : index
    %c0_223 = arith.constant 0 : index
    %c0_224 = arith.constant 0 : index
    %217 = vector.load %arg3[%c2_221, %c1_222, %c0_223, %c0_224] : memref<3x3x128x128xbf16, #tpu.memory_space<vmem>>, vector<1x1x128x128xbf16>
    %218 = vector.shape_cast %217 : vector<1x1x128x128xbf16> to vector<128x128xbf16>
    %cst_225 = arith.constant dense<0.000000e+00> : vector<128x128xf32>
    %219 = tpu.matmul %216, %218, %cst_225 {dimension_numbers = #tpu.dot_dimension_numbers<[1], [0], [0], [1], [0, 0, 1, 1], [], []>} : vector<128x128xbf16>, vector<128x128xbf16>, vector<128x128xf32> -> vector<128x128xf32>
    %220 = arith.addf %212, %219 : vector<128x128xf32>
    %c0_226 = arith.constant 0 : index
    %c10_227 = arith.constant 10 : index
    %c2_228 = arith.constant 2 : index
    %c0_229 = arith.constant 0 : index
    %221 = vector.load %arg6[%c0_226, %c10_227, %c2_228, %c0_229] : memref<2x18x18x128xf32, #tpu.memory_space<vmem>>, vector<1x8x16x128xf32>
    %222 = vector.shape_cast %221 : vector<1x8x16x128xf32> to vector<8x16x128xf32>
    %223 = vector.shape_cast %222 : vector<8x16x128xf32> to vector<128x128xf32>
    %224 = arith.truncf %223 : vector<128x128xf32> to vector<128x128xbf16>
    %c2_230 = arith.constant 2 : index
    %c2_231 = arith.constant 2 : index
    %c0_232 = arith.constant 0 : index
    %c0_233 = arith.constant 0 : index
    %225 = vector.load %arg3[%c2_230, %c2_231, %c0_232, %c0_233] : memref<3x3x128x128xbf16, #tpu.memory_space<vmem>>, vector<1x1x128x128xbf16>
    %226 = vector.shape_cast %225 : vector<1x1x128x128xbf16> to vector<128x128xbf16>
    %cst_234 = arith.constant dense<0.000000e+00> : vector<128x128xf32>
    %227 = tpu.matmul %224, %226, %cst_234 {dimension_numbers = #tpu.dot_dimension_numbers<[1], [0], [0], [1], [0, 0, 1, 1], [], []>} : vector<128x128xbf16>, vector<128x128xbf16>, vector<128x128xf32> -> vector<128x128xf32>
    %228 = arith.addf %220, %227 : vector<128x128xf32>
    %229 = vector.extract_strided_slice %228 {offsets = [0, 0], sizes = [128, 32], strides = [1, 1]} : vector<128x128xf32> to vector<128x32xf32>
    %230 = arith.negf %229 : vector<128x32xf32>
    %231 = math.exp %230 : vector<128x32xf32>
    %cst_235 = arith.constant 1.000000e+00 : f32
    %232 = vector.broadcast %cst_235 : f32 to vector<128x32xf32>
    %233 = arith.addf %232, %231 : vector<128x32xf32>
    %234 = arith.divf %232, %233 : vector<128x32xf32>
    %235 = vector.extract_strided_slice %228 {offsets = [0, 32], sizes = [128, 32], strides = [1, 1]} : vector<128x128xf32> to vector<128x32xf32>
    %236 = arith.negf %235 : vector<128x32xf32>
    %237 = math.exp %236 : vector<128x32xf32>
    %cst_236 = arith.constant 1.000000e+00 : f32
    %238 = vector.broadcast %cst_236 : f32 to vector<128x32xf32>
    %239 = arith.addf %238, %237 : vector<128x32xf32>
    %240 = arith.divf %238, %239 : vector<128x32xf32>
    %241 = vector.extract_strided_slice %228 {offsets = [0, 64], sizes = [128, 32], strides = [1, 1]} : vector<128x128xf32> to vector<128x32xf32>
    %242 = vector.extract_strided_slice %228 {offsets = [0, 96], sizes = [128, 32], strides = [1, 1]} : vector<128x128xf32> to vector<128x32xf32>
    %243 = arith.mulf %234, %242 : vector<128x32xf32>
    %244 = arith.addf %241, %243 : vector<128x32xf32>
    %245 = math.tanh %244 : vector<128x32xf32>
    %c0_237 = arith.constant 0 : index
    %c8_238 = arith.constant 8 : index
    %c0_239 = arith.constant 0 : index
    %c0_240 = arith.constant 0 : index
    %246 = vector.load %arg2[%c0_237, %c8_238, %c0_239, %c0_240] : memref<2x16x16x32xf32, #tpu.memory_space<vmem>>, vector<1x8x16x32xf32>
    %247 = vector.shape_cast %246 : vector<1x8x16x32xf32> to vector<8x16x32xf32>
    %248 = vector.shape_cast %247 : vector<8x16x32xf32> to vector<128x32xf32>
    %249 = arith.mulf %240, %248 : vector<128x32xf32>
    %cst_241 = arith.constant 1.000000e+00 : f32
    %250 = vector.broadcast %cst_241 : f32 to vector<128x32xf32>
    %251 = arith.subf %250, %240 : vector<128x32xf32>
    %252 = arith.mulf %251, %245 : vector<128x32xf32>
    %253 = arith.addf %249, %252 : vector<128x32xf32>
    %254 = vector.shape_cast %253 : vector<128x32xf32> to vector<8x16x32xf32>
    %c0_242 = arith.constant 0 : index
    %c8_243 = arith.constant 8 : index
    %c0_244 = arith.constant 0 : index
    %c0_245 = arith.constant 0 : index
    %255 = vector.load %arg5[%c0_242, %c8_243, %c0_244, %c0_245] : memref<2x16x16x32xf32, #tpu.memory_space<vmem>>, vector<1x8x16x32xf32>
    %256 = vector.shape_cast %255 : vector<1x8x16x32xf32> to vector<8x16x32xf32>
    %257 = vector.shape_cast %254 : vector<8x16x32xf32> to vector<1x8x16x32xf32>
    tpu.vector_store %arg5[%c0_242, %c8_243, %c0_244, %c0_245], %257 {strides = array<i32>} : memref<2x16x16x32xf32, #tpu.memory_space<vmem>>, vector<1x8x16x32xf32>,
    %c0_246 = arith.constant 0 : index
    %c0_247 = arith.constant 0 : index
    %258 = vector.load %arg4[%c0_246, %c0_247] : memref<1x128xf32, #tpu.memory_space<vmem>>, vector<1x128xf32>
    %259 = vector.shape_cast %258 : vector<1x128xf32> to vector<1x128xf32>
    %260 = vector.broadcast %259 : vector<1x128xf32> to vector<128x128xf32>
    %c1_248 = arith.constant 1 : index
    %c0_249 = arith.constant 0 : index
    %c0_250 = arith.constant 0 : index
    %c0_251 = arith.constant 0 : index
    %261 = vector.load %arg6[%c1_248, %c0_249, %c0_250, %c0_251] : memref<2x18x18x128xf32, #tpu.memory_space<vmem>>, vector<1x8x16x128xf32>
    %262 = vector.shape_cast %261 : vector<1x8x16x128xf32> to vector<8x16x128xf32>
    %263 = vector.shape_cast %262 : vector<8x16x128xf32> to vector<128x128xf32>
    %264 = arith.truncf %263 : vector<128x128xf32> to vector<128x128xbf16>
    %c0_252 = arith.constant 0 : index
    %c0_253 = arith.constant 0 : index
    %c0_254 = arith.constant 0 : index
    %c0_255 = arith.constant 0 : index
    %265 = vector.load %arg3[%c0_252, %c0_253, %c0_254, %c0_255] : memref<3x3x128x128xbf16, #tpu.memory_space<vmem>>, vector<1x1x128x128xbf16>
    %266 = vector.shape_cast %265 : vector<1x1x128x128xbf16> to vector<128x128xbf16>
    %cst_256 = arith.constant dense<0.000000e+00> : vector<128x128xf32>
    %267 = tpu.matmul %264, %266, %cst_256 {dimension_numbers = #tpu.dot_dimension_numbers<[1], [0], [0], [1], [0, 0, 1, 1], [], []>} : vector<128x128xbf16>, vector<128x128xbf16>, vector<128x128xf32> -> vector<128x128xf32>
    %268 = arith.addf %260, %267 : vector<128x128xf32>
    %c1_257 = arith.constant 1 : index
    %c0_258 = arith.constant 0 : index
    %c1_259 = arith.constant 1 : index
    %c0_260 = arith.constant 0 : index
    %269 = vector.load %arg6[%c1_257, %c0_258, %c1_259, %c0_260] : memref<2x18x18x128xf32, #tpu.memory_space<vmem>>, vector<1x8x16x128xf32>
    %270 = vector.shape_cast %269 : vector<1x8x16x128xf32> to vector<8x16x128xf32>
    %271 = vector.shape_cast %270 : vector<8x16x128xf32> to vector<128x128xf32>
    %272 = arith.truncf %271 : vector<128x128xf32> to vector<128x128xbf16>
    %c0_261 = arith.constant 0 : index
    %c1_262 = arith.constant 1 : index
    %c0_263 = arith.constant 0 : index
    %c0_264 = arith.constant 0 : index
    %273 = vector.load %arg3[%c0_261, %c1_262, %c0_263, %c0_264] : memref<3x3x128x128xbf16, #tpu.memory_space<vmem>>, vector<1x1x128x128xbf16>
    %274 = vector.shape_cast %273 : vector<1x1x128x128xbf16> to vector<128x128xbf16>
    %cst_265 = arith.constant dense<0.000000e+00> : vector<128x128xf32>
    %275 = tpu.matmul %272, %274, %cst_265 {dimension_numbers = #tpu.dot_dimension_numbers<[1], [0], [0], [1], [0, 0, 1, 1], [], []>} : vector<128x128xbf16>, vector<128x128xbf16>, vector<128x128xf32> -> vector<128x128xf32>
    %276 = arith.addf %268, %275 : vector<128x128xf32>
    %c1_266 = arith.constant 1 : index
    %c0_267 = arith.constant 0 : index
    %c2_268 = arith.constant 2 : index
    %c0_269 = arith.constant 0 : index
    %277 = vector.load %arg6[%c1_266, %c0_267, %c2_268, %c0_269] : memref<2x18x18x128xf32, #tpu.memory_space<vmem>>, vector<1x8x16x128xf32>
    %278 = vector.shape_cast %277 : vector<1x8x16x128xf32> to vector<8x16x128xf32>
    %279 = vector.shape_cast %278 : vector<8x16x128xf32> to vector<128x128xf32>
    %280 = arith.truncf %279 : vector<128x128xf32> to vector<128x128xbf16>
    %c0_270 = arith.constant 0 : index
    %c2_271 = arith.constant 2 : index
    %c0_272 = arith.constant 0 : index
    %c0_273 = arith.constant 0 : index
    %281 = vector.load %arg3[%c0_270, %c2_271, %c0_272, %c0_273] : memref<3x3x128x128xbf16, #tpu.memory_space<vmem>>, vector<1x1x128x128xbf16>
    %282 = vector.shape_cast %281 : vector<1x1x128x128xbf16> to vector<128x128xbf16>
    %cst_274 = arith.constant dense<0.000000e+00> : vector<128x128xf32>
    %283 = tpu.matmul %280, %282, %cst_274 {dimension_numbers = #tpu.dot_dimension_numbers<[1], [0], [0], [1], [0, 0, 1, 1], [], []>} : vector<128x128xbf16>, vector<128x128xbf16>, vector<128x128xf32> -> vector<128x128xf32>
    %284 = arith.addf %276, %283 : vector<128x128xf32>
    %c1_275 = arith.constant 1 : index
    %c1_276 = arith.constant 1 : index
    %c0_277 = arith.constant 0 : index
    %c0_278 = arith.constant 0 : index
    %285 = vector.load %arg6[%c1_275, %c1_276, %c0_277, %c0_278] : memref<2x18x18x128xf32, #tpu.memory_space<vmem>>, vector<1x8x16x128xf32>
    %286 = vector.shape_cast %285 : vector<1x8x16x128xf32> to vector<8x16x128xf32>
    %287 = vector.shape_cast %286 : vector<8x16x128xf32> to vector<128x128xf32>
    %288 = arith.truncf %287 : vector<128x128xf32> to vector<128x128xbf16>
    %c1_279 = arith.constant 1 : index
    %c0_280 = arith.constant 0 : index
    %c0_281 = arith.constant 0 : index
    %c0_282 = arith.constant 0 : index
    %289 = vector.load %arg3[%c1_279, %c0_280, %c0_281, %c0_282] : memref<3x3x128x128xbf16, #tpu.memory_space<vmem>>, vector<1x1x128x128xbf16>
    %290 = vector.shape_cast %289 : vector<1x1x128x128xbf16> to vector<128x128xbf16>
    %cst_283 = arith.constant dense<0.000000e+00> : vector<128x128xf32>
    %291 = tpu.matmul %288, %290, %cst_283 {dimension_numbers = #tpu.dot_dimension_numbers<[1], [0], [0], [1], [0, 0, 1, 1], [], []>} : vector<128x128xbf16>, vector<128x128xbf16>, vector<128x128xf32> -> vector<128x128xf32>
    %292 = arith.addf %284, %291 : vector<128x128xf32>
    %c1_284 = arith.constant 1 : index
    %c1_285 = arith.constant 1 : index
    %c1_286 = arith.constant 1 : index
    %c0_287 = arith.constant 0 : index
    %293 = vector.load %arg6[%c1_284, %c1_285, %c1_286, %c0_287] : memref<2x18x18x128xf32, #tpu.memory_space<vmem>>, vector<1x8x16x128xf32>
    %294 = vector.shape_cast %293 : vector<1x8x16x128xf32> to vector<8x16x128xf32>
    %295 = vector.shape_cast %294 : vector<8x16x128xf32> to vector<128x128xf32>
    %296 = arith.truncf %295 : vector<128x128xf32> to vector<128x128xbf16>
    %c1_288 = arith.constant 1 : index
    %c1_289 = arith.constant 1 : index
    %c0_290 = arith.constant 0 : index
    %c0_291 = arith.constant 0 : index
    %297 = vector.load %arg3[%c1_288, %c1_289, %c0_290, %c0_291] : memref<3x3x128x128xbf16, #tpu.memory_space<vmem>>, vector<1x1x128x128xbf16>
    %298 = vector.shape_cast %297 : vector<1x1x128x128xbf16> to vector<128x128xbf16>
    %cst_292 = arith.constant dense<0.000000e+00> : vector<128x128xf32>
    %299 = tpu.matmul %296, %298, %cst_292 {dimension_numbers = #tpu.dot_dimension_numbers<[1], [0], [0], [1], [0, 0, 1, 1], [], []>} : vector<128x128xbf16>, vector<128x128xbf16>, vector<128x128xf32> -> vector<128x128xf32>
    %300 = arith.addf %292, %299 : vector<128x128xf32>
    %c1_293 = arith.constant 1 : index
    %c1_294 = arith.constant 1 : index
    %c2_295 = arith.constant 2 : index
    %c0_296 = arith.constant 0 : index
    %301 = vector.load %arg6[%c1_293, %c1_294, %c2_295, %c0_296] : memref<2x18x18x128xf32, #tpu.memory_space<vmem>>, vector<1x8x16x128xf32>
    %302 = vector.shape_cast %301 : vector<1x8x16x128xf32> to vector<8x16x128xf32>
    %303 = vector.shape_cast %302 : vector<8x16x128xf32> to vector<128x128xf32>
    %304 = arith.truncf %303 : vector<128x128xf32> to vector<128x128xbf16>
    %c1_297 = arith.constant 1 : index
    %c2_298 = arith.constant 2 : index
    %c0_299 = arith.constant 0 : index
    %c0_300 = arith.constant 0 : index
    %305 = vector.load %arg3[%c1_297, %c2_298, %c0_299, %c0_300] : memref<3x3x128x128xbf16, #tpu.memory_space<vmem>>, vector<1x1x128x128xbf16>
    %306 = vector.shape_cast %305 : vector<1x1x128x128xbf16> to vector<128x128xbf16>
    %cst_301 = arith.constant dense<0.000000e+00> : vector<128x128xf32>
    %307 = tpu.matmul %304, %306, %cst_301 {dimension_numbers = #tpu.dot_dimension_numbers<[1], [0], [0], [1], [0, 0, 1, 1], [], []>} : vector<128x128xbf16>, vector<128x128xbf16>, vector<128x128xf32> -> vector<128x128xf32>
    %308 = arith.addf %300, %307 : vector<128x128xf32>
    %c1_302 = arith.constant 1 : index
    %c2_303 = arith.constant 2 : index
    %c0_304 = arith.constant 0 : index
    %c0_305 = arith.constant 0 : index
    %309 = vector.load %arg6[%c1_302, %c2_303, %c0_304, %c0_305] : memref<2x18x18x128xf32, #tpu.memory_space<vmem>>, vector<1x8x16x128xf32>
    %310 = vector.shape_cast %309 : vector<1x8x16x128xf32> to vector<8x16x128xf32>
    %311 = vector.shape_cast %310 : vector<8x16x128xf32> to vector<128x128xf32>
    %312 = arith.truncf %311 : vector<128x128xf32> to vector<128x128xbf16>
    %c2_306 = arith.constant 2 : index
    %c0_307 = arith.constant 0 : index
    %c0_308 = arith.constant 0 : index
    %c0_309 = arith.constant 0 : index
    %313 = vector.load %arg3[%c2_306, %c0_307, %c0_308, %c0_309] : memref<3x3x128x128xbf16, #tpu.memory_space<vmem>>, vector<1x1x128x128xbf16>
    %314 = vector.shape_cast %313 : vector<1x1x128x128xbf16> to vector<128x128xbf16>
    %cst_310 = arith.constant dense<0.000000e+00> : vector<128x128xf32>
    %315 = tpu.matmul %312, %314, %cst_310 {dimension_numbers = #tpu.dot_dimension_numbers<[1], [0], [0], [1], [0, 0, 1, 1], [], []>} : vector<128x128xbf16>, vector<128x128xbf16>, vector<128x128xf32> -> vector<128x128xf32>
    %316 = arith.addf %308, %315 : vector<128x128xf32>
    %c1_311 = arith.constant 1 : index
    %c2_312 = arith.constant 2 : index
    %c1_313 = arith.constant 1 : index
    %c0_314 = arith.constant 0 : index
    %317 = vector.load %arg6[%c1_311, %c2_312, %c1_313, %c0_314] : memref<2x18x18x128xf32, #tpu.memory_space<vmem>>, vector<1x8x16x128xf32>
    %318 = vector.shape_cast %317 : vector<1x8x16x128xf32> to vector<8x16x128xf32>
    %319 = vector.shape_cast %318 : vector<8x16x128xf32> to vector<128x128xf32>
    %320 = arith.truncf %319 : vector<128x128xf32> to vector<128x128xbf16>
    %c2_315 = arith.constant 2 : index
    %c1_316 = arith.constant 1 : index
    %c0_317 = arith.constant 0 : index
    %c0_318 = arith.constant 0 : index
    %321 = vector.load %arg3[%c2_315, %c1_316, %c0_317, %c0_318] : memref<3x3x128x128xbf16, #tpu.memory_space<vmem>>, vector<1x1x128x128xbf16>
    %322 = vector.shape_cast %321 : vector<1x1x128x128xbf16> to vector<128x128xbf16>
    %cst_319 = arith.constant dense<0.000000e+00> : vector<128x128xf32>
    %323 = tpu.matmul %320, %322, %cst_319 {dimension_numbers = #tpu.dot_dimension_numbers<[1], [0], [0], [1], [0, 0, 1, 1], [], []>} : vector<128x128xbf16>, vector<128x128xbf16>, vector<128x128xf32> -> vector<128x128xf32>
    %324 = arith.addf %316, %323 : vector<128x128xf32>
    %c1_320 = arith.constant 1 : index
    %c2_321 = arith.constant 2 : index
    %c2_322 = arith.constant 2 : index
    %c0_323 = arith.constant 0 : index
    %325 = vector.load %arg6[%c1_320, %c2_321, %c2_322, %c0_323] : memref<2x18x18x128xf32, #tpu.memory_space<vmem>>, vector<1x8x16x128xf32>
    %326 = vector.shape_cast %325 : vector<1x8x16x128xf32> to vector<8x16x128xf32>
    %327 = vector.shape_cast %326 : vector<8x16x128xf32> to vector<128x128xf32>
    %328 = arith.truncf %327 : vector<128x128xf32> to vector<128x128xbf16>
    %c2_324 = arith.constant 2 : index
    %c2_325 = arith.constant 2 : index
    %c0_326 = arith.constant 0 : index
    %c0_327 = arith.constant 0 : index
    %329 = vector.load %arg3[%c2_324, %c2_325, %c0_326, %c0_327] : memref<3x3x128x128xbf16, #tpu.memory_space<vmem>>, vector<1x1x128x128xbf16>
    %330 = vector.shape_cast %329 : vector<1x1x128x128xbf16> to vector<128x128xbf16>
    %cst_328 = arith.constant dense<0.000000e+00> : vector<128x128xf32>
    %331 = tpu.matmul %328, %330, %cst_328 {dimension_numbers = #tpu.dot_dimension_numbers<[1], [0], [0], [1], [0, 0, 1, 1], [], []>} : vector<128x128xbf16>, vector<128x128xbf16>, vector<128x128xf32> -> vector<128x128xf32>
    %332 = arith.addf %324, %331 : vector<128x128xf32>
    %333 = vector.extract_strided_slice %332 {offsets = [0, 0], sizes = [128, 32], strides = [1, 1]} : vector<128x128xf32> to vector<128x32xf32>
    %334 = arith.negf %333 : vector<128x32xf32>
    %335 = math.exp %334 : vector<128x32xf32>
    %cst_329 = arith.constant 1.000000e+00 : f32
    %336 = vector.broadcast %cst_329 : f32 to vector<128x32xf32>
    %337 = arith.addf %336, %335 : vector<128x32xf32>
    %338 = arith.divf %336, %337 : vector<128x32xf32>
    %339 = vector.extract_strided_slice %332 {offsets = [0, 32], sizes = [128, 32], strides = [1, 1]} : vector<128x128xf32> to vector<128x32xf32>
    %340 = arith.negf %339 : vector<128x32xf32>
    %341 = math.exp %340 : vector<128x32xf32>
    %cst_330 = arith.constant 1.000000e+00 : f32
    %342 = vector.broadcast %cst_330 : f32 to vector<128x32xf32>
    %343 = arith.addf %342, %341 : vector<128x32xf32>
    %344 = arith.divf %342, %343 : vector<128x32xf32>
    %345 = vector.extract_strided_slice %332 {offsets = [0, 64], sizes = [128, 32], strides = [1, 1]} : vector<128x128xf32> to vector<128x32xf32>
    %346 = vector.extract_strided_slice %332 {offsets = [0, 96], sizes = [128, 32], strides = [1, 1]} : vector<128x128xf32> to vector<128x32xf32>
    %347 = arith.mulf %338, %346 : vector<128x32xf32>
    %348 = arith.addf %345, %347 : vector<128x32xf32>
    %349 = math.tanh %348 : vector<128x32xf32>
    %c1_331 = arith.constant 1 : index
    %c0_332 = arith.constant 0 : index
    %c0_333 = arith.constant 0 : index
    %c0_334 = arith.constant 0 : index
    %350 = vector.load %arg2[%c1_331, %c0_332, %c0_333, %c0_334] : memref<2x16x16x32xf32, #tpu.memory_space<vmem>>, vector<1x8x16x32xf32>
    %351 = vector.shape_cast %350 : vector<1x8x16x32xf32> to vector<8x16x32xf32>
    %352 = vector.shape_cast %351 : vector<8x16x32xf32> to vector<128x32xf32>
    %353 = arith.mulf %344, %352 : vector<128x32xf32>
    %cst_335 = arith.constant 1.000000e+00 : f32
    %354 = vector.broadcast %cst_335 : f32 to vector<128x32xf32>
    %355 = arith.subf %354, %344 : vector<128x32xf32>
    %356 = arith.mulf %355, %349 : vector<128x32xf32>
    %357 = arith.addf %353, %356 : vector<128x32xf32>
    %358 = vector.shape_cast %357 : vector<128x32xf32> to vector<8x16x32xf32>
    %c1_336 = arith.constant 1 : index
    %c0_337 = arith.constant 0 : index
    %c0_338 = arith.constant 0 : index
    %c0_339 = arith.constant 0 : index
    %359 = vector.load %arg5[%c1_336, %c0_337, %c0_338, %c0_339] : memref<2x16x16x32xf32, #tpu.memory_space<vmem>>, vector<1x8x16x32xf32>
    %360 = vector.shape_cast %359 : vector<1x8x16x32xf32> to vector<8x16x32xf32>
    %361 = vector.shape_cast %358 : vector<8x16x32xf32> to vector<1x8x16x32xf32>
    tpu.vector_store %arg5[%c1_336, %c0_337, %c0_338, %c0_339], %361 {strides = array<i32>} : memref<2x16x16x32xf32, #tpu.memory_space<vmem>>, vector<1x8x16x32xf32>,
    %c0_340 = arith.constant 0 : index
    %c0_341 = arith.constant 0 : index
    %362 = vector.load %arg4[%c0_340, %c0_341] : memref<1x128xf32, #tpu.memory_space<vmem>>, vector<1x128xf32>
    %363 = vector.shape_cast %362 : vector<1x128xf32> to vector<1x128xf32>
    %364 = vector.broadcast %363 : vector<1x128xf32> to vector<128x128xf32>
    %c1_342 = arith.constant 1 : index
    %c8_343 = arith.constant 8 : index
    %c0_344 = arith.constant 0 : index
    %c0_345 = arith.constant 0 : index
    %365 = vector.load %arg6[%c1_342, %c8_343, %c0_344, %c0_345] : memref<2x18x18x128xf32, #tpu.memory_space<vmem>>, vector<1x8x16x128xf32>
    %366 = vector.shape_cast %365 : vector<1x8x16x128xf32> to vector<8x16x128xf32>
    %367 = vector.shape_cast %366 : vector<8x16x128xf32> to vector<128x128xf32>
    %368 = arith.truncf %367 : vector<128x128xf32> to vector<128x128xbf16>
    %c0_346 = arith.constant 0 : index
    %c0_347 = arith.constant 0 : index
    %c0_348 = arith.constant 0 : index
    %c0_349 = arith.constant 0 : index
    %369 = vector.load %arg3[%c0_346, %c0_347, %c0_348, %c0_349] : memref<3x3x128x128xbf16, #tpu.memory_space<vmem>>, vector<1x1x128x128xbf16>
    %370 = vector.shape_cast %369 : vector<1x1x128x128xbf16> to vector<128x128xbf16>
    %cst_350 = arith.constant dense<0.000000e+00> : vector<128x128xf32>
    %371 = tpu.matmul %368, %370, %cst_350 {dimension_numbers = #tpu.dot_dimension_numbers<[1], [0], [0], [1], [0, 0, 1, 1], [], []>} : vector<128x128xbf16>, vector<128x128xbf16>, vector<128x128xf32> -> vector<128x128xf32>
    %372 = arith.addf %364, %371 : vector<128x128xf32>
    %c1_351 = arith.constant 1 : index
    %c8_352 = arith.constant 8 : index
    %c1_353 = arith.constant 1 : index
    %c0_354 = arith.constant 0 : index
    %373 = vector.load %arg6[%c1_351, %c8_352, %c1_353, %c0_354] : memref<2x18x18x128xf32, #tpu.memory_space<vmem>>, vector<1x8x16x128xf32>
    %374 = vector.shape_cast %373 : vector<1x8x16x128xf32> to vector<8x16x128xf32>
    %375 = vector.shape_cast %374 : vector<8x16x128xf32> to vector<128x128xf32>
    %376 = arith.truncf %375 : vector<128x128xf32> to vector<128x128xbf16>
    %c0_355 = arith.constant 0 : index
    %c1_356 = arith.constant 1 : index
    %c0_357 = arith.constant 0 : index
    %c0_358 = arith.constant 0 : index
    %377 = vector.load %arg3[%c0_355, %c1_356, %c0_357, %c0_358] : memref<3x3x128x128xbf16, #tpu.memory_space<vmem>>, vector<1x1x128x128xbf16>
    %378 = vector.shape_cast %377 : vector<1x1x128x128xbf16> to vector<128x128xbf16>
    %cst_359 = arith.constant dense<0.000000e+00> : vector<128x128xf32>
    %379 = tpu.matmul %376, %378, %cst_359 {dimension_numbers = #tpu.dot_dimension_numbers<[1], [0], [0], [1], [0, 0, 1, 1], [], []>} : vector<128x128xbf16>, vector<128x128xbf16>, vector<128x128xf32> -> vector<128x128xf32>
    %380 = arith.addf %372, %379 : vector<128x128xf32>
    %c1_360 = arith.constant 1 : index
    %c8_361 = arith.constant 8 : index
    %c2_362 = arith.constant 2 : index
    %c0_363 = arith.constant 0 : index
    %381 = vector.load %arg6[%c1_360, %c8_361, %c2_362, %c0_363] : memref<2x18x18x128xf32, #tpu.memory_space<vmem>>, vector<1x8x16x128xf32>
    %382 = vector.shape_cast %381 : vector<1x8x16x128xf32> to vector<8x16x128xf32>
    %383 = vector.shape_cast %382 : vector<8x16x128xf32> to vector<128x128xf32>
    %384 = arith.truncf %383 : vector<128x128xf32> to vector<128x128xbf16>
    %c0_364 = arith.constant 0 : index
    %c2_365 = arith.constant 2 : index
    %c0_366 = arith.constant 0 : index
    %c0_367 = arith.constant 0 : index
    %385 = vector.load %arg3[%c0_364, %c2_365, %c0_366, %c0_367] : memref<3x3x128x128xbf16, #tpu.memory_space<vmem>>, vector<1x1x128x128xbf16>
    %386 = vector.shape_cast %385 : vector<1x1x128x128xbf16> to vector<128x128xbf16>
    %cst_368 = arith.constant dense<0.000000e+00> : vector<128x128xf32>
    %387 = tpu.matmul %384, %386, %cst_368 {dimension_numbers = #tpu.dot_dimension_numbers<[1], [0], [0], [1], [0, 0, 1, 1], [], []>} : vector<128x128xbf16>, vector<128x128xbf16>, vector<128x128xf32> -> vector<128x128xf32>
    %388 = arith.addf %380, %387 : vector<128x128xf32>
    %c1_369 = arith.constant 1 : index
    %c9_370 = arith.constant 9 : index
    %c0_371 = arith.constant 0 : index
    %c0_372 = arith.constant 0 : index
    %389 = vector.load %arg6[%c1_369, %c9_370, %c0_371, %c0_372] : memref<2x18x18x128xf32, #tpu.memory_space<vmem>>, vector<1x8x16x128xf32>
    %390 = vector.shape_cast %389 : vector<1x8x16x128xf32> to vector<8x16x128xf32>
    %391 = vector.shape_cast %390 : vector<8x16x128xf32> to vector<128x128xf32>
    %392 = arith.truncf %391 : vector<128x128xf32> to vector<128x128xbf16>
    %c1_373 = arith.constant 1 : index
    %c0_374 = arith.constant 0 : index
    %c0_375 = arith.constant 0 : index
    %c0_376 = arith.constant 0 : index
    %393 = vector.load %arg3[%c1_373, %c0_374, %c0_375, %c0_376] : memref<3x3x128x128xbf16, #tpu.memory_space<vmem>>, vector<1x1x128x128xbf16>
    %394 = vector.shape_cast %393 : vector<1x1x128x128xbf16> to vector<128x128xbf16>
    %cst_377 = arith.constant dense<0.000000e+00> : vector<128x128xf32>
    %395 = tpu.matmul %392, %394, %cst_377 {dimension_numbers = #tpu.dot_dimension_numbers<[1], [0], [0], [1], [0, 0, 1, 1], [], []>} : vector<128x128xbf16>, vector<128x128xbf16>, vector<128x128xf32> -> vector<128x128xf32>
    %396 = arith.addf %388, %395 : vector<128x128xf32>
    %c1_378 = arith.constant 1 : index
    %c9_379 = arith.constant 9 : index
    %c1_380 = arith.constant 1 : index
    %c0_381 = arith.constant 0 : index
    %397 = vector.load %arg6[%c1_378, %c9_379, %c1_380, %c0_381] : memref<2x18x18x128xf32, #tpu.memory_space<vmem>>, vector<1x8x16x128xf32>
    %398 = vector.shape_cast %397 : vector<1x8x16x128xf32> to vector<8x16x128xf32>
    %399 = vector.shape_cast %398 : vector<8x16x128xf32> to vector<128x128xf32>
    %400 = arith.truncf %399 : vector<128x128xf32> to vector<128x128xbf16>
    %c1_382 = arith.constant 1 : index
    %c1_383 = arith.constant 1 : index
    %c0_384 = arith.constant 0 : index
    %c0_385 = arith.constant 0 : index
    %401 = vector.load %arg3[%c1_382, %c1_383, %c0_384, %c0_385] : memref<3x3x128x128xbf16, #tpu.memory_space<vmem>>, vector<1x1x128x128xbf16>
    %402 = vector.shape_cast %401 : vector<1x1x128x128xbf16> to vector<128x128xbf16>
    %cst_386 = arith.constant dense<0.000000e+00> : vector<128x128xf32>
    %403 = tpu.matmul %400, %402, %cst_386 {dimension_numbers = #tpu.dot_dimension_numbers<[1], [0], [0], [1], [0, 0, 1, 1], [], []>} : vector<128x128xbf16>, vector<128x128xbf16>, vector<128x128xf32> -> vector<128x128xf32>
    %404 = arith.addf %396, %403 : vector<128x128xf32>
    %c1_387 = arith.constant 1 : index
    %c9_388 = arith.constant 9 : index
    %c2_389 = arith.constant 2 : index
    %c0_390 = arith.constant 0 : index
    %405 = vector.load %arg6[%c1_387, %c9_388, %c2_389, %c0_390] : memref<2x18x18x128xf32, #tpu.memory_space<vmem>>, vector<1x8x16x128xf32>
    %406 = vector.shape_cast %405 : vector<1x8x16x128xf32> to vector<8x16x128xf32>
    %407 = vector.shape_cast %406 : vector<8x16x128xf32> to vector<128x128xf32>
    %408 = arith.truncf %407 : vector<128x128xf32> to vector<128x128xbf16>
    %c1_391 = arith.constant 1 : index
    %c2_392 = arith.constant 2 : index
    %c0_393 = arith.constant 0 : index
    %c0_394 = arith.constant 0 : index
    %409 = vector.load %arg3[%c1_391, %c2_392, %c0_393, %c0_394] : memref<3x3x128x128xbf16, #tpu.memory_space<vmem>>, vector<1x1x128x128xbf16>
    %410 = vector.shape_cast %409 : vector<1x1x128x128xbf16> to vector<128x128xbf16>
    %cst_395 = arith.constant dense<0.000000e+00> : vector<128x128xf32>
    %411 = tpu.matmul %408, %410, %cst_395 {dimension_numbers = #tpu.dot_dimension_numbers<[1], [0], [0], [1], [0, 0, 1, 1], [], []>} : vector<128x128xbf16>, vector<128x128xbf16>, vector<128x128xf32> -> vector<128x128xf32>
    %412 = arith.addf %404, %411 : vector<128x128xf32>
    %c1_396 = arith.constant 1 : index
    %c10_397 = arith.constant 10 : index
    %c0_398 = arith.constant 0 : index
    %c0_399 = arith.constant 0 : index
    %413 = vector.load %arg6[%c1_396, %c10_397, %c0_398, %c0_399] : memref<2x18x18x128xf32, #tpu.memory_space<vmem>>, vector<1x8x16x128xf32>
    %414 = vector.shape_cast %413 : vector<1x8x16x128xf32> to vector<8x16x128xf32>
    %415 = vector.shape_cast %414 : vector<8x16x128xf32> to vector<128x128xf32>
    %416 = arith.truncf %415 : vector<128x128xf32> to vector<128x128xbf16>
    %c2_400 = arith.constant 2 : index
    %c0_401 = arith.constant 0 : index
    %c0_402 = arith.constant 0 : index
    %c0_403 = arith.constant 0 : index
    %417 = vector.load %arg3[%c2_400, %c0_401, %c0_402, %c0_403] : memref<3x3x128x128xbf16, #tpu.memory_space<vmem>>, vector<1x1x128x128xbf16>
    %418 = vector.shape_cast %417 : vector<1x1x128x128xbf16> to vector<128x128xbf16>
    %cst_404 = arith.constant dense<0.000000e+00> : vector<128x128xf32>
    %419 = tpu.matmul %416, %418, %cst_404 {dimension_numbers = #tpu.dot_dimension_numbers<[1], [0], [0], [1], [0, 0, 1, 1], [], []>} : vector<128x128xbf16>, vector<128x128xbf16>, vector<128x128xf32> -> vector<128x128xf32>
    %420 = arith.addf %412, %419 : vector<128x128xf32>
    %c1_405 = arith.constant 1 : index
    %c10_406 = arith.constant 10 : index
    %c1_407 = arith.constant 1 : index
    %c0_408 = arith.constant 0 : index
    %421 = vector.load %arg6[%c1_405, %c10_406, %c1_407, %c0_408] : memref<2x18x18x128xf32, #tpu.memory_space<vmem>>, vector<1x8x16x128xf32>
    %422 = vector.shape_cast %421 : vector<1x8x16x128xf32> to vector<8x16x128xf32>
    %423 = vector.shape_cast %422 : vector<8x16x128xf32> to vector<128x128xf32>
    %424 = arith.truncf %423 : vector<128x128xf32> to vector<128x128xbf16>
    %c2_409 = arith.constant 2 : index
    %c1_410 = arith.constant 1 : index
    %c0_411 = arith.constant 0 : index
    %c0_412 = arith.constant 0 : index
    %425 = vector.load %arg3[%c2_409, %c1_410, %c0_411, %c0_412] : memref<3x3x128x128xbf16, #tpu.memory_space<vmem>>, vector<1x1x128x128xbf16>
    %426 = vector.shape_cast %425 : vector<1x1x128x128xbf16> to vector<128x128xbf16>
    %cst_413 = arith.constant dense<0.000000e+00> : vector<128x128xf32>
    %427 = tpu.matmul %424, %426, %cst_413 {dimension_numbers = #tpu.dot_dimension_numbers<[1], [0], [0], [1], [0, 0, 1, 1], [], []>} : vector<128x128xbf16>, vector<128x128xbf16>, vector<128x128xf32> -> vector<128x128xf32>
    %428 = arith.addf %420, %427 : vector<128x128xf32>
    %c1_414 = arith.constant 1 : index
    %c10_415 = arith.constant 10 : index
    %c2_416 = arith.constant 2 : index
    %c0_417 = arith.constant 0 : index
    %429 = vector.load %arg6[%c1_414, %c10_415, %c2_416, %c0_417] : memref<2x18x18x128xf32, #tpu.memory_space<vmem>>, vector<1x8x16x128xf32>
    %430 = vector.shape_cast %429 : vector<1x8x16x128xf32> to vector<8x16x128xf32>
    %431 = vector.shape_cast %430 : vector<8x16x128xf32> to vector<128x128xf32>
    %432 = arith.truncf %431 : vector<128x128xf32> to vector<128x128xbf16>
    %c2_418 = arith.constant 2 : index
    %c2_419 = arith.constant 2 : index
    %c0_420 = arith.constant 0 : index
    %c0_421 = arith.constant 0 : index
    %433 = vector.load %arg3[%c2_418, %c2_419, %c0_420, %c0_421] : memref<3x3x128x128xbf16, #tpu.memory_space<vmem>>, vector<1x1x128x128xbf16>
    %434 = vector.shape_cast %433 : vector<1x1x128x128xbf16> to vector<128x128xbf16>
    %cst_422 = arith.constant dense<0.000000e+00> : vector<128x128xf32>
    %435 = tpu.matmul %432, %434, %cst_422 {dimension_numbers = #tpu.dot_dimension_numbers<[1], [0], [0], [1], [0, 0, 1, 1], [], []>} : vector<128x128xbf16>, vector<128x128xbf16>, vector<128x128xf32> -> vector<128x128xf32>
    %436 = arith.addf %428, %435 : vector<128x128xf32>
    %437 = vector.extract_strided_slice %436 {offsets = [0, 0], sizes = [128, 32], strides = [1, 1]} : vector<128x128xf32> to vector<128x32xf32>
    %438 = arith.negf %437 : vector<128x32xf32>
    %439 = math.exp %438 : vector<128x32xf32>
    %cst_423 = arith.constant 1.000000e+00 : f32
    %440 = vector.broadcast %cst_423 : f32 to vector<128x32xf32>
    %441 = arith.addf %440, %439 : vector<128x32xf32>
    %442 = arith.divf %440, %441 : vector<128x32xf32>
    %443 = vector.extract_strided_slice %436 {offsets = [0, 32], sizes = [128, 32], strides = [1, 1]} : vector<128x128xf32> to vector<128x32xf32>
    %444 = arith.negf %443 : vector<128x32xf32>
    %445 = math.exp %444 : vector<128x32xf32>
    %cst_424 = arith.constant 1.000000e+00 : f32
    %446 = vector.broadcast %cst_424 : f32 to vector<128x32xf32>
    %447 = arith.addf %446, %445 : vector<128x32xf32>
    %448 = arith.divf %446, %447 : vector<128x32xf32>
    %449 = vector.extract_strided_slice %436 {offsets = [0, 64], sizes = [128, 32], strides = [1, 1]} : vector<128x128xf32> to vector<128x32xf32>
    %450 = vector.extract_strided_slice %436 {offsets = [0, 96], sizes = [128, 32], strides = [1, 1]} : vector<128x128xf32> to vector<128x32xf32>
    %451 = arith.mulf %442, %450 : vector<128x32xf32>
    %452 = arith.addf %449, %451 : vector<128x32xf32>
    %453 = math.tanh %452 : vector<128x32xf32>
    %c1_425 = arith.constant 1 : index
    %c8_426 = arith.constant 8 : index
    %c0_427 = arith.constant 0 : index
    %c0_428 = arith.constant 0 : index
    %454 = vector.load %arg2[%c1_425, %c8_426, %c0_427, %c0_428] : memref<2x16x16x32xf32, #tpu.memory_space<vmem>>, vector<1x8x16x32xf32>
    %455 = vector.shape_cast %454 : vector<1x8x16x32xf32> to vector<8x16x32xf32>
    %456 = vector.shape_cast %455 : vector<8x16x32xf32> to vector<128x32xf32>
    %457 = arith.mulf %448, %456 : vector<128x32xf32>
    %cst_429 = arith.constant 1.000000e+00 : f32
    %458 = vector.broadcast %cst_429 : f32 to vector<128x32xf32>
    %459 = arith.subf %458, %448 : vector<128x32xf32>
    %460 = arith.mulf %459, %453 : vector<128x32xf32>
    %461 = arith.addf %457, %460 : vector<128x32xf32>
    %462 = vector.shape_cast %461 : vector<128x32xf32> to vector<8x16x32xf32>
    %c1_430 = arith.constant 1 : index
    %c8_431 = arith.constant 8 : index
    %c0_432 = arith.constant 0 : index
    %c0_433 = arith.constant 0 : index
    %463 = vector.load %arg5[%c1_430, %c8_431, %c0_432, %c0_433] : memref<2x16x16x32xf32, #tpu.memory_space<vmem>>, vector<1x8x16x32xf32>
    %464 = vector.shape_cast %463 : vector<1x8x16x32xf32> to vector<8x16x32xf32>
    %465 = vector.shape_cast %462 : vector<8x16x32xf32> to vector<1x8x16x32xf32>
    tpu.vector_store %arg5[%c1_430, %c8_431, %c0_432, %c0_433], %465 {strides = array<i32>} : memref<2x16x16x32xf32, #tpu.memory_space<vmem>>, vector<1x8x16x32xf32>,
    return
  }
  func.func @transform_0(%arg0: i32) -> (i32, i32, i32, i32) {
    %c0_i32 = arith.constant 0 : i32
    %c0_i32_0 = arith.constant 0 : i32
    %c0_i32_1 = arith.constant 0 : i32
    %c0_i32_2 = arith.constant 0 : i32
    return %arg0, %c0_i32, %c0_i32_0, %c0_i32_1 : i32, i32, i32, i32
  }
  func.func @transform_1(%arg0: i32) -> (i32, i32, i32, i32) {
    %c0_i32 = arith.constant 0 : i32
    %c0_i32_0 = arith.constant 0 : i32
    %c0_i32_1 = arith.constant 0 : i32
    %c0_i32_2 = arith.constant 0 : i32
    return %arg0, %c0_i32, %c0_i32_0, %c0_i32_1 : i32, i32, i32, i32
  }
  func.func @transform_2(%arg0: i32) -> (i32, i32, i32, i32) {
    %c0_i32 = arith.constant 0 : i32
    %c0_i32_0 = arith.constant 0 : i32
    %c0_i32_1 = arith.constant 0 : i32
    %c0_i32_2 = arith.constant 0 : i32
    %c0_i32_3 = arith.constant 0 : i32
    return %c0_i32, %c0_i32_0, %c0_i32_1, %c0_i32_2 : i32, i32, i32, i32
  }
  func.func @transform_3(%arg0: i32) -> (i32, i32) {
    %c0_i32 = arith.constant 0 : i32
    %c0_i32_0 = arith.constant 0 : i32
    %c0_i32_1 = arith.constant 0 : i32
    return %c0_i32, %c0_i32_0 : i32, i32
  }
  func.func @transform_4(%arg0: i32) -> (i32, i32, i32, i32) {
    %c0_i32 = arith.constant 0 : i32
    %c0_i32_0 = arith.constant 0 : i32
    %c0_i32_1 = arith.constant 0 : i32
    %c0_i32_2 = arith.constant 0 : i32
    return %arg0, %c0_i32, %c0_i32_0, %c0_i32_1 : i32, i32, i32, i32
  }
}

</mosaic_0001>

<llo_original>
// kernel: conv2d_gru_cell.1
$region0: #{conv2d_gru_cell.1}
  #allocation0 [shape = 'u32[]', space=smem, size = 0x4, offset = 0x4, fixed_abs, tag = 'smem constant byte address 0x4 - core index']
  #allocation1 [shape = 'u32[72,128]{1,0:T(1,128)}', space=vmem, size = 0x9000, scoped, tag = 'internal scratch']
  #allocation2 [shape = 'f32[2,18,18,128]{3,2,1,0:T(8,128)}', space=vmem, size = 0x6c000, scoped, tag = 'scratch operand']
  %s0 = inlined_call_operand.vmem [shape: f32[2,16,16,64], index: 0, kind: input, shape index: {}]
  %s1 = inlined_call_operand.vmem [shape: f32[2,16,16,32], index: 1, kind: input, shape index: {}]
  %s2 = inlined_call_operand.vmem [shape: bf16[3,3,128,128], index: 2, kind: input, shape index: {}]
  %s3 = inlined_call_operand.vmem [shape: f32[1,128], index: 3, kind: input, shape index: {}]
  %s4 = inlined_call_operand.hbm [shape: f32[2,16,16,32], index: 4, kind: output, shape index: {}]
  %s5 = sld [smem:[#allocation0]]
  $region26: #{conv2d_gru_cell.1} parent=0
    _
  %s7 = ssub.s32 1, %s5
  %s8 = scalar_select 0, %s7, %s5
  $region1: #{conv2d_gru_cell.1} parent=0
    #allocation3 [shape = 'u8[262144]{0}', space=vmem, size = 0x40000, scoped, tag = 'output window, operand 0, single buffered']
    #allocation4 [shape = 's32[1]{0}', space=sflag, size = 0x4, scoped, tag = 'scoped memory for conv2d_gru_cell.1']
    %9 = vsyncpa [#allocation4], 0
    // Predicated region
    $region2: #{conv2d_gru_cell.1} parent=1 // pred_check
      _
    $region3: #{conv2d_gru_cell.1} parent=1 // pred_check_branch
      %11 = sbr.rel (0) target = $region5
    $region4: #{conv2d_gru_cell.1} parent=1 // pred_region
      _
    $region5: #{conv2d_gru_cell.1} parent=1 // pred_fallthru
      _
    // Predicated region
    $region6: #{conv2d_gru_cell.1} parent=1 // pred_check
      _
    $region7: #{conv2d_gru_cell.1} parent=1 // pred_check_branch
      %13 = sbr.rel (0) target = $region9
    $region8: #{conv2d_gru_cell.1} parent=1 // pred_region
      _
    $region9: #{conv2d_gru_cell.1} parent=1 // pred_fallthru
      _
    // Predicated region
    $region10: #{conv2d_gru_cell.1} parent=1 // pred_check
      _
    $region11: #{conv2d_gru_cell.1} parent=1 // pred_check_branch
      %15 = sbr.rel (0) target = $region13
    $region12: #{conv2d_gru_cell.1} parent=1 // pred_region
      _
    $region13: #{conv2d_gru_cell.1} parent=1 // pred_fallthru
      _
    // Predicated region
    $region14: #{conv2d_gru_cell.1} parent=1 // pred_check
      _
    $region15: #{conv2d_gru_cell.1} parent=1 // pred_check_branch
      %17 = sbr.rel (0) target = $region17
    $region16: #{conv2d_gru_cell.1} parent=1 // pred_region
      _
    $region17: #{conv2d_gru_cell.1} parent=1 // pred_fallthru
      _
    %18 = vst [vmem:[#allocation2] sm:$0xff] 0.0
    %19 = vst [vmem:[#allocation2 + $0x8] sm:$0xff] 0.0
    %20 = vst [vmem:[#allocation2 + $0x10] sm:$0x3] 0.0
    %s21 = scalar_lea.vmem [#allocation2], 408
    %22 = vst [vmem:[%s21] sm:$0xff] 0.0
    %23 = vst [vmem:[%s21 + $0x8] sm:$0xff] 0.0
    %24 = vst [vmem:[%s21 + $0x10] sm:$0x3] 0.0
    %s25 = scalar_lea.vmem [#allocation2], 24
    %26 = vst [vmem:[%s25] sm:$0x3] 0.0
    %27 = vst [vmem:[%s25 + $0x18] sm:$0x3] 0.0
    %28 = vst [vmem:[%s25 + $0x30] sm:$0x3] 0.0
    %29 = vst [vmem:[%s25 + $0x48] sm:$0x3] 0.0
    %30 = vst [vmem:[%s25 + $0x60] sm:$0x3] 0.0
    %31 = vst [vmem:[%s25 + $0x78] sm:$0x3] 0.0
    %32 = vst [vmem:[%s25 + $0x90] sm:$0x3] 0.0
    %33 = vst [vmem:[%s25 + $0xa8] sm:$0x3] 0.0
    %34 = vst [vmem:[%s25 + $0xc0] sm:$0x3] 0.0
    %35 = vst [vmem:[%s25 + $0xd8] sm:$0x3] 0.0
    %36 = vst [vmem:[%s25 + $0xf0] sm:$0x3] 0.0
    %37 = vst [vmem:[%s25 + $0x108] sm:$0x3] 0.0
    %38 = vst [vmem:[%s25 + $0x120] sm:$0x3] 0.0
    %39 = vst [vmem:[%s25 + $0x138] sm:$0x3] 0.0
    %40 = vst [vmem:[%s25 + $0x150] sm:$0x3] 0.0
    %41 = vst [vmem:[%s25 + $0x168] sm:$0x3] 0.0
    %42 = vst [vmem:[%s25 + $0x10] sm:$0x3] 0.0
    %43 = vst [vmem:[%s25 + $0x28] sm:$0x3] 0.0
    %44 = vst [vmem:[%s25 + $0x40] sm:$0x3] 0.0
    %45 = vst [vmem:[%s25 + $0x58] sm:$0x3] 0.0
    %46 = vst [vmem:[%s25 + $0x70] sm:$0x3] 0.0
    %47 = vst [vmem:[%s25 + $0x88] sm:$0x3] 0.0
    %48 = vst [vmem:[%s25 + $0xa0] sm:$0x3] 0.0
    %49 = vst [vmem:[%s25 + $0xb8] sm:$0x3] 0.0
    %50 = vst [vmem:[%s25 + $0xd0] sm:$0x3] 0.0
    %51 = vst [vmem:[%s25 + $0xe8] sm:$0x3] 0.0
    %52 = vst [vmem:[%s25 + $0x100] sm:$0x3] 0.0
    %53 = vst [vmem:[%s25 + $0x118] sm:$0x3] 0.0
    %54 = vst [vmem:[%s25 + $0x130] sm:$0x3] 0.0
    %55 = vst [vmem:[%s25 + $0x148] sm:$0x3] 0.0
    %56 = vst [vmem:[%s25 + $0x160] sm:$0x3] 0.0
    %57 = vst [vmem:[%s25 + $0x178] sm:$0x3] 0.0
    %v58 = vld [vmem:[%s0] sm:$0xff]
    %v59 = vld [vmem:[%s0 + $0x8] sm:$0xff]
    %v60 = vld [vmem:[%s0 + $0x10] sm:$0xff]
    %v61 = vld [vmem:[%s0 + $0x18] sm:$0xff]
    %v62 = vld [vmem:[%s0 + $0x20] sm:$0xff]
    %v63 = vld [vmem:[%s0 + $0x28] sm:$0xff]
    %v64 = vld [vmem:[%s0 + $0x30] sm:$0xff]
    %v65 = vld [vmem:[%s0 + $0x38] sm:$0xff]
    %v66 = vld [vmem:[%s0 + $0x40] sm:$0xff]
    %v67 = vld [vmem:[%s0 + $0x48] sm:$0xff]
    %v68 = vld [vmem:[%s0 + $0x50] sm:$0xff]
    %v69 = vld [vmem:[%s0 + $0x58] sm:$0xff]
    %v70 = vld [vmem:[%s0 + $0x60] sm:$0xff]
    %v71 = vld [vmem:[%s0 + $0x68] sm:$0xff]
    %v72 = vld [vmem:[%s0 + $0x70] sm:$0xff]
    %v73 = vld [vmem:[%s0 + $0x78] sm:$0xff]
    %v74 = vld [vmem:[%s0 + $0x80] sm:$0xff]
    %v75 = vld [vmem:[%s0 + $0x88] sm:$0xff]
    %v76 = vld [vmem:[%s0 + $0x90] sm:$0xff]
    %v77 = vld [vmem:[%s0 + $0x98] sm:$0xff]
    %v78 = vld [vmem:[%s0 + $0xa0] sm:$0xff]
    %v79 = vld [vmem:[%s0 + $0xa8] sm:$0xff]
    %v80 = vld [vmem:[%s0 + $0xb0] sm:$0xff]
    %v81 = vld [vmem:[%s0 + $0xb8] sm:$0xff]
    %v82 = vld [vmem:[%s0 + $0xc0] sm:$0xff]
    %v83 = vld [vmem:[%s0 + $0xc8] sm:$0xff]
    %v84 = vld [vmem:[%s0 + $0xd0] sm:$0xff]
    %v85 = vld [vmem:[%s0 + $0xd8] sm:$0xff]
    %v86 = vld [vmem:[%s0 + $0xe0] sm:$0xff]
    %v87 = vld [vmem:[%s0 + $0xe8] sm:$0xff]
    %v88 = vld [vmem:[%s0 + $0xf0] sm:$0xff]
    %v89 = vld [vmem:[%s0 + $0xf8] sm:$0xff]
    %vm90 = vcmask 523264
    %91 = vst.msk [vmem:[%s25 + $0x1] sm:$0xff] %vm90, %v58
    %92 = vst.msk [vmem:[%s25 + $0x9] sm:$0xff] %vm90, %v59
    %93 = vst.msk [vmem:[%s25 + $0x19] sm:$0xff] %vm90, %v60
    %94 = vst.msk [vmem:[%s25 + $0x21] sm:$0xff] %vm90, %v61
    %95 = vst.msk [vmem:[%s25 + $0x31] sm:$0xff] %vm90, %v62
    %96 = vst.msk [vmem:[%s25 + $0x39] sm:$0xff] %vm90, %v63
    %97 = vst.msk [vmem:[%s25 + $0x49] sm:$0xff] %vm90, %v64
    %98 = vst.msk [vmem:[%s25 + $0x51] sm:$0xff] %vm90, %v65
    %99 = vst.msk [vmem:[%s25 + $0x61] sm:$0xff] %vm90, %v66
    %100 = vst.msk [vmem:[%s25 + $0x69] sm:$0xff] %vm90, %v67
    %101 = vst.msk [vmem:[%s25 + $0x79] sm:$0xff] %vm90, %v68
    %102 = vst.msk [vmem:[%s25 + $0x81] sm:$0xff] %vm90, %v69
    %103 = vst.msk [vmem:[%s25 + $0x91] sm:$0xff] %vm90, %v70
    %104 = vst.msk [vmem:[%s25 + $0x99] sm:$0xff] %vm90, %v71
    %105 = vst.msk [vmem:[%s25 + $0xa9] sm:$0xff] %vm90, %v72
    %106 = vst.msk [vmem:[%s25 + $0xb1] sm:$0xff] %vm90, %v73
    %107 = vst.msk [vmem:[%s25 + $0xc1] sm:$0xff] %vm90, %v74
    %108 = vst.msk [vmem:[%s25 + $0xc9] sm:$0xff] %vm90, %v75
    %109 = vst.msk [vmem:[%s25 + $0xd9] sm:$0xff] %vm90, %v76
    %110 = vst.msk [vmem:[%s25 + $0xe1] sm:$0xff] %vm90, %v77
    %111 = vst.msk [vmem:[%s25 + $0xf1] sm:$0xff] %vm90, %v78
    %112 = vst.msk [vmem:[%s25 + $0xf9] sm:$0xff] %vm90, %v79
    %113 = vst.msk [vmem:[%s25 + $0x109] sm:$0xff] %vm90, %v80
    %114 = vst.msk [vmem:[%s25 + $0x111] sm:$0xff] %vm90, %v81
    %115 = vst.msk [vmem:[%s25 + $0x121] sm:$0xff] %vm90, %v82
    %116 = vst.msk [vmem:[%s25 + $0x129] sm:$0xff] %vm90, %v83
    %117 = vst.msk [vmem:[%s25 + $0x139] sm:$0xff] %vm90, %v84
    %118 = vst.msk [vmem:[%s25 + $0x141] sm:$0xff] %vm90, %v85
    %119 = vst.msk [vmem:[%s25 + $0x151] sm:$0xff] %vm90, %v86
    %120 = vst.msk [vmem:[%s25 + $0x159] sm:$0xff] %vm90, %v87
    %121 = vst.msk [vmem:[%s25 + $0x169] sm:$0xff] %vm90, %v88
    %122 = vst.msk [vmem:[%s25 + $0x171] sm:$0xff] %vm90, %v89
    %v123 = vld [vmem:[%s1] sm:$0xff]
    %v124 = vld [vmem:[%s1 + $0x8] sm:$0xff]
    %v125 = vld [vmem:[%s1 + $0x10] sm:$0xff]
    %v126 = vld [vmem:[%s1 + $0x18] sm:$0xff]
    %v127 = vld [vmem:[%s1 + $0x20] sm:$0xff]
    %v128 = vld [vmem:[%s1 + $0x28] sm:$0xff]
    %v129 = vld [vmem:[%s1 + $0x30] sm:$0xff]
    %v130 = vld [vmem:[%s1 + $0x38] sm:$0xff]
    %v131 = vld [vmem:[%s1 + $0x40] sm:$0xff]
    %v132 = vld [vmem:[%s1 + $0x48] sm:$0xff]
    %v133 = vld [vmem:[%s1 + $0x50] sm:$0xff]
    %v134 = vld [vmem:[%s1 + $0x58] sm:$0xff]
    %v135 = vld [vmem:[%s1 + $0x60] sm:$0xff]
    %v136 = vld [vmem:[%s1 + $0x68] sm:$0xff]
    %v137 = vld [vmem:[%s1 + $0x70] sm:$0xff]
    %v138 = vld [vmem:[%s1 + $0x78] sm:$0xff]
    %v139 = vld [vmem:[%s1 + $0x80] sm:$0xff]
    %v140 = vld [vmem:[%s1 + $0x88] sm:$0xff]
    %v141 = vld [vmem:[%s1 + $0x90] sm:$0xff]
    %v142 = vld [vmem:[%s1 + $0x98] sm:$0xff]
    %v143 = vld [vmem:[%s1 + $0xa0] sm:$0xff]
    %v144 = vld [vmem:[%s1 + $0xa8] sm:$0xff]
    %v145 = vld [vmem:[%s1 + $0xb0] sm:$0xff]
    %v146 = vld [vmem:[%s1 + $0xb8] sm:$0xff]
    %v147 = vld [vmem:[%s1 + $0xc0] sm:$0xff]
    %v148 = vld [vmem:[%s1 + $0xc8] sm:$0xff]
    %v149 = vld [vmem:[%s1 + $0xd0] sm:$0xff]
    %v150 = vld [vmem:[%s1 + $0xd8] sm:$0xff]
    %v151 = vld [vmem:[%s1 + $0xe0] sm:$0xff]
    %v152 = vld [vmem:[%s1 + $0xe8] sm:$0xff]
    %v153 = vld [vmem:[%s1 + $0xf0] sm:$0xff]
    %v154 = vld [vmem:[%s1 + $0xf8] sm:$0xff]
    %vm155 = vcmask 261120
    %v156 = vsel %vm155, %v123, 0.0
    %v157 = vsel %vm155, %v124, 0.0
    %v158 = vsel %vm155, %v125, 0.0
    %v159 = vsel %vm155, %v126, 0.0
    %v160 = vsel %vm155, %v127, 0.0
    %v161 = vsel %vm155, %v128, 0.0
    %v162 = vsel %vm155, %v129, 0.0
    %v163 = vsel %vm155, %v130, 0.0
    %v164 = vsel %vm155, %v131, 0.0
    %v165 = vsel %vm155, %v132, 0.0
    %v166 = vsel %vm155, %v133, 0.0
    %v167 = vsel %vm155, %v134, 0.0
    %v168 = vsel %vm155, %v135, 0.0
    %v169 = vsel %vm155, %v136, 0.0
    %v170 = vsel %vm155, %v137, 0.0
    %v171 = vsel %vm155, %v138, 0.0
    %v172 = vsel %vm155, %v139, 0.0
    %v173 = vsel %vm155, %v140, 0.0
    %v174 = vsel %vm155, %v141, 0.0
    %v175 = vsel %vm155, %v142, 0.0
    %v176 = vsel %vm155, %v143, 0.0
    %v177 = vsel %vm155, %v144, 0.0
    %v178 = vsel %vm155, %v145, 0.0
    %v179 = vsel %vm155, %v146, 0.0
    %v180 = vsel %vm155, %v147, 0.0
    %v181 = vsel %vm155, %v148, 0.0
    %v182 = vsel %vm155, %v149, 0.0
    %v183 = vsel %vm155, %v150, 0.0
    %v184 = vsel %vm155, %v151, 0.0
    %v185 = vsel %vm155, %v152, 0.0
    %v186 = vsel %vm155, %v153, 0.0
    %v187 = vsel %vm155, %v154, 0.0
    %220 = vrot.lane.b32.xlu0 %v156, 64
    %v221 = vpop.permute.xlu0 %220
    %222 = vrot.lane.b32.xlu0 %v157, 64
    %v223 = vpop.permute.xlu0 %222
    %224 = vrot.lane.b32.xlu0 %v158, 64
    %v225 = vpop.permute.xlu0 %224
    %226 = vrot.lane.b32.xlu0 %v159, 64
    %v227 = vpop.permute.xlu0 %226
    %228 = vrot.lane.b32.xlu0 %v160, 64
    %v229 = vpop.permute.xlu0 %228
    %230 = vrot.lane.b32.xlu0 %v161, 64
    %v231 = vpop.permute.xlu0 %230
    %232 = vrot.lane.b32.xlu0 %v162, 64
    %v233 = vpop.permute.xlu0 %232
    %234 = vrot.lane.b32.xlu0 %v163, 64
    %v235 = vpop.permute.xlu0 %234
    %236 = vrot.lane.b32.xlu0 %v164, 64
    %v237 = vpop.permute.xlu0 %236
    %238 = vrot.lane.b32.xlu0 %v165, 64
    %v239 = vpop.permute.xlu0 %238
    %240 = vrot.lane.b32.xlu0 %v166, 64
    %v241 = vpop.permute.xlu0 %240
    %242 = vrot.lane.b32.xlu0 %v167, 64
    %v243 = vpop.permute.xlu0 %242
    %244 = vrot.lane.b32.xlu0 %v168, 64
    %v245 = vpop.permute.xlu0 %244
    %246 = vrot.lane.b32.xlu0 %v169, 64
    %v247 = vpop.permute.xlu0 %246
    %248 = vrot.lane.b32.xlu0 %v170, 64
    %v249 = vpop.permute.xlu0 %248
    %250 = vrot.lane.b32.xlu0 %v171, 64
    %v251 = vpop.permute.xlu0 %250
    %252 = vrot.lane.b32.xlu0 %v172, 64
    %v253 = vpop.permute.xlu0 %252
    %254 = vrot.lane.b32.xlu0 %v173, 64
    %v255 = vpop.permute.xlu0 %254
    %256 = vrot.lane.b32.xlu0 %v174, 64
    %v257 = vpop.permute.xlu0 %256
    %258 = vrot.lane.b32.xlu0 %v175, 64
    %v259 = vpop.permute.xlu0 %258
    %260 = vrot.lane.b32.xlu0 %v176, 64
    %v261 = vpop.permute.xlu0 %260
    %262 = vrot.lane.b32.xlu0 %v177, 64
    %v263 = vpop.permute.xlu0 %262
    %264 = vrot.lane.b32.xlu0 %v178, 64
    %v265 = vpop.permute.xlu0 %264
    %266 = vrot.lane.b32.xlu0 %v179, 64
    %v267 = vpop.permute.xlu0 %266
    %268 = vrot.lane.b32.xlu0 %v180, 64
    %v269 = vpop.permute.xlu0 %268
    %270 = vrot.lane.b32.xlu0 %v181, 64
    %v271 = vpop.permute.xlu0 %270
    %272 = vrot.lane.b32.xlu0 %v182, 64
    %v273 = vpop.permute.xlu0 %272
    %274 = vrot.lane.b32.xlu0 %v183, 64
    %v275 = vpop.permute.xlu0 %274
    %276 = vrot.lane.b32.xlu0 %v184, 64
    %v277 = vpop.permute.xlu0 %276
    %278 = vrot.lane.b32.xlu0 %v185, 64
    %v279 = vpop.permute.xlu0 %278
    %280 = vrot.lane.b32.xlu0 %v186, 64
    %v281 = vpop.permute.xlu0 %280
    %282 = vrot.lane.b32.xlu0 %v187, 64
    %v283 = vpop.permute.xlu0 %282
    %vm316 = vcmask 1048064
    %317 = vst.msk [vmem:[%s25 + $0x1] sm:$0xff] %vm316, %v221
    %318 = vst.msk [vmem:[%s25 + $0x9] sm:$0xff] %vm316, %v223
    %319 = vst.msk [vmem:[%s25 + $0x19] sm:$0xff] %vm316, %v225
    %320 = vst.msk [vmem:[%s25 + $0x21] sm:$0xff] %vm316, %v227
    %321 = vst.msk [vmem:[%s25 + $0x31] sm:$0xff] %vm316, %v229
    %322 = vst.msk [vmem:[%s25 + $0x39] sm:$0xff] %vm316, %v231
    %323 = vst.msk [vmem:[%s25 + $0x49] sm:$0xff] %vm316, %v233
    %324 = vst.msk [vmem:[%s25 + $0x51] sm:$0xff] %vm316, %v235
    %325 = vst.msk [vmem:[%s25 + $0x61] sm:$0xff] %vm316, %v237
    %326 = vst.msk [vmem:[%s25 + $0x69] sm:$0xff] %vm316, %v239
    %327 = vst.msk [vmem:[%s25 + $0x79] sm:$0xff] %vm316, %v241
    %328 = vst.msk [vmem:[%s25 + $0x81] sm:$0xff] %vm316, %v243
    %329 = vst.msk [vmem:[%s25 + $0x91] sm:$0xff] %vm316, %v245
    %330 = vst.msk [vmem:[%s25 + $0x99] sm:$0xff] %vm316, %v247
    %331 = vst.msk [vmem:[%s25 + $0xa9] sm:$0xff] %vm316, %v249
    %332 = vst.msk [vmem:[%s25 + $0xb1] sm:$0xff] %vm316, %v251
    %333 = vst.msk [vmem:[%s25 + $0xc1] sm:$0xff] %vm316, %v253
    %334 = vst.msk [vmem:[%s25 + $0xc9] sm:$0xff] %vm316, %v255
    %335 = vst.msk [vmem:[%s25 + $0xd9] sm:$0xff] %vm316, %v257
    %336 = vst.msk [vmem:[%s25 + $0xe1] sm:$0xff] %vm316, %v259
    %337 = vst.msk [vmem:[%s25 + $0xf1] sm:$0xff] %vm316, %v261
    %338 = vst.msk [vmem:[%s25 + $0xf9] sm:$0xff] %vm316, %v263
    %339 = vst.msk [vmem:[%s25 + $0x109] sm:$0xff] %vm316, %v265
    %340 = vst.msk [vmem:[%s25 + $0x111] sm:$0xff] %vm316, %v267
    %341 = vst.msk [vmem:[%s25 + $0x121] sm:$0xff] %vm316, %v269
    %342 = vst.msk [vmem:[%s25 + $0x129] sm:$0xff] %vm316, %v271
    %343 = vst.msk [vmem:[%s25 + $0x139] sm:$0xff] %vm316, %v273
    %344 = vst.msk [vmem:[%s25 + $0x141] sm:$0xff] %vm316, %v275
    %345 = vst.msk [vmem:[%s25 + $0x151] sm:$0xff] %vm316, %v277
    %346 = vst.msk [vmem:[%s25 + $0x159] sm:$0xff] %vm316, %v279
    %347 = vst.msk [vmem:[%s25 + $0x169] sm:$0xff] %vm316, %v281
    %348 = vst.msk [vmem:[%s25 + $0x171] sm:$0xff] %vm316, %v283
    %s349 = scalar_lea.vmem [#allocation2], 432
    %350 = vst [vmem:[%s349] sm:$0xff] 0.0
    %351 = vst [vmem:[%s349 + $0x8] sm:$0xff] 0.0
    %352 = vst [vmem:[%s349 + $0x10] sm:$0x3] 0.0
    %s353 = scalar_lea.vmem [#allocation2], 840
    %354 = vst [vmem:[%s353] sm:$0xff] 0.0
    %355 = vst [vmem:[%s353 + $0x8] sm:$0xff] 0.0
    %356 = vst [vmem:[%s353 + $0x10] sm:$0x3] 0.0
    %s357 = scalar_lea.vmem [#allocation2], 456
    %358 = vst [vmem:[%s357] sm:$0x3] 0.0
    %359 = vst [vmem:[%s357 + $0x18] sm:$0x3] 0.0
    %360 = vst [vmem:[%s357 + $0x30] sm:$0x3] 0.0
    %361 = vst [vmem:[%s357 + $0x48] sm:$0x3] 0.0
    %362 = vst [vmem:[%s357 + $0x60] sm:$0x3] 0.0
    %363 = vst [vmem:[%s357 + $0x78] sm:$0x3] 0.0
    %364 = vst [vmem:[%s357 + $0x90] sm:$0x3] 0.0
    %365 = vst [vmem:[%s357 + $0xa8] sm:$0x3] 0.0
    %366 = vst [vmem:[%s357 + $0xc0] sm:$0x3] 0.0
    %367 = vst [vmem:[%s357 + $0xd8] sm:$0x3] 0.0
    %368 = vst [vmem:[%s357 + $0xf0] sm:$0x3] 0.0
    %369 = vst [vmem:[%s357 + $0x108] sm:$0x3] 0.0
    %370 = vst [vmem:[%s357 + $0x120] sm:$0x3] 0.0
    %371 = vst [vmem:[%s357 + $0x138] sm:$0x3] 0.0
    %372 = vst [vmem:[%s357 + $0x150] sm:$0x3] 0.0
    %373 = vst [vmem:[%s357 + $0x168] sm:$0x3] 0.0
    %374 = vst [vmem:[%s357 + $0x10] sm:$0x3] 0.0
    %375 = vst [vmem:[%s357 + $0x28] sm:$0x3] 0.0
    %376 = vst [vmem:[%s357 + $0x40] sm:$0x3] 0.0
    %377 = vst [vmem:[%s357 + $0x58] sm:$0x3] 0.0
    %378 = vst [vmem:[%s357 + $0x70] sm:$0x3] 0.0
    %379 = vst [vmem:[%s357 + $0x88] sm:$0x3] 0.0
    %380 = vst [vmem:[%s357 + $0xa0] sm:$0x3] 0.0
    %381 = vst [vmem:[%s357 + $0xb8] sm:$0x3] 0.0
    %382 = vst [vmem:[%s357 + $0xd0] sm:$0x3] 0.0
    %383 = vst [vmem:[%s357 + $0xe8] sm:$0x3] 0.0
    %384 = vst [vmem:[%s357 + $0x100] sm:$0x3] 0.0
    %385 = vst [vmem:[%s357 + $0x118] sm:$0x3] 0.0
    %386 = vst [vmem:[%s357 + $0x130] sm:$0x3] 0.0
    %387 = vst [vmem:[%s357 + $0x148] sm:$0x3] 0.0
    %388 = vst [vmem:[%s357 + $0x160] sm:$0x3] 0.0
    %389 = vst [vmem:[%s357 + $0x178] sm:$0x3] 0.0
    %s390 = scalar_lea.vmem %s0, 256
    %v391 = vld [vmem:[%s390] sm:$0xff]
    %v392 = vld [vmem:[%s390 + $0x8] sm:$0xff]
    %v393 = vld [vmem:[%s390 + $0x10] sm:$0xff]
    %v394 = vld [vmem:[%s390 + $0x18] sm:$0xff]
    %v395 = vld [vmem:[%s390 + $0x20] sm:$0xff]
    %v396 = vld [vmem:[%s390 + $0x28] sm:$0xff]
    %v397 = vld [vmem:[%s390 + $0x30] sm:$0xff]
    %v398 = vld [vmem:[%s390 + $0x38] sm:$0xff]
    %v399 = vld [vmem:[%s390 + $0x40] sm:$0xff]
    %v400 = vld [vmem:[%s390 + $0x48] sm:$0xff]
    %v401 = vld [vmem:[%s390 + $0x50] sm:$0xff]
    %v402 = vld [vmem:[%s390 + $0x58] sm:$0xff]
    %v403 = vld [vmem:[%s390 + $0x60] sm:$0xff]
    %v404 = vld [vmem:[%s390 + $0x68] sm:$0xff]
    %v405 = vld [vmem:[%s390 + $0x70] sm:$0xff]
    %v406 = vld [vmem:[%s390 + $0x78] sm:$0xff]
    %v407 = vld [vmem:[%s390 + $0x80] sm:$0xff]
    %v408 = vld [vmem:[%s390 + $0x88] sm:$0xff]
    %v409 = vld [vmem:[%s390 + $0x90] sm:$0xff]
    %v410 = vld [vmem:[%s390 + $0x98] sm:$0xff]
    %v411 = vld [vmem:[%s390 + $0xa0] sm:$0xff]
    %v412 = vld [vmem:[%s390 + $0xa8] sm:$0xff]
    %v413 = vld [vmem:[%s390 + $0xb0] sm:$0xff]
    %v414 = vld [vmem:[%s390 + $0xb8] sm:$0xff]
    %v415 = vld [vmem:[%s390 + $0xc0] sm:$0xff]
    %v416 = vld [vmem:[%s390 + $0xc8] sm:$0xff]
    %v417 = vld [vmem:[%s390 + $0xd0] sm:$0xff]
    %v418 = vld [vmem:[%s390 + $0xd8] sm:$0xff]
    %v419 = vld [vmem:[%s390 + $0xe0] sm:$0xff]
    %v420 = vld [vmem:[%s390 + $0xe8] sm:$0xff]
    %v421 = vld [vmem:[%s390 + $0xf0] sm:$0xff]
    %v422 = vld [vmem:[%s390 + $0xf8] sm:$0xff]
    %423 = vst.msk [vmem:[%s357 + $0x1] sm:$0xff] %vm90, %v391
    %424 = vst.msk [vmem:[%s357 + $0x9] sm:$0xff] %vm90, %v392
    %425 = vst.msk [vmem:[%s357 + $0x19] sm:$0xff] %vm90, %v393
    %426 = vst.msk [vmem:[%s357 + $0x21] sm:$0xff] %vm90, %v394
    %427 = vst.msk [vmem:[%s357 + $0x31] sm:$0xff] %vm90, %v395
    %428 = vst.msk [vmem:[%s357 + $0x39] sm:$0xff] %vm90, %v396
    %429 = vst.msk [vmem:[%s357 + $0x49] sm:$0xff] %vm90, %v397
    %430 = vst.msk [vmem:[%s357 + $0x51] sm:$0xff] %vm90, %v398
    %431 = vst.msk [vmem:[%s357 + $0x61] sm:$0xff] %vm90, %v399
    %432 = vst.msk [vmem:[%s357 + $0x69] sm:$0xff] %vm90, %v400
    %433 = vst.msk [vmem:[%s357 + $0x79] sm:$0xff] %vm90, %v401
    %434 = vst.msk [vmem:[%s357 + $0x81] sm:$0xff] %vm90, %v402
    %435 = vst.msk [vmem:[%s357 + $0x91] sm:$0xff] %vm90, %v403
    %436 = vst.msk [vmem:[%s357 + $0x99] sm:$0xff] %vm90, %v404
    %437 = vst.msk [vmem:[%s357 + $0xa9] sm:$0xff] %vm90, %v405
    %438 = vst.msk [vmem:[%s357 + $0xb1] sm:$0xff] %vm90, %v406
    %439 = vst.msk [vmem:[%s357 + $0xc1] sm:$0xff] %vm90, %v407
    %440 = vst.msk [vmem:[%s357 + $0xc9] sm:$0xff] %vm90, %v408
    %441 = vst.msk [vmem:[%s357 + $0xd9] sm:$0xff] %vm90, %v409
    %442 = vst.msk [vmem:[%s357 + $0xe1] sm:$0xff] %vm90, %v410
    %443 = vst.msk [vmem:[%s357 + $0xf1] sm:$0xff] %vm90, %v411
    %444 = vst.msk [vmem:[%s357 + $0xf9] sm:$0xff] %vm90, %v412
    %445 = vst.msk [vmem:[%s357 + $0x109] sm:$0xff] %vm90, %v413
    %446 = vst.msk [vmem:[%s357 + $0x111] sm:$0xff] %vm90, %v414
    %447 = vst.msk [vmem:[%s357 + $0x121] sm:$0xff] %vm90, %v415
    %448 = vst.msk [vmem:[%s357 + $0x129] sm:$0xff] %vm90, %v416
    %449 = vst.msk [vmem:[%s357 + $0x139] sm:$0xff] %vm90, %v417
    %450 = vst.msk [vmem:[%s357 + $0x141] sm:$0xff] %vm90, %v418
    %451 = vst.msk [vmem:[%s357 + $0x151] sm:$0xff] %vm90, %v419
    %452 = vst.msk [vmem:[%s357 + $0x159] sm:$0xff] %vm90, %v420
    %453 = vst.msk [vmem:[%s357 + $0x169] sm:$0xff] %vm90, %v421
    %454 = vst.msk [vmem:[%s357 + $0x171] sm:$0xff] %vm90, %v422
    %s455 = scalar_lea.vmem %s1, 256
    %v456 = vld [vmem:[%s455] sm:$0xff]
    %v457 = vld [vmem:[%s455 + $0x8] sm:$0xff]
    %v458 = vld [vmem:[%s455 + $0x10] sm:$0xff]
    %v459 = vld [vmem:[%s455 + $0x18] sm:$0xff]
    %v460 = vld [vmem:[%s455 + $0x20] sm:$0xff]
    %v461 = vld [vmem:[%s455 + $0x28] sm:$0xff]
    %v462 = vld [vmem:[%s455 + $0x30] sm:$0xff]
    %v463 = vld [vmem:[%s455 + $0x38] sm:$0xff]
    %v464 = vld [vmem:[%s455 + $0x40] sm:$0xff]
    %v465 = vld [vmem:[%s455 + $0x48] sm:$0xff]
    %v466 = vld [vmem:[%s455 + $0x50] sm:$0xff]
    %v467 = vld [vmem:[%s455 + $0x58] sm:$0xff]
    %v468 = vld [vmem:[%s455 + $0x60] sm:$0xff]
    %v469 = vld [vmem:[%s455 + $0x68] sm:$0xff]
    %v470 = vld [vmem:[%s455 + $0x70] sm:$0xff]
    %v471 = vld [vmem:[%s455 + $0x78] sm:$0xff]
    %v472 = vld [vmem:[%s455 + $0x80] sm:$0xff]
    %v473 = vld [vmem:[%s455 + $0x88] sm:$0xff]
    %v474 = vld [vmem:[%s455 + $0x90] sm:$0xff]
    %v475 = vld [vmem:[%s455 + $0x98] sm:$0xff]
    %v476 = vld [vmem:[%s455 + $0xa0] sm:$0xff]
    %v477 = vld [vmem:[%s455 + $0xa8] sm:$0xff]
    %v478 = vld [vmem:[%s455 + $0xb0] sm:$0xff]
    %v479 = vld [vmem:[%s455 + $0xb8] sm:$0xff]
    %v480 = vld [vmem:[%s455 + $0xc0] sm:$0xff]
    %v481 = vld [vmem:[%s455 + $0xc8] sm:$0xff]
    %v482 = vld [vmem:[%s455 + $0xd0] sm:$0xff]
    %v483 = vld [vmem:[%s455 + $0xd8] sm:$0xff]
    %v484 = vld [vmem:[%s455 + $0xe0] sm:$0xff]
    %v485 = vld [vmem:[%s455 + $0xe8] sm:$0xff]
    %v486 = vld [vmem:[%s455 + $0xf0] sm:$0xff]
    %v487 = vld [vmem:[%s455 + $0xf8] sm:$0xff]
    %v488 = vsel %vm155, %v456, 0.0
    %v489 = vsel %vm155, %v457, 0.0
    %v490 = vsel %vm155, %v458, 0.0
    %v491 = vsel %vm155, %v459, 0.0
    %v492 = vsel %vm155, %v460, 0.0
    %v493 = vsel %vm155, %v461, 0.0
    %v494 = vsel %vm155, %v462, 0.0
    %v495 = vsel %vm155, %v463, 0.0
    %v496 = vsel %vm155, %v464, 0.0
    %v497 = vsel %vm155, %v465, 0.0
    %v498 = vsel %vm155, %v466, 0.0
    %v499 = vsel %vm155, %v467, 0.0
    %v500 = vsel %vm155, %v468, 0.0
    %v501 = vsel %vm155, %v469, 0.0
    %v502 = vsel %vm155, %v470, 0.0
    %v503 = vsel %vm155, %v471, 0.0
    %v504 = vsel %vm155, %v472, 0.0
    %v505 = vsel %vm155, %v473, 0.0
    %v506 = vsel %vm155, %v474, 0.0
    %v507 = vsel %vm155, %v475, 0.0
    %v508 = vsel %vm155, %v476, 0.0
    %v509 = vsel %vm155, %v477, 0.0
    %v510 = vsel %vm155, %v478, 0.0
    %v511 = vsel %vm155, %v479, 0.0
    %v512 = vsel %vm155, %v480, 0.0
    %v513 = vsel %vm155, %v481, 0.0
    %v514 = vsel %vm155, %v482, 0.0
    %v515 = vsel %vm155, %v483, 0.0
    %v516 = vsel %vm155, %v484, 0.0
    %v517 = vsel %vm155, %v485, 0.0
    %v518 = vsel %vm155, %v486, 0.0
    %v519 = vsel %vm155, %v487, 0.0
    %552 = vrot.lane.b32.xlu0 %v488, 64
    %v553 = vpop.permute.xlu0 %552
    %554 = vrot.lane.b32.xlu0 %v489, 64
    %v555 = vpop.permute.xlu0 %554
    %556 = vrot.lane.b32.xlu0 %v490, 64
    %v557 = vpop.permute.xlu0 %556
    %558 = vrot.lane.b32.xlu0 %v491, 64
    %v559 = vpop.permute.xlu0 %558
    %560 = vrot.lane.b32.xlu0 %v492, 64
    %v561 = vpop.permute.xlu0 %560
    %562 = vrot.lane.b32.xlu0 %v493, 64
    %v563 = vpop.permute.xlu0 %562
    %564 = vrot.lane.b32.xlu0 %v494, 64
    %v565 = vpop.permute.xlu0 %564
    %566 = vrot.lane.b32.xlu0 %v495, 64
    %v567 = vpop.permute.xlu0 %566
    %568 = vrot.lane.b32.xlu0 %v496, 64
    %v569 = vpop.permute.xlu0 %568
    %570 = vrot.lane.b32.xlu0 %v497, 64
    %v571 = vpop.permute.xlu0 %570
    %572 = vrot.lane.b32.xlu0 %v498, 64
    %v573 = vpop.permute.xlu0 %572
    %574 = vrot.lane.b32.xlu0 %v499, 64
    %v575 = vpop.permute.xlu0 %574
    %576 = vrot.lane.b32.xlu0 %v500, 64
    %v577 = vpop.permute.xlu0 %576
    %578 = vrot.lane.b32.xlu0 %v501, 64
    %v579 = vpop.permute.xlu0 %578
    %580 = vrot.lane.b32.xlu0 %v502, 64
    %v581 = vpop.permute.xlu0 %580
    %582 = vrot.lane.b32.xlu0 %v503, 64
    %v583 = vpop.permute.xlu0 %582
    %584 = vrot.lane.b32.xlu0 %v504, 64
    %v585 = vpop.permute.xlu0 %584
    %586 = vrot.lane.b32.xlu0 %v505, 64
    %v587 = vpop.permute.xlu0 %586
    %588 = vrot.lane.b32.xlu0 %v506, 64
    %v589 = vpop.permute.xlu0 %588
    %590 = vrot.lane.b32.xlu0 %v507, 64
    %v591 = vpop.permute.xlu0 %590
    %592 = vrot.lane.b32.xlu0 %v508, 64
    %v593 = vpop.permute.xlu0 %592
    %594 = vrot.lane.b32.xlu0 %v509, 64
    %v595 = vpop.permute.xlu0 %594
    %596 = vrot.lane.b32.xlu0 %v510, 64
    %v597 = vpop.permute.xlu0 %596
    %598 = vrot.lane.b32.xlu0 %v511, 64
    %v599 = vpop.permute.xlu0 %598
    %600 = vrot.lane.b32.xlu0 %v512, 64
    %v601 = vpop.permute.xlu0 %600
    %602 = vrot.lane.b32.xlu0 %v513, 64
    %v603 = vpop.permute.xlu0 %602
    %604 = vrot.lane.b32.xlu0 %v514, 64
    %v605 = vpop.permute.xlu0 %604
    %606 = vrot.lane.b32.xlu0 %v515, 64
    %v607 = vpop.permute.xlu0 %606
    %608 = vrot.lane.b32.xlu0 %v516, 64
    %v609 = vpop.permute.xlu0 %608
    %610 = vrot.lane.b32.xlu0 %v517, 64
    %v611 = vpop.permute.xlu0 %610
    %612 = vrot.lane.b32.xlu0 %v518, 64
    %v613 = vpop.permute.xlu0 %612
    %614 = vrot.lane.b32.xlu0 %v519, 64
    %v615 = vpop.permute.xlu0 %614
    %648 = vst.msk [vmem:[%s357 + $0x1] sm:$0xff] %vm316, %v553
    %649 = vst.msk [vmem:[%s357 + $0x9] sm:$0xff] %vm316, %v555
    %650 = vst.msk [vmem:[%s357 + $0x19] sm:$0xff] %vm316, %v557
    %651 = vst.msk [vmem:[%s357 + $0x21] sm:$0xff] %vm316, %v559
    %652 = vst.msk [vmem:[%s357 + $0x31] sm:$0xff] %vm316, %v561
    %653 = vst.msk [vmem:[%s357 + $0x39] sm:$0xff] %vm316, %v563
    %654 = vst.msk [vmem:[%s357 + $0x49] sm:$0xff] %vm316, %v565
    %655 = vst.msk [vmem:[%s357 + $0x51] sm:$0xff] %vm316, %v567
    %656 = vst.msk [vmem:[%s357 + $0x61] sm:$0xff] %vm316, %v569
    %657 = vst.msk [vmem:[%s357 + $0x69] sm:$0xff] %vm316, %v571
    %658 = vst.msk [vmem:[%s357 + $0x79] sm:$0xff] %vm316, %v573
    %659 = vst.msk [vmem:[%s357 + $0x81] sm:$0xff] %vm316, %v575
    %660 = vst.msk [vmem:[%s357 + $0x91] sm:$0xff] %vm316, %v577
    %661 = vst.msk [vmem:[%s357 + $0x99] sm:$0xff] %vm316, %v579
    %662 = vst.msk [vmem:[%s357 + $0xa9] sm:$0xff] %vm316, %v581
    %663 = vst.msk [vmem:[%s357 + $0xb1] sm:$0xff] %vm316, %v583
    %664 = vst.msk [vmem:[%s357 + $0xc1] sm:$0xff] %vm316, %v585
    %665 = vst.msk [vmem:[%s357 + $0xc9] sm:$0xff] %vm316, %v587
    %666 = vst.msk [vmem:[%s357 + $0xd9] sm:$0xff] %vm316, %v589
    %667 = vst.msk [vmem:[%s357 + $0xe1] sm:$0xff] %vm316, %v591
    %668 = vst.msk [vmem:[%s357 + $0xf1] sm:$0xff] %vm316, %v593
    %669 = vst.msk [vmem:[%s357 + $0xf9] sm:$0xff] %vm316, %v595
    %670 = vst.msk [vmem:[%s357 + $0x109] sm:$0xff] %vm316, %v597
    %671 = vst.msk [vmem:[%s357 + $0x111] sm:$0xff] %vm316, %v599
    %672 = vst.msk [vmem:[%s357 + $0x121] sm:$0xff] %vm316, %v601
    %673 = vst.msk [vmem:[%s357 + $0x129] sm:$0xff] %vm316, %v603
    %674 = vst.msk [vmem:[%s357 + $0x139] sm:$0xff] %vm316, %v605
    %675 = vst.msk [vmem:[%s357 + $0x141] sm:$0xff] %vm316, %v607
    %676 = vst.msk [vmem:[%s357 + $0x151] sm:$0xff] %vm316, %v609
    %677 = vst.msk [vmem:[%s357 + $0x159] sm:$0xff] %vm316, %v611
    %678 = vst.msk [vmem:[%s357 + $0x169] sm:$0xff] %vm316, %v613
    %679 = vst.msk [vmem:[%s357 + $0x171] sm:$0xff] %vm316, %v615
    %v680 = vld [vmem:[%s3] sm:$0x1]
    %v682 = vperm.slane %v680, 0
    %v684 = vld [vmem:[#allocation2] sm:$0xff]
    %v685 = vld [vmem:[#allocation2 + $0x8] sm:$0xff]
    %v686 = vld [vmem:[#allocation2 + $0x18] sm:$0xff]
    %v687 = vld [vmem:[#allocation2 + $0x20] sm:$0xff]
    %v688 = vld [vmem:[#allocation2 + $0x30] sm:$0xff]
    %v689 = vld [vmem:[#allocation2 + $0x38] sm:$0xff]
    %v690 = vld [vmem:[#allocation2 + $0x48] sm:$0xff]
    %v691 = vld [vmem:[#allocation2 + $0x50] sm:$0xff]
    %v692 = vld [vmem:[#allocation2 + $0x60] sm:$0xff]
    %v693 = vld [vmem:[#allocation2 + $0x68] sm:$0xff]
    %v694 = vld [vmem:[#allocation2 + $0x78] sm:$0xff]
    %v695 = vld [vmem:[#allocation2 + $0x80] sm:$0xff]
    %v696 = vld [vmem:[#allocation2 + $0x90] sm:$0xff]
    %v697 = vld [vmem:[#allocation2 + $0x98] sm:$0xff]
    %v698 = vld [vmem:[#allocation2 + $0xa8] sm:$0xff]
    %v699 = vld [vmem:[#allocation2 + $0xb0] sm:$0xff]
    %v700 = vpack.c.bf16 %v685, %v684
    %v701 = vpack.c.bf16 %v687, %v686
    %v702 = vpack.c.bf16 %v689, %v688
    %v703 = vpack.c.bf16 %v691, %v690
    %v704 = vpack.c.bf16 %v693, %v692
    %v705 = vpack.c.bf16 %v695, %v694
    %v706 = vpack.c.bf16 %v697, %v696
    %v707 = vpack.c.bf16 %v699, %v698
    %v708 = vld [vmem:[%s2] sm:$0xf]
    %v709 = vld [vmem:[%s2 + $0x4] sm:$0xf]
    %v710 = vld [vmem:[%s2 + $0x8] sm:$0xf]
    %v711 = vld [vmem:[%s2 + $0xc] sm:$0xf]
    %v712 = vld [vmem:[%s2 + $0x10] sm:$0xf]
    %v713 = vld [vmem:[%s2 + $0x14] sm:$0xf]
    %v714 = vld [vmem:[%s2 + $0x18] sm:$0xf]
    %v715 = vld [vmem:[%s2 + $0x1c] sm:$0xf]
    %v716 = vld [vmem:[%s2 + $0x20] sm:$0xf]
    %v717 = vld [vmem:[%s2 + $0x24] sm:$0xf]
    %v718 = vld [vmem:[%s2 + $0x28] sm:$0xf]
    %v719 = vld [vmem:[%s2 + $0x2c] sm:$0xf]
    %v720 = vld [vmem:[%s2 + $0x30] sm:$0xf]
    %v721 = vld [vmem:[%s2 + $0x34] sm:$0xf]
    %v722 = vld [vmem:[%s2 + $0x38] sm:$0xf]
    %v723 = vld [vmem:[%s2 + $0x3c] sm:$0xf]
    %v740 = vunpack.c.l.b16 %v708
    %v741 = vunpack.c.l.b16 %v709
    %v742 = vunpack.c.l.b16 %v710
    %v743 = vunpack.c.l.b16 %v711
    %v744 = vunpack.c.l.b16 %v712
    %v745 = vunpack.c.l.b16 %v713
    %v746 = vunpack.c.l.b16 %v714
    %v747 = vunpack.c.l.b16 %v715
    %v748 = vunpack.c.l.b16 %v716
    %v749 = vunpack.c.l.b16 %v717
    %v750 = vunpack.c.l.b16 %v718
    %v751 = vunpack.c.l.b16 %v719
    %v752 = vunpack.c.l.b16 %v720
    %v753 = vunpack.c.l.b16 %v721
    %v754 = vunpack.c.l.b16 %v722
    %v755 = vunpack.c.l.b16 %v723
    %v756 = vpack.c.b16 %v741, %v740
    %v757 = vpack.c.b16 %v743, %v742
    %v758 = vpack.c.b16 %v745, %v744
    %v759 = vpack.c.b16 %v747, %v746
    %v760 = vpack.c.b16 %v749, %v748
    %v761 = vpack.c.b16 %v751, %v750
    %v762 = vpack.c.b16 %v753, %v752
    %v763 = vpack.c.b16 %v755, %v754
    %772 = vmatpush.bf16.msra.mxu0 %v763
    %773 = vmatpush.bf16.msra.mxu0 %v762
    %774 = vmatpush.bf16.msra.mxu0 %v761
    %775 = vmatpush.bf16.msra.mxu0 %v760
    %776 = vmatpush.bf16.msra.mxu0 %v759
    %777 = vmatpush.bf16.msra.mxu0 %v758
    %778 = vmatpush.bf16.msra.mxu0 %v757
    %779 = vmatpush.bf16.msra.mxu0 %v756
    %780 = vmatmul.bf16.gmra.mxu0 %v700
    %v781 = vpop.f32.mrf.mxu0
    %v782 = vadd.f32 0.0, %v781
    %v783 = vpop.f32.mrf.mxu0
    %v784 = vadd.f32 0.0, %v783
    %785 = vmatmul.bf16.gmra.mxu0 %v701
    %v786 = vpop.f32.mrf.mxu0
    %v787 = vadd.f32 0.0, %v786
    %v788 = vpop.f32.mrf.mxu0
    %v789 = vadd.f32 0.0, %v788
    %790 = vmatmul.bf16.gmra.mxu0 %v702
    %v791 = vpop.f32.mrf.mxu0
    %v792 = vadd.f32 0.0, %v791
    %v793 = vpop.f32.mrf.mxu0
    %v794 = vadd.f32 0.0, %v793
    %795 = vmatmul.bf16.gmra.mxu0 %v703
    %v796 = vpop.f32.mrf.mxu0
    %v797 = vadd.f32 0.0, %v796
    %v798 = vpop.f32.mrf.mxu0
    %v799 = vadd.f32 0.0, %v798
    %800 = vmatmul.bf16.gmra.mxu0 %v704
    %v801 = vpop.f32.mrf.mxu0
    %v802 = vadd.f32 0.0, %v801
    %v803 = vpop.f32.mrf.mxu0
    %v804 = vadd.f32 0.0, %v803
    %805 = vmatmul.bf16.gmra.mxu0 %v705
    %v806 = vpop.f32.mrf.mxu0
    %v807 = vadd.f32 0.0, %v806
    %v808 = vpop.f32.mrf.mxu0
    %v809 = vadd.f32 0.0, %v808
    %810 = vmatmul.bf16.gmra.mxu0 %v706
    %v811 = vpop.f32.mrf.mxu0
    %v812 = vadd.f32 0.0, %v811
    %v813 = vpop.f32.mrf.mxu0
    %v814 = vadd.f32 0.0, %v813
    %815 = vmatmul.bf16.gmra.mxu0 %v707
    %v816 = vpop.f32.mrf.mxu0
    %v817 = vadd.f32 0.0, %v816
    %v818 = vpop.f32.mrf.mxu0
    %v819 = vadd.f32 0.0, %v818
    %820 = vdwg.mxu0
    %v821 = vadd.f32 %v682, %v782
    %v822 = vadd.f32 %v682, %v784
    %v823 = vadd.f32 %v682, %v787
    %v824 = vadd.f32 %v682, %v789
    %v825 = vadd.f32 %v682, %v792
    %v826 = vadd.f32 %v682, %v794
    %v827 = vadd.f32 %v682, %v797
    %v828 = vadd.f32 %v682, %v799
    %v829 = vadd.f32 %v682, %v802
    %v830 = vadd.f32 %v682, %v804
    %v831 = vadd.f32 %v682, %v807
    %v832 = vadd.f32 %v682, %v809
    %v833 = vadd.f32 %v682, %v812
    %v834 = vadd.f32 %v682, %v814
    %v835 = vadd.f32 %v682, %v817
    %v836 = vadd.f32 %v682, %v819
    %v837 = vld [vmem:[#allocation2 + $0x1] sm:$0xff]
    %v838 = vld [vmem:[#allocation2 + $0x9] sm:$0xff]
    %v839 = vld [vmem:[#allocation2 + $0x19] sm:$0xff]
    %v840 = vld [vmem:[#allocation2 + $0x21] sm:$0xff]
    %v841 = vld [vmem:[#allocation2 + $0x31] sm:$0xff]
    %v842 = vld [vmem:[#allocation2 + $0x39] sm:$0xff]
    %v843 = vld [vmem:[#allocation2 + $0x49] sm:$0xff]
    %v844 = vld [vmem:[#allocation2 + $0x51] sm:$0xff]
    %v845 = vld [vmem:[#allocation2 + $0x61] sm:$0xff]
    %v846 = vld [vmem:[#allocation2 + $0x69] sm:$0xff]
    %v847 = vld [vmem:[#allocation2 + $0x79] sm:$0xff]
    %v848 = vld [vmem:[#allocation2 + $0x81] sm:$0xff]
    %v849 = vld [vmem:[#allocation2 + $0x91] sm:$0xff]
    %v850 = vld [vmem:[#allocation2 + $0x99] sm:$0xff]
    %v851 = vld [vmem:[#allocation2 + $0xa9] sm:$0xff]
    %v852 = vld [vmem:[#allocation2 + $0xb1] sm:$0xff]
    %v853 = vpack.c.bf16 %v838, %v837
    %v854 = vpack.c.bf16 %v840, %v839
    %v855 = vpack.c.bf16 %v842, %v841
    %v856 = vpack.c.bf16 %v844, %v843
    %v857 = vpack.c.bf16 %v846, %v845
    %v858 = vpack.c.bf16 %v848, %v847
    %v859 = vpack.c.bf16 %v850, %v849
    %v860 = vpack.c.bf16 %v852, %v851
    %s861 = scalar_lea.vmem %s2, 64
    %v862 = vld [vmem:[%s861] sm:$0xf]
    %v863 = vld [vmem:[%s861 + $0x4] sm:$0xf]
    %v864 = vld [vmem:[%s861 + $0x8] sm:$0xf]
    %v865 = vld [vmem:[%s861 + $0xc] sm:$0xf]
    %v866 = vld [vmem:[%s861 + $0x10] sm:$0xf]
    %v867 = vld [vmem:[%s861 + $0x14] sm:$0xf]
    %v868 = vld [vmem:[%s861 + $0x18] sm:$0xf]
    %v869 = vld [vmem:[%s861 + $0x1c] sm:$0xf]
    %v870 = vld [vmem:[%s861 + $0x20] sm:$0xf]
    %v871 = vld [vmem:[%s861 + $0x24] sm:$0xf]
    %v872 = vld [vmem:[%s861 + $0x28] sm:$0xf]
    %v873 = vld [vmem:[%s861 + $0x2c] sm:$0xf]
    %v874 = vld [vmem:[%s861 + $0x30] sm:$0xf]
    %v875 = vld [vmem:[%s861 + $0x34] sm:$0xf]
    %v876 = vld [vmem:[%s861 + $0x38] sm:$0xf]
    %v877 = vld [vmem:[%s861 + $0x3c] sm:$0xf]
    %v894 = vunpack.c.l.b16 %v862
    %v895 = vunpack.c.l.b16 %v863
    %v896 = vunpack.c.l.b16 %v864
    %v897 = vunpack.c.l.b16 %v865
    %v898 = vunpack.c.l.b16 %v866
    %v899 = vunpack.c.l.b16 %v867
    %v900 = vunpack.c.l.b16 %v868
    %v901 = vunpack.c.l.b16 %v869
    %v902 = vunpack.c.l.b16 %v870
    %v903 = vunpack.c.l.b16 %v871
    %v904 = vunpack.c.l.b16 %v872
    %v905 = vunpack.c.l.b16 %v873
    %v906 = vunpack.c.l.b16 %v874
    %v907 = vunpack.c.l.b16 %v875
    %v908 = vunpack.c.l.b16 %v876
    %v909 = vunpack.c.l.b16 %v877
    %v910 = vpack.c.b16 %v895, %v894
    %v911 = vpack.c.b16 %v897, %v896
    %v912 = vpack.c.b16 %v899, %v898
    %v913 = vpack.c.b16 %v901, %v900
    %v914 = vpack.c.b16 %v903, %v902
    %v915 = vpack.c.b16 %v905, %v904
    %v916 = vpack.c.b16 %v907, %v906
    %v917 = vpack.c.b16 %v909, %v908
    %926 = vmatpush.bf16.msra.mxu0 %v917
    %927 = vmatpush.bf16.msra.mxu0 %v916
    %928 = vmatpush.bf16.msra.mxu0 %v915
    %929 = vmatpush.bf16.msra.mxu0 %v914
    %930 = vmatpush.bf16.msra.mxu0 %v913
    %931 = vmatpush.bf16.msra.mxu0 %v912
    %932 = vmatpush.bf16.msra.mxu0 %v911
    %933 = vmatpush.bf16.msra.mxu0 %v910
    %934 = vmatmul.bf16.gmra.mxu0 %v853
    %v935 = vpop.f32.mrf.mxu0
    %v936 = vadd.f32 0.0, %v935
    %v937 = vpop.f32.mrf.mxu0
    %v938 = vadd.f32 0.0, %v937
    %939 = vmatmul.bf16.gmra.mxu0 %v854
    %v940 = vpop.f32.mrf.mxu0
    %v941 = vadd.f32 0.0, %v940
    %v942 = vpop.f32.mrf.mxu0
    %v943 = vadd.f32 0.0, %v942
    %944 = vmatmul.bf16.gmra.mxu0 %v855
    %v945 = vpop.f32.mrf.mxu0
    %v946 = vadd.f32 0.0, %v945
    %v947 = vpop.f32.mrf.mxu0
    %v948 = vadd.f32 0.0, %v947
    %949 = vmatmul.bf16.gmra.mxu0 %v856
    %v950 = vpop.f32.mrf.mxu0
    %v951 = vadd.f32 0.0, %v950
    %v952 = vpop.f32.mrf.mxu0
    %v953 = vadd.f32 0.0, %v952
    %954 = vmatmul.bf16.gmra.mxu0 %v857
    %v955 = vpop.f32.mrf.mxu0
    %v956 = vadd.f32 0.0, %v955
    %v957 = vpop.f32.mrf.mxu0
    %v958 = vadd.f32 0.0, %v957
    %959 = vmatmul.bf16.gmra.mxu0 %v858
    %v960 = vpop.f32.mrf.mxu0
    %v961 = vadd.f32 0.0, %v960
    %v962 = vpop.f32.mrf.mxu0
    %v963 = vadd.f32 0.0, %v962
    %964 = vmatmul.bf16.gmra.mxu0 %v859
    %v965 = vpop.f32.mrf.mxu0
    %v966 = vadd.f32 0.0, %v965
    %v967 = vpop.f32.mrf.mxu0
    %v968 = vadd.f32 0.0, %v967
    %969 = vmatmul.bf16.gmra.mxu0 %v860
    %v970 = vpop.f32.mrf.mxu0
    %v971 = vadd.f32 0.0, %v970
    %v972 = vpop.f32.mrf.mxu0
    %v973 = vadd.f32 0.0, %v972
    %974 = vdwg.mxu0
    %v975 = vadd.f32 %v821, %v936
    %v976 = vadd.f32 %v822, %v938
    %v977 = vadd.f32 %v823, %v941
    %v978 = vadd.f32 %v824, %v943
    %v979 = vadd.f32 %v825, %v946
    %v980 = vadd.f32 %v826, %v948
    %v981 = vadd.f32 %v827, %v951
    %v982 = vadd.f32 %v828, %v953
    %v983 = vadd.f32 %v829, %v956
    %v984 = vadd.f32 %v830, %v958
    %v985 = vadd.f32 %v831, %v961
    %v986 = vadd.f32 %v832, %v963
    %v987 = vadd.f32 %v833, %v966
    %v988 = vadd.f32 %v834, %v968
    %v989 = vadd.f32 %v835, %v971
    %v990 = vadd.f32 %v836, %v973
    %v991 = vld [vmem:[#allocation2 + $0x2] sm:$0xff]
    %v992 = vld [vmem:[#allocation2 + $0xa] sm:$0xff]
    %v993 = vld [vmem:[#allocation2 + $0x1a] sm:$0xff]
    %v994 = vld [vmem:[#allocation2 + $0x22] sm:$0xff]
    %v995 = vld [vmem:[#allocation2 + $0x32] sm:$0xff]
    %v996 = vld [vmem:[#allocation2 + $0x3a] sm:$0xff]
    %v997 = vld [vmem:[#allocation2 + $0x4a] sm:$0xff]
    %v998 = vld [vmem:[#allocation2 + $0x52] sm:$0xff]
    %v999 = vld [vmem:[#allocation2 + $0x62] sm:$0xff]
    %v1000 = vld [vmem:[#allocation2 + $0x6a] sm:$0xff]
    %v1001 = vld [vmem:[#allocation2 + $0x7a] sm:$0xff]
    %v1002 = vld [vmem:[#allocation2 + $0x82] sm:$0xff]
    %v1003 = vld [vmem:[#allocation2 + $0x92] sm:$0xff]
    %v1004 = vld [vmem:[#allocation2 + $0x9a] sm:$0xff]
    %v1005 = vld [vmem:[#allocation2 + $0xaa] sm:$0xff]
    %v1006 = vld [vmem:[#allocation2 + $0xb2] sm:$0xff]
    %v1007 = vpack.c.bf16 %v992, %v991
    %v1008 = vpack.c.bf16 %v994, %v993
    %v1009 = vpack.c.bf16 %v996, %v995
    %v1010 = vpack.c.bf16 %v998, %v997
    %v1011 = vpack.c.bf16 %v1000, %v999
    %v1012 = vpack.c.bf16 %v1002, %v1001
    %v1013 = vpack.c.bf16 %v1004, %v1003
    %v1014 = vpack.c.bf16 %v1006, %v1005
    %s1015 = scalar_lea.vmem %s2, 128
    %v1016 = vld [vmem:[%s1015] sm:$0xf]
    %v1017 = vld [vmem:[%s1015 + $0x4] sm:$0xf]
    %v1018 = vld [vmem:[%s1015 + $0x8] sm:$0xf]
    %v1019 = vld [vmem:[%s1015 + $0xc] sm:$0xf]
    %v1020 = vld [vmem:[%s1015 + $0x10] sm:$0xf]
    %v1021 = vld [vmem:[%s1015 + $0x14] sm:$0xf]
    %v1022 = vld [vmem:[%s1015 + $0x18] sm:$0xf]
    %v1023 = vld [vmem:[%s1015 + $0x1c] sm:$0xf]
    %v1024 = vld [vmem:[%s1015 + $0x20] sm:$0xf]
    %v1025 = vld [vmem:[%s1015 + $0x24] sm:$0xf]
    %v1026 = vld [vmem:[%s1015 + $0x28] sm:$0xf]
    %v1027 = vld [vmem:[%s1015 + $0x2c] sm:$0xf]
    %v1028 = vld [vmem:[%s1015 + $0x30] sm:$0xf]
    %v1029 = vld [vmem:[%s1015 + $0x34] sm:$0xf]
    %v1030 = vld [vmem:[%s1015 + $0x38] sm:$0xf]
    %v1031 = vld [vmem:[%s1015 + $0x3c] sm:$0xf]
    %v1048 = vunpack.c.l.b16 %v1016
    %v1049 = vunpack.c.l.b16 %v1017
    %v1050 = vunpack.c.l.b16 %v1018
    %v1051 = vunpack.c.l.b16 %v1019
    %v1052 = vunpack.c.l.b16 %v1020
    %v1053 = vunpack.c.l.b16 %v1021
    %v1054 = vunpack.c.l.b16 %v1022
    %v1055 = vunpack.c.l.b16 %v1023
    %v1056 = vunpack.c.l.b16 %v1024
    %v1057 = vunpack.c.l.b16 %v1025
    %v1058 = vunpack.c.l.b16 %v1026
    %v1059 = vunpack.c.l.b16 %v1027
    %v1060 = vunpack.c.l.b16 %v1028
    %v1061 = vunpack.c.l.b16 %v1029
    %v1062 = vunpack.c.l.b16 %v1030
    %v1063 = vunpack.c.l.b16 %v1031
    %v1064 = vpack.c.b16 %v1049, %v1048
    %v1065 = vpack.c.b16 %v1051, %v1050
    %v1066 = vpack.c.b16 %v1053, %v1052
    %v1067 = vpack.c.b16 %v1055, %v1054
    %v1068 = vpack.c.b16 %v1057, %v1056
    %v1069 = vpack.c.b16 %v1059, %v1058
    %v1070 = vpack.c.b16 %v1061, %v1060
    %v1071 = vpack.c.b16 %v1063, %v1062
    %1080 = vmatpush.bf16.msra.mxu0 %v1071
    %1081 = vmatpush.bf16.msra.mxu0 %v1070
    %1082 = vmatpush.bf16.msra.mxu0 %v1069
    %1083 = vmatpush.bf16.msra.mxu0 %v1068
    %1084 = vmatpush.bf16.msra.mxu0 %v1067
    %1085 = vmatpush.bf16.msra.mxu0 %v1066
    %1086 = vmatpush.bf16.msra.mxu0 %v1065
    %1087 = vmatpush.bf16.msra.mxu0 %v1064
    %1088 = vmatmul.bf16.gmra.mxu0 %v1007
    %v1089 = vpop.f32.mrf.mxu0
    %v1090 = vadd.f32 0.0, %v1089
    %v1091 = vpop.f32.mrf.mxu0
    %v1092 = vadd.f32 0.0, %v1091
    %1093 = vmatmul.bf16.gmra.mxu0 %v1008
    %v1094 = vpop.f32.mrf.mxu0
    %v1095 = vadd.f32 0.0, %v1094
    %v1096 = vpop.f32.mrf.mxu0
    %v1097 = vadd.f32 0.0, %v1096
    %1098 = vmatmul.bf16.gmra.mxu0 %v1009
    %v1099 = vpop.f32.mrf.mxu0
    %v1100 = vadd.f32 0.0, %v1099
    %v1101 = vpop.f32.mrf.mxu0
    %v1102 = vadd.f32 0.0, %v1101
    %1103 = vmatmul.bf16.gmra.mxu0 %v1010
    %v1104 = vpop.f32.mrf.mxu0
    %v1105 = vadd.f32 0.0, %v1104
    %v1106 = vpop.f32.mrf.mxu0
    %v1107 = vadd.f32 0.0, %v1106
    %1108 = vmatmul.bf16.gmra.mxu0 %v1011
    %v1109 = vpop.f32.mrf.mxu0
    %v1110 = vadd.f32 0.0, %v1109
    %v1111 = vpop.f32.mrf.mxu0
    %v1112 = vadd.f32 0.0, %v1111
    %1113 = vmatmul.bf16.gmra.mxu0 %v1012
    %v1114 = vpop.f32.mrf.mxu0
    %v1115 = vadd.f32 0.0, %v1114
    %v1116 = vpop.f32.mrf.mxu0
    %v1117 = vadd.f32 0.0, %v1116
    %1118 = vmatmul.bf16.gmra.mxu0 %v1013
    %v1119 = vpop.f32.mrf.mxu0
    %v1120 = vadd.f32 0.0, %v1119
    %v1121 = vpop.f32.mrf.mxu0
    %v1122 = vadd.f32 0.0, %v1121
    %1123 = vmatmul.bf16.gmra.mxu0 %v1014
    %v1124 = vpop.f32.mrf.mxu0
    %v1125 = vadd.f32 0.0, %v1124
    %v1126 = vpop.f32.mrf.mxu0
    %v1127 = vadd.f32 0.0, %v1126
    %1128 = vdwg.mxu0
    %v1129 = vadd.f32 %v975, %v1090
    %v1130 = vadd.f32 %v976, %v1092
    %v1131 = vadd.f32 %v977, %v1095
    %v1132 = vadd.f32 %v978, %v1097
    %v1133 = vadd.f32 %v979, %v1100
    %v1134 = vadd.f32 %v980, %v1102
    %v1135 = vadd.f32 %v981, %v1105
    %v1136 = vadd.f32 %v982, %v1107
    %v1137 = vadd.f32 %v983, %v1110
    %v1138 = vadd.f32 %v984, %v1112
    %v1139 = vadd.f32 %v985, %v1115
    %v1140 = vadd.f32 %v986, %v1117
    %v1141 = vadd.f32 %v987, %v1120
    %v1142 = vadd.f32 %v988, %v1122
    %v1143 = vadd.f32 %v989, %v1125
    %v1144 = vadd.f32 %v990, %v1127
    %v1145 = vld [vmem:[%s25] sm:$0xff]
    %v1146 = vld [vmem:[%s25 + $0x8] sm:$0xff]
    %v1147 = vld [vmem:[%s25 + $0x18] sm:$0xff]
    %v1148 = vld [vmem:[%s25 + $0x20] sm:$0xff]
    %v1149 = vld [vmem:[%s25 + $0x30] sm:$0xff]
    %v1150 = vld [vmem:[%s25 + $0x38] sm:$0xff]
    %v1151 = vld [vmem:[%s25 + $0x48] sm:$0xff]
    %v1152 = vld [vmem:[%s25 + $0x50] sm:$0xff]
    %v1153 = vld [vmem:[%s25 + $0x60] sm:$0xff]
    %v1154 = vld [vmem:[%s25 + $0x68] sm:$0xff]
    %v1155 = vld [vmem:[%s25 + $0x78] sm:$0xff]
    %v1156 = vld [vmem:[%s25 + $0x80] sm:$0xff]
    %v1157 = vld [vmem:[%s25 + $0x90] sm:$0xff]
    %v1158 = vld [vmem:[%s25 + $0x98] sm:$0xff]
    %v1159 = vld [vmem:[%s25 + $0xa8] sm:$0xff]
    %v1160 = vld [vmem:[%s25 + $0xb0] sm:$0xff]
    %v1161 = vpack.c.bf16 %v1146, %v1145
    %v1162 = vpack.c.bf16 %v1148, %v1147
    %v1163 = vpack.c.bf16 %v1150, %v1149
    %v1164 = vpack.c.bf16 %v1152, %v1151
    %v1165 = vpack.c.bf16 %v1154, %v1153
    %v1166 = vpack.c.bf16 %v1156, %v1155
    %v1167 = vpack.c.bf16 %v1158, %v1157
    %v1168 = vpack.c.bf16 %v1160, %v1159
    %s1169 = scalar_lea.vmem %s2, 192
    %v1170 = vld [vmem:[%s1169] sm:$0xf]
    %v1171 = vld [vmem:[%s1169 + $0x4] sm:$0xf]
    %v1172 = vld [vmem:[%s1169 + $0x8] sm:$0xf]
    %v1173 = vld [vmem:[%s1169 + $0xc] sm:$0xf]
    %v1174 = vld [vmem:[%s1169 + $0x10] sm:$0xf]
    %v1175 = vld [vmem:[%s1169 + $0x14] sm:$0xf]
    %v1176 = vld [vmem:[%s1169 + $0x18] sm:$0xf]
    %v1177 = vld [vmem:[%s1169 + $0x1c] sm:$0xf]
    %v1178 = vld [vmem:[%s1169 + $0x20] sm:$0xf]
    %v1179 = vld [vmem:[%s1169 + $0x24] sm:$0xf]
    %v1180 = vld [vmem:[%s1169 + $0x28] sm:$0xf]
    %v1181 = vld [vmem:[%s1169 + $0x2c] sm:$0xf]
    %v1182 = vld [vmem:[%s1169 + $0x30] sm:$0xf]
    %v1183 = vld [vmem:[%s1169 + $0x34] sm:$0xf]
    %v1184 = vld [vmem:[%s1169 + $0x38] sm:$0xf]
    %v1185 = vld [vmem:[%s1169 + $0x3c] sm:$0xf]
    %v1202 = vunpack.c.l.b16 %v1170
    %v1203 = vunpack.c.l.b16 %v1171
    %v1204 = vunpack.c.l.b16 %v1172
    %v1205 = vunpack.c.l.b16 %v1173
    %v1206 = vunpack.c.l.b16 %v1174
    %v1207 = vunpack.c.l.b16 %v1175
    %v1208 = vunpack.c.l.b16 %v1176
    %v1209 = vunpack.c.l.b16 %v1177
    %v1210 = vunpack.c.l.b16 %v1178
    %v1211 = vunpack.c.l.b16 %v1179
    %v1212 = vunpack.c.l.b16 %v1180
    %v1213 = vunpack.c.l.b16 %v1181
    %v1214 = vunpack.c.l.b16 %v1182
    %v1215 = vunpack.c.l.b16 %v1183
    %v1216 = vunpack.c.l.b16 %v1184
    %v1217 = vunpack.c.l.b16 %v1185
    %v1218 = vpack.c.b16 %v1203, %v1202
    %v1219 = vpack.c.b16 %v1205, %v1204
    %v1220 = vpack.c.b16 %v1207, %v1206
    %v1221 = vpack.c.b16 %v1209, %v1208
    %v1222 = vpack.c.b16 %v1211, %v1210
    %v1223 = vpack.c.b16 %v1213, %v1212
    %v1224 = vpack.c.b16 %v1215, %v1214
    %v1225 = vpack.c.b16 %v1217, %v1216
    %1234 = vmatpush.bf16.msra.mxu0 %v1225
    %1235 = vmatpush.bf16.msra.mxu0 %v1224
    %1236 = vmatpush.bf16.msra.mxu0 %v1223
    %1237 = vmatpush.bf16.msra.mxu0 %v1222
    %1238 = vmatpush.bf16.msra.mxu0 %v1221
    %1239 = vmatpush.bf16.msra.mxu0 %v1220
    %1240 = vmatpush.bf16.msra.mxu0 %v1219
    %1241 = vmatpush.bf16.msra.mxu0 %v1218
    %1242 = vmatmul.bf16.gmra.mxu0 %v1161
    %v1243 = vpop.f32.mrf.mxu0
    %v1244 = vadd.f32 0.0, %v1243
    %v1245 = vpop.f32.mrf.mxu0
    %v1246 = vadd.f32 0.0, %v1245
    %1247 = vmatmul.bf16.gmra.mxu0 %v1162
    %v1248 = vpop.f32.mrf.mxu0
    %v1249 = vadd.f32 0.0, %v1248
    %v1250 = vpop.f32.mrf.mxu0
    %v1251 = vadd.f32 0.0, %v1250
    %1252 = vmatmul.bf16.gmra.mxu0 %v1163
    %v1253 = vpop.f32.mrf.mxu0
    %v1254 = vadd.f32 0.0, %v1253
    %v1255 = vpop.f32.mrf.mxu0
    %v1256 = vadd.f32 0.0, %v1255
    %1257 = vmatmul.bf16.gmra.mxu0 %v1164
    %v1258 = vpop.f32.mrf.mxu0
    %v1259 = vadd.f32 0.0, %v1258
    %v1260 = vpop.f32.mrf.mxu0
    %v1261 = vadd.f32 0.0, %v1260
    %1262 = vmatmul.bf16.gmra.mxu0 %v1165
    %v1263 = vpop.f32.mrf.mxu0
    %v1264 = vadd.f32 0.0, %v1263
    %v1265 = vpop.f32.mrf.mxu0
    %v1266 = vadd.f32 0.0, %v1265
    %1267 = vmatmul.bf16.gmra.mxu0 %v1166
    %v1268 = vpop.f32.mrf.mxu0
    %v1269 = vadd.f32 0.0, %v1268
    %v1270 = vpop.f32.mrf.mxu0
    %v1271 = vadd.f32 0.0, %v1270
    %1272 = vmatmul.bf16.gmra.mxu0 %v1167
    %v1273 = vpop.f32.mrf.mxu0
    %v1274 = vadd.f32 0.0, %v1273
    %v1275 = vpop.f32.mrf.mxu0
    %v1276 = vadd.f32 0.0, %v1275
    %1277 = vmatmul.bf16.gmra.mxu0 %v1168
    %v1278 = vpop.f32.mrf.mxu0
    %v1279 = vadd.f32 0.0, %v1278
    %v1280 = vpop.f32.mrf.mxu0
    %v1281 = vadd.f32 0.0, %v1280
    %1282 = vdwg.mxu0
    %v1283 = vadd.f32 %v1129, %v1244
    %v1284 = vadd.f32 %v1130, %v1246
    %v1285 = vadd.f32 %v1131, %v1249
    %v1286 = vadd.f32 %v1132, %v1251
    %v1287 = vadd.f32 %v1133, %v1254
    %v1288 = vadd.f32 %v1134, %v1256
    %v1289 = vadd.f32 %v1135, %v1259
    %v1290 = vadd.f32 %v1136, %v1261
    %v1291 = vadd.f32 %v1137, %v1264
    %v1292 = vadd.f32 %v1138, %v1266
    %v1293 = vadd.f32 %v1139, %v1269
    %v1294 = vadd.f32 %v1140, %v1271
    %v1295 = vadd.f32 %v1141, %v1274
    %v1296 = vadd.f32 %v1142, %v1276
    %v1297 = vadd.f32 %v1143, %v1279
    %v1298 = vadd.f32 %v1144, %v1281
    %v1299 = vld [vmem:[%s25 + $0x1] sm:$0xff]
    %v1300 = vld [vmem:[%s25 + $0x9] sm:$0xff]
    %v1301 = vld [vmem:[%s25 + $0x19] sm:$0xff]
    %v1302 = vld [vmem:[%s25 + $0x21] sm:$0xff]
    %v1303 = vld [vmem:[%s25 + $0x31] sm:$0xff]
    %v1304 = vld [vmem:[%s25 + $0x39] sm:$0xff]
    %v1305 = vld [vmem:[%s25 + $0x49] sm:$0xff]
    %v1306 = vld [vmem:[%s25 + $0x51] sm:$0xff]
    %v1307 = vld [vmem:[%s25 + $0x61] sm:$0xff]
    %v1308 = vld [vmem:[%s25 + $0x69] sm:$0xff]
    %v1309 = vld [vmem:[%s25 + $0x79] sm:$0xff]
    %v1310 = vld [vmem:[%s25 + $0x81] sm:$0xff]
    %v1311 = vld [vmem:[%s25 + $0x91] sm:$0xff]
    %v1312 = vld [vmem:[%s25 + $0x99] sm:$0xff]
    %v1313 = vld [vmem:[%s25 + $0xa9] sm:$0xff]
    %v1314 = vld [vmem:[%s25 + $0xb1] sm:$0xff]
    %v1315 = vpack.c.bf16 %v1300, %v1299
    %v1316 = vpack.c.bf16 %v1302, %v1301
    %v1317 = vpack.c.bf16 %v1304, %v1303
    %v1318 = vpack.c.bf16 %v1306, %v1305
    %v1319 = vpack.c.bf16 %v1308, %v1307
    %v1320 = vpack.c.bf16 %v1310, %v1309
    %v1321 = vpack.c.bf16 %v1312, %v1311
    %v1322 = vpack.c.bf16 %v1314, %v1313
    %s1323 = scalar_lea.vmem %s2, 256
    %v1324 = vld [vmem:[%s1323] sm:$0xf]
    %v1325 = vld [vmem:[%s1323 + $0x4] sm:$0xf]
    %v1326 = vld [vmem:[%s1323 + $0x8] sm:$0xf]
    %v1327 = vld [vmem:[%s1323 + $0xc] sm:$0xf]
    %v1328 = vld [vmem:[%s1323 + $0x10] sm:$0xf]
    %v1329 = vld [vmem:[%s1323 + $0x14] sm:$0xf]
    %v1330 = vld [vmem:[%s1323 + $0x18] sm:$0xf]
    %v1331 = vld [vmem:[%s1323 + $0x1c] sm:$0xf]
    %v1332 = vld [vmem:[%s1323 + $0x20] sm:$0xf]
    %v1333 = vld [vmem:[%s1323 + $0x24] sm:$0xf]
    %v1334 = vld [vmem:[%s1323 + $0x28] sm:$0xf]
    %v1335 = vld [vmem:[%s1323 + $0x2c] sm:$0xf]
    %v1336 = vld [vmem:[%s1323 + $0x30] sm:$0xf]
    %v1337 = vld [vmem:[%s1323 + $0x34] sm:$0xf]
    %v1338 = vld [vmem:[%s1323 + $0x38] sm:$0xf]
    %v1339 = vld [vmem:[%s1323 + $0x3c] sm:$0xf]
    %v1356 = vunpack.c.l.b16 %v1324
    %v1357 = vunpack.c.l.b16 %v1325
    %v1358 = vunpack.c.l.b16 %v1326
    %v1359 = vunpack.c.l.b16 %v1327
    %v1360 = vunpack.c.l.b16 %v1328
    %v1361 = vunpack.c.l.b16 %v1329
    %v1362 = vunpack.c.l.b16 %v1330
    %v1363 = vunpack.c.l.b16 %v1331
    %v1364 = vunpack.c.l.b16 %v1332
    %v1365 = vunpack.c.l.b16 %v1333
    %v1366 = vunpack.c.l.b16 %v1334
    %v1367 = vunpack.c.l.b16 %v1335
    %v1368 = vunpack.c.l.b16 %v1336
    %v1369 = vunpack.c.l.b16 %v1337
    %v1370 = vunpack.c.l.b16 %v1338
    %v1371 = vunpack.c.l.b16 %v1339
    %v1372 = vpack.c.b16 %v1357, %v1356
    %v1373 = vpack.c.b16 %v1359, %v1358
    %v1374 = vpack.c.b16 %v1361, %v1360
    %v1375 = vpack.c.b16 %v1363, %v1362
    %v1376 = vpack.c.b16 %v1365, %v1364
    %v1377 = vpack.c.b16 %v1367, %v1366
    %v1378 = vpack.c.b16 %v1369, %v1368
    %v1379 = vpack.c.b16 %v1371, %v1370
    %1388 = vmatpush.bf16.msra.mxu0 %v1379
    %1389 = vmatpush.bf16.msra.mxu0 %v1378
    %1390 = vmatpush.bf16.msra.mxu0 %v1377
    %1391 = vmatpush.bf16.msra.mxu0 %v1376
    %1392 = vmatpush.bf16.msra.mxu0 %v1375
    %1393 = vmatpush.bf16.msra.mxu0 %v1374
    %1394 = vmatpush.bf16.msra.mxu0 %v1373
    %1395 = vmatpush.bf16.msra.mxu0 %v1372
    %1396 = vmatmul.bf16.gmra.mxu0 %v1315
    %v1397 = vpop.f32.mrf.mxu0
    %v1398 = vadd.f32 0.0, %v1397
    %v1399 = vpop.f32.mrf.mxu0
    %v1400 = vadd.f32 0.0, %v1399
    %1401 = vmatmul.bf16.gmra.mxu0 %v1316
    %v1402 = vpop.f32.mrf.mxu0
    %v1403 = vadd.f32 0.0, %v1402
    %v1404 = vpop.f32.mrf.mxu0
    %v1405 = vadd.f32 0.0, %v1404
    %1406 = vmatmul.bf16.gmra.mxu0 %v1317
    %v1407 = vpop.f32.mrf.mxu0
    %v1408 = vadd.f32 0.0, %v1407
    %v1409 = vpop.f32.mrf.mxu0
    %v1410 = vadd.f32 0.0, %v1409
    %1411 = vmatmul.bf16.gmra.mxu0 %v1318
    %v1412 = vpop.f32.mrf.mxu0
    %v1413 = vadd.f32 0.0, %v1412
    %v1414 = vpop.f32.mrf.mxu0
    %v1415 = vadd.f32 0.0, %v1414
    %1416 = vmatmul.bf16.gmra.mxu0 %v1319
    %v1417 = vpop.f32.mrf.mxu0
    %v1418 = vadd.f32 0.0, %v1417
    %v1419 = vpop.f32.mrf.mxu0
    %v1420 = vadd.f32 0.0, %v1419
    %1421 = vmatmul.bf16.gmra.mxu0 %v1320
    %v1422 = vpop.f32.mrf.mxu0
    %v1423 = vadd.f32 0.0, %v1422
    %v1424 = vpop.f32.mrf.mxu0
    %v1425 = vadd.f32 0.0, %v1424
    %1426 = vmatmul.bf16.gmra.mxu0 %v1321
    %v1427 = vpop.f32.mrf.mxu0
    %v1428 = vadd.f32 0.0, %v1427
    %v1429 = vpop.f32.mrf.mxu0
    %v1430 = vadd.f32 0.0, %v1429
    %1431 = vmatmul.bf16.gmra.mxu0 %v1322
    %v1432 = vpop.f32.mrf.mxu0
    %v1433 = vadd.f32 0.0, %v1432
    %v1434 = vpop.f32.mrf.mxu0
    %v1435 = vadd.f32 0.0, %v1434
    %1436 = vdwg.mxu0
    %v1437 = vadd.f32 %v1283, %v1398
    %v1438 = vadd.f32 %v1284, %v1400
    %v1439 = vadd.f32 %v1285, %v1403
    %v1440 = vadd.f32 %v1286, %v1405
    %v1441 = vadd.f32 %v1287, %v1408
    %v1442 = vadd.f32 %v1288, %v1410
    %v1443 = vadd.f32 %v1289, %v1413
    %v1444 = vadd.f32 %v1290, %v1415
    %v1445 = vadd.f32 %v1291, %v1418
    %v1446 = vadd.f32 %v1292, %v1420
    %v1447 = vadd.f32 %v1293, %v1423
    %v1448 = vadd.f32 %v1294, %v1425
    %v1449 = vadd.f32 %v1295, %v1428
    %v1450 = vadd.f32 %v1296, %v1430
    %v1451 = vadd.f32 %v1297, %v1433
    %v1452 = vadd.f32 %v1298, %v1435
    %v1453 = vld [vmem:[%s25 + $0x2] sm:$0xff]
    %v1454 = vld [vmem:[%s25 + $0xa] sm:$0xff]
    %v1455 = vld [vmem:[%s25 + $0x1a] sm:$0xff]
    %v1456 = vld [vmem:[%s25 + $0x22] sm:$0xff]
    %v1457 = vld [vmem:[%s25 + $0x32] sm:$0xff]
    %v1458 = vld [vmem:[%s25 + $0x3a] sm:$0xff]
    %v1459 = vld [vmem:[%s25 + $0x4a] sm:$0xff]
    %v1460 = vld [vmem:[%s25 + $0x52] sm:$0xff]
    %v1461 = vld [vmem:[%s25 + $0x62] sm:$0xff]
    %v1462 = vld [vmem:[%s25 + $0x6a] sm:$0xff]
    %v1463 = vld [vmem:[%s25 + $0x7a] sm:$0xff]
    %v1464 = vld [vmem:[%s25 + $0x82] sm:$0xff]
    %v1465 = vld [vmem:[%s25 + $0x92] sm:$0xff]
    %v1466 = vld [vmem:[%s25 + $0x9a] sm:$0xff]
    %v1467 = vld [vmem:[%s25 + $0xaa] sm:$0xff]
    %v1468 = vld [vmem:[%s25 + $0xb2] sm:$0xff]
    %v1469 = vpack.c.bf16 %v1454, %v1453
    %v1470 = vpack.c.bf16 %v1456, %v1455
    %v1471 = vpack.c.bf16 %v1458, %v1457
    %v1472 = vpack.c.bf16 %v1460, %v1459
    %v1473 = vpack.c.bf16 %v1462, %v1461
    %v1474 = vpack.c.bf16 %v1464, %v1463
    %v1475 = vpack.c.bf16 %v1466, %v1465
    %v1476 = vpack.c.bf16 %v1468, %v1467
    %s1477 = scalar_lea.vmem %s2, 320
    %v1478 = vld [vmem:[%s1477] sm:$0xf]
    %v1479 = vld [vmem:[%s1477 + $0x4] sm:$0xf]
    %v1480 = vld [vmem:[%s1477 + $0x8] sm:$0xf]
    %v1481 = vld [vmem:[%s1477 + $0xc] sm:$0xf]
    %v1482 = vld [vmem:[%s1477 + $0x10] sm:$0xf]
    %v1483 = vld [vmem:[%s1477 + $0x14] sm:$0xf]
    %v1484 = vld [vmem:[%s1477 + $0x18] sm:$0xf]
    %v1485 = vld [vmem:[%s1477 + $0x1c] sm:$0xf]
    %v1486 = vld [vmem:[%s1477 + $0x20] sm:$0xf]
    %v1487 = vld [vmem:[%s1477 + $0x24] sm:$0xf]
    %v1488 = vld [vmem:[%s1477 + $0x28] sm:$0xf]
    %v1489 = vld [vmem:[%s1477 + $0x2c] sm:$0xf]
    %v1490 = vld [vmem:[%s1477 + $0x30] sm:$0xf]
    %v1491 = vld [vmem:[%s1477 + $0x34] sm:$0xf]
    %v1492 = vld [vmem:[%s1477 + $0x38] sm:$0xf]
    %v1493 = vld [vmem:[%s1477 + $0x3c] sm:$0xf]
    %v1510 = vunpack.c.l.b16 %v1478
    %v1511 = vunpack.c.l.b16 %v1479
    %v1512 = vunpack.c.l.b16 %v1480
    %v1513 = vunpack.c.l.b16 %v1481
    %v1514 = vunpack.c.l.b16 %v1482
    %v1515 = vunpack.c.l.b16 %v1483
    %v1516 = vunpack.c.l.b16 %v1484
    %v1517 = vunpack.c.l.b16 %v1485
    %v1518 = vunpack.c.l.b16 %v1486
    %v1519 = vunpack.c.l.b16 %v1487
    %v1520 = vunpack.c.l.b16 %v1488
    %v1521 = vunpack.c.l.b16 %v1489
    %v1522 = vunpack.c.l.b16 %v1490
    %v1523 = vunpack.c.l.b16 %v1491
    %v1524 = vunpack.c.l.b16 %v1492
    %v1525 = vunpack.c.l.b16 %v1493
    %v1526 = vpack.c.b16 %v1511, %v1510
    %v1527 = vpack.c.b16 %v1513, %v1512
    %v1528 = vpack.c.b16 %v1515, %v1514
    %v1529 = vpack.c.b16 %v1517, %v1516
    %v1530 = vpack.c.b16 %v1519, %v1518
    %v1531 = vpack.c.b16 %v1521, %v1520
    %v1532 = vpack.c.b16 %v1523, %v1522
    %v1533 = vpack.c.b16 %v1525, %v1524
    %1542 = vmatpush.bf16.msra.mxu0 %v1533
    %1543 = vmatpush.bf16.msra.mxu0 %v1532
    %1544 = vmatpush.bf16.msra.mxu0 %v1531
    %1545 = vmatpush.bf16.msra.mxu0 %v1530
    %1546 = vmatpush.bf16.msra.mxu0 %v1529
    %1547 = vmatpush.bf16.msra.mxu0 %v1528
    %1548 = vmatpush.bf16.msra.mxu0 %v1527
    %1549 = vmatpush.bf16.msra.mxu0 %v1526
    %1550 = vmatmul.bf16.gmra.mxu0 %v1469
    %v1551 = vpop.f32.mrf.mxu0
    %v1552 = vadd.f32 0.0, %v1551
    %v1553 = vpop.f32.mrf.mxu0
    %v1554 = vadd.f32 0.0, %v1553
    %1555 = vmatmul.bf16.gmra.mxu0 %v1470
    %v1556 = vpop.f32.mrf.mxu0
    %v1557 = vadd.f32 0.0, %v1556
    %v1558 = vpop.f32.mrf.mxu0
    %v1559 = vadd.f32 0.0, %v1558
    %1560 = vmatmul.bf16.gmra.mxu0 %v1471
    %v1561 = vpop.f32.mrf.mxu0
    %v1562 = vadd.f32 0.0, %v1561
    %v1563 = vpop.f32.mrf.mxu0
    %v1564 = vadd.f32 0.0, %v1563
    %1565 = vmatmul.bf16.gmra.mxu0 %v1472
    %v1566 = vpop.f32.mrf.mxu0
    %v1567 = vadd.f32 0.0, %v1566
    %v1568 = vpop.f32.mrf.mxu0
    %v1569 = vadd.f32 0.0, %v1568
    %1570 = vmatmul.bf16.gmra.mxu0 %v1473
    %v1571 = vpop.f32.mrf.mxu0
    %v1572 = vadd.f32 0.0, %v1571
    %v1573 = vpop.f32.mrf.mxu0
    %v1574 = vadd.f32 0.0, %v1573
    %1575 = vmatmul.bf16.gmra.mxu0 %v1474
    %v1576 = vpop.f32.mrf.mxu0
    %v1577 = vadd.f32 0.0, %v1576
    %v1578 = vpop.f32.mrf.mxu0
    %v1579 = vadd.f32 0.0, %v1578
    %1580 = vmatmul.bf16.gmra.mxu0 %v1475
    %v1581 = vpop.f32.mrf.mxu0
    %v1582 = vadd.f32 0.0, %v1581
    %v1583 = vpop.f32.mrf.mxu0
    %v1584 = vadd.f32 0.0, %v1583
    %1585 = vmatmul.bf16.gmra.mxu0 %v1476
    %v1586 = vpop.f32.mrf.mxu0
    %v1587 = vadd.f32 0.0, %v1586
    %v1588 = vpop.f32.mrf.mxu0
    %v1589 = vadd.f32 0.0, %v1588
    %1590 = vdwg.mxu0
    %v1591 = vadd.f32 %v1437, %v1552
    %v1592 = vadd.f32 %v1438, %v1554
    %v1593 = vadd.f32 %v1439, %v1557
    %v1594 = vadd.f32 %v1440, %v1559
    %v1595 = vadd.f32 %v1441, %v1562
    %v1596 = vadd.f32 %v1442, %v1564
    %v1597 = vadd.f32 %v1443, %v1567
    %v1598 = vadd.f32 %v1444, %v1569
    %v1599 = vadd.f32 %v1445, %v1572
    %v1600 = vadd.f32 %v1446, %v1574
    %v1601 = vadd.f32 %v1447, %v1577
    %v1602 = vadd.f32 %v1448, %v1579
    %v1603 = vadd.f32 %v1449, %v1582
    %v1604 = vadd.f32 %v1450, %v1584
    %v1605 = vadd.f32 %v1451, %v1587
    %v1606 = vadd.f32 %v1452, %v1589
    %s1607 = scalar_lea.vmem [#allocation2], 48
    %v1608 = vld [vmem:[%s1607] sm:$0xff]
    %v1609 = vld [vmem:[%s1607 + $0x8] sm:$0xff]
    %v1610 = vld [vmem:[%s1607 + $0x18] sm:$0xff]
    %v1611 = vld [vmem:[%s1607 + $0x20] sm:$0xff]
    %v1612 = vld [vmem:[%s1607 + $0x30] sm:$0xff]
    %v1613 = vld [vmem:[%s1607 + $0x38] sm:$0xff]
    %v1614 = vld [vmem:[%s1607 + $0x48] sm:$0xff]
    %v1615 = vld [vmem:[%s1607 + $0x50] sm:$0xff]
    %v1616 = vld [vmem:[%s1607 + $0x60] sm:$0xff]
    %v1617 = vld [vmem:[%s1607 + $0x68] sm:$0xff]
    %v1618 = vld [vmem:[%s1607 + $0x78] sm:$0xff]
    %v1619 = vld [vmem:[%s1607 + $0x80] sm:$0xff]
    %v1620 = vld [vmem:[%s1607 + $0x90] sm:$0xff]
    %v1621 = vld [vmem:[%s1607 + $0x98] sm:$0xff]
    %v1622 = vld [vmem:[%s1607 + $0xa8] sm:$0xff]
    %v1623 = vld [vmem:[%s1607 + $0xb0] sm:$0xff]
    %v1624 = vpack.c.bf16 %v1609, %v1608
    %v1625 = vpack.c.bf16 %v1611, %v1610
    %v1626 = vpack.c.bf16 %v1613, %v1612
    %v1627 = vpack.c.bf16 %v1615, %v1614
    %v1628 = vpack.c.bf16 %v1617, %v1616
    %v1629 = vpack.c.bf16 %v1619, %v1618
    %v1630 = vpack.c.bf16 %v1621, %v1620
    %v1631 = vpack.c.bf16 %v1623, %v1622
    %s1632 = scalar_lea.vmem %s2, 384
    %v1633 = vld [vmem:[%s1632] sm:$0xf]
    %v1634 = vld [vmem:[%s1632 + $0x4] sm:$0xf]
    %v1635 = vld [vmem:[%s1632 + $0x8] sm:$0xf]
    %v1636 = vld [vmem:[%s1632 + $0xc] sm:$0xf]
    %v1637 = vld [vmem:[%s1632 + $0x10] sm:$0xf]
    %v1638 = vld [vmem:[%s1632 + $0x14] sm:$0xf]
    %v1639 = vld [vmem:[%s1632 + $0x18] sm:$0xf]
    %v1640 = vld [vmem:[%s1632 + $0x1c] sm:$0xf]
    %v1641 = vld [vmem:[%s1632 + $0x20] sm:$0xf]
    %v1642 = vld [vmem:[%s1632 + $0x24] sm:$0xf]
    %v1643 = vld [vmem:[%s1632 + $0x28] sm:$0xf]
    %v1644 = vld [vmem:[%s1632 + $0x2c] sm:$0xf]
    %v1645 = vld [vmem:[%s1632 + $0x30] sm:$0xf]
    %v1646 = vld [vmem:[%s1632 + $0x34] sm:$0xf]
    %v1647 = vld [vmem:[%s1632 + $0x38] sm:$0xf]
    %v1648 = vld [vmem:[%s1632 + $0x3c] sm:$0xf]
    %v1665 = vunpack.c.l.b16 %v1633
    %v1666 = vunpack.c.l.b16 %v1634
    %v1667 = vunpack.c.l.b16 %v1635
    %v1668 = vunpack.c.l.b16 %v1636
    %v1669 = vunpack.c.l.b16 %v1637
    %v1670 = vunpack.c.l.b16 %v1638
    %v1671 = vunpack.c.l.b16 %v1639
    %v1672 = vunpack.c.l.b16 %v1640
    %v1673 = vunpack.c.l.b16 %v1641
    %v1674 = vunpack.c.l.b16 %v1642
    %v1675 = vunpack.c.l.b16 %v1643
    %v1676 = vunpack.c.l.b16 %v1644
    %v1677 = vunpack.c.l.b16 %v1645
    %v1678 = vunpack.c.l.b16 %v1646
    %v1679 = vunpack.c.l.b16 %v1647
    %v1680 = vunpack.c.l.b16 %v1648
    %v1681 = vpack.c.b16 %v1666, %v1665
    %v1682 = vpack.c.b16 %v1668, %v1667
    %v1683 = vpack.c.b16 %v1670, %v1669
    %v1684 = vpack.c.b16 %v1672, %v1671
    %v1685 = vpack.c.b16 %v1674, %v1673
    %v1686 = vpack.c.b16 %v1676, %v1675
    %v1687 = vpack.c.b16 %v1678, %v1677
    %v1688 = vpack.c.b16 %v1680, %v1679
    %1697 = vmatpush.bf16.msra.mxu0 %v1688
    %1698 = vmatpush.bf16.msra.mxu0 %v1687
    %1699 = vmatpush.bf16.msra.mxu0 %v1686
    %1700 = vmatpush.bf16.msra.mxu0 %v1685
    %1701 = vmatpush.bf16.msra.mxu0 %v1684
    %1702 = vmatpush.bf16.msra.mxu0 %v1683
    %1703 = vmatpush.bf16.msra.mxu0 %v1682
    %1704 = vmatpush.bf16.msra.mxu0 %v1681
    %1705 = vmatmul.bf16.gmra.mxu0 %v1624
    %v1706 = vpop.f32.mrf.mxu0
    %v1707 = vadd.f32 0.0, %v1706
    %v1708 = vpop.f32.mrf.mxu0
    %v1709 = vadd.f32 0.0, %v1708
    %1710 = vmatmul.bf16.gmra.mxu0 %v1625
    %v1711 = vpop.f32.mrf.mxu0
    %v1712 = vadd.f32 0.0, %v1711
    %v1713 = vpop.f32.mrf.mxu0
    %v1714 = vadd.f32 0.0, %v1713
    %1715 = vmatmul.bf16.gmra.mxu0 %v1626
    %v1716 = vpop.f32.mrf.mxu0
    %v1717 = vadd.f32 0.0, %v1716
    %v1718 = vpop.f32.mrf.mxu0
    %v1719 = vadd.f32 0.0, %v1718
    %1720 = vmatmul.bf16.gmra.mxu0 %v1627
    %v1721 = vpop.f32.mrf.mxu0
    %v1722 = vadd.f32 0.0, %v1721
    %v1723 = vpop.f32.mrf.mxu0
    %v1724 = vadd.f32 0.0, %v1723
    %1725 = vmatmul.bf16.gmra.mxu0 %v1628
    %v1726 = vpop.f32.mrf.mxu0
    %v1727 = vadd.f32 0.0, %v1726
    %v1728 = vpop.f32.mrf.mxu0
    %v1729 = vadd.f32 0.0, %v1728
    %1730 = vmatmul.bf16.gmra.mxu0 %v1629
    %v1731 = vpop.f32.mrf.mxu0
    %v1732 = vadd.f32 0.0, %v1731
    %v1733 = vpop.f32.mrf.mxu0
    %v1734 = vadd.f32 0.0, %v1733
    %1735 = vmatmul.bf16.gmra.mxu0 %v1630
    %v1736 = vpop.f32.mrf.mxu0
    %v1737 = vadd.f32 0.0, %v1736
    %v1738 = vpop.f32.mrf.mxu0
    %v1739 = vadd.f32 0.0, %v1738
    %1740 = vmatmul.bf16.gmra.mxu0 %v1631
    %v1741 = vpop.f32.mrf.mxu0
    %v1742 = vadd.f32 0.0, %v1741
    %v1743 = vpop.f32.mrf.mxu0
    %v1744 = vadd.f32 0.0, %v1743
    %1745 = vdwg.mxu0
    %v1746 = vadd.f32 %v1591, %v1707
    %v1747 = vadd.f32 %v1592, %v1709
    %v1748 = vadd.f32 %v1593, %v1712
    %v1749 = vadd.f32 %v1594, %v1714
    %v1750 = vadd.f32 %v1595, %v1717
    %v1751 = vadd.f32 %v1596, %v1719
    %v1752 = vadd.f32 %v1597, %v1722
    %v1753 = vadd.f32 %v1598, %v1724
    %v1754 = vadd.f32 %v1599, %v1727
    %v1755 = vadd.f32 %v1600, %v1729
    %v1756 = vadd.f32 %v1601, %v1732
    %v1757 = vadd.f32 %v1602, %v1734
    %v1758 = vadd.f32 %v1603, %v1737
    %v1759 = vadd.f32 %v1604, %v1739
    %v1760 = vadd.f32 %v1605, %v1742
    %v1761 = vadd.f32 %v1606, %v1744
    %v1762 = vld [vmem:[%s1607 + $0x1] sm:$0xff]
    %v1763 = vld [vmem:[%s1607 + $0x9] sm:$0xff]
    %v1764 = vld [vmem:[%s1607 + $0x19] sm:$0xff]
    %v1765 = vld [vmem:[%s1607 + $0x21] sm:$0xff]
    %v1766 = vld [vmem:[%s1607 + $0x31] sm:$0xff]
    %v1767 = vld [vmem:[%s1607 + $0x39] sm:$0xff]
    %v1768 = vld [vmem:[%s1607 + $0x49] sm:$0xff]
    %v1769 = vld [vmem:[%s1607 + $0x51] sm:$0xff]
    %v1770 = vld [vmem:[%s1607 + $0x61] sm:$0xff]
    %v1771 = vld [vmem:[%s1607 + $0x69] sm:$0xff]
    %v1772 = vld [vmem:[%s1607 + $0x79] sm:$0xff]
    %v1773 = vld [vmem:[%s1607 + $0x81] sm:$0xff]
    %v1774 = vld [vmem:[%s1607 + $0x91] sm:$0xff]
    %v1775 = vld [vmem:[%s1607 + $0x99] sm:$0xff]
    %v1776 = vld [vmem:[%s1607 + $0xa9] sm:$0xff]
    %v1777 = vld [vmem:[%s1607 + $0xb1] sm:$0xff]
    %v1778 = vpack.c.bf16 %v1763, %v1762
    %v1779 = vpack.c.bf16 %v1765, %v1764
    %v1780 = vpack.c.bf16 %v1767, %v1766
    %v1781 = vpack.c.bf16 %v1769, %v1768
    %v1782 = vpack.c.bf16 %v1771, %v1770
    %v1783 = vpack.c.bf16 %v1773, %v1772
    %v1784 = vpack.c.bf16 %v1775, %v1774
    %v1785 = vpack.c.bf16 %v1777, %v1776
    %s1786 = scalar_lea.vmem %s2, 448
    %v1787 = vld [vmem:[%s1786] sm:$0xf]
    %v1788 = vld [vmem:[%s1786 + $0x4] sm:$0xf]
    %v1789 = vld [vmem:[%s1786 + $0x8] sm:$0xf]
    %v1790 = vld [vmem:[%s1786 + $0xc] sm:$0xf]
    %v1791 = vld [vmem:[%s1786 + $0x10] sm:$0xf]
    %v1792 = vld [vmem:[%s1786 + $0x14] sm:$0xf]
    %v1793 = vld [vmem:[%s1786 + $0x18] sm:$0xf]
    %v1794 = vld [vmem:[%s1786 + $0x1c] sm:$0xf]
    %v1795 = vld [vmem:[%s1786 + $0x20] sm:$0xf]
    %v1796 = vld [vmem:[%s1786 + $0x24] sm:$0xf]
    %v1797 = vld [vmem:[%s1786 + $0x28] sm:$0xf]
    %v1798 = vld [vmem:[%s1786 + $0x2c] sm:$0xf]
    %v1799 = vld [vmem:[%s1786 + $0x30] sm:$0xf]
    %v1800 = vld [vmem:[%s1786 + $0x34] sm:$0xf]
    %v1801 = vld [vmem:[%s1786 + $0x38] sm:$0xf]
    %v1802 = vld [vmem:[%s1786 + $0x3c] sm:$0xf]
    %v1819 = vunpack.c.l.b16 %v1787
    %v1820 = vunpack.c.l.b16 %v1788
    %v1821 = vunpack.c.l.b16 %v1789
    %v1822 = vunpack.c.l.b16 %v1790
    %v1823 = vunpack.c.l.b16 %v1791
    %v1824 = vunpack.c.l.b16 %v1792
    %v1825 = vunpack.c.l.b16 %v1793
    %v1826 = vunpack.c.l.b16 %v1794
    %v1827 = vunpack.c.l.b16 %v1795
    %v1828 = vunpack.c.l.b16 %v1796
    %v1829 = vunpack.c.l.b16 %v1797
    %v1830 = vunpack.c.l.b16 %v1798
    %v1831 = vunpack.c.l.b16 %v1799
    %v1832 = vunpack.c.l.b16 %v1800
    %v1833 = vunpack.c.l.b16 %v1801
    %v1834 = vunpack.c.l.b16 %v1802
    %v1835 = vpack.c.b16 %v1820, %v1819
    %v1836 = vpack.c.b16 %v1822, %v1821
    %v1837 = vpack.c.b16 %v1824, %v1823
    %v1838 = vpack.c.b16 %v1826, %v1825
    %v1839 = vpack.c.b16 %v1828, %v1827
    %v1840 = vpack.c.b16 %v1830, %v1829
    %v1841 = vpack.c.b16 %v1832, %v1831
    %v1842 = vpack.c.b16 %v1834, %v1833
    %1851 = vmatpush.bf16.msra.mxu0 %v1842
    %1852 = vmatpush.bf16.msra.mxu0 %v1841
    %1853 = vmatpush.bf16.msra.mxu0 %v1840
    %1854 = vmatpush.bf16.msra.mxu0 %v1839
    %1855 = vmatpush.bf16.msra.mxu0 %v1838
    %1856 = vmatpush.bf16.msra.mxu0 %v1837
    %1857 = vmatpush.bf16.msra.mxu0 %v1836
    %1858 = vmatpush.bf16.msra.mxu0 %v1835
    %1859 = vmatmul.bf16.gmra.mxu0 %v1778
    %v1860 = vpop.f32.mrf.mxu0
    %v1861 = vadd.f32 0.0, %v1860
    %v1862 = vpop.f32.mrf.mxu0
    %v1863 = vadd.f32 0.0, %v1862
    %1864 = vmatmul.bf16.gmra.mxu0 %v1779
    %v1865 = vpop.f32.mrf.mxu0
    %v1866 = vadd.f32 0.0, %v1865
    %v1867 = vpop.f32.mrf.mxu0
    %v1868 = vadd.f32 0.0, %v1867
    %1869 = vmatmul.bf16.gmra.mxu0 %v1780
    %v1870 = vpop.f32.mrf.mxu0
    %v1871 = vadd.f32 0.0, %v1870
    %v1872 = vpop.f32.mrf.mxu0
    %v1873 = vadd.f32 0.0, %v1872
    %1874 = vmatmul.bf16.gmra.mxu0 %v1781
    %v1875 = vpop.f32.mrf.mxu0
    %v1876 = vadd.f32 0.0, %v1875
    %v1877 = vpop.f32.mrf.mxu0
    %v1878 = vadd.f32 0.0, %v1877
    %1879 = vmatmul.bf16.gmra.mxu0 %v1782
    %v1880 = vpop.f32.mrf.mxu0
    %v1881 = vadd.f32 0.0, %v1880
    %v1882 = vpop.f32.mrf.mxu0
    %v1883 = vadd.f32 0.0, %v1882
    %1884 = vmatmul.bf16.gmra.mxu0 %v1783
    %v1885 = vpop.f32.mrf.mxu0
    %v1886 = vadd.f32 0.0, %v1885
    %v1887 = vpop.f32.mrf.mxu0
    %v1888 = vadd.f32 0.0, %v1887
    %1889 = vmatmul.bf16.gmra.mxu0 %v1784
    %v1890 = vpop.f32.mrf.mxu0
    %v1891 = vadd.f32 0.0, %v1890
    %v1892 = vpop.f32.mrf.mxu0
    %v1893 = vadd.f32 0.0, %v1892
    %1894 = vmatmul.bf16.gmra.mxu0 %v1785
    %v1895 = vpop.f32.mrf.mxu0
    %v1896 = vadd.f32 0.0, %v1895
    %v1897 = vpop.f32.mrf.mxu0
    %v1898 = vadd.f32 0.0, %v1897
    %1899 = vdwg.mxu0
    %v1900 = vadd.f32 %v1746, %v1861
    %v1901 = vadd.f32 %v1747, %v1863
    %v1902 = vadd.f32 %v1748, %v1866
    %v1903 = vadd.f32 %v1749, %v1868
    %v1904 = vadd.f32 %v1750, %v1871
    %v1905 = vadd.f32 %v1751, %v1873
    %v1906 = vadd.f32 %v1752, %v1876
    %v1907 = vadd.f32 %v1753, %v1878
    %v1908 = vadd.f32 %v1754, %v1881
    %v1909 = vadd.f32 %v1755, %v1883
    %v1910 = vadd.f32 %v1756, %v1886
    %v1911 = vadd.f32 %v1757, %v1888
    %v1912 = vadd.f32 %v1758, %v1891
    %v1913 = vadd.f32 %v1759, %v1893
    %v1914 = vadd.f32 %v1760, %v1896
    %v1915 = vadd.f32 %v1761, %v1898
    %v1916 = vld [vmem:[%s1607 + $0x2] sm:$0xff]
    %v1917 = vld [vmem:[%s1607 + $0xa] sm:$0xff]
    %v1918 = vld [vmem:[%s1607 + $0x1a] sm:$0xff]
    %v1919 = vld [vmem:[%s1607 + $0x22] sm:$0xff]
    %v1920 = vld [vmem:[%s1607 + $0x32] sm:$0xff]
    %v1921 = vld [vmem:[%s1607 + $0x3a] sm:$0xff]
    %v1922 = vld [vmem:[%s1607 + $0x4a] sm:$0xff]
    %v1923 = vld [vmem:[%s1607 + $0x52] sm:$0xff]
    %v1924 = vld [vmem:[%s1607 + $0x62] sm:$0xff]
    %v1925 = vld [vmem:[%s1607 + $0x6a] sm:$0xff]
    %v1926 = vld [vmem:[%s1607 + $0x7a] sm:$0xff]
    %v1927 = vld [vmem:[%s1607 + $0x82] sm:$0xff]
    %v1928 = vld [vmem:[%s1607 + $0x92] sm:$0xff]
    %v1929 = vld [vmem:[%s1607 + $0x9a] sm:$0xff]
    %v1930 = vld [vmem:[%s1607 + $0xaa] sm:$0xff]
    %v1931 = vld [vmem:[%s1607 + $0xb2] sm:$0xff]
    %v1932 = vpack.c.bf16 %v1917, %v1916
    %v1933 = vpack.c.bf16 %v1919, %v1918
    %v1934 = vpack.c.bf16 %v1921, %v1920
    %v1935 = vpack.c.bf16 %v1923, %v1922
    %v1936 = vpack.c.bf16 %v1925, %v1924
    %v1937 = vpack.c.bf16 %v1927, %v1926
    %v1938 = vpack.c.bf16 %v1929, %v1928
    %v1939 = vpack.c.bf16 %v1931, %v1930
    %s1940 = scalar_lea.vmem %s2, 512
    %v1941 = vld [vmem:[%s1940] sm:$0xf]
    %v1942 = vld [vmem:[%s1940 + $0x4] sm:$0xf]
    %v1943 = vld [vmem:[%s1940 + $0x8] sm:$0xf]
    %v1944 = vld [vmem:[%s1940 + $0xc] sm:$0xf]
    %v1945 = vld [vmem:[%s1940 + $0x10] sm:$0xf]
    %v1946 = vld [vmem:[%s1940 + $0x14] sm:$0xf]
    %v1947 = vld [vmem:[%s1940 + $0x18] sm:$0xf]
    %v1948 = vld [vmem:[%s1940 + $0x1c] sm:$0xf]
    %v1949 = vld [vmem:[%s1940 + $0x20] sm:$0xf]
    %v1950 = vld [vmem:[%s1940 + $0x24] sm:$0xf]
    %v1951 = vld [vmem:[%s1940 + $0x28] sm:$0xf]
    %v1952 = vld [vmem:[%s1940 + $0x2c] sm:$0xf]
    %v1953 = vld [vmem:[%s1940 + $0x30] sm:$0xf]
    %v1954 = vld [vmem:[%s1940 + $0x34] sm:$0xf]
    %v1955 = vld [vmem:[%s1940 + $0x38] sm:$0xf]
    %v1956 = vld [vmem:[%s1940 + $0x3c] sm:$0xf]
    %v1973 = vunpack.c.l.b16 %v1941
    %v1974 = vunpack.c.l.b16 %v1942
    %v1975 = vunpack.c.l.b16 %v1943
    %v1976 = vunpack.c.l.b16 %v1944
    %v1977 = vunpack.c.l.b16 %v1945
    %v1978 = vunpack.c.l.b16 %v1946
    %v1979 = vunpack.c.l.b16 %v1947
    %v1980 = vunpack.c.l.b16 %v1948
    %v1981 = vunpack.c.l.b16 %v1949
    %v1982 = vunpack.c.l.b16 %v1950
    %v1983 = vunpack.c.l.b16 %v1951
    %v1984 = vunpack.c.l.b16 %v1952
    %v1985 = vunpack.c.l.b16 %v1953
    %v1986 = vunpack.c.l.b16 %v1954
    %v1987 = vunpack.c.l.b16 %v1955
    %v1988 = vunpack.c.l.b16 %v1956
    %v1989 = vpack.c.b16 %v1974, %v1973
    %v1990 = vpack.c.b16 %v1976, %v1975
    %v1991 = vpack.c.b16 %v1978, %v1977
    %v1992 = vpack.c.b16 %v1980, %v1979
    %v1993 = vpack.c.b16 %v1982, %v1981
    %v1994 = vpack.c.b16 %v1984, %v1983
    %v1995 = vpack.c.b16 %v1986, %v1985
    %v1996 = vpack.c.b16 %v1988, %v1987
    %2005 = vmatpush.bf16.msra.mxu0 %v1996
    %2006 = vmatpush.bf16.msra.mxu0 %v1995
    %2007 = vmatpush.bf16.msra.mxu0 %v1994
    %2008 = vmatpush.bf16.msra.mxu0 %v1993
    %2009 = vmatpush.bf16.msra.mxu0 %v1992
    %2010 = vmatpush.bf16.msra.mxu0 %v1991
    %2011 = vmatpush.bf16.msra.mxu0 %v1990
    %2012 = vmatpush.bf16.msra.mxu0 %v1989
    %2013 = vmatmul.bf16.gmra.mxu0 %v1932
    %v2014 = vpop.f32.mrf.mxu0
    %v2015 = vadd.f32 0.0, %v2014
    %v2016 = vpop.f32.mrf.mxu0
    %v2017 = vadd.f32 0.0, %v2016
    %2018 = vmatmul.bf16.gmra.mxu0 %v1933
    %v2019 = vpop.f32.mrf.mxu0
    %v2020 = vadd.f32 0.0, %v2019
    %v2021 = vpop.f32.mrf.mxu0
    %v2022 = vadd.f32 0.0, %v2021
    %2023 = vmatmul.bf16.gmra.mxu0 %v1934
    %v2024 = vpop.f32.mrf.mxu0
    %v2025 = vadd.f32 0.0, %v2024
    %v2026 = vpop.f32.mrf.mxu0
    %v2027 = vadd.f32 0.0, %v2026
    %2028 = vmatmul.bf16.gmra.mxu0 %v1935
    %v2029 = vpop.f32.mrf.mxu0
    %v2030 = vadd.f32 0.0, %v2029
    %v2031 = vpop.f32.mrf.mxu0
    %v2032 = vadd.f32 0.0, %v2031
    %2033 = vmatmul.bf16.gmra.mxu0 %v1936
    %v2034 = vpop.f32.mrf.mxu0
    %v2035 = vadd.f32 0.0, %v2034
    %v2036 = vpop.f32.mrf.mxu0
    %v2037 = vadd.f32 0.0, %v2036
    %2038 = vmatmul.bf16.gmra.mxu0 %v1937
    %v2039 = vpop.f32.mrf.mxu0
    %v2040 = vadd.f32 0.0, %v2039
    %v2041 = vpop.f32.mrf.mxu0
    %v2042 = vadd.f32 0.0, %v2041
    %2043 = vmatmul.bf16.gmra.mxu0 %v1938
    %v2044 = vpop.f32.mrf.mxu0
    %v2045 = vadd.f32 0.0, %v2044
    %v2046 = vpop.f32.mrf.mxu0
    %v2047 = vadd.f32 0.0, %v2046
    %2048 = vmatmul.bf16.gmra.mxu0 %v1939
    %v2049 = vpop.f32.mrf.mxu0
    %v2050 = vadd.f32 0.0, %v2049
    %v2051 = vpop.f32.mrf.mxu0
    %v2052 = vadd.f32 0.0, %v2051
    %2053 = vdwg.mxu0
    %v2054 = vadd.f32 %v1900, %v2015
    %v2055 = vadd.f32 %v1901, %v2017
    %v2056 = vadd.f32 %v1902, %v2020
    %v2057 = vadd.f32 %v1903, %v2022
    %v2058 = vadd.f32 %v1904, %v2025
    %v2059 = vadd.f32 %v1905, %v2027
    %v2060 = vadd.f32 %v1906, %v2030
    %v2061 = vadd.f32 %v1907, %v2032
    %v2062 = vadd.f32 %v1908, %v2035
    %v2063 = vadd.f32 %v1909, %v2037
    %v2064 = vadd.f32 %v1910, %v2040
    %v2065 = vadd.f32 %v1911, %v2042
    %v2066 = vadd.f32 %v1912, %v2045
    %v2067 = vadd.f32 %v1913, %v2047
    %v2068 = vadd.f32 %v1914, %v2050
    %v2069 = vadd.f32 %v1915, %v2052
    %v2070 = vxor.u32 %v2054, 2147483648
    %v2071 = vxor.u32 %v2055, 2147483648
    %v2072 = vxor.u32 %v2056, 2147483648
    %v2073 = vxor.u32 %v2057, 2147483648
    %v2074 = vxor.u32 %v2058, 2147483648
    %v2075 = vxor.u32 %v2059, 2147483648
    %v2076 = vxor.u32 %v2060, 2147483648
    %v2077 = vxor.u32 %v2061, 2147483648
    %v2078 = vxor.u32 %v2062, 2147483648
    %v2079 = vxor.u32 %v2063, 2147483648
    %v2080 = vxor.u32 %v2064, 2147483648
    %v2081 = vxor.u32 %v2065, 2147483648
    %v2082 = vxor.u32 %v2066, 2147483648
    %v2083 = vxor.u32 %v2067, 2147483648
    %v2084 = vxor.u32 %v2068, 2147483648
    %v2085 = vxor.u32 %v2069, 2147483648
    %v2086 = vmul.f32 %v2070, 1.442695
    %v2087 = vpow.pop %v2086
    %v2088 = vmul.f32 %v2071, 1.442695
    %v2089 = vpow.pop %v2088
    %v2090 = vmul.f32 %v2072, 1.442695
    %v2091 = vpow.pop %v2090
    %v2092 = vmul.f32 %v2073, 1.442695
    %v2093 = vpow.pop %v2092
    %v2094 = vmul.f32 %v2074, 1.442695
    %v2095 = vpow.pop %v2094
    %v2096 = vmul.f32 %v2075, 1.442695
    %v2097 = vpow.pop %v2096
    %v2098 = vmul.f32 %v2076, 1.442695
    %v2099 = vpow.pop %v2098
    %v2100 = vmul.f32 %v2077, 1.442695
    %v2101 = vpow.pop %v2100
    %v2102 = vmul.f32 %v2078, 1.442695
    %v2103 = vpow.pop %v2102
    %v2104 = vmul.f32 %v2079, 1.442695
    %v2105 = vpow.pop %v2104
    %v2106 = vmul.f32 %v2080, 1.442695
    %v2107 = vpow.pop %v2106
    %v2108 = vmul.f32 %v2081, 1.442695
    %v2109 = vpow.pop %v2108
    %v2110 = vmul.f32 %v2082, 1.442695
    %v2111 = vpow.pop %v2110
    %v2112 = vmul.f32 %v2083, 1.442695
    %v2113 = vpow.pop %v2112
    %v2114 = vmul.f32 %v2084, 1.442695
    %v2115 = vpow.pop %v2114
    %v2116 = vmul.f32 %v2085, 1.442695
    %v2117 = vpow.pop %v2116
    %v2118 = vadd.f32 %v2087, 1.0
    %v2119 = vadd.f32 %v2089, 1.0
    %v2120 = vadd.f32 %v2091, 1.0
    %v2121 = vadd.f32 %v2093, 1.0
    %v2122 = vadd.f32 %v2095, 1.0
    %v2123 = vadd.f32 %v2097, 1.0
    %v2124 = vadd.f32 %v2099, 1.0
    %v2125 = vadd.f32 %v2101, 1.0
    %v2126 = vadd.f32 %v2103, 1.0
    %v2127 = vadd.f32 %v2105, 1.0
    %v2128 = vadd.f32 %v2107, 1.0
    %v2129 = vadd.f32 %v2109, 1.0
    %v2130 = vadd.f32 %v2111, 1.0
    %v2131 = vadd.f32 %v2113, 1.0
    %v2132 = vadd.f32 %v2115, 1.0
    %v2133 = vadd.f32 %v2117, 1.0
    %v2134 = vrcp.pop %v2118
    %v2135 = vmul.f32 %v2118, %v2134
    %v2136 = vsub.f32 1.0, %v2135
    %v2137 = vmul.f32 %v2134, %v2136
    %v2138 = vadd.f32 %v2134, %v2137
    %vm2139 = vweird.f32 %v2118
    %vm2140 = vweird.f32 %v2134
    %vm2141 = vmor %vm2139, %vm2140
    %v2142 = vsel %vm2141, %v2134, %v2138
    %v2143 = vand.u32 2147483647, %v2118
    %vm2144 = vcmp.eq.f32.partialorder %v2143, 8.507059e+37
    %v2145 = vand.u32 %v2118, 2147483648
    %v2146 = vor.u32 1.1754944e-38, %v2145
    %v2147 = vsel %vm2144, %v2146, %v2142
    %v2148 = vmul.f32 1.0, %v2147
    %v2149 = vrcp.pop %v2119
    %v2150 = vmul.f32 %v2119, %v2149
    %v2151 = vsub.f32 1.0, %v2150
    %v2152 = vmul.f32 %v2149, %v2151
    %v2153 = vadd.f32 %v2149, %v2152
    %vm2154 = vweird.f32 %v2119
    %vm2155 = vweird.f32 %v2149
    %vm2156 = vmor %vm2154, %vm2155
    %v2157 = vsel %vm2156, %v2149, %v2153
    %v2158 = vand.u32 2147483647, %v2119
    %vm2159 = vcmp.eq.f32.partialorder %v2158, 8.507059e+37
    %v2160 = vand.u32 %v2119, 2147483648
    %v2161 = vor.u32 1.1754944e-38, %v2160
    %v2162 = vsel %vm2159, %v2161, %v2157
    %v2163 = vmul.f32 1.0, %v2162
    %v2164 = vrcp.pop %v2120
    %v2165 = vmul.f32 %v2120, %v2164
    %v2166 = vsub.f32 1.0, %v2165
    %v2167 = vmul.f32 %v2164, %v2166
    %v2168 = vadd.f32 %v2164, %v2167
    %vm2169 = vweird.f32 %v2120
    %vm2170 = vweird.f32 %v2164
    %vm2171 = vmor %vm2169, %vm2170
    %v2172 = vsel %vm2171, %v2164, %v2168
    %v2173 = vand.u32 2147483647, %v2120
    %vm2174 = vcmp.eq.f32.partialorder %v2173, 8.507059e+37
    %v2175 = vand.u32 %v2120, 2147483648
    %v2176 = vor.u32 1.1754944e-38, %v2175
    %v2177 = vsel %vm2174, %v2176, %v2172
    %v2178 = vmul.f32 1.0, %v2177
    %v2179 = vrcp.pop %v2121
    %v2180 = vmul.f32 %v2121, %v2179
    %v2181 = vsub.f32 1.0, %v2180
    %v2182 = vmul.f32 %v2179, %v2181
    %v2183 = vadd.f32 %v2179, %v2182
    %vm2184 = vweird.f32 %v2121
    %vm2185 = vweird.f32 %v2179
    %vm2186 = vmor %vm2184, %vm2185
    %v2187 = vsel %vm2186, %v2179, %v2183
    %v2188 = vand.u32 2147483647, %v2121
    %vm2189 = vcmp.eq.f32.partialorder %v2188, 8.507059e+37
    %v2190 = vand.u32 %v2121, 2147483648
    %v2191 = vor.u32 1.1754944e-38, %v2190
    %v2192 = vsel %vm2189, %v2191, %v2187
    %v2193 = vmul.f32 1.0, %v2192
    %v2194 = vrcp.pop %v2122
    %v2195 = vmul.f32 %v2122, %v2194
    %v2196 = vsub.f32 1.0, %v2195
    %v2197 = vmul.f32 %v2194, %v2196
    %v2198 = vadd.f32 %v2194, %v2197
    %vm2199 = vweird.f32 %v2122
    %vm2200 = vweird.f32 %v2194
    %vm2201 = vmor %vm2199, %vm2200
    %v2202 = vsel %vm2201, %v2194, %v2198
    %v2203 = vand.u32 2147483647, %v2122
    %vm2204 = vcmp.eq.f32.partialorder %v2203, 8.507059e+37
    %v2205 = vand.u32 %v2122, 2147483648
    %v2206 = vor.u32 1.1754944e-38, %v2205
    %v2207 = vsel %vm2204, %v2206, %v2202
    %v2208 = vmul.f32 1.0, %v2207
    %v2209 = vrcp.pop %v2123
    %v2210 = vmul.f32 %v2123, %v2209
    %v2211 = vsub.f32 1.0, %v2210
    %v2212 = vmul.f32 %v2209, %v2211
    %v2213 = vadd.f32 %v2209, %v2212
    %vm2214 = vweird.f32 %v2123
    %vm2215 = vweird.f32 %v2209
    %vm2216 = vmor %vm2214, %vm2215
    %v2217 = vsel %vm2216, %v2209, %v2213
    %v2218 = vand.u32 2147483647, %v2123
    %vm2219 = vcmp.eq.f32.partialorder %v2218, 8.507059e+37
    %v2220 = vand.u32 %v2123, 2147483648
    %v2221 = vor.u32 1.1754944e-38, %v2220
    %v2222 = vsel %vm2219, %v2221, %v2217
    %v2223 = vmul.f32 1.0, %v2222
    %v2224 = vrcp.pop %v2124
    %v2225 = vmul.f32 %v2124, %v2224
    %v2226 = vsub.f32 1.0, %v2225
    %v2227 = vmul.f32 %v2224, %v2226
    %v2228 = vadd.f32 %v2224, %v2227
    %vm2229 = vweird.f32 %v2124
    %vm2230 = vweird.f32 %v2224
    %vm2231 = vmor %vm2229, %vm2230
    %v2232 = vsel %vm2231, %v2224, %v2228
    %v2233 = vand.u32 2147483647, %v2124
    %vm2234 = vcmp.eq.f32.partialorder %v2233, 8.507059e+37
    %v2235 = vand.u32 %v2124, 2147483648
    %v2236 = vor.u32 1.1754944e-38, %v2235
    %v2237 = vsel %vm2234, %v2236, %v2232
    %v2238 = vmul.f32 1.0, %v2237
    %v2239 = vrcp.pop %v2125
    %v2240 = vmul.f32 %v2125, %v2239
    %v2241 = vsub.f32 1.0, %v2240
    %v2242 = vmul.f32 %v2239, %v2241
    %v2243 = vadd.f32 %v2239, %v2242
    %vm2244 = vweird.f32 %v2125
    %vm2245 = vweird.f32 %v2239
    %vm2246 = vmor %vm2244, %vm2245
    %v2247 = vsel %vm2246, %v2239, %v2243
    %v2248 = vand.u32 2147483647, %v2125
    %vm2249 = vcmp.eq.f32.partialorder %v2248, 8.507059e+37
    %v2250 = vand.u32 %v2125, 2147483648
    %v2251 = vor.u32 1.1754944e-38, %v2250
    %v2252 = vsel %vm2249, %v2251, %v2247
    %v2253 = vmul.f32 1.0, %v2252
    %v2254 = vrcp.pop %v2126
    %v2255 = vmul.f32 %v2126, %v2254
    %v2256 = vsub.f32 1.0, %v2255
    %v2257 = vmul.f32 %v2254, %v2256
    %v2258 = vadd.f32 %v2254, %v2257
    %vm2259 = vweird.f32 %v2126
    %vm2260 = vweird.f32 %v2254
    %vm2261 = vmor %vm2259, %vm2260
    %v2262 = vsel %vm2261, %v2254, %v2258
    %v2263 = vand.u32 2147483647, %v2126
    %vm2264 = vcmp.eq.f32.partialorder %v2263, 8.507059e+37
    %v2265 = vand.u32 %v2126, 2147483648
    %v2266 = vor.u32 1.1754944e-38, %v2265
    %v2267 = vsel %vm2264, %v2266, %v2262
    %v2268 = vmul.f32 1.0, %v2267
    %v2269 = vrcp.pop %v2127
    %v2270 = vmul.f32 %v2127, %v2269
    %v2271 = vsub.f32 1.0, %v2270
    %v2272 = vmul.f32 %v2269, %v2271
    %v2273 = vadd.f32 %v2269, %v2272
    %vm2274 = vweird.f32 %v2127
    %vm2275 = vweird.f32 %v2269
    %vm2276 = vmor %vm2274, %vm2275
    %v2277 = vsel %vm2276, %v2269, %v2273
    %v2278 = vand.u32 2147483647, %v2127
    %vm2279 = vcmp.eq.f32.partialorder %v2278, 8.507059e+37
    %v2280 = vand.u32 %v2127, 2147483648
    %v2281 = vor.u32 1.1754944e-38, %v2280
    %v2282 = vsel %vm2279, %v2281, %v2277
    %v2283 = vmul.f32 1.0, %v2282
    %v2284 = vrcp.pop %v2128
    %v2285 = vmul.f32 %v2128, %v2284
    %v2286 = vsub.f32 1.0, %v2285
    %v2287 = vmul.f32 %v2284, %v2286
    %v2288 = vadd.f32 %v2284, %v2287
    %vm2289 = vweird.f32 %v2128
    %vm2290 = vweird.f32 %v2284
    %vm2291 = vmor %vm2289, %vm2290
    %v2292 = vsel %vm2291, %v2284, %v2288
    %v2293 = vand.u32 2147483647, %v2128
    %vm2294 = vcmp.eq.f32.partialorder %v2293, 8.507059e+37
    %v2295 = vand.u32 %v2128, 2147483648
    %v2296 = vor.u32 1.1754944e-38, %v2295
    %v2297 = vsel %vm2294, %v2296, %v2292
    %v2298 = vmul.f32 1.0, %v2297
    %v2299 = vrcp.pop %v2129
    %v2300 = vmul.f32 %v2129, %v2299
    %v2301 = vsub.f32 1.0, %v2300
    %v2302 = vmul.f32 %v2299, %v2301
    %v2303 = vadd.f32 %v2299, %v2302
    %vm2304 = vweird.f32 %v2129
    %vm2305 = vweird.f32 %v2299
    %vm2306 = vmor %vm2304, %vm2305
    %v2307 = vsel %vm2306, %v2299, %v2303
    %v2308 = vand.u32 2147483647, %v2129
    %vm2309 = vcmp.eq.f32.partialorder %v2308, 8.507059e+37
    %v2310 = vand.u32 %v2129, 2147483648
    %v2311 = vor.u32 1.1754944e-38, %v2310
    %v2312 = vsel %vm2309, %v2311, %v2307
    %v2313 = vmul.f32 1.0, %v2312
    %v2314 = vrcp.pop %v2130
    %v2315 = vmul.f32 %v2130, %v2314
    %v2316 = vsub.f32 1.0, %v2315
    %v2317 = vmul.f32 %v2314, %v2316
    %v2318 = vadd.f32 %v2314, %v2317
    %vm2319 = vweird.f32 %v2130
    %vm2320 = vweird.f32 %v2314
    %vm2321 = vmor %vm2319, %vm2320
    %v2322 = vsel %vm2321, %v2314, %v2318
    %v2323 = vand.u32 2147483647, %v2130
    %vm2324 = vcmp.eq.f32.partialorder %v2323, 8.507059e+37
    %v2325 = vand.u32 %v2130, 2147483648
    %v2326 = vor.u32 1.1754944e-38, %v2325
    %v2327 = vsel %vm2324, %v2326, %v2322
    %v2328 = vmul.f32 1.0, %v2327
    %v2329 = vrcp.pop %v2131
    %v2330 = vmul.f32 %v2131, %v2329
    %v2331 = vsub.f32 1.0, %v2330
    %v2332 = vmul.f32 %v2329, %v2331
    %v2333 = vadd.f32 %v2329, %v2332
    %vm2334 = vweird.f32 %v2131
    %vm2335 = vweird.f32 %v2329
    %vm2336 = vmor %vm2334, %vm2335
    %v2337 = vsel %vm2336, %v2329, %v2333
    %v2338 = vand.u32 2147483647, %v2131
    %vm2339 = vcmp.eq.f32.partialorder %v2338, 8.507059e+37
    %v2340 = vand.u32 %v2131, 2147483648
    %v2341 = vor.u32 1.1754944e-38, %v2340
    %v2342 = vsel %vm2339, %v2341, %v2337
    %v2343 = vmul.f32 1.0, %v2342
    %v2344 = vrcp.pop %v2132
    %v2345 = vmul.f32 %v2132, %v2344
    %v2346 = vsub.f32 1.0, %v2345
    %v2347 = vmul.f32 %v2344, %v2346
    %v2348 = vadd.f32 %v2344, %v2347
    %vm2349 = vweird.f32 %v2132
    %vm2350 = vweird.f32 %v2344
    %vm2351 = vmor %vm2349, %vm2350
    %v2352 = vsel %vm2351, %v2344, %v2348
    %v2353 = vand.u32 2147483647, %v2132
    %vm2354 = vcmp.eq.f32.partialorder %v2353, 8.507059e+37
    %v2355 = vand.u32 %v2132, 2147483648
    %v2356 = vor.u32 1.1754944e-38, %v2355
    %v2357 = vsel %vm2354, %v2356, %v2352
    %v2358 = vmul.f32 1.0, %v2357
    %v2359 = vrcp.pop %v2133
    %v2360 = vmul.f32 %v2133, %v2359
    %v2361 = vsub.f32 1.0, %v2360
    %v2362 = vmul.f32 %v2359, %v2361
    %v2363 = vadd.f32 %v2359, %v2362
    %vm2364 = vweird.f32 %v2133
    %vm2365 = vweird.f32 %v2359
    %vm2366 = vmor %vm2364, %vm2365
    %v2367 = vsel %vm2366, %v2359, %v2363
    %v2368 = vand.u32 2147483647, %v2133
    %vm2369 = vcmp.eq.f32.partialorder %v2368, 8.507059e+37
    %v2370 = vand.u32 %v2133, 2147483648
    %v2371 = vor.u32 1.1754944e-38, %v2370
    %v2372 = vsel %vm2369, %v2371, %v2367
    %v2373 = vmul.f32 1.0, %v2372
    %2390 = vrot.lane.b32.xlu0 %v2054, 32
    %v2391 = vpop.permute.xlu0 %2390
    %2392 = vrot.lane.b32.xlu0 %v2055, 32
    %v2393 = vpop.permute.xlu0 %2392
    %2394 = vrot.lane.b32.xlu0 %v2056, 32
    %v2395 = vpop.permute.xlu0 %2394
    %2396 = vrot.lane.b32.xlu0 %v2057, 32
    %v2397 = vpop.permute.xlu0 %2396
    %2398 = vrot.lane.b32.xlu0 %v2058, 32
    %v2399 = vpop.permute.xlu0 %2398
    %2400 = vrot.lane.b32.xlu0 %v2059, 32
    %v2401 = vpop.permute.xlu0 %2400
    %2402 = vrot.lane.b32.xlu0 %v2060, 32
    %v2403 = vpop.permute.xlu0 %2402
    %2404 = vrot.lane.b32.xlu0 %v2061, 32
    %v2405 = vpop.permute.xlu0 %2404
    %2406 = vrot.lane.b32.xlu0 %v2062, 32
    %v2407 = vpop.permute.xlu0 %2406
    %2408 = vrot.lane.b32.xlu0 %v2063, 32
    %v2409 = vpop.permute.xlu0 %2408
    %2410 = vrot.lane.b32.xlu0 %v2064, 32
    %v2411 = vpop.permute.xlu0 %2410
    %2412 = vrot.lane.b32.xlu0 %v2065, 32
    %v2413 = vpop.permute.xlu0 %2412
    %2414 = vrot.lane.b32.xlu0 %v2066, 32
    %v2415 = vpop.permute.xlu0 %2414
    %2416 = vrot.lane.b32.xlu0 %v2067, 32
    %v2417 = vpop.permute.xlu0 %2416
    %2418 = vrot.lane.b32.xlu0 %v2068, 32
    %v2419 = vpop.permute.xlu0 %2418
    %2420 = vrot.lane.b32.xlu0 %v2069, 32
    %v2421 = vpop.permute.xlu0 %2420
    %v2438 = vmul.f32 %v2148, %v2391
    %v2439 = vmul.f32 %v2163, %v2393
    %v2440 = vmul.f32 %v2178, %v2395
    %v2441 = vmul.f32 %v2193, %v2397
    %v2442 = vmul.f32 %v2208, %v2399
    %v2443 = vmul.f32 %v2223, %v2401
    %v2444 = vmul.f32 %v2238, %v2403
    %v2445 = vmul.f32 %v2253, %v2405
    %v2446 = vmul.f32 %v2268, %v2407
    %v2447 = vmul.f32 %v2283, %v2409
    %v2448 = vmul.f32 %v2298, %v2411
    %v2449 = vmul.f32 %v2313, %v2413
    %v2450 = vmul.f32 %v2328, %v2415
    %v2451 = vmul.f32 %v2343, %v2417
    %v2452 = vmul.f32 %v2358, %v2419
    %v2453 = vmul.f32 %v2373, %v2421
    %2470 = vrot.lane.b32.xlu0 %v2438, 64
    %v2471 = vpop.permute.xlu0 %2470
    %2472 = vrot.lane.b32.xlu0 %v2439, 64
    %v2473 = vpop.permute.xlu0 %2472
    %2474 = vrot.lane.b32.xlu0 %v2440, 64
    %v2475 = vpop.permute.xlu0 %2474
    %2476 = vrot.lane.b32.xlu0 %v2441, 64
    %v2477 = vpop.permute.xlu0 %2476
    %2478 = vrot.lane.b32.xlu0 %v2442, 64
    %v2479 = vpop.permute.xlu0 %2478
    %2480 = vrot.lane.b32.xlu0 %v2443, 64
    %v2481 = vpop.permute.xlu0 %2480
    %2482 = vrot.lane.b32.xlu0 %v2444, 64
    %v2483 = vpop.permute.xlu0 %2482
    %2484 = vrot.lane.b32.xlu0 %v2445, 64
    %v2485 = vpop.permute.xlu0 %2484
    %2486 = vrot.lane.b32.xlu0 %v2446, 64
    %v2487 = vpop.permute.xlu0 %2486
    %2488 = vrot.lane.b32.xlu0 %v2447, 64
    %v2489 = vpop.permute.xlu0 %2488
    %2490 = vrot.lane.b32.xlu0 %v2448, 64
    %v2491 = vpop.permute.xlu0 %2490
    %2492 = vrot.lane.b32.xlu0 %v2449, 64
    %v2493 = vpop.permute.xlu0 %2492
    %2494 = vrot.lane.b32.xlu0 %v2450, 64
    %v2495 = vpop.permute.xlu0 %2494
    %2496 = vrot.lane.b32.xlu0 %v2451, 64
    %v2497 = vpop.permute.xlu0 %2496
    %2498 = vrot.lane.b32.xlu0 %v2452, 64
    %v2499 = vpop.permute.xlu0 %2498
    %2500 = vrot.lane.b32.xlu0 %v2453, 64
    %v2501 = vpop.permute.xlu0 %2500
    %v2518 = vadd.f32 %v2054, %v2471
    %v2519 = vadd.f32 %v2055, %v2473
    %v2520 = vadd.f32 %v2056, %v2475
    %v2521 = vadd.f32 %v2057, %v2477
    %v2522 = vadd.f32 %v2058, %v2479
    %v2523 = vadd.f32 %v2059, %v2481
    %v2524 = vadd.f32 %v2060, %v2483
    %v2525 = vadd.f32 %v2061, %v2485
    %v2526 = vadd.f32 %v2062, %v2487
    %v2527 = vadd.f32 %v2063, %v2489
    %v2528 = vadd.f32 %v2064, %v2491
    %v2529 = vadd.f32 %v2065, %v2493
    %v2530 = vadd.f32 %v2066, %v2495
    %v2531 = vadd.f32 %v2067, %v2497
    %v2532 = vadd.f32 %v2068, %v2499
    %v2533 = vadd.f32 %v2069, %v2501
    %v2534 = vtanh.pop %v2518
    %v2535 = vtanh.pop %v2519
    %v2536 = vtanh.pop %v2520
    %v2537 = vtanh.pop %v2521
    %v2538 = vtanh.pop %v2522
    %v2539 = vtanh.pop %v2523
    %v2540 = vtanh.pop %v2524
    %v2541 = vtanh.pop %v2525
    %v2542 = vtanh.pop %v2526
    %v2543 = vtanh.pop %v2527
    %v2544 = vtanh.pop %v2528
    %v2545 = vtanh.pop %v2529
    %v2546 = vtanh.pop %v2530
    %v2547 = vtanh.pop %v2531
    %v2548 = vtanh.pop %v2532
    %v2549 = vtanh.pop %v2533
    %v2550 = vld [vmem:[%s1] sm:$0xff]
    %v2551 = vld [vmem:[%s1 + $0x8] sm:$0xff]
    %v2552 = vld [vmem:[%s1 + $0x10] sm:$0xff]
    %v2553 = vld [vmem:[%s1 + $0x18] sm:$0xff]
    %v2554 = vld [vmem:[%s1 + $0x20] sm:$0xff]
    %v2555 = vld [vmem:[%s1 + $0x28] sm:$0xff]
    %v2556 = vld [vmem:[%s1 + $0x30] sm:$0xff]
    %v2557 = vld [vmem:[%s1 + $0x38] sm:$0xff]
    %v2558 = vld [vmem:[%s1 + $0x40] sm:$0xff]
    %v2559 = vld [vmem:[%s1 + $0x48] sm:$0xff]
    %v2560 = vld [vmem:[%s1 + $0x50] sm:$0xff]
    %v2561 = vld [vmem:[%s1 + $0x58] sm:$0xff]
    %v2562 = vld [vmem:[%s1 + $0x60] sm:$0xff]
    %v2563 = vld [vmem:[%s1 + $0x68] sm:$0xff]
    %v2564 = vld [vmem:[%s1 + $0x70] sm:$0xff]
    %v2565 = vld [vmem:[%s1 + $0x78] sm:$0xff]
    %2582 = vrot.lane.b32.xlu0 %v2550, 32
    %v2583 = vpop.permute.xlu0 %2582
    %2584 = vrot.lane.b32.xlu0 %v2551, 32
    %v2585 = vpop.permute.xlu0 %2584
    %2586 = vrot.lane.b32.xlu0 %v2552, 32
    %v2587 = vpop.permute.xlu0 %2586
    %2588 = vrot.lane.b32.xlu0 %v2553, 32
    %v2589 = vpop.permute.xlu0 %2588
    %2590 = vrot.lane.b32.xlu0 %v2554, 32
    %v2591 = vpop.permute.xlu0 %2590
    %2592 = vrot.lane.b32.xlu0 %v2555, 32
    %v2593 = vpop.permute.xlu0 %2592
    %2594 = vrot.lane.b32.xlu0 %v2556, 32
    %v2595 = vpop.permute.xlu0 %2594
    %2596 = vrot.lane.b32.xlu0 %v2557, 32
    %v2597 = vpop.permute.xlu0 %2596
    %2598 = vrot.lane.b32.xlu0 %v2558, 32
    %v2599 = vpop.permute.xlu0 %2598
    %2600 = vrot.lane.b32.xlu0 %v2559, 32
    %v2601 = vpop.permute.xlu0 %2600
    %2602 = vrot.lane.b32.xlu0 %v2560, 32
    %v2603 = vpop.permute.xlu0 %2602
    %2604 = vrot.lane.b32.xlu0 %v2561, 32
    %v2605 = vpop.permute.xlu0 %2604
    %2606 = vrot.lane.b32.xlu0 %v2562, 32
    %v2607 = vpop.permute.xlu0 %2606
    %2608 = vrot.lane.b32.xlu0 %v2563, 32
    %v2609 = vpop.permute.xlu0 %2608
    %2610 = vrot.lane.b32.xlu0 %v2564, 32
    %v2611 = vpop.permute.xlu0 %2610
    %2612 = vrot.lane.b32.xlu0 %v2565, 32
    %v2613 = vpop.permute.xlu0 %2612
    %v2630 = vmul.f32 %v2148, %v2583
    %v2631 = vmul.f32 %v2163, %v2585
    %v2632 = vmul.f32 %v2178, %v2587
    %v2633 = vmul.f32 %v2193, %v2589
    %v2634 = vmul.f32 %v2208, %v2591
    %v2635 = vmul.f32 %v2223, %v2593
    %v2636 = vmul.f32 %v2238, %v2595
    %v2637 = vmul.f32 %v2253, %v2597
    %v2638 = vmul.f32 %v2268, %v2599
    %v2639 = vmul.f32 %v2283, %v2601
    %v2640 = vmul.f32 %v2298, %v2603
    %v2641 = vmul.f32 %v2313, %v2605
    %v2642 = vmul.f32 %v2328, %v2607
    %v2643 = vmul.f32 %v2343, %v2609
    %v2644 = vmul.f32 %v2358, %v2611
    %v2645 = vmul.f32 %v2373, %v2613
    %v2646 = vsub.f32 1.0, %v2148
    %v2647 = vsub.f32 1.0, %v2163
    %v2648 = vsub.f32 1.0, %v2178
    %v2649 = vsub.f32 1.0, %v2193
    %v2650 = vsub.f32 1.0, %v2208
    %v2651 = vsub.f32 1.0, %v2223
    %v2652 = vsub.f32 1.0, %v2238
    %v2653 = vsub.f32 1.0, %v2253
    %v2654 = vsub.f32 1.0, %v2268
    %v2655 = vsub.f32 1.0, %v2283
    %v2656 = vsub.f32 1.0, %v2298
    %v2657 = vsub.f32 1.0, %v2313
    %v2658 = vsub.f32 1.0, %v2328
    %v2659 = vsub.f32 1.0, %v2343
    %v2660 = vsub.f32 1.0, %v2358
    %v2661 = vsub.f32 1.0, %v2373
    %2678 = vrot.lane.b32.xlu0 %v2534, 96
    %v2679 = vpop.permute.xlu0 %2678
    %2680 = vrot.lane.b32.xlu0 %v2535, 96
    %v2681 = vpop.permute.xlu0 %2680
    %2682 = vrot.lane.b32.xlu0 %v2536, 96
    %v2683 = vpop.permute.xlu0 %2682
    %2684 = vrot.lane.b32.xlu0 %v2537, 96
    %v2685 = vpop.permute.xlu0 %2684
    %2686 = vrot.lane.b32.xlu0 %v2538, 96
    %v2687 = vpop.permute.xlu0 %2686
    %2688 = vrot.lane.b32.xlu0 %v2539, 96
    %v2689 = vpop.permute.xlu0 %2688
    %2690 = vrot.lane.b32.xlu0 %v2540, 96
    %v2691 = vpop.permute.xlu0 %2690
    %2692 = vrot.lane.b32.xlu0 %v2541, 96
    %v2693 = vpop.permute.xlu0 %2692
    %2694 = vrot.lane.b32.xlu0 %v2542, 96
    %v2695 = vpop.permute.xlu0 %2694
    %2696 = vrot.lane.b32.xlu0 %v2543, 96
    %v2697 = vpop.permute.xlu0 %2696
    %2698 = vrot.lane.b32.xlu0 %v2544, 96
    %v2699 = vpop.permute.xlu0 %2698
    %2700 = vrot.lane.b32.xlu0 %v2545, 96
    %v2701 = vpop.permute.xlu0 %2700
    %2702 = vrot.lane.b32.xlu0 %v2546, 96
    %v2703 = vpop.permute.xlu0 %2702
    %2704 = vrot.lane.b32.xlu0 %v2547, 96
    %v2705 = vpop.permute.xlu0 %2704
    %2706 = vrot.lane.b32.xlu0 %v2548, 96
    %v2707 = vpop.permute.xlu0 %2706
    %2708 = vrot.lane.b32.xlu0 %v2549, 96
    %v2709 = vpop.permute.xlu0 %2708
    %v2726 = vmul.f32 %v2646, %v2679
    %v2727 = vmul.f32 %v2647, %v2681
    %v2728 = vmul.f32 %v2648, %v2683
    %v2729 = vmul.f32 %v2649, %v2685
    %v2730 = vmul.f32 %v2650, %v2687
    %v2731 = vmul.f32 %v2651, %v2689
    %v2732 = vmul.f32 %v2652, %v2691
    %v2733 = vmul.f32 %v2653, %v2693
    %v2734 = vmul.f32 %v2654, %v2695
    %v2735 = vmul.f32 %v2655, %v2697
    %v2736 = vmul.f32 %v2656, %v2699
    %v2737 = vmul.f32 %v2657, %v2701
    %v2738 = vmul.f32 %v2658, %v2703
    %v2739 = vmul.f32 %v2659, %v2705
    %v2740 = vmul.f32 %v2660, %v2707
    %v2741 = vmul.f32 %v2661, %v2709
    %v2742 = vadd.f32 %v2630, %v2726
    %v2743 = vadd.f32 %v2631, %v2727
    %v2744 = vadd.f32 %v2632, %v2728
    %v2745 = vadd.f32 %v2633, %v2729
    %v2746 = vadd.f32 %v2634, %v2730
    %v2747 = vadd.f32 %v2635, %v2731
    %v2748 = vadd.f32 %v2636, %v2732
    %v2749 = vadd.f32 %v2637, %v2733
    %v2750 = vadd.f32 %v2638, %v2734
    %v2751 = vadd.f32 %v2639, %v2735
    %v2752 = vadd.f32 %v2640, %v2736
    %v2753 = vadd.f32 %v2641, %v2737
    %v2754 = vadd.f32 %v2642, %v2738
    %v2755 = vadd.f32 %v2643, %v2739
    %v2756 = vadd.f32 %v2644, %v2740
    %v2757 = vadd.f32 %v2645, %v2741
    %2774 = vrot.lane.b32.xlu0 %v2742, 96
    %v2775 = vpop.permute.xlu0 %2774
    %2776 = vrot.lane.b32.xlu0 %v2743, 96
    %v2777 = vpop.permute.xlu0 %2776
    %2778 = vrot.lane.b32.xlu0 %v2744, 96
    %v2779 = vpop.permute.xlu0 %2778
    %2780 = vrot.lane.b32.xlu0 %v2745, 96
    %v2781 = vpop.permute.xlu0 %2780
    %2782 = vrot.lane.b32.xlu0 %v2746, 96
    %v2783 = vpop.permute.xlu0 %2782
    %2784 = vrot.lane.b32.xlu0 %v2747, 96
    %v2785 = vpop.permute.xlu0 %2784
    %2786 = vrot.lane.b32.xlu0 %v2748, 96
    %v2787 = vpop.permute.xlu0 %2786
    %2788 = vrot.lane.b32.xlu0 %v2749, 96
    %v2789 = vpop.permute.xlu0 %2788
    %2790 = vrot.lane.b32.xlu0 %v2750, 96
    %v2791 = vpop.permute.xlu0 %2790
    %2792 = vrot.lane.b32.xlu0 %v2751, 96
    %v2793 = vpop.permute.xlu0 %2792
    %2794 = vrot.lane.b32.xlu0 %v2752, 96
    %v2795 = vpop.permute.xlu0 %2794
    %2796 = vrot.lane.b32.xlu0 %v2753, 96
    %v2797 = vpop.permute.xlu0 %2796
    %2798 = vrot.lane.b32.xlu0 %v2754, 96
    %v2799 = vpop.permute.xlu0 %2798
    %2800 = vrot.lane.b32.xlu0 %v2755, 96
    %v2801 = vpop.permute.xlu0 %2800
    %2802 = vrot.lane.b32.xlu0 %v2756, 96
    %v2803 = vpop.permute.xlu0 %2802
    %2804 = vrot.lane.b32.xlu0 %v2757, 96
    %v2805 = vpop.permute.xlu0 %2804
    %2822 = vst.msk [vmem:[#allocation3] sm:$0xff] %vm155, %v2775
    %2823 = vst.msk [vmem:[#allocation3 + $0x8] sm:$0xff] %vm155, %v2777
    %2824 = vst.msk [vmem:[#allocation3 + $0x10] sm:$0xff] %vm155, %v2779
    %2825 = vst.msk [vmem:[#allocation3 + $0x18] sm:$0xff] %vm155, %v2781
    %2826 = vst.msk [vmem:[#allocation3 + $0x20] sm:$0xff] %vm155, %v2783
    %2827 = vst.msk [vmem:[#allocation3 + $0x28] sm:$0xff] %vm155, %v2785
    %2828 = vst.msk [vmem:[#allocation3 + $0x30] sm:$0xff] %vm155, %v2787
    %2829 = vst.msk [vmem:[#allocation3 + $0x38] sm:$0xff] %vm155, %v2789
    %2830 = vst.msk [vmem:[#allocation3 + $0x40] sm:$0xff] %vm155, %v2791
    %2831 = vst.msk [vmem:[#allocation3 + $0x48] sm:$0xff] %vm155, %v2793
    %2832 = vst.msk [vmem:[#allocation3 + $0x50] sm:$0xff] %vm155, %v2795
    %2833 = vst.msk [vmem:[#allocation3 + $0x58] sm:$0xff] %vm155, %v2797
    %2834 = vst.msk [vmem:[#allocation3 + $0x60] sm:$0xff] %vm155, %v2799
    %2835 = vst.msk [vmem:[#allocation3 + $0x68] sm:$0xff] %vm155, %v2801
    %2836 = vst.msk [vmem:[#allocation3 + $0x70] sm:$0xff] %vm155, %v2803
    %2837 = vst.msk [vmem:[#allocation3 + $0x78] sm:$0xff] %vm155, %v2805
    %v2838 = vld [vmem:[%s3] sm:$0x1]
    %v2840 = vperm.slane %v2838, 0
    %s2842 = scalar_lea.vmem [#allocation2], 192
    %v2843 = vld [vmem:[%s2842] sm:$0xff]
    %v2844 = vld [vmem:[%s2842 + $0x8] sm:$0xff]
    %v2845 = vld [vmem:[%s2842 + $0x18] sm:$0xff]
    %v2846 = vld [vmem:[%s2842 + $0x20] sm:$0xff]
    %v2847 = vld [vmem:[%s2842 + $0x30] sm:$0xff]
    %v2848 = vld [vmem:[%s2842 + $0x38] sm:$0xff]
    %v2849 = vld [vmem:[%s2842 + $0x48] sm:$0xff]
    %v2850 = vld [vmem:[%s2842 + $0x50] sm:$0xff]
    %v2851 = vld [vmem:[%s2842 + $0x60] sm:$0xff]
    %v2852 = vld [vmem:[%s2842 + $0x68] sm:$0xff]
    %v2853 = vld [vmem:[%s2842 + $0x78] sm:$0xff]
    %v2854 = vld [vmem:[%s2842 + $0x80] sm:$0xff]
    %v2855 = vld [vmem:[%s2842 + $0x90] sm:$0xff]
    %v2856 = vld [vmem:[%s2842 + $0x98] sm:$0xff]
    %v2857 = vld [vmem:[%s2842 + $0xa8] sm:$0xff]
    %v2858 = vld [vmem:[%s2842 + $0xb0] sm:$0xff]
    %v2859 = vpack.c.bf16 %v2844, %v2843
    %v2860 = vpack.c.bf16 %v2846, %v2845
    %v2861 = vpack.c.bf16 %v2848, %v2847
    %v2862 = vpack.c.bf16 %v2850, %v2849
    %v2863 = vpack.c.bf16 %v2852, %v2851
    %v2864 = vpack.c.bf16 %v2854, %v2853
    %v2865 = vpack.c.bf16 %v2856, %v2855
    %v2866 = vpack.c.bf16 %v2858, %v2857
    %v2867 = vld [vmem:[%s2] sm:$0xf]
    %v2868 = vld [vmem:[%s2 + $0x4] sm:$0xf]
    %v2869 = vld [vmem:[%s2 + $0x8] sm:$0xf]
    %v2870 = vld [vmem:[%s2 + $0xc] sm:$0xf]
    %v2871 = vld [vmem:[%s2 + $0x10] sm:$0xf]
    %v2872 = vld [vmem:[%s2 + $0x14] sm:$0xf]
    %v2873 = vld [vmem:[%s2 + $0x18] sm:$0xf]
    %v2874 = vld [vmem:[%s2 + $0x1c] sm:$0xf]
    %v2875 = vld [vmem:[%s2 + $0x20] sm:$0xf]
    %v2876 = vld [vmem:[%s2 + $0x24] sm:$0xf]
    %v2877 = vld [vmem:[%s2 + $0x28] sm:$0xf]
    %v2878 = vld [vmem:[%s2 + $0x2c] sm:$0xf]
    %v2879 = vld [vmem:[%s2 + $0x30] sm:$0xf]
    %v2880 = vld [vmem:[%s2 + $0x34] sm:$0xf]
    %v2881 = vld [vmem:[%s2 + $0x38] sm:$0xf]
    %v2882 = vld [vmem:[%s2 + $0x3c] sm:$0xf]
    %v2899 = vunpack.c.l.b16 %v2867
    %v2900 = vunpack.c.l.b16 %v2868
    %v2901 = vunpack.c.l.b16 %v2869
    %v2902 = vunpack.c.l.b16 %v2870
    %v2903 = vunpack.c.l.b16 %v2871
    %v2904 = vunpack.c.l.b16 %v2872
    %v2905 = vunpack.c.l.b16 %v2873
    %v2906 = vunpack.c.l.b16 %v2874
    %v2907 = vunpack.c.l.b16 %v2875
    %v2908 = vunpack.c.l.b16 %v2876
    %v2909 = vunpack.c.l.b16 %v2877
    %v2910 = vunpack.c.l.b16 %v2878
    %v2911 = vunpack.c.l.b16 %v2879
    %v2912 = vunpack.c.l.b16 %v2880
    %v2913 = vunpack.c.l.b16 %v2881
    %v2914 = vunpack.c.l.b16 %v2882
    %v2915 = vpack.c.b16 %v2900, %v2899
    %v2916 = vpack.c.b16 %v2902, %v2901
    %v2917 = vpack.c.b16 %v2904, %v2903
    %v2918 = vpack.c.b16 %v2906, %v2905
    %v2919 = vpack.c.b16 %v2908, %v2907
    %v2920 = vpack.c.b16 %v2910, %v2909
    %v2921 = vpack.c.b16 %v2912, %v2911
    %v2922 = vpack.c.b16 %v2914, %v2913
    %2931 = vmatpush.bf16.msra.mxu0 %v2922
    %2932 = vmatpush.bf16.msra.mxu0 %v2921
    %2933 = vmatpush.bf16.msra.mxu0 %v2920
    %2934 = vmatpush.bf16.msra.mxu0 %v2919
    %2935 = vmatpush.bf16.msra.mxu0 %v2918
    %2936 = vmatpush.bf16.msra.mxu0 %v2917
    %2937 = vmatpush.bf16.msra.mxu0 %v2916
    %2938 = vmatpush.bf16.msra.mxu0 %v2915
    %2939 = vmatmul.bf16.gmra.mxu0 %v2859
    %v2940 = vpop.f32.mrf.mxu0
    %v2941 = vadd.f32 0.0, %v2940
    %v2942 = vpop.f32.mrf.mxu0
    %v2943 = vadd.f32 0.0, %v2942
    %2944 = vmatmul.bf16.gmra.mxu0 %v2860
    %v2945 = vpop.f32.mrf.mxu0
    %v2946 = vadd.f32 0.0, %v2945
    %v2947 = vpop.f32.mrf.mxu0
    %v2948 = vadd.f32 0.0, %v2947
    %2949 = vmatmul.bf16.gmra.mxu0 %v2861
    %v2950 = vpop.f32.mrf.mxu0
    %v2951 = vadd.f32 0.0, %v2950
    %v2952 = vpop.f32.mrf.mxu0
    %v2953 = vadd.f32 0.0, %v2952
    %2954 = vmatmul.bf16.gmra.mxu0 %v2862
    %v2955 = vpop.f32.mrf.mxu0
    %v2956 = vadd.f32 0.0, %v2955
    %v2957 = vpop.f32.mrf.mxu0
    %v2958 = vadd.f32 0.0, %v2957
    %2959 = vmatmul.bf16.gmra.mxu0 %v2863
    %v2960 = vpop.f32.mrf.mxu0
    %v2961 = vadd.f32 0.0, %v2960
    %v2962 = vpop.f32.mrf.mxu0
    %v2963 = vadd.f32 0.0, %v2962
    %2964 = vmatmul.bf16.gmra.mxu0 %v2864
    %v2965 = vpop.f32.mrf.mxu0
    %v2966 = vadd.f32 0.0, %v2965
    %v2967 = vpop.f32.mrf.mxu0
    %v2968 = vadd.f32 0.0, %v2967
    %2969 = vmatmul.bf16.gmra.mxu0 %v2865
    %v2970 = vpop.f32.mrf.mxu0
    %v2971 = vadd.f32 0.0, %v2970
    %v2972 = vpop.f32.mrf.mxu0
    %v2973 = vadd.f32 0.0, %v2972
    %2974 = vmatmul.bf16.gmra.mxu0 %v2866
    %v2975 = vpop.f32.mrf.mxu0
    %v2976 = vadd.f32 0.0, %v2975
    %v2977 = vpop.f32.mrf.mxu0
    %v2978 = vadd.f32 0.0, %v2977
    %2979 = vdwg.mxu0
    %v2980 = vadd.f32 %v2840, %v2941
    %v2981 = vadd.f32 %v2840, %v2943
    %v2982 = vadd.f32 %v2840, %v2946
    %v2983 = vadd.f32 %v2840, %v2948
    %v2984 = vadd.f32 %v2840, %v2951
    %v2985 = vadd.f32 %v2840, %v2953
    %v2986 = vadd.f32 %v2840, %v2956
    %v2987 = vadd.f32 %v2840, %v2958
    %v2988 = vadd.f32 %v2840, %v2961
    %v2989 = vadd.f32 %v2840, %v2963
    %v2990 = vadd.f32 %v2840, %v2966
    %v2991 = vadd.f32 %v2840, %v2968
    %v2992 = vadd.f32 %v2840, %v2971
    %v2993 = vadd.f32 %v2840, %v2973
    %v2994 = vadd.f32 %v2840, %v2976
    %v2995 = vadd.f32 %v2840, %v2978
    %v2996 = vld [vmem:[%s2842 + $0x1] sm:$0xff]
    %v2997 = vld [vmem:[%s2842 + $0x9] sm:$0xff]
    %v2998 = vld [vmem:[%s2842 + $0x19] sm:$0xff]
    %v2999 = vld [vmem:[%s2842 + $0x21] sm:$0xff]
    %v3000 = vld [vmem:[%s2842 + $0x31] sm:$0xff]
    %v3001 = vld [vmem:[%s2842 + $0x39] sm:$0xff]
    %v3002 = vld [vmem:[%s2842 + $0x49] sm:$0xff]
    %v3003 = vld [vmem:[%s2842 + $0x51] sm:$0xff]
    %v3004 = vld [vmem:[%s2842 + $0x61] sm:$0xff]
    %v3005 = vld [vmem:[%s2842 + $0x69] sm:$0xff]
    %v3006 = vld [vmem:[%s2842 + $0x79] sm:$0xff]
    %v3007 = vld [vmem:[%s2842 + $0x81] sm:$0xff]
    %v3008 = vld [vmem:[%s2842 + $0x91] sm:$0xff]
    %v3009 = vld [vmem:[%s2842 + $0x99] sm:$0xff]
    %v3010 = vld [vmem:[%s2842 + $0xa9] sm:$0xff]
    %v3011 = vld [vmem:[%s2842 + $0xb1] sm:$0xff]
    %v3012 = vpack.c.bf16 %v2997, %v2996
    %v3013 = vpack.c.bf16 %v2999, %v2998
    %v3014 = vpack.c.bf16 %v3001, %v3000
    %v3015 = vpack.c.bf16 %v3003, %v3002
    %v3016 = vpack.c.bf16 %v3005, %v3004
    %v3017 = vpack.c.bf16 %v3007, %v3006
    %v3018 = vpack.c.bf16 %v3009, %v3008
    %v3019 = vpack.c.bf16 %v3011, %v3010
    %v3020 = vld [vmem:[%s861] sm:$0xf]
    %v3021 = vld [vmem:[%s861 + $0x4] sm:$0xf]
    %v3022 = vld [vmem:[%s861 + $0x8] sm:$0xf]
    %v3023 = vld [vmem:[%s861 + $0xc] sm:$0xf]
    %v3024 = vld [vmem:[%s861 + $0x10] sm:$0xf]
    %v3025 = vld [vmem:[%s861 + $0x14] sm:$0xf]
    %v3026 = vld [vmem:[%s861 + $0x18] sm:$0xf]
    %v3027 = vld [vmem:[%s861 + $0x1c] sm:$0xf]
    %v3028 = vld [vmem:[%s861 + $0x20] sm:$0xf]
    %v3029 = vld [vmem:[%s861 + $0x24] sm:$0xf]
    %v3030 = vld [vmem:[%s861 + $0x28] sm:$0xf]
    %v3031 = vld [vmem:[%s861 + $0x2c] sm:$0xf]
    %v3032 = vld [vmem:[%s861 + $0x30] sm:$0xf]
    %v3033 = vld [vmem:[%s861 + $0x34] sm:$0xf]
    %v3034 = vld [vmem:[%s861 + $0x38] sm:$0xf]
    %v3035 = vld [vmem:[%s861 + $0x3c] sm:$0xf]
    %v3052 = vunpack.c.l.b16 %v3020
    %v3053 = vunpack.c.l.b16 %v3021
    %v3054 = vunpack.c.l.b16 %v3022
    %v3055 = vunpack.c.l.b16 %v3023
    %v3056 = vunpack.c.l.b16 %v3024
    %v3057 = vunpack.c.l.b16 %v3025
    %v3058 = vunpack.c.l.b16 %v3026
    %v3059 = vunpack.c.l.b16 %v3027
    %v3060 = vunpack.c.l.b16 %v3028
    %v3061 = vunpack.c.l.b16 %v3029
    %v3062 = vunpack.c.l.b16 %v3030
    %v3063 = vunpack.c.l.b16 %v3031
    %v3064 = vunpack.c.l.b16 %v3032
    %v3065 = vunpack.c.l.b16 %v3033
    %v3066 = vunpack.c.l.b16 %v3034
    %v3067 = vunpack.c.l.b16 %v3035
    %v3068 = vpack.c.b16 %v3053, %v3052
    %v3069 = vpack.c.b16 %v3055, %v3054
    %v3070 = vpack.c.b16 %v3057, %v3056
    %v3071 = vpack.c.b16 %v3059, %v3058
    %v3072 = vpack.c.b16 %v3061, %v3060
    %v3073 = vpack.c.b16 %v3063, %v3062
    %v3074 = vpack.c.b16 %v3065, %v3064
    %v3075 = vpack.c.b16 %v3067, %v3066
    %3084 = vmatpush.bf16.msra.mxu0 %v3075
    %3085 = vmatpush.bf16.msra.mxu0 %v3074
    %3086 = vmatpush.bf16.msra.mxu0 %v3073
    %3087 = vmatpush.bf16.msra.mxu0 %v3072
    %3088 = vmatpush.bf16.msra.mxu0 %v3071
    %3089 = vmatpush.bf16.msra.mxu0 %v3070
    %3090 = vmatpush.bf16.msra.mxu0 %v3069
    %3091 = vmatpush.bf16.msra.mxu0 %v3068
    %3092 = vmatmul.bf16.gmra.mxu0 %v3012
    %v3093 = vpop.f32.mrf.mxu0
    %v3094 = vadd.f32 0.0, %v3093
    %v3095 = vpop.f32.mrf.mxu0
    %v3096 = vadd.f32 0.0, %v3095
    %3097 = vmatmul.bf16.gmra.mxu0 %v3013
    %v3098 = vpop.f32.mrf.mxu0
    %v3099 = vadd.f32 0.0, %v3098
    %v3100 = vpop.f32.mrf.mxu0
    %v3101 = vadd.f32 0.0, %v3100
    %3102 = vmatmul.bf16.gmra.mxu0 %v3014
    %v3103 = vpop.f32.mrf.mxu0
    %v3104 = vadd.f32 0.0, %v3103
    %v3105 = vpop.f32.mrf.mxu0
    %v3106 = vadd.f32 0.0, %v3105
    %3107 = vmatmul.bf16.gmra.mxu0 %v3015
    %v3108 = vpop.f32.mrf.mxu0
    %v3109 = vadd.f32 0.0, %v3108
    %v3110 = vpop.f32.mrf.mxu0
    %v3111 = vadd.f32 0.0, %v3110
    %3112 = vmatmul.bf16.gmra.mxu0 %v3016
    %v3113 = vpop.f32.mrf.mxu0
    %v3114 = vadd.f32 0.0, %v3113
    %v3115 = vpop.f32.mrf.mxu0
    %v3116 = vadd.f32 0.0, %v3115
    %3117 = vmatmul.bf16.gmra.mxu0 %v3017
    %v3118 = vpop.f32.mrf.mxu0
    %v3119 = vadd.f32 0.0, %v3118
    %v3120 = vpop.f32.mrf.mxu0
    %v3121 = vadd.f32 0.0, %v3120
    %3122 = vmatmul.bf16.gmra.mxu0 %v3018
    %v3123 = vpop.f32.mrf.mxu0
    %v3124 = vadd.f32 0.0, %v3123
    %v3125 = vpop.f32.mrf.mxu0
    %v3126 = vadd.f32 0.0, %v3125
    %3127 = vmatmul.bf16.gmra.mxu0 %v3019
    %v3128 = vpop.f32.mrf.mxu0
    %v3129 = vadd.f32 0.0, %v3128
    %v3130 = vpop.f32.mrf.mxu0
    %v3131 = vadd.f32 0.0, %v3130
    %3132 = vdwg.mxu0
    %v3133 = vadd.f32 %v2980, %v3094
    %v3134 = vadd.f32 %v2981, %v3096
    %v3135 = vadd.f32 %v2982, %v3099
    %v3136 = vadd.f32 %v2983, %v3101
    %v3137 = vadd.f32 %v2984, %v3104
    %v3138 = vadd.f32 %v2985, %v3106
    %v3139 = vadd.f32 %v2986, %v3109
    %v3140 = vadd.f32 %v2987, %v3111
    %v3141 = vadd.f32 %v2988, %v3114
    %v3142 = vadd.f32 %v2989, %v3116
    %v3143 = vadd.f32 %v2990, %v3119
    %v3144 = vadd.f32 %v2991, %v3121
    %v3145 = vadd.f32 %v2992, %v3124
    %v3146 = vadd.f32 %v2993, %v3126
    %v3147 = vadd.f32 %v2994, %v3129
    %v3148 = vadd.f32 %v2995, %v3131
    %v3149 = vld [vmem:[%s2842 + $0x2] sm:$0xff]
    %v3150 = vld [vmem:[%s2842 + $0xa] sm:$0xff]
    %v3151 = vld [vmem:[%s2842 + $0x1a] sm:$0xff]
    %v3152 = vld [vmem:[%s2842 + $0x22] sm:$0xff]
    %v3153 = vld [vmem:[%s2842 + $0x32] sm:$0xff]
    %v3154 = vld [vmem:[%s2842 + $0x3a] sm:$0xff]
    %v3155 = vld [vmem:[%s2842 + $0x4a] sm:$0xff]
    %v3156 = vld [vmem:[%s2842 + $0x52] sm:$0xff]
    %v3157 = vld [vmem:[%s2842 + $0x62] sm:$0xff]
    %v3158 = vld [vmem:[%s2842 + $0x6a] sm:$0xff]
    %v3159 = vld [vmem:[%s2842 + $0x7a] sm:$0xff]
    %v3160 = vld [vmem:[%s2842 + $0x82] sm:$0xff]
    %v3161 = vld [vmem:[%s2842 + $0x92] sm:$0xff]
    %v3162 = vld [vmem:[%s2842 + $0x9a] sm:$0xff]
    %v3163 = vld [vmem:[%s2842 + $0xaa] sm:$0xff]
    %v3164 = vld [vmem:[%s2842 + $0xb2] sm:$0xff]
    %v3165 = vpack.c.bf16 %v3150, %v3149
    %v3166 = vpack.c.bf16 %v3152, %v3151
    %v3167 = vpack.c.bf16 %v3154, %v3153
    %v3168 = vpack.c.bf16 %v3156, %v3155
    %v3169 = vpack.c.bf16 %v3158, %v3157
    %v3170 = vpack.c.bf16 %v3160, %v3159
    %v3171 = vpack.c.bf16 %v3162, %v3161
    %v3172 = vpack.c.bf16 %v3164, %v3163
    %v3173 = vld [vmem:[%s1015] sm:$0xf]
    %v3174 = vld [vmem:[%s1015 + $0x4] sm:$0xf]
    %v3175 = vld [vmem:[%s1015 + $0x8] sm:$0xf]
    %v3176 = vld [vmem:[%s1015 + $0xc] sm:$0xf]
    %v3177 = vld [vmem:[%s1015 + $0x10] sm:$0xf]
    %v3178 = vld [vmem:[%s1015 + $0x14] sm:$0xf]
    %v3179 = vld [vmem:[%s1015 + $0x18] sm:$0xf]
    %v3180 = vld [vmem:[%s1015 + $0x1c] sm:$0xf]
    %v3181 = vld [vmem:[%s1015 + $0x20] sm:$0xf]
    %v3182 = vld [vmem:[%s1015 + $0x24] sm:$0xf]
    %v3183 = vld [vmem:[%s1015 + $0x28] sm:$0xf]
    %v3184 = vld [vmem:[%s1015 + $0x2c] sm:$0xf]
    %v3185 = vld [vmem:[%s1015 + $0x30] sm:$0xf]
    %v3186 = vld [vmem:[%s1015 + $0x34] sm:$0xf]
    %v3187 = vld [vmem:[%s1015 + $0x38] sm:$0xf]
    %v3188 = vld [vmem:[%s1015 + $0x3c] sm:$0xf]
    %v3205 = vunpack.c.l.b16 %v3173
    %v3206 = vunpack.c.l.b16 %v3174
    %v3207 = vunpack.c.l.b16 %v3175
    %v3208 = vunpack.c.l.b16 %v3176
    %v3209 = vunpack.c.l.b16 %v3177
    %v3210 = vunpack.c.l.b16 %v3178
    %v3211 = vunpack.c.l.b16 %v3179
    %v3212 = vunpack.c.l.b16 %v3180
    %v3213 = vunpack.c.l.b16 %v3181
    %v3214 = vunpack.c.l.b16 %v3182
    %v3215 = vunpack.c.l.b16 %v3183
    %v3216 = vunpack.c.l.b16 %v3184
    %v3217 = vunpack.c.l.b16 %v3185
    %v3218 = vunpack.c.l.b16 %v3186
    %v3219 = vunpack.c.l.b16 %v3187
    %v3220 = vunpack.c.l.b16 %v3188
    %v3221 = vpack.c.b16 %v3206, %v3205
    %v3222 = vpack.c.b16 %v3208, %v3207
    %v3223 = vpack.c.b16 %v3210, %v3209
    %v3224 = vpack.c.b16 %v3212, %v3211
    %v3225 = vpack.c.b16 %v3214, %v3213
    %v3226 = vpack.c.b16 %v3216, %v3215
    %v3227 = vpack.c.b16 %v3218, %v3217
    %v3228 = vpack.c.b16 %v3220, %v3219
    %3237 = vmatpush.bf16.msra.mxu0 %v3228
    %3238 = vmatpush.bf16.msra.mxu0 %v3227
    %3239 = vmatpush.bf16.msra.mxu0 %v3226
    %3240 = vmatpush.bf16.msra.mxu0 %v3225
    %3241 = vmatpush.bf16.msra.mxu0 %v3224
    %3242 = vmatpush.bf16.msra.mxu0 %v3223
    %3243 = vmatpush.bf16.msra.mxu0 %v3222
    %3244 = vmatpush.bf16.msra.mxu0 %v3221
    %3245 = vmatmul.bf16.gmra.mxu0 %v3165
    %v3246 = vpop.f32.mrf.mxu0
    %v3247 = vadd.f32 0.0, %v3246
    %v3248 = vpop.f32.mrf.mxu0
    %v3249 = vadd.f32 0.0, %v3248
    %3250 = vmatmul.bf16.gmra.mxu0 %v3166
    %v3251 = vpop.f32.mrf.mxu0
    %v3252 = vadd.f32 0.0, %v3251
    %v3253 = vpop.f32.mrf.mxu0
    %v3254 = vadd.f32 0.0, %v3253
    %3255 = vmatmul.bf16.gmra.mxu0 %v3167
    %v3256 = vpop.f32.mrf.mxu0
    %v3257 = vadd.f32 0.0, %v3256
    %v3258 = vpop.f32.mrf.mxu0
    %v3259 = vadd.f32 0.0, %v3258
    %3260 = vmatmul.bf16.gmra.mxu0 %v3168
    %v3261 = vpop.f32.mrf.mxu0
    %v3262 = vadd.f32 0.0, %v3261
    %v3263 = vpop.f32.mrf.mxu0
    %v3264 = vadd.f32 0.0, %v3263
    %3265 = vmatmul.bf16.gmra.mxu0 %v3169
    %v3266 = vpop.f32.mrf.mxu0
    %v3267 = vadd.f32 0.0, %v3266
    %v3268 = vpop.f32.mrf.mxu0
    %v3269 = vadd.f32 0.0, %v3268
    %3270 = vmatmul.bf16.gmra.mxu0 %v3170
    %v3271 = vpop.f32.mrf.mxu0
    %v3272 = vadd.f32 0.0, %v3271
    %v3273 = vpop.f32.mrf.mxu0
    %v3274 = vadd.f32 0.0, %v3273
    %3275 = vmatmul.bf16.gmra.mxu0 %v3171
    %v3276 = vpop.f32.mrf.mxu0
    %v3277 = vadd.f32 0.0, %v3276
    %v3278 = vpop.f32.mrf.mxu0
    %v3279 = vadd.f32 0.0, %v3278
    %3280 = vmatmul.bf16.gmra.mxu0 %v3172
    %v3281 = vpop.f32.mrf.mxu0
    %v3282 = vadd.f32 0.0, %v3281
    %v3283 = vpop.f32.mrf.mxu0
    %v3284 = vadd.f32 0.0, %v3283
    %3285 = vdwg.mxu0
    %v3286 = vadd.f32 %v3133, %v3247
    %v3287 = vadd.f32 %v3134, %v3249
    %v3288 = vadd.f32 %v3135, %v3252
    %v3289 = vadd.f32 %v3136, %v3254
    %v3290 = vadd.f32 %v3137, %v3257
    %v3291 = vadd.f32 %v3138, %v3259
    %v3292 = vadd.f32 %v3139, %v3262
    %v3293 = vadd.f32 %v3140, %v3264
    %v3294 = vadd.f32 %v3141, %v3267
    %v3295 = vadd.f32 %v3142, %v3269
    %v3296 = vadd.f32 %v3143, %v3272
    %v3297 = vadd.f32 %v3144, %v3274
    %v3298 = vadd.f32 %v3145, %v3277
    %v3299 = vadd.f32 %v3146, %v3279
    %v3300 = vadd.f32 %v3147, %v3282
    %v3301 = vadd.f32 %v3148, %v3284
    %s3302 = scalar_lea.vmem [#allocation2], 216
    %v3303 = vld [vmem:[%s3302] sm:$0xff]
    %v3304 = vld [vmem:[%s3302 + $0x8] sm:$0xff]
    %v3305 = vld [vmem:[%s3302 + $0x18] sm:$0xff]
    %v3306 = vld [vmem:[%s3302 + $0x20] sm:$0xff]
    %v3307 = vld [vmem:[%s3302 + $0x30] sm:$0xff]
    %v3308 = vld [vmem:[%s3302 + $0x38] sm:$0xff]
    %v3309 = vld [vmem:[%s3302 + $0x48] sm:$0xff]
    %v3310 = vld [vmem:[%s3302 + $0x50] sm:$0xff]
    %v3311 = vld [vmem:[%s3302 + $0x60] sm:$0xff]
    %v3312 = vld [vmem:[%s3302 + $0x68] sm:$0xff]
    %v3313 = vld [vmem:[%s3302 + $0x78] sm:$0xff]
    %v3314 = vld [vmem:[%s3302 + $0x80] sm:$0xff]
    %v3315 = vld [vmem:[%s3302 + $0x90] sm:$0xff]
    %v3316 = vld [vmem:[%s3302 + $0x98] sm:$0xff]
    %v3317 = vld [vmem:[%s3302 + $0xa8] sm:$0xff]
    %v3318 = vld [vmem:[%s3302 + $0xb0] sm:$0xff]
    %v3319 = vpack.c.bf16 %v3304, %v3303
    %v3320 = vpack.c.bf16 %v3306, %v3305
    %v3321 = vpack.c.bf16 %v3308, %v3307
    %v3322 = vpack.c.bf16 %v3310, %v3309
    %v3323 = vpack.c.bf16 %v3312, %v3311
    %v3324 = vpack.c.bf16 %v3314, %v3313
    %v3325 = vpack.c.bf16 %v3316, %v3315
    %v3326 = vpack.c.bf16 %v3318, %v3317
    %v3327 = vld [vmem:[%s1169] sm:$0xf]
    %v3328 = vld [vmem:[%s1169 + $0x4] sm:$0xf]
    %v3329 = vld [vmem:[%s1169 + $0x8] sm:$0xf]
    %v3330 = vld [vmem:[%s1169 + $0xc] sm:$0xf]
    %v3331 = vld [vmem:[%s1169 + $0x10] sm:$0xf]
    %v3332 = vld [vmem:[%s1169 + $0x14] sm:$0xf]
    %v3333 = vld [vmem:[%s1169 + $0x18] sm:$0xf]
    %v3334 = vld [vmem:[%s1169 + $0x1c] sm:$0xf]
    %v3335 = vld [vmem:[%s1169 + $0x20] sm:$0xf]
    %v3336 = vld [vmem:[%s1169 + $0x24] sm:$0xf]
    %v3337 = vld [vmem:[%s1169 + $0x28] sm:$0xf]
    %v3338 = vld [vmem:[%s1169 + $0x2c] sm:$0xf]
    %v3339 = vld [vmem:[%s1169 + $0x30] sm:$0xf]
    %v3340 = vld [vmem:[%s1169 + $0x34] sm:$0xf]
    %v3341 = vld [vmem:[%s1169 + $0x38] sm:$0xf]
    %v3342 = vld [vmem:[%s1169 + $0x3c] sm:$0xf]
    %v3359 = vunpack.c.l.b16 %v3327
    %v3360 = vunpack.c.l.b16 %v3328
    %v3361 = vunpack.c.l.b16 %v3329
    %v3362 = vunpack.c.l.b16 %v3330
    %v3363 = vunpack.c.l.b16 %v3331
    %v3364 = vunpack.c.l.b16 %v3332
    %v3365 = vunpack.c.l.b16 %v3333
    %v3366 = vunpack.c.l.b16 %v3334
    %v3367 = vunpack.c.l.b16 %v3335
    %v3368 = vunpack.c.l.b16 %v3336
    %v3369 = vunpack.c.l.b16 %v3337
    %v3370 = vunpack.c.l.b16 %v3338
    %v3371 = vunpack.c.l.b16 %v3339
    %v3372 = vunpack.c.l.b16 %v3340
    %v3373 = vunpack.c.l.b16 %v3341
    %v3374 = vunpack.c.l.b16 %v3342
    %v3375 = vpack.c.b16 %v3360, %v3359
    %v3376 = vpack.c.b16 %v3362, %v3361
    %v3377 = vpack.c.b16 %v3364, %v3363
    %v3378 = vpack.c.b16 %v3366, %v3365
    %v3379 = vpack.c.b16 %v3368, %v3367
    %v3380 = vpack.c.b16 %v3370, %v3369
    %v3381 = vpack.c.b16 %v3372, %v3371
    %v3382 = vpack.c.b16 %v3374, %v3373
    %3391 = vmatpush.bf16.msra.mxu0 %v3382
    %3392 = vmatpush.bf16.msra.mxu0 %v3381
    %3393 = vmatpush.bf16.msra.mxu0 %v3380
    %3394 = vmatpush.bf16.msra.mxu0 %v3379
    %3395 = vmatpush.bf16.msra.mxu0 %v3378
    %3396 = vmatpush.bf16.msra.mxu0 %v3377
    %3397 = vmatpush.bf16.msra.mxu0 %v3376
    %3398 = vmatpush.bf16.msra.mxu0 %v3375
    %3399 = vmatmul.bf16.gmra.mxu0 %v3319
    %v3400 = vpop.f32.mrf.mxu0
    %v3401 = vadd.f32 0.0, %v3400
    %v3402 = vpop.f32.mrf.mxu0
    %v3403 = vadd.f32 0.0, %v3402
    %3404 = vmatmul.bf16.gmra.mxu0 %v3320
    %v3405 = vpop.f32.mrf.mxu0
    %v3406 = vadd.f32 0.0, %v3405
    %v3407 = vpop.f32.mrf.mxu0
    %v3408 = vadd.f32 0.0, %v3407
    %3409 = vmatmul.bf16.gmra.mxu0 %v3321
    %v3410 = vpop.f32.mrf.mxu0
    %v3411 = vadd.f32 0.0, %v3410
    %v3412 = vpop.f32.mrf.mxu0
    %v3413 = vadd.f32 0.0, %v3412
    %3414 = vmatmul.bf16.gmra.mxu0 %v3322
    %v3415 = vpop.f32.mrf.mxu0
    %v3416 = vadd.f32 0.0, %v3415
    %v3417 = vpop.f32.mrf.mxu0
    %v3418 = vadd.f32 0.0, %v3417
    %3419 = vmatmul.bf16.gmra.mxu0 %v3323
    %v3420 = vpop.f32.mrf.mxu0
    %v3421 = vadd.f32 0.0, %v3420
    %v3422 = vpop.f32.mrf.mxu0
    %v3423 = vadd.f32 0.0, %v3422
    %3424 = vmatmul.bf16.gmra.mxu0 %v3324
    %v3425 = vpop.f32.mrf.mxu0
    %v3426 = vadd.f32 0.0, %v3425
    %v3427 = vpop.f32.mrf.mxu0
    %v3428 = vadd.f32 0.0, %v3427
    %3429 = vmatmul.bf16.gmra.mxu0 %v3325
    %v3430 = vpop.f32.mrf.mxu0
    %v3431 = vadd.f32 0.0, %v3430
    %v3432 = vpop.f32.mrf.mxu0
    %v3433 = vadd.f32 0.0, %v3432
    %3434 = vmatmul.bf16.gmra.mxu0 %v3326
    %v3435 = vpop.f32.mrf.mxu0
    %v3436 = vadd.f32 0.0, %v3435
    %v3437 = vpop.f32.mrf.mxu0
    %v3438 = vadd.f32 0.0, %v3437
    %3439 = vdwg.mxu0
    %v3440 = vadd.f32 %v3286, %v3401
    %v3441 = vadd.f32 %v3287, %v3403
    %v3442 = vadd.f32 %v3288, %v3406
    %v3443 = vadd.f32 %v3289, %v3408
    %v3444 = vadd.f32 %v3290, %v3411
    %v3445 = vadd.f32 %v3291, %v3413
    %v3446 = vadd.f32 %v3292, %v3416
    %v3447 = vadd.f32 %v3293, %v3418
    %v3448 = vadd.f32 %v3294, %v3421
    %v3449 = vadd.f32 %v3295, %v3423
    %v3450 = vadd.f32 %v3296, %v3426
    %v3451 = vadd.f32 %v3297, %v3428
    %v3452 = vadd.f32 %v3298, %v3431
    %v3453 = vadd.f32 %v3299, %v3433
    %v3454 = vadd.f32 %v3300, %v3436
    %v3455 = vadd.f32 %v3301, %v3438
    %v3456 = vld [vmem:[%s3302 + $0x1] sm:$0xff]
    %v3457 = vld [vmem:[%s3302 + $0x9] sm:$0xff]
    %v3458 = vld [vmem:[%s3302 + $0x19] sm:$0xff]
    %v3459 = vld [vmem:[%s3302 + $0x21] sm:$0xff]
    %v3460 = vld [vmem:[%s3302 + $0x31] sm:$0xff]
    %v3461 = vld [vmem:[%s3302 + $0x39] sm:$0xff]
    %v3462 = vld [vmem:[%s3302 + $0x49] sm:$0xff]
    %v3463 = vld [vmem:[%s3302 + $0x51] sm:$0xff]
    %v3464 = vld [vmem:[%s3302 + $0x61] sm:$0xff]
    %v3465 = vld [vmem:[%s3302 + $0x69] sm:$0xff]
    %v3466 = vld [vmem:[%s3302 + $0x79] sm:$0xff]
    %v3467 = vld [vmem:[%s3302 + $0x81] sm:$0xff]
    %v3468 = vld [vmem:[%s3302 + $0x91] sm:$0xff]
    %v3469 = vld [vmem:[%s3302 + $0x99] sm:$0xff]
    %v3470 = vld [vmem:[%s3302 + $0xa9] sm:$0xff]
    %v3471 = vld [vmem:[%s3302 + $0xb1] sm:$0xff]
    %v3472 = vpack.c.bf16 %v3457, %v3456
    %v3473 = vpack.c.bf16 %v3459, %v3458
    %v3474 = vpack.c.bf16 %v3461, %v3460
    %v3475 = vpack.c.bf16 %v3463, %v3462
    %v3476 = vpack.c.bf16 %v3465, %v3464
    %v3477 = vpack.c.bf16 %v3467, %v3466
    %v3478 = vpack.c.bf16 %v3469, %v3468
    %v3479 = vpack.c.bf16 %v3471, %v3470
    %v3480 = vld [vmem:[%s1323] sm:$0xf]
    %v3481 = vld [vmem:[%s1323 + $0x4] sm:$0xf]
    %v3482 = vld [vmem:[%s1323 + $0x8] sm:$0xf]
    %v3483 = vld [vmem:[%s1323 + $0xc] sm:$0xf]
    %v3484 = vld [vmem:[%s1323 + $0x10] sm:$0xf]
    %v3485 = vld [vmem:[%s1323 + $0x14] sm:$0xf]
    %v3486 = vld [vmem:[%s1323 + $0x18] sm:$0xf]
    %v3487 = vld [vmem:[%s1323 + $0x1c] sm:$0xf]
    %v3488 = vld [vmem:[%s1323 + $0x20] sm:$0xf]
    %v3489 = vld [vmem:[%s1323 + $0x24] sm:$0xf]
    %v3490 = vld [vmem:[%s1323 + $0x28] sm:$0xf]
    %v3491 = vld [vmem:[%s1323 + $0x2c] sm:$0xf]
    %v3492 = vld [vmem:[%s1323 + $0x30] sm:$0xf]
    %v3493 = vld [vmem:[%s1323 + $0x34] sm:$0xf]
    %v3494 = vld [vmem:[%s1323 + $0x38] sm:$0xf]
    %v3495 = vld [vmem:[%s1323 + $0x3c] sm:$0xf]
    %v3512 = vunpack.c.l.b16 %v3480
    %v3513 = vunpack.c.l.b16 %v3481
    %v3514 = vunpack.c.l.b16 %v3482
    %v3515 = vunpack.c.l.b16 %v3483
    %v3516 = vunpack.c.l.b16 %v3484
    %v3517 = vunpack.c.l.b16 %v3485
    %v3518 = vunpack.c.l.b16 %v3486
    %v3519 = vunpack.c.l.b16 %v3487
    %v3520 = vunpack.c.l.b16 %v3488
    %v3521 = vunpack.c.l.b16 %v3489
    %v3522 = vunpack.c.l.b16 %v3490
    %v3523 = vunpack.c.l.b16 %v3491
    %v3524 = vunpack.c.l.b16 %v3492
    %v3525 = vunpack.c.l.b16 %v3493
    %v3526 = vunpack.c.l.b16 %v3494
    %v3527 = vunpack.c.l.b16 %v3495
    %v3528 = vpack.c.b16 %v3513, %v3512
    %v3529 = vpack.c.b16 %v3515, %v3514
    %v3530 = vpack.c.b16 %v3517, %v3516
    %v3531 = vpack.c.b16 %v3519, %v3518
    %v3532 = vpack.c.b16 %v3521, %v3520
    %v3533 = vpack.c.b16 %v3523, %v3522
    %v3534 = vpack.c.b16 %v3525, %v3524
    %v3535 = vpack.c.b16 %v3527, %v3526
    %3544 = vmatpush.bf16.msra.mxu0 %v3535
    %3545 = vmatpush.bf16.msra.mxu0 %v3534
    %3546 = vmatpush.bf16.msra.mxu0 %v3533
    %3547 = vmatpush.bf16.msra.mxu0 %v3532
    %3548 = vmatpush.bf16.msra.mxu0 %v3531
    %3549 = vmatpush.bf16.msra.mxu0 %v3530
    %3550 = vmatpush.bf16.msra.mxu0 %v3529
    %3551 = vmatpush.bf16.msra.mxu0 %v3528
    %3552 = vmatmul.bf16.gmra.mxu0 %v3472
    %v3553 = vpop.f32.mrf.mxu0
    %v3554 = vadd.f32 0.0, %v3553
    %v3555 = vpop.f32.mrf.mxu0
    %v3556 = vadd.f32 0.0, %v3555
    %3557 = vmatmul.bf16.gmra.mxu0 %v3473
    %v3558 = vpop.f32.mrf.mxu0
    %v3559 = vadd.f32 0.0, %v3558
    %v3560 = vpop.f32.mrf.mxu0
    %v3561 = vadd.f32 0.0, %v3560
    %3562 = vmatmul.bf16.gmra.mxu0 %v3474
    %v3563 = vpop.f32.mrf.mxu0
    %v3564 = vadd.f32 0.0, %v3563
    %v3565 = vpop.f32.mrf.mxu0
    %v3566 = vadd.f32 0.0, %v3565
    %3567 = vmatmul.bf16.gmra.mxu0 %v3475
    %v3568 = vpop.f32.mrf.mxu0
    %v3569 = vadd.f32 0.0, %v3568
    %v3570 = vpop.f32.mrf.mxu0
    %v3571 = vadd.f32 0.0, %v3570
    %3572 = vmatmul.bf16.gmra.mxu0 %v3476
    %v3573 = vpop.f32.mrf.mxu0
    %v3574 = vadd.f32 0.0, %v3573
    %v3575 = vpop.f32.mrf.mxu0
    %v3576 = vadd.f32 0.0, %v3575
    %3577 = vmatmul.bf16.gmra.mxu0 %v3477
    %v3578 = vpop.f32.mrf.mxu0
    %v3579 = vadd.f32 0.0, %v3578
    %v3580 = vpop.f32.mrf.mxu0
    %v3581 = vadd.f32 0.0, %v3580
    %3582 = vmatmul.bf16.gmra.mxu0 %v3478
    %v3583 = vpop.f32.mrf.mxu0
    %v3584 = vadd.f32 0.0, %v3583
    %v3585 = vpop.f32.mrf.mxu0
    %v3586 = vadd.f32 0.0, %v3585
    %3587 = vmatmul.bf16.gmra.mxu0 %v3479
    %v3588 = vpop.f32.mrf.mxu0
    %v3589 = vadd.f32 0.0, %v3588
    %v3590 = vpop.f32.mrf.mxu0
    %v3591 = vadd.f32 0.0, %v3590
    %3592 = vdwg.mxu0
    %v3593 = vadd.f32 %v3440, %v3554
    %v3594 = vadd.f32 %v3441, %v3556
    %v3595 = vadd.f32 %v3442, %v3559
    %v3596 = vadd.f32 %v3443, %v3561
    %v3597 = vadd.f32 %v3444, %v3564
    %v3598 = vadd.f32 %v3445, %v3566
    %v3599 = vadd.f32 %v3446, %v3569
    %v3600 = vadd.f32 %v3447, %v3571
    %v3601 = vadd.f32 %v3448, %v3574
    %v3602 = vadd.f32 %v3449, %v3576
    %v3603 = vadd.f32 %v3450, %v3579
    %v3604 = vadd.f32 %v3451, %v3581
    %v3605 = vadd.f32 %v3452, %v3584
    %v3606 = vadd.f32 %v3453, %v3586
    %v3607 = vadd.f32 %v3454, %v3589
    %v3608 = vadd.f32 %v3455, %v3591
    %v3609 = vld [vmem:[%s3302 + $0x2] sm:$0xff]
    %v3610 = vld [vmem:[%s3302 + $0xa] sm:$0xff]
    %v3611 = vld [vmem:[%s3302 + $0x1a] sm:$0xff]
    %v3612 = vld [vmem:[%s3302 + $0x22] sm:$0xff]
    %v3613 = vld [vmem:[%s3302 + $0x32] sm:$0xff]
    %v3614 = vld [vmem:[%s3302 + $0x3a] sm:$0xff]
    %v3615 = vld [vmem:[%s3302 + $0x4a] sm:$0xff]
    %v3616 = vld [vmem:[%s3302 + $0x52] sm:$0xff]
    %v3617 = vld [vmem:[%s3302 + $0x62] sm:$0xff]
    %v3618 = vld [vmem:[%s3302 + $0x6a] sm:$0xff]
    %v3619 = vld [vmem:[%s3302 + $0x7a] sm:$0xff]
    %v3620 = vld [vmem:[%s3302 + $0x82] sm:$0xff]
    %v3621 = vld [vmem:[%s3302 + $0x92] sm:$0xff]
    %v3622 = vld [vmem:[%s3302 + $0x9a] sm:$0xff]
    %v3623 = vld [vmem:[%s3302 + $0xaa] sm:$0xff]
    %v3624 = vld [vmem:[%s3302 + $0xb2] sm:$0xff]
    %v3625 = vpack.c.bf16 %v3610, %v3609
    %v3626 = vpack.c.bf16 %v3612, %v3611
    %v3627 = vpack.c.bf16 %v3614, %v3613
    %v3628 = vpack.c.bf16 %v3616, %v3615
    %v3629 = vpack.c.bf16 %v3618, %v3617
    %v3630 = vpack.c.bf16 %v3620, %v3619
    %v3631 = vpack.c.bf16 %v3622, %v3621
    %v3632 = vpack.c.bf16 %v3624, %v3623
    %v3633 = vld [vmem:[%s1477] sm:$0xf]
    %v3634 = vld [vmem:[%s1477 + $0x4] sm:$0xf]
    %v3635 = vld [vmem:[%s1477 + $0x8] sm:$0xf]
    %v3636 = vld [vmem:[%s1477 + $0xc] sm:$0xf]
    %v3637 = vld [vmem:[%s1477 + $0x10] sm:$0xf]
    %v3638 = vld [vmem:[%s1477 + $0x14] sm:$0xf]
    %v3639 = vld [vmem:[%s1477 + $0x18] sm:$0xf]
    %v3640 = vld [vmem:[%s1477 + $0x1c] sm:$0xf]
    %v3641 = vld [vmem:[%s1477 + $0x20] sm:$0xf]
    %v3642 = vld [vmem:[%s1477 + $0x24] sm:$0xf]
    %v3643 = vld [vmem:[%s1477 + $0x28] sm:$0xf]
    %v3644 = vld [vmem:[%s1477 + $0x2c] sm:$0xf]
    %v3645 = vld [vmem:[%s1477 + $0x30] sm:$0xf]
    %v3646 = vld [vmem:[%s1477 + $0x34] sm:$0xf]
    %v3647 = vld [vmem:[%s1477 + $0x38] sm:$0xf]
    %v3648 = vld [vmem:[%s1477 + $0x3c] sm:$0xf]
    %v3665 = vunpack.c.l.b16 %v3633
    %v3666 = vunpack.c.l.b16 %v3634
    %v3667 = vunpack.c.l.b16 %v3635
    %v3668 = vunpack.c.l.b16 %v3636
    %v3669 = vunpack.c.l.b16 %v3637
    %v3670 = vunpack.c.l.b16 %v3638
    %v3671 = vunpack.c.l.b16 %v3639
    %v3672 = vunpack.c.l.b16 %v3640
    %v3673 = vunpack.c.l.b16 %v3641
    %v3674 = vunpack.c.l.b16 %v3642
    %v3675 = vunpack.c.l.b16 %v3643
    %v3676 = vunpack.c.l.b16 %v3644
    %v3677 = vunpack.c.l.b16 %v3645
    %v3678 = vunpack.c.l.b16 %v3646
    %v3679 = vunpack.c.l.b16 %v3647
    %v3680 = vunpack.c.l.b16 %v3648
    %v3681 = vpack.c.b16 %v3666, %v3665
    %v3682 = vpack.c.b16 %v3668, %v3667
    %v3683 = vpack.c.b16 %v3670, %v3669
    %v3684 = vpack.c.b16 %v3672, %v3671
    %v3685 = vpack.c.b16 %v3674, %v3673
    %v3686 = vpack.c.b16 %v3676, %v3675
    %v3687 = vpack.c.b16 %v3678, %v3677
    %v3688 = vpack.c.b16 %v3680, %v3679
    %3697 = vmatpush.bf16.msra.mxu0 %v3688
    %3698 = vmatpush.bf16.msra.mxu0 %v3687
    %3699 = vmatpush.bf16.msra.mxu0 %v3686
    %3700 = vmatpush.bf16.msra.mxu0 %v3685
    %3701 = vmatpush.bf16.msra.mxu0 %v3684
    %3702 = vmatpush.bf16.msra.mxu0 %v3683
    %3703 = vmatpush.bf16.msra.mxu0 %v3682
    %3704 = vmatpush.bf16.msra.mxu0 %v3681
    %3705 = vmatmul.bf16.gmra.mxu0 %v3625
    %v3706 = vpop.f32.mrf.mxu0
    %v3707 = vadd.f32 0.0, %v3706
    %v3708 = vpop.f32.mrf.mxu0
    %v3709 = vadd.f32 0.0, %v3708
    %3710 = vmatmul.bf16.gmra.mxu0 %v3626
    %v3711 = vpop.f32.mrf.mxu0
    %v3712 = vadd.f32 0.0, %v3711
    %v3713 = vpop.f32.mrf.mxu0
    %v3714 = vadd.f32 0.0, %v3713
    %3715 = vmatmul.bf16.gmra.mxu0 %v3627
    %v3716 = vpop.f32.mrf.mxu0
    %v3717 = vadd.f32 0.0, %v3716
    %v3718 = vpop.f32.mrf.mxu0
    %v3719 = vadd.f32 0.0, %v3718
    %3720 = vmatmul.bf16.gmra.mxu0 %v3628
    %v3721 = vpop.f32.mrf.mxu0
    %v3722 = vadd.f32 0.0, %v3721
    %v3723 = vpop.f32.mrf.mxu0
    %v3724 = vadd.f32 0.0, %v3723
    %3725 = vmatmul.bf16.gmra.mxu0 %v3629
    %v3726 = vpop.f32.mrf.mxu0
    %v3727 = vadd.f32 0.0, %v3726
    %v3728 = vpop.f32.mrf.mxu0
    %v3729 = vadd.f32 0.0, %v3728
    %3730 = vmatmul.bf16.gmra.mxu0 %v3630
    %v3731 = vpop.f32.mrf.mxu0
    %v3732 = vadd.f32 0.0, %v3731
    %v3733 = vpop.f32.mrf.mxu0
    %v3734 = vadd.f32 0.0, %v3733
    %3735 = vmatmul.bf16.gmra.mxu0 %v3631
    %v3736 = vpop.f32.mrf.mxu0
    %v3737 = vadd.f32 0.0, %v3736
    %v3738 = vpop.f32.mrf.mxu0
    %v3739 = vadd.f32 0.0, %v3738
    %3740 = vmatmul.bf16.gmra.mxu0 %v3632
    %v3741 = vpop.f32.mrf.mxu0
    %v3742 = vadd.f32 0.0, %v3741
    %v3743 = vpop.f32.mrf.mxu0
    %v3744 = vadd.f32 0.0, %v3743
    %3745 = vdwg.mxu0
    %v3746 = vadd.f32 %v3593, %v3707
    %v3747 = vadd.f32 %v3594, %v3709
    %v3748 = vadd.f32 %v3595, %v3712
    %v3749 = vadd.f32 %v3596, %v3714
    %v3750 = vadd.f32 %v3597, %v3717
    %v3751 = vadd.f32 %v3598, %v3719
    %v3752 = vadd.f32 %v3599, %v3722
    %v3753 = vadd.f32 %v3600, %v3724
    %v3754 = vadd.f32 %v3601, %v3727
    %v3755 = vadd.f32 %v3602, %v3729
    %v3756 = vadd.f32 %v3603, %v3732
    %v3757 = vadd.f32 %v3604, %v3734
    %v3758 = vadd.f32 %v3605, %v3737
    %v3759 = vadd.f32 %v3606, %v3739
    %v3760 = vadd.f32 %v3607, %v3742
    %v3761 = vadd.f32 %v3608, %v3744
    %s3762 = scalar_lea.vmem [#allocation2], 240
    %v3763 = vld [vmem:[%s3762] sm:$0xff]
    %v3764 = vld [vmem:[%s3762 + $0x8] sm:$0xff]
    %v3765 = vld [vmem:[%s3762 + $0x18] sm:$0xff]
    %v3766 = vld [vmem:[%s3762 + $0x20] sm:$0xff]
    %v3767 = vld [vmem:[%s3762 + $0x30] sm:$0xff]
    %v3768 = vld [vmem:[%s3762 + $0x38] sm:$0xff]
    %v3769 = vld [vmem:[%s3762 + $0x48] sm:$0xff]
    %v3770 = vld [vmem:[%s3762 + $0x50] sm:$0xff]
    %v3771 = vld [vmem:[%s3762 + $0x60] sm:$0xff]
    %v3772 = vld [vmem:[%s3762 + $0x68] sm:$0xff]
    %v3773 = vld [vmem:[%s3762 + $0x78] sm:$0xff]
    %v3774 = vld [vmem:[%s3762 + $0x80] sm:$0xff]
    %v3775 = vld [vmem:[%s3762 + $0x90] sm:$0xff]
    %v3776 = vld [vmem:[%s3762 + $0x98] sm:$0xff]
    %v3777 = vld [vmem:[%s3762 + $0xa8] sm:$0xff]
    %v3778 = vld [vmem:[%s3762 + $0xb0] sm:$0xff]
    %v3779 = vpack.c.bf16 %v3764, %v3763
    %v3780 = vpack.c.bf16 %v3766, %v3765
    %v3781 = vpack.c.bf16 %v3768, %v3767
    %v3782 = vpack.c.bf16 %v3770, %v3769
    %v3783 = vpack.c.bf16 %v3772, %v3771
    %v3784 = vpack.c.bf16 %v3774, %v3773
    %v3785 = vpack.c.bf16 %v3776, %v3775
    %v3786 = vpack.c.bf16 %v3778, %v3777
    %v3787 = vld [vmem:[%s1632] sm:$0xf]
    %v3788 = vld [vmem:[%s1632 + $0x4] sm:$0xf]
    %v3789 = vld [vmem:[%s1632 + $0x8] sm:$0xf]
    %v3790 = vld [vmem:[%s1632 + $0xc] sm:$0xf]
    %v3791 = vld [vmem:[%s1632 + $0x10] sm:$0xf]
    %v3792 = vld [vmem:[%s1632 + $0x14] sm:$0xf]
    %v3793 = vld [vmem:[%s1632 + $0x18] sm:$0xf]
    %v3794 = vld [vmem:[%s1632 + $0x1c] sm:$0xf]
    %v3795 = vld [vmem:[%s1632 + $0x20] sm:$0xf]
    %v3796 = vld [vmem:[%s1632 + $0x24] sm:$0xf]
    %v3797 = vld [vmem:[%s1632 + $0x28] sm:$0xf]
    %v3798 = vld [vmem:[%s1632 + $0x2c] sm:$0xf]
    %v3799 = vld [vmem:[%s1632 + $0x30] sm:$0xf]
    %v3800 = vld [vmem:[%s1632 + $0x34] sm:$0xf]
    %v3801 = vld [vmem:[%s1632 + $0x38] sm:$0xf]
    %v3802 = vld [vmem:[%s1632 + $0x3c] sm:$0xf]
    %v3819 = vunpack.c.l.b16 %v3787
    %v3820 = vunpack.c.l.b16 %v3788
    %v3821 = vunpack.c.l.b16 %v3789
    %v3822 = vunpack.c.l.b16 %v3790
    %v3823 = vunpack.c.l.b16 %v3791
    %v3824 = vunpack.c.l.b16 %v3792
    %v3825 = vunpack.c.l.b16 %v3793
    %v3826 = vunpack.c.l.b16 %v3794
    %v3827 = vunpack.c.l.b16 %v3795
    %v3828 = vunpack.c.l.b16 %v3796
    %v3829 = vunpack.c.l.b16 %v3797
    %v3830 = vunpack.c.l.b16 %v3798
    %v3831 = vunpack.c.l.b16 %v3799
    %v3832 = vunpack.c.l.b16 %v3800
    %v3833 = vunpack.c.l.b16 %v3801
    %v3834 = vunpack.c.l.b16 %v3802
    %v3835 = vpack.c.b16 %v3820, %v3819
    %v3836 = vpack.c.b16 %v3822, %v3821
    %v3837 = vpack.c.b16 %v3824, %v3823
    %v3838 = vpack.c.b16 %v3826, %v3825
    %v3839 = vpack.c.b16 %v3828, %v3827
    %v3840 = vpack.c.b16 %v3830, %v3829
    %v3841 = vpack.c.b16 %v3832, %v3831
    %v3842 = vpack.c.b16 %v3834, %v3833
    %3851 = vmatpush.bf16.msra.mxu0 %v3842
    %3852 = vmatpush.bf16.msra.mxu0 %v3841
    %3853 = vmatpush.bf16.msra.mxu0 %v3840
    %3854 = vmatpush.bf16.msra.mxu0 %v3839
    %3855 = vmatpush.bf16.msra.mxu0 %v3838
    %3856 = vmatpush.bf16.msra.mxu0 %v3837
    %3857 = vmatpush.bf16.msra.mxu0 %v3836
    %3858 = vmatpush.bf16.msra.mxu0 %v3835
    %3859 = vmatmul.bf16.gmra.mxu0 %v3779
    %v3860 = vpop.f32.mrf.mxu0
    %v3861 = vadd.f32 0.0, %v3860
    %v3862 = vpop.f32.mrf.mxu0
    %v3863 = vadd.f32 0.0, %v3862
    %3864 = vmatmul.bf16.gmra.mxu0 %v3780
    %v3865 = vpop.f32.mrf.mxu0
    %v3866 = vadd.f32 0.0, %v3865
    %v3867 = vpop.f32.mrf.mxu0
    %v3868 = vadd.f32 0.0, %v3867
    %3869 = vmatmul.bf16.gmra.mxu0 %v3781
    %v3870 = vpop.f32.mrf.mxu0
    %v3871 = vadd.f32 0.0, %v3870
    %v3872 = vpop.f32.mrf.mxu0
    %v3873 = vadd.f32 0.0, %v3872
    %3874 = vmatmul.bf16.gmra.mxu0 %v3782
    %v3875 = vpop.f32.mrf.mxu0
    %v3876 = vadd.f32 0.0, %v3875
    %v3877 = vpop.f32.mrf.mxu0
    %v3878 = vadd.f32 0.0, %v3877
    %3879 = vmatmul.bf16.gmra.mxu0 %v3783
    %v3880 = vpop.f32.mrf.mxu0
    %v3881 = vadd.f32 0.0, %v3880
    %v3882 = vpop.f32.mrf.mxu0
    %v3883 = vadd.f32 0.0, %v3882
    %3884 = vmatmul.bf16.gmra.mxu0 %v3784
    %v3885 = vpop.f32.mrf.mxu0
    %v3886 = vadd.f32 0.0, %v3885
    %v3887 = vpop.f32.mrf.mxu0
    %v3888 = vadd.f32 0.0, %v3887
    %3889 = vmatmul.bf16.gmra.mxu0 %v3785
    %v3890 = vpop.f32.mrf.mxu0
    %v3891 = vadd.f32 0.0, %v3890
    %v3892 = vpop.f32.mrf.mxu0
    %v3893 = vadd.f32 0.0, %v3892
    %3894 = vmatmul.bf16.gmra.mxu0 %v3786
    %v3895 = vpop.f32.mrf.mxu0
    %v3896 = vadd.f32 0.0, %v3895
    %v3897 = vpop.f32.mrf.mxu0
    %v3898 = vadd.f32 0.0, %v3897
    %3899 = vdwg.mxu0
    %v3900 = vadd.f32 %v3746, %v3861
    %v3901 = vadd.f32 %v3747, %v3863
    %v3902 = vadd.f32 %v3748, %v3866
    %v3903 = vadd.f32 %v3749, %v3868
    %v3904 = vadd.f32 %v3750, %v3871
    %v3905 = vadd.f32 %v3751, %v3873
    %v3906 = vadd.f32 %v3752, %v3876
    %v3907 = vadd.f32 %v3753, %v3878
    %v3908 = vadd.f32 %v3754, %v3881
    %v3909 = vadd.f32 %v3755, %v3883
    %v3910 = vadd.f32 %v3756, %v3886
    %v3911 = vadd.f32 %v3757, %v3888
    %v3912 = vadd.f32 %v3758, %v3891
    %v3913 = vadd.f32 %v3759, %v3893
    %v3914 = vadd.f32 %v3760, %v3896
    %v3915 = vadd.f32 %v3761, %v3898
    %v3916 = vld [vmem:[%s3762 + $0x1] sm:$0xff]
    %v3917 = vld [vmem:[%s3762 + $0x9] sm:$0xff]
    %v3918 = vld [vmem:[%s3762 + $0x19] sm:$0xff]
    %v3919 = vld [vmem:[%s3762 + $0x21] sm:$0xff]
    %v3920 = vld [vmem:[%s3762 + $0x31] sm:$0xff]
    %v3921 = vld [vmem:[%s3762 + $0x39] sm:$0xff]
    %v3922 = vld [vmem:[%s3762 + $0x49] sm:$0xff]
    %v3923 = vld [vmem:[%s3762 + $0x51] sm:$0xff]
    %v3924 = vld [vmem:[%s3762 + $0x61] sm:$0xff]
    %v3925 = vld [vmem:[%s3762 + $0x69] sm:$0xff]
    %v3926 = vld [vmem:[%s3762 + $0x79] sm:$0xff]
    %v3927 = vld [vmem:[%s3762 + $0x81] sm:$0xff]
    %v3928 = vld [vmem:[%s3762 + $0x91] sm:$0xff]
    %v3929 = vld [vmem:[%s3762 + $0x99] sm:$0xff]
    %v3930 = vld [vmem:[%s3762 + $0xa9] sm:$0xff]
    %v3931 = vld [vmem:[%s3762 + $0xb1] sm:$0xff]
    %v3932 = vpack.c.bf16 %v3917, %v3916
    %v3933 = vpack.c.bf16 %v3919, %v3918
    %v3934 = vpack.c.bf16 %v3921, %v3920
    %v3935 = vpack.c.bf16 %v3923, %v3922
    %v3936 = vpack.c.bf16 %v3925, %v3924
    %v3937 = vpack.c.bf16 %v3927, %v3926
    %v3938 = vpack.c.bf16 %v3929, %v3928
    %v3939 = vpack.c.bf16 %v3931, %v3930
    %v3940 = vld [vmem:[%s1786] sm:$0xf]
    %v3941 = vld [vmem:[%s1786 + $0x4] sm:$0xf]
    %v3942 = vld [vmem:[%s1786 + $0x8] sm:$0xf]
    %v3943 = vld [vmem:[%s1786 + $0xc] sm:$0xf]
    %v3944 = vld [vmem:[%s1786 + $0x10] sm:$0xf]
    %v3945 = vld [vmem:[%s1786 + $0x14] sm:$0xf]
    %v3946 = vld [vmem:[%s1786 + $0x18] sm:$0xf]
    %v3947 = vld [vmem:[%s1786 + $0x1c] sm:$0xf]
    %v3948 = vld [vmem:[%s1786 + $0x20] sm:$0xf]
    %v3949 = vld [vmem:[%s1786 + $0x24] sm:$0xf]
    %v3950 = vld [vmem:[%s1786 + $0x28] sm:$0xf]
    %v3951 = vld [vmem:[%s1786 + $0x2c] sm:$0xf]
    %v3952 = vld [vmem:[%s1786 + $0x30] sm:$0xf]
    %v3953 = vld [vmem:[%s1786 + $0x34] sm:$0xf]
    %v3954 = vld [vmem:[%s1786 + $0x38] sm:$0xf]
    %v3955 = vld [vmem:[%s1786 + $0x3c] sm:$0xf]
    %v3972 = vunpack.c.l.b16 %v3940
    %v3973 = vunpack.c.l.b16 %v3941
    %v3974 = vunpack.c.l.b16 %v3942
    %v3975 = vunpack.c.l.b16 %v3943
    %v3976 = vunpack.c.l.b16 %v3944
    %v3977 = vunpack.c.l.b16 %v3945
    %v3978 = vunpack.c.l.b16 %v3946
    %v3979 = vunpack.c.l.b16 %v3947
    %v3980 = vunpack.c.l.b16 %v3948
    %v3981 = vunpack.c.l.b16 %v3949
    %v3982 = vunpack.c.l.b16 %v3950
    %v3983 = vunpack.c.l.b16 %v3951
    %v3984 = vunpack.c.l.b16 %v3952
    %v3985 = vunpack.c.l.b16 %v3953
    %v3986 = vunpack.c.l.b16 %v3954
    %v3987 = vunpack.c.l.b16 %v3955
    %v3988 = vpack.c.b16 %v3973, %v3972
    %v3989 = vpack.c.b16 %v3975, %v3974
    %v3990 = vpack.c.b16 %v3977, %v3976
    %v3991 = vpack.c.b16 %v3979, %v3978
    %v3992 = vpack.c.b16 %v3981, %v3980
    %v3993 = vpack.c.b16 %v3983, %v3982
    %v3994 = vpack.c.b16 %v3985, %v3984
    %v3995 = vpack.c.b16 %v3987, %v3986
    %4004 = vmatpush.bf16.msra.mxu0 %v3995
    %4005 = vmatpush.bf16.msra.mxu0 %v3994
    %4006 = vmatpush.bf16.msra.mxu0 %v3993
    %4007 = vmatpush.bf16.msra.mxu0 %v3992
    %4008 = vmatpush.bf16.msra.mxu0 %v3991
    %4009 = vmatpush.bf16.msra.mxu0 %v3990
    %4010 = vmatpush.bf16.msra.mxu0 %v3989
    %4011 = vmatpush.bf16.msra.mxu0 %v3988
    %4012 = vmatmul.bf16.gmra.mxu0 %v3932
    %v4013 = vpop.f32.mrf.mxu0
    %v4014 = vadd.f32 0.0, %v4013
    %v4015 = vpop.f32.mrf.mxu0
    %v4016 = vadd.f32 0.0, %v4015
    %4017 = vmatmul.bf16.gmra.mxu0 %v3933
    %v4018 = vpop.f32.mrf.mxu0
    %v4019 = vadd.f32 0.0, %v4018
    %v4020 = vpop.f32.mrf.mxu0
    %v4021 = vadd.f32 0.0, %v4020
    %4022 = vmatmul.bf16.gmra.mxu0 %v3934
    %v4023 = vpop.f32.mrf.mxu0
    %v4024 = vadd.f32 0.0, %v4023
    %v4025 = vpop.f32.mrf.mxu0
    %v4026 = vadd.f32 0.0, %v4025
    %4027 = vmatmul.bf16.gmra.mxu0 %v3935
    %v4028 = vpop.f32.mrf.mxu0
    %v4029 = vadd.f32 0.0, %v4028
    %v4030 = vpop.f32.mrf.mxu0
    %v4031 = vadd.f32 0.0, %v4030
    %4032 = vmatmul.bf16.gmra.mxu0 %v3936
    %v4033 = vpop.f32.mrf.mxu0
    %v4034 = vadd.f32 0.0, %v4033
    %v4035 = vpop.f32.mrf.mxu0
    %v4036 = vadd.f32 0.0, %v4035
    %4037 = vmatmul.bf16.gmra.mxu0 %v3937
    %v4038 = vpop.f32.mrf.mxu0
    %v4039 = vadd.f32 0.0, %v4038
    %v4040 = vpop.f32.mrf.mxu0
    %v4041 = vadd.f32 0.0, %v4040
    %4042 = vmatmul.bf16.gmra.mxu0 %v3938
    %v4043 = vpop.f32.mrf.mxu0
    %v4044 = vadd.f32 0.0, %v4043
    %v4045 = vpop.f32.mrf.mxu0
    %v4046 = vadd.f32 0.0, %v4045
    %4047 = vmatmul.bf16.gmra.mxu0 %v3939
    %v4048 = vpop.f32.mrf.mxu0
    %v4049 = vadd.f32 0.0, %v4048
    %v4050 = vpop.f32.mrf.mxu0
    %v4051 = vadd.f32 0.0, %v4050
    %4052 = vdwg.mxu0
    %v4053 = vadd.f32 %v3900, %v4014
    %v4054 = vadd.f32 %v3901, %v4016
    %v4055 = vadd.f32 %v3902, %v4019
    %v4056 = vadd.f32 %v3903, %v4021
    %v4057 = vadd.f32 %v3904, %v4024
    %v4058 = vadd.f32 %v3905, %v4026
    %v4059 = vadd.f32 %v3906, %v4029
    %v4060 = vadd.f32 %v3907, %v4031
    %v4061 = vadd.f32 %v3908, %v4034
    %v4062 = vadd.f32 %v3909, %v4036
    %v4063 = vadd.f32 %v3910, %v4039
    %v4064 = vadd.f32 %v3911, %v4041
    %v4065 = vadd.f32 %v3912, %v4044
    %v4066 = vadd.f32 %v3913, %v4046
    %v4067 = vadd.f32 %v3914, %v4049
    %v4068 = vadd.f32 %v3915, %v4051
    %v4069 = vld [vmem:[%s3762 + $0x2] sm:$0xff]
    %v4070 = vld [vmem:[%s3762 + $0xa] sm:$0xff]
    %v4071 = vld [vmem:[%s3762 + $0x1a] sm:$0xff]
    %v4072 = vld [vmem:[%s3762 + $0x22] sm:$0xff]
    %v4073 = vld [vmem:[%s3762 + $0x32] sm:$0xff]
    %v4074 = vld [vmem:[%s3762 + $0x3a] sm:$0xff]
    %v4075 = vld [vmem:[%s3762 + $0x4a] sm:$0xff]
    %v4076 = vld [vmem:[%s3762 + $0x52] sm:$0xff]
    %v4077 = vld [vmem:[%s3762 + $0x62] sm:$0xff]
    %v4078 = vld [vmem:[%s3762 + $0x6a] sm:$0xff]
    %v4079 = vld [vmem:[%s3762 + $0x7a] sm:$0xff]
    %v4080 = vld [vmem:[%s3762 + $0x82] sm:$0xff]
    %v4081 = vld [vmem:[%s3762 + $0x92] sm:$0xff]
    %v4082 = vld [vmem:[%s3762 + $0x9a] sm:$0xff]
    %v4083 = vld [vmem:[%s3762 + $0xaa] sm:$0xff]
    %v4084 = vld [vmem:[%s3762 + $0xb2] sm:$0xff]
    %v4085 = vpack.c.bf16 %v4070, %v4069
    %v4086 = vpack.c.bf16 %v4072, %v4071
    %v4087 = vpack.c.bf16 %v4074, %v4073
    %v4088 = vpack.c.bf16 %v4076, %v4075
    %v4089 = vpack.c.bf16 %v4078, %v4077
    %v4090 = vpack.c.bf16 %v4080, %v4079
    %v4091 = vpack.c.bf16 %v4082, %v4081
    %v4092 = vpack.c.bf16 %v4084, %v4083
    %v4093 = vld [vmem:[%s1940] sm:$0xf]
    %v4094 = vld [vmem:[%s1940 + $0x4] sm:$0xf]
    %v4095 = vld [vmem:[%s1940 + $0x8] sm:$0xf]
    %v4096 = vld [vmem:[%s1940 + $0xc] sm:$0xf]
    %v4097 = vld [vmem:[%s1940 + $0x10] sm:$0xf]
    %v4098 = vld [vmem:[%s1940 + $0x14] sm:$0xf]
    %v4099 = vld [vmem:[%s1940 + $0x18] sm:$0xf]
    %v4100 = vld [vmem:[%s1940 + $0x1c] sm:$0xf]
    %v4101 = vld [vmem:[%s1940 + $0x20] sm:$0xf]
    %v4102 = vld [vmem:[%s1940 + $0x24] sm:$0xf]
    %v4103 = vld [vmem:[%s1940 + $0x28] sm:$0xf]
    %v4104 = vld [vmem:[%s1940 + $0x2c] sm:$0xf]
    %v4105 = vld [vmem:[%s1940 + $0x30] sm:$0xf]
    %v4106 = vld [vmem:[%s1940 + $0x34] sm:$0xf]
    %v4107 = vld [vmem:[%s1940 + $0x38] sm:$0xf]
    %v4108 = vld [vmem:[%s1940 + $0x3c] sm:$0xf]
    %v4125 = vunpack.c.l.b16 %v4093
    %v4126 = vunpack.c.l.b16 %v4094
    %v4127 = vunpack.c.l.b16 %v4095
    %v4128 = vunpack.c.l.b16 %v4096
    %v4129 = vunpack.c.l.b16 %v4097
    %v4130 = vunpack.c.l.b16 %v4098
    %v4131 = vunpack.c.l.b16 %v4099
    %v4132 = vunpack.c.l.b16 %v4100
    %v4133 = vunpack.c.l.b16 %v4101
    %v4134 = vunpack.c.l.b16 %v4102
    %v4135 = vunpack.c.l.b16 %v4103
    %v4136 = vunpack.c.l.b16 %v4104
    %v4137 = vunpack.c.l.b16 %v4105
    %v4138 = vunpack.c.l.b16 %v4106
    %v4139 = vunpack.c.l.b16 %v4107
    %v4140 = vunpack.c.l.b16 %v4108
    %v4141 = vpack.c.b16 %v4126, %v4125
    %v4142 = vpack.c.b16 %v4128, %v4127
    %v4143 = vpack.c.b16 %v4130, %v4129
    %v4144 = vpack.c.b16 %v4132, %v4131
    %v4145 = vpack.c.b16 %v4134, %v4133
    %v4146 = vpack.c.b16 %v4136, %v4135
    %v4147 = vpack.c.b16 %v4138, %v4137
    %v4148 = vpack.c.b16 %v4140, %v4139
    %4157 = vmatpush.bf16.msra.mxu0 %v4148
    %4158 = vmatpush.bf16.msra.mxu0 %v4147
    %4159 = vmatpush.bf16.msra.mxu0 %v4146
    %4160 = vmatpush.bf16.msra.mxu0 %v4145
    %4161 = vmatpush.bf16.msra.mxu0 %v4144
    %4162 = vmatpush.bf16.msra.mxu0 %v4143
    %4163 = vmatpush.bf16.msra.mxu0 %v4142
    %4164 = vmatpush.bf16.msra.mxu0 %v4141
    %4165 = vmatmul.bf16.gmra.mxu0 %v4085
    %v4166 = vpop.f32.mrf.mxu0
    %v4167 = vadd.f32 0.0, %v4166
    %v4168 = vpop.f32.mrf.mxu0
    %v4169 = vadd.f32 0.0, %v4168
    %4170 = vmatmul.bf16.gmra.mxu0 %v4086
    %v4171 = vpop.f32.mrf.mxu0
    %v4172 = vadd.f32 0.0, %v4171
    %v4173 = vpop.f32.mrf.mxu0
    %v4174 = vadd.f32 0.0, %v4173
    %4175 = vmatmul.bf16.gmra.mxu0 %v4087
    %v4176 = vpop.f32.mrf.mxu0
    %v4177 = vadd.f32 0.0, %v4176
    %v4178 = vpop.f32.mrf.mxu0
    %v4179 = vadd.f32 0.0, %v4178
    %4180 = vmatmul.bf16.gmra.mxu0 %v4088
    %v4181 = vpop.f32.mrf.mxu0
    %v4182 = vadd.f32 0.0, %v4181
    %v4183 = vpop.f32.mrf.mxu0
    %v4184 = vadd.f32 0.0, %v4183
    %4185 = vmatmul.bf16.gmra.mxu0 %v4089
    %v4186 = vpop.f32.mrf.mxu0
    %v4187 = vadd.f32 0.0, %v4186
    %v4188 = vpop.f32.mrf.mxu0
    %v4189 = vadd.f32 0.0, %v4188
    %4190 = vmatmul.bf16.gmra.mxu0 %v4090
    %v4191 = vpop.f32.mrf.mxu0
    %v4192 = vadd.f32 0.0, %v4191
    %v4193 = vpop.f32.mrf.mxu0
    %v4194 = vadd.f32 0.0, %v4193
    %4195 = vmatmul.bf16.gmra.mxu0 %v4091
    %v4196 = vpop.f32.mrf.mxu0
    %v4197 = vadd.f32 0.0, %v4196
    %v4198 = vpop.f32.mrf.mxu0
    %v4199 = vadd.f32 0.0, %v4198
    %4200 = vmatmul.bf16.gmra.mxu0 %v4092
    %v4201 = vpop.f32.mrf.mxu0
    %v4202 = vadd.f32 0.0, %v4201
    %v4203 = vpop.f32.mrf.mxu0
    %v4204 = vadd.f32 0.0, %v4203
    %4205 = vdwg.mxu0
    %v4206 = vadd.f32 %v4053, %v4167
    %v4207 = vadd.f32 %v4054, %v4169
    %v4208 = vadd.f32 %v4055, %v4172
    %v4209 = vadd.f32 %v4056, %v4174
    %v4210 = vadd.f32 %v4057, %v4177
    %v4211 = vadd.f32 %v4058, %v4179
    %v4212 = vadd.f32 %v4059, %v4182
    %v4213 = vadd.f32 %v4060, %v4184
    %v4214 = vadd.f32 %v4061, %v4187
    %v4215 = vadd.f32 %v4062, %v4189
    %v4216 = vadd.f32 %v4063, %v4192
    %v4217 = vadd.f32 %v4064, %v4194
    %v4218 = vadd.f32 %v4065, %v4197
    %v4219 = vadd.f32 %v4066, %v4199
    %v4220 = vadd.f32 %v4067, %v4202
    %v4221 = vadd.f32 %v4068, %v4204
    %v4222 = vxor.u32 %v4206, 2147483648
    %v4223 = vxor.u32 %v4207, 2147483648
    %v4224 = vxor.u32 %v4208, 2147483648
    %v4225 = vxor.u32 %v4209, 2147483648
    %v4226 = vxor.u32 %v4210, 2147483648
    %v4227 = vxor.u32 %v4211, 2147483648
    %v4228 = vxor.u32 %v4212, 2147483648
    %v4229 = vxor.u32 %v4213, 2147483648
    %v4230 = vxor.u32 %v4214, 2147483648
    %v4231 = vxor.u32 %v4215, 2147483648
    %v4232 = vxor.u32 %v4216, 2147483648
    %v4233 = vxor.u32 %v4217, 2147483648
    %v4234 = vxor.u32 %v4218, 2147483648
    %v4235 = vxor.u32 %v4219, 2147483648
    %v4236 = vxor.u32 %v4220, 2147483648
    %v4237 = vxor.u32 %v4221, 2147483648
    %v4238 = vmul.f32 %v4222, 1.442695
    %v4239 = vpow.pop %v4238
    %v4240 = vmul.f32 %v4223, 1.442695
    %v4241 = vpow.pop %v4240
    %v4242 = vmul.f32 %v4224, 1.442695
    %v4243 = vpow.pop %v4242
    %v4244 = vmul.f32 %v4225, 1.442695
    %v4245 = vpow.pop %v4244
    %v4246 = vmul.f32 %v4226, 1.442695
    %v4247 = vpow.pop %v4246
    %v4248 = vmul.f32 %v4227, 1.442695
    %v4249 = vpow.pop %v4248
    %v4250 = vmul.f32 %v4228, 1.442695
    %v4251 = vpow.pop %v4250
    %v4252 = vmul.f32 %v4229, 1.442695
    %v4253 = vpow.pop %v4252
    %v4254 = vmul.f32 %v4230, 1.442695
    %v4255 = vpow.pop %v4254
    %v4256 = vmul.f32 %v4231, 1.442695
    %v4257 = vpow.pop %v4256
    %v4258 = vmul.f32 %v4232, 1.442695
    %v4259 = vpow.pop %v4258
    %v4260 = vmul.f32 %v4233, 1.442695
    %v4261 = vpow.pop %v4260
    %v4262 = vmul.f32 %v4234, 1.442695
    %v4263 = vpow.pop %v4262
    %v4264 = vmul.f32 %v4235, 1.442695
    %v4265 = vpow.pop %v4264
    %v4266 = vmul.f32 %v4236, 1.442695
    %v4267 = vpow.pop %v4266
    %v4268 = vmul.f32 %v4237, 1.442695
    %v4269 = vpow.pop %v4268
    %v4270 = vadd.f32 %v4239, 1.0
    %v4271 = vadd.f32 %v4241, 1.0
    %v4272 = vadd.f32 %v4243, 1.0
    %v4273 = vadd.f32 %v4245, 1.0
    %v4274 = vadd.f32 %v4247, 1.0
    %v4275 = vadd.f32 %v4249, 1.0
    %v4276 = vadd.f32 %v4251, 1.0
    %v4277 = vadd.f32 %v4253, 1.0
    %v4278 = vadd.f32 %v4255, 1.0
    %v4279 = vadd.f32 %v4257, 1.0
    %v4280 = vadd.f32 %v4259, 1.0
    %v4281 = vadd.f32 %v4261, 1.0
    %v4282 = vadd.f32 %v4263, 1.0
    %v4283 = vadd.f32 %v4265, 1.0
    %v4284 = vadd.f32 %v4267, 1.0
    %v4285 = vadd.f32 %v4269, 1.0
    %v4286 = vrcp.pop %v4270
    %v4287 = vmul.f32 %v4270, %v4286
    %v4288 = vsub.f32 1.0, %v4287
    %v4289 = vmul.f32 %v4286, %v4288
    %v4290 = vadd.f32 %v4286, %v4289
    %vm4291 = vweird.f32 %v4270
    %vm4292 = vweird.f32 %v4286
    %vm4293 = vmor %vm4291, %vm4292
    %v4294 = vsel %vm4293, %v4286, %v4290
    %v4295 = vand.u32 2147483647, %v4270
    %vm4296 = vcmp.eq.f32.partialorder %v4295, 8.507059e+37
    %v4297 = vand.u32 %v4270, 2147483648
    %v4298 = vor.u32 1.1754944e-38, %v4297
    %v4299 = vsel %vm4296, %v4298, %v4294
    %v4300 = vmul.f32 1.0, %v4299
    %v4301 = vrcp.pop %v4271
    %v4302 = vmul.f32 %v4271, %v4301
    %v4303 = vsub.f32 1.0, %v4302
    %v4304 = vmul.f32 %v4301, %v4303
    %v4305 = vadd.f32 %v4301, %v4304
    %vm4306 = vweird.f32 %v4271
    %vm4307 = vweird.f32 %v4301
    %vm4308 = vmor %vm4306, %vm4307
    %v4309 = vsel %vm4308, %v4301, %v4305
    %v4310 = vand.u32 2147483647, %v4271
    %vm4311 = vcmp.eq.f32.partialorder %v4310, 8.507059e+37
    %v4312 = vand.u32 %v4271, 2147483648
    %v4313 = vor.u32 1.1754944e-38, %v4312
    %v4314 = vsel %vm4311, %v4313, %v4309
    %v4315 = vmul.f32 1.0, %v4314
    %v4316 = vrcp.pop %v4272
    %v4317 = vmul.f32 %v4272, %v4316
    %v4318 = vsub.f32 1.0, %v4317
    %v4319 = vmul.f32 %v4316, %v4318
    %v4320 = vadd.f32 %v4316, %v4319
    %vm4321 = vweird.f32 %v4272
    %vm4322 = vweird.f32 %v4316
    %vm4323 = vmor %vm4321, %vm4322
    %v4324 = vsel %vm4323, %v4316, %v4320
    %v4325 = vand.u32 2147483647, %v4272
    %vm4326 = vcmp.eq.f32.partialorder %v4325, 8.507059e+37
    %v4327 = vand.u32 %v4272, 2147483648
    %v4328 = vor.u32 1.1754944e-38, %v4327
    %v4329 = vsel %vm4326, %v4328, %v4324
    %v4330 = vmul.f32 1.0, %v4329
    %v4331 = vrcp.pop %v4273
    %v4332 = vmul.f32 %v4273, %v4331
    %v4333 = vsub.f32 1.0, %v4332
    %v4334 = vmul.f32 %v4331, %v4333
    %v4335 = vadd.f32 %v4331, %v4334
    %vm4336 = vweird.f32 %v4273
    %vm4337 = vweird.f32 %v4331
    %vm4338 = vmor %vm4336, %vm4337
    %v4339 = vsel %vm4338, %v4331, %v4335
    %v4340 = vand.u32 2147483647, %v4273
    %vm4341 = vcmp.eq.f32.partialorder %v4340, 8.507059e+37
    %v4342 = vand.u32 %v4273, 2147483648
    %v4343 = vor.u32 1.1754944e-38, %v4342
    %v4344 = vsel %vm4341, %v4343, %v4339
    %v4345 = vmul.f32 1.0, %v4344
    %v4346 = vrcp.pop %v4274
    %v4347 = vmul.f32 %v4274, %v4346
    %v4348 = vsub.f32 1.0, %v4347
    %v4349 = vmul.f32 %v4346, %v4348
    %v4350 = vadd.f32 %v4346, %v4349
    %vm4351 = vweird.f32 %v4274
    %vm4352 = vweird.f32 %v4346
    %vm4353 = vmor %vm4351, %vm4352
    %v4354 = vsel %vm4353, %v4346, %v4350
    %v4355 = vand.u32 2147483647, %v4274
    %vm4356 = vcmp.eq.f32.partialorder %v4355, 8.507059e+37
    %v4357 = vand.u32 %v4274, 2147483648
    %v4358 = vor.u32 1.1754944e-38, %v4357
    %v4359 = vsel %vm4356, %v4358, %v4354
    %v4360 = vmul.f32 1.0, %v4359
    %v4361 = vrcp.pop %v4275
    %v4362 = vmul.f32 %v4275, %v4361
    %v4363 = vsub.f32 1.0, %v4362
    %v4364 = vmul.f32 %v4361, %v4363
    %v4365 = vadd.f32 %v4361, %v4364
    %vm4366 = vweird.f32 %v4275
    %vm4367 = vweird.f32 %v4361
    %vm4368 = vmor %vm4366, %vm4367
    %v4369 = vsel %vm4368, %v4361, %v4365
    %v4370 = vand.u32 2147483647, %v4275
    %vm4371 = vcmp.eq.f32.partialorder %v4370, 8.507059e+37
    %v4372 = vand.u32 %v4275, 2147483648
    %v4373 = vor.u32 1.1754944e-38, %v4372
    %v4374 = vsel %vm4371, %v4373, %v4369
    %v4375 = vmul.f32 1.0, %v4374
    %v4376 = vrcp.pop %v4276
    %v4377 = vmul.f32 %v4276, %v4376
    %v4378 = vsub.f32 1.0, %v4377
    %v4379 = vmul.f32 %v4376, %v4378
    %v4380 = vadd.f32 %v4376, %v4379
    %vm4381 = vweird.f32 %v4276
    %vm4382 = vweird.f32 %v4376
    %vm4383 = vmor %vm4381, %vm4382
    %v4384 = vsel %vm4383, %v4376, %v4380
    %v4385 = vand.u32 2147483647, %v4276
    %vm4386 = vcmp.eq.f32.partialorder %v4385, 8.507059e+37
    %v4387 = vand.u32 %v4276, 2147483648
    %v4388 = vor.u32 1.1754944e-38, %v4387
    %v4389 = vsel %vm4386, %v4388, %v4384
    %v4390 = vmul.f32 1.0, %v4389
    %v4391 = vrcp.pop %v4277
    %v4392 = vmul.f32 %v4277, %v4391
    %v4393 = vsub.f32 1.0, %v4392
    %v4394 = vmul.f32 %v4391, %v4393
    %v4395 = vadd.f32 %v4391, %v4394
    %vm4396 = vweird.f32 %v4277
    %vm4397 = vweird.f32 %v4391
    %vm4398 = vmor %vm4396, %vm4397
    %v4399 = vsel %vm4398, %v4391, %v4395
    %v4400 = vand.u32 2147483647, %v4277
    %vm4401 = vcmp.eq.f32.partialorder %v4400, 8.507059e+37
    %v4402 = vand.u32 %v4277, 2147483648
    %v4403 = vor.u32 1.1754944e-38, %v4402
    %v4404 = vsel %vm4401, %v4403, %v4399
    %v4405 = vmul.f32 1.0, %v4404
    %v4406 = vrcp.pop %v4278
    %v4407 = vmul.f32 %v4278, %v4406
    %v4408 = vsub.f32 1.0, %v4407
    %v4409 = vmul.f32 %v4406, %v4408
    %v4410 = vadd.f32 %v4406, %v4409
    %vm4411 = vweird.f32 %v4278
    %vm4412 = vweird.f32 %v4406
    %vm4413 = vmor %vm4411, %vm4412
    %v4414 = vsel %vm4413, %v4406, %v4410
    %v4415 = vand.u32 2147483647, %v4278
    %vm4416 = vcmp.eq.f32.partialorder %v4415, 8.507059e+37
    %v4417 = vand.u32 %v4278, 2147483648
    %v4418 = vor.u32 1.1754944e-38, %v4417
    %v4419 = vsel %vm4416, %v4418, %v4414
    %v4420 = vmul.f32 1.0, %v4419
    %v4421 = vrcp.pop %v4279
    %v4422 = vmul.f32 %v4279, %v4421
    %v4423 = vsub.f32 1.0, %v4422
    %v4424 = vmul.f32 %v4421, %v4423
    %v4425 = vadd.f32 %v4421, %v4424
    %vm4426 = vweird.f32 %v4279
    %vm4427 = vweird.f32 %v4421
    %vm4428 = vmor %vm4426, %vm4427
    %v4429 = vsel %vm4428, %v4421, %v4425
    %v4430 = vand.u32 2147483647, %v4279
    %vm4431 = vcmp.eq.f32.partialorder %v4430, 8.507059e+37
    %v4432 = vand.u32 %v4279, 2147483648
    %v4433 = vor.u32 1.1754944e-38, %v4432
    %v4434 = vsel %vm4431, %v4433, %v4429
    %v4435 = vmul.f32 1.0, %v4434
    %v4436 = vrcp.pop %v4280
    %v4437 = vmul.f32 %v4280, %v4436
    %v4438 = vsub.f32 1.0, %v4437
    %v4439 = vmul.f32 %v4436, %v4438
    %v4440 = vadd.f32 %v4436, %v4439
    %vm4441 = vweird.f32 %v4280
    %vm4442 = vweird.f32 %v4436
    %vm4443 = vmor %vm4441, %vm4442
    %v4444 = vsel %vm4443, %v4436, %v4440
    %v4445 = vand.u32 2147483647, %v4280
    %vm4446 = vcmp.eq.f32.partialorder %v4445, 8.507059e+37
    %v4447 = vand.u32 %v4280, 2147483648
    %v4448 = vor.u32 1.1754944e-38, %v4447
    %v4449 = vsel %vm4446, %v4448, %v4444
    %v4450 = vmul.f32 1.0, %v4449
    %v4451 = vrcp.pop %v4281
    %v4452 = vmul.f32 %v4281, %v4451
    %v4453 = vsub.f32 1.0, %v4452
    %v4454 = vmul.f32 %v4451, %v4453
    %v4455 = vadd.f32 %v4451, %v4454
    %vm4456 = vweird.f32 %v4281
    %vm4457 = vweird.f32 %v4451
    %vm4458 = vmor %vm4456, %vm4457
    %v4459 = vsel %vm4458, %v4451, %v4455
    %v4460 = vand.u32 2147483647, %v4281
    %vm4461 = vcmp.eq.f32.partialorder %v4460, 8.507059e+37
    %v4462 = vand.u32 %v4281, 2147483648
    %v4463 = vor.u32 1.1754944e-38, %v4462
    %v4464 = vsel %vm4461, %v4463, %v4459
    %v4465 = vmul.f32 1.0, %v4464
    %v4466 = vrcp.pop %v4282
    %v4467 = vmul.f32 %v4282, %v4466
    %v4468 = vsub.f32 1.0, %v4467
    %v4469 = vmul.f32 %v4466, %v4468
    %v4470 = vadd.f32 %v4466, %v4469
    %vm4471 = vweird.f32 %v4282
    %vm4472 = vweird.f32 %v4466
    %vm4473 = vmor %vm4471, %vm4472
    %v4474 = vsel %vm4473, %v4466, %v4470
    %v4475 = vand.u32 2147483647, %v4282
    %vm4476 = vcmp.eq.f32.partialorder %v4475, 8.507059e+37
    %v4477 = vand.u32 %v4282, 2147483648
    %v4478 = vor.u32 1.1754944e-38, %v4477
    %v4479 = vsel %vm4476, %v4478, %v4474
    %v4480 = vmul.f32 1.0, %v4479
    %v4481 = vrcp.pop %v4283
    %v4482 = vmul.f32 %v4283, %v4481
    %v4483 = vsub.f32 1.0, %v4482
    %v4484 = vmul.f32 %v4481, %v4483
    %v4485 = vadd.f32 %v4481, %v4484
    %vm4486 = vweird.f32 %v4283
    %vm4487 = vweird.f32 %v4481
    %vm4488 = vmor %vm4486, %vm4487
    %v4489 = vsel %vm4488, %v4481, %v4485
    %v4490 = vand.u32 2147483647, %v4283
    %vm4491 = vcmp.eq.f32.partialorder %v4490, 8.507059e+37
    %v4492 = vand.u32 %v4283, 2147483648
    %v4493 = vor.u32 1.1754944e-38, %v4492
    %v4494 = vsel %vm4491, %v4493, %v4489
    %v4495 = vmul.f32 1.0, %v4494
    %v4496 = vrcp.pop %v4284
    %v4497 = vmul.f32 %v4284, %v4496
    %v4498 = vsub.f32 1.0, %v4497
    %v4499 = vmul.f32 %v4496, %v4498
    %v4500 = vadd.f32 %v4496, %v4499
    %vm4501 = vweird.f32 %v4284
    %vm4502 = vweird.f32 %v4496
    %vm4503 = vmor %vm4501, %vm4502
    %v4504 = vsel %vm4503, %v4496, %v4500
    %v4505 = vand.u32 2147483647, %v4284
    %vm4506 = vcmp.eq.f32.partialorder %v4505, 8.507059e+37
    %v4507 = vand.u32 %v4284, 2147483648
    %v4508 = vor.u32 1.1754944e-38, %v4507
    %v4509 = vsel %vm4506, %v4508, %v4504
    %v4510 = vmul.f32 1.0, %v4509
    %v4511 = vrcp.pop %v4285
    %v4512 = vmul.f32 %v4285, %v4511
    %v4513 = vsub.f32 1.0, %v4512
    %v4514 = vmul.f32 %v4511, %v4513
    %v4515 = vadd.f32 %v4511, %v4514
    %vm4516 = vweird.f32 %v4285
    %vm4517 = vweird.f32 %v4511
    %vm4518 = vmor %vm4516, %vm4517
    %v4519 = vsel %vm4518, %v4511, %v4515
    %v4520 = vand.u32 2147483647, %v4285
    %vm4521 = vcmp.eq.f32.partialorder %v4520, 8.507059e+37
    %v4522 = vand.u32 %v4285, 2147483648
    %v4523 = vor.u32 1.1754944e-38, %v4522
    %v4524 = vsel %vm4521, %v4523, %v4519
    %v4525 = vmul.f32 1.0, %v4524
    %4542 = vrot.lane.b32.xlu0 %v4206, 32
    %v4543 = vpop.permute.xlu0 %4542
    %4544 = vrot.lane.b32.xlu0 %v4207, 32
    %v4545 = vpop.permute.xlu0 %4544
    %4546 = vrot.lane.b32.xlu0 %v4208, 32
    %v4547 = vpop.permute.xlu0 %4546
    %4548 = vrot.lane.b32.xlu0 %v4209, 32
    %v4549 = vpop.permute.xlu0 %4548
    %4550 = vrot.lane.b32.xlu0 %v4210, 32
    %v4551 = vpop.permute.xlu0 %4550
    %4552 = vrot.lane.b32.xlu0 %v4211, 32
    %v4553 = vpop.permute.xlu0 %4552
    %4554 = vrot.lane.b32.xlu0 %v4212, 32
    %v4555 = vpop.permute.xlu0 %4554
    %4556 = vrot.lane.b32.xlu0 %v4213, 32
    %v4557 = vpop.permute.xlu0 %4556
    %4558 = vrot.lane.b32.xlu0 %v4214, 32
    %v4559 = vpop.permute.xlu0 %4558
    %4560 = vrot.lane.b32.xlu0 %v4215, 32
    %v4561 = vpop.permute.xlu0 %4560
    %4562 = vrot.lane.b32.xlu0 %v4216, 32
    %v4563 = vpop.permute.xlu0 %4562
    %4564 = vrot.lane.b32.xlu0 %v4217, 32
    %v4565 = vpop.permute.xlu0 %4564
    %4566 = vrot.lane.b32.xlu0 %v4218, 32
    %v4567 = vpop.permute.xlu0 %4566
    %4568 = vrot.lane.b32.xlu0 %v4219, 32
    %v4569 = vpop.permute.xlu0 %4568
    %4570 = vrot.lane.b32.xlu0 %v4220, 32
    %v4571 = vpop.permute.xlu0 %4570
    %4572 = vrot.lane.b32.xlu0 %v4221, 32
    %v4573 = vpop.permute.xlu0 %4572
    %v4590 = vmul.f32 %v4300, %v4543
    %v4591 = vmul.f32 %v4315, %v4545
    %v4592 = vmul.f32 %v4330, %v4547
    %v4593 = vmul.f32 %v4345, %v4549
    %v4594 = vmul.f32 %v4360, %v4551
    %v4595 = vmul.f32 %v4375, %v4553
    %v4596 = vmul.f32 %v4390, %v4555
    %v4597 = vmul.f32 %v4405, %v4557
    %v4598 = vmul.f32 %v4420, %v4559
    %v4599 = vmul.f32 %v4435, %v4561
    %v4600 = vmul.f32 %v4450, %v4563
    %v4601 = vmul.f32 %v4465, %v4565
    %v4602 = vmul.f32 %v4480, %v4567
    %v4603 = vmul.f32 %v4495, %v4569
    %v4604 = vmul.f32 %v4510, %v4571
    %v4605 = vmul.f32 %v4525, %v4573
    %4622 = vrot.lane.b32.xlu0 %v4590, 64
    %v4623 = vpop.permute.xlu0 %4622
    %4624 = vrot.lane.b32.xlu0 %v4591, 64
    %v4625 = vpop.permute.xlu0 %4624
    %4626 = vrot.lane.b32.xlu0 %v4592, 64
    %v4627 = vpop.permute.xlu0 %4626
    %4628 = vrot.lane.b32.xlu0 %v4593, 64
    %v4629 = vpop.permute.xlu0 %4628
    %4630 = vrot.lane.b32.xlu0 %v4594, 64
    %v4631 = vpop.permute.xlu0 %4630
    %4632 = vrot.lane.b32.xlu0 %v4595, 64
    %v4633 = vpop.permute.xlu0 %4632
    %4634 = vrot.lane.b32.xlu0 %v4596, 64
    %v4635 = vpop.permute.xlu0 %4634
    %4636 = vrot.lane.b32.xlu0 %v4597, 64
    %v4637 = vpop.permute.xlu0 %4636
    %4638 = vrot.lane.b32.xlu0 %v4598, 64
    %v4639 = vpop.permute.xlu0 %4638
    %4640 = vrot.lane.b32.xlu0 %v4599, 64
    %v4641 = vpop.permute.xlu0 %4640
    %4642 = vrot.lane.b32.xlu0 %v4600, 64
    %v4643 = vpop.permute.xlu0 %4642
    %4644 = vrot.lane.b32.xlu0 %v4601, 64
    %v4645 = vpop.permute.xlu0 %4644
    %4646 = vrot.lane.b32.xlu0 %v4602, 64
    %v4647 = vpop.permute.xlu0 %4646
    %4648 = vrot.lane.b32.xlu0 %v4603, 64
    %v4649 = vpop.permute.xlu0 %4648
    %4650 = vrot.lane.b32.xlu0 %v4604, 64
    %v4651 = vpop.permute.xlu0 %4650
    %4652 = vrot.lane.b32.xlu0 %v4605, 64
    %v4653 = vpop.permute.xlu0 %4652
    %v4670 = vadd.f32 %v4206, %v4623
    %v4671 = vadd.f32 %v4207, %v4625
    %v4672 = vadd.f32 %v4208, %v4627
    %v4673 = vadd.f32 %v4209, %v4629
    %v4674 = vadd.f32 %v4210, %v4631
    %v4675 = vadd.f32 %v4211, %v4633
    %v4676 = vadd.f32 %v4212, %v4635
    %v4677 = vadd.f32 %v4213, %v4637
    %v4678 = vadd.f32 %v4214, %v4639
    %v4679 = vadd.f32 %v4215, %v4641
    %v4680 = vadd.f32 %v4216, %v4643
    %v4681 = vadd.f32 %v4217, %v4645
    %v4682 = vadd.f32 %v4218, %v4647
    %v4683 = vadd.f32 %v4219, %v4649
    %v4684 = vadd.f32 %v4220, %v4651
    %v4685 = vadd.f32 %v4221, %v4653
    %v4686 = vtanh.pop %v4670
    %v4687 = vtanh.pop %v4671
    %v4688 = vtanh.pop %v4672
    %v4689 = vtanh.pop %v4673
    %v4690 = vtanh.pop %v4674
    %v4691 = vtanh.pop %v4675
    %v4692 = vtanh.pop %v4676
    %v4693 = vtanh.pop %v4677
    %v4694 = vtanh.pop %v4678
    %v4695 = vtanh.pop %v4679
    %v4696 = vtanh.pop %v4680
    %v4697 = vtanh.pop %v4681
    %v4698 = vtanh.pop %v4682
    %v4699 = vtanh.pop %v4683
    %v4700 = vtanh.pop %v4684
    %v4701 = vtanh.pop %v4685
    %s4702 = scalar_lea.vmem %s1, 128
    %v4703 = vld [vmem:[%s4702] sm:$0xff]
    %v4704 = vld [vmem:[%s4702 + $0x8] sm:$0xff]
    %v4705 = vld [vmem:[%s4702 + $0x10] sm:$0xff]
    %v4706 = vld [vmem:[%s4702 + $0x18] sm:$0xff]
    %v4707 = vld [vmem:[%s4702 + $0x20] sm:$0xff]
    %v4708 = vld [vmem:[%s4702 + $0x28] sm:$0xff]
    %v4709 = vld [vmem:[%s4702 + $0x30] sm:$0xff]
    %v4710 = vld [vmem:[%s4702 + $0x38] sm:$0xff]
    %v4711 = vld [vmem:[%s4702 + $0x40] sm:$0xff]
    %v4712 = vld [vmem:[%s4702 + $0x48] sm:$0xff]
    %v4713 = vld [vmem:[%s4702 + $0x50] sm:$0xff]
    %v4714 = vld [vmem:[%s4702 + $0x58] sm:$0xff]
    %v4715 = vld [vmem:[%s4702 + $0x60] sm:$0xff]
    %v4716 = vld [vmem:[%s4702 + $0x68] sm:$0xff]
    %v4717 = vld [vmem:[%s4702 + $0x70] sm:$0xff]
    %v4718 = vld [vmem:[%s4702 + $0x78] sm:$0xff]
    %4735 = vrot.lane.b32.xlu0 %v4703, 32
    %v4736 = vpop.permute.xlu0 %4735
    %4737 = vrot.lane.b32.xlu0 %v4704, 32
    %v4738 = vpop.permute.xlu0 %4737
    %4739 = vrot.lane.b32.xlu0 %v4705, 32
    %v4740 = vpop.permute.xlu0 %4739
    %4741 = vrot.lane.b32.xlu0 %v4706, 32
    %v4742 = vpop.permute.xlu0 %4741
    %4743 = vrot.lane.b32.xlu0 %v4707, 32
    %v4744 = vpop.permute.xlu0 %4743
    %4745 = vrot.lane.b32.xlu0 %v4708, 32
    %v4746 = vpop.permute.xlu0 %4745
    %4747 = vrot.lane.b32.xlu0 %v4709, 32
    %v4748 = vpop.permute.xlu0 %4747
    %4749 = vrot.lane.b32.xlu0 %v4710, 32
    %v4750 = vpop.permute.xlu0 %4749
    %4751 = vrot.lane.b32.xlu0 %v4711, 32
    %v4752 = vpop.permute.xlu0 %4751
    %4753 = vrot.lane.b32.xlu0 %v4712, 32
    %v4754 = vpop.permute.xlu0 %4753
    %4755 = vrot.lane.b32.xlu0 %v4713, 32
    %v4756 = vpop.permute.xlu0 %4755
    %4757 = vrot.lane.b32.xlu0 %v4714, 32
    %v4758 = vpop.permute.xlu0 %4757
    %4759 = vrot.lane.b32.xlu0 %v4715, 32
    %v4760 = vpop.permute.xlu0 %4759
    %4761 = vrot.lane.b32.xlu0 %v4716, 32
    %v4762 = vpop.permute.xlu0 %4761
    %4763 = vrot.lane.b32.xlu0 %v4717, 32
    %v4764 = vpop.permute.xlu0 %4763
    %4765 = vrot.lane.b32.xlu0 %v4718, 32
    %v4766 = vpop.permute.xlu0 %4765
    %v4783 = vmul.f32 %v4300, %v4736
    %v4784 = vmul.f32 %v4315, %v4738
    %v4785 = vmul.f32 %v4330, %v4740
    %v4786 = vmul.f32 %v4345, %v4742
    %v4787 = vmul.f32 %v4360, %v4744
    %v4788 = vmul.f32 %v4375, %v4746
    %v4789 = vmul.f32 %v4390, %v4748
    %v4790 = vmul.f32 %v4405, %v4750
    %v4791 = vmul.f32 %v4420, %v4752
    %v4792 = vmul.f32 %v4435, %v4754
    %v4793 = vmul.f32 %v4450, %v4756
    %v4794 = vmul.f32 %v4465, %v4758
    %v4795 = vmul.f32 %v4480, %v4760
    %v4796 = vmul.f32 %v4495, %v4762
    %v4797 = vmul.f32 %v4510, %v4764
    %v4798 = vmul.f32 %v4525, %v4766
    %v4799 = vsub.f32 1.0, %v4300
    %v4800 = vsub.f32 1.0, %v4315
    %v4801 = vsub.f32 1.0, %v4330
    %v4802 = vsub.f32 1.0, %v4345
    %v4803 = vsub.f32 1.0, %v4360
    %v4804 = vsub.f32 1.0, %v4375
    %v4805 = vsub.f32 1.0, %v4390
    %v4806 = vsub.f32 1.0, %v4405
    %v4807 = vsub.f32 1.0, %v4420
    %v4808 = vsub.f32 1.0, %v4435
    %v4809 = vsub.f32 1.0, %v4450
    %v4810 = vsub.f32 1.0, %v4465
    %v4811 = vsub.f32 1.0, %v4480
    %v4812 = vsub.f32 1.0, %v4495
    %v4813 = vsub.f32 1.0, %v4510
    %v4814 = vsub.f32 1.0, %v4525
    %4831 = vrot.lane.b32.xlu0 %v4686, 96
    %v4832 = vpop.permute.xlu0 %4831
    %4833 = vrot.lane.b32.xlu0 %v4687, 96
    %v4834 = vpop.permute.xlu0 %4833
    %4835 = vrot.lane.b32.xlu0 %v4688, 96
    %v4836 = vpop.permute.xlu0 %4835
    %4837 = vrot.lane.b32.xlu0 %v4689, 96
    %v4838 = vpop.permute.xlu0 %4837
    %4839 = vrot.lane.b32.xlu0 %v4690, 96
    %v4840 = vpop.permute.xlu0 %4839
    %4841 = vrot.lane.b32.xlu0 %v4691, 96
    %v4842 = vpop.permute.xlu0 %4841
    %4843 = vrot.lane.b32.xlu0 %v4692, 96
    %v4844 = vpop.permute.xlu0 %4843
    %4845 = vrot.lane.b32.xlu0 %v4693, 96
    %v4846 = vpop.permute.xlu0 %4845
    %4847 = vrot.lane.b32.xlu0 %v4694, 96
    %v4848 = vpop.permute.xlu0 %4847
    %4849 = vrot.lane.b32.xlu0 %v4695, 96
    %v4850 = vpop.permute.xlu0 %4849
    %4851 = vrot.lane.b32.xlu0 %v4696, 96
    %v4852 = vpop.permute.xlu0 %4851
    %4853 = vrot.lane.b32.xlu0 %v4697, 96
    %v4854 = vpop.permute.xlu0 %4853
    %4855 = vrot.lane.b32.xlu0 %v4698, 96
    %v4856 = vpop.permute.xlu0 %4855
    %4857 = vrot.lane.b32.xlu0 %v4699, 96
    %v4858 = vpop.permute.xlu0 %4857
    %4859 = vrot.lane.b32.xlu0 %v4700, 96
    %v4860 = vpop.permute.xlu0 %4859
    %4861 = vrot.lane.b32.xlu0 %v4701, 96
    %v4862 = vpop.permute.xlu0 %4861
    %v4879 = vmul.f32 %v4799, %v4832
    %v4880 = vmul.f32 %v4800, %v4834
    %v4881 = vmul.f32 %v4801, %v4836
    %v4882 = vmul.f32 %v4802, %v4838
    %v4883 = vmul.f32 %v4803, %v4840
    %v4884 = vmul.f32 %v4804, %v4842
    %v4885 = vmul.f32 %v4805, %v4844
    %v4886 = vmul.f32 %v4806, %v4846
    %v4887 = vmul.f32 %v4807, %v4848
    %v4888 = vmul.f32 %v4808, %v4850
    %v4889 = vmul.f32 %v4809, %v4852
    %v4890 = vmul.f32 %v4810, %v4854
    %v4891 = vmul.f32 %v4811, %v4856
    %v4892 = vmul.f32 %v4812, %v4858
    %v4893 = vmul.f32 %v4813, %v4860
    %v4894 = vmul.f32 %v4814, %v4862
    %v4895 = vadd.f32 %v4783, %v4879
    %v4896 = vadd.f32 %v4784, %v4880
    %v4897 = vadd.f32 %v4785, %v4881
    %v4898 = vadd.f32 %v4786, %v4882
    %v4899 = vadd.f32 %v4787, %v4883
    %v4900 = vadd.f32 %v4788, %v4884
    %v4901 = vadd.f32 %v4789, %v4885
    %v4902 = vadd.f32 %v4790, %v4886
    %v4903 = vadd.f32 %v4791, %v4887
    %v4904 = vadd.f32 %v4792, %v4888
    %v4905 = vadd.f32 %v4793, %v4889
    %v4906 = vadd.f32 %v4794, %v4890
    %v4907 = vadd.f32 %v4795, %v4891
    %v4908 = vadd.f32 %v4796, %v4892
    %v4909 = vadd.f32 %v4797, %v4893
    %v4910 = vadd.f32 %v4798, %v4894
    %4927 = vrot.lane.b32.xlu0 %v4895, 96
    %v4928 = vpop.permute.xlu0 %4927
    %4929 = vrot.lane.b32.xlu0 %v4896, 96
    %v4930 = vpop.permute.xlu0 %4929
    %4931 = vrot.lane.b32.xlu0 %v4897, 96
    %v4932 = vpop.permute.xlu0 %4931
    %4933 = vrot.lane.b32.xlu0 %v4898, 96
    %v4934 = vpop.permute.xlu0 %4933
    %4935 = vrot.lane.b32.xlu0 %v4899, 96
    %v4936 = vpop.permute.xlu0 %4935
    %4937 = vrot.lane.b32.xlu0 %v4900, 96
    %v4938 = vpop.permute.xlu0 %4937
    %4939 = vrot.lane.b32.xlu0 %v4901, 96
    %v4940 = vpop.permute.xlu0 %4939
    %4941 = vrot.lane.b32.xlu0 %v4902, 96
    %v4942 = vpop.permute.xlu0 %4941
    %4943 = vrot.lane.b32.xlu0 %v4903, 96
    %v4944 = vpop.permute.xlu0 %4943
    %4945 = vrot.lane.b32.xlu0 %v4904, 96
    %v4946 = vpop.permute.xlu0 %4945
    %4947 = vrot.lane.b32.xlu0 %v4905, 96
    %v4948 = vpop.permute.xlu0 %4947
    %4949 = vrot.lane.b32.xlu0 %v4906, 96
    %v4950 = vpop.permute.xlu0 %4949
    %4951 = vrot.lane.b32.xlu0 %v4907, 96
    %v4952 = vpop.permute.xlu0 %4951
    %4953 = vrot.lane.b32.xlu0 %v4908, 96
    %v4954 = vpop.permute.xlu0 %4953
    %4955 = vrot.lane.b32.xlu0 %v4909, 96
    %v4956 = vpop.permute.xlu0 %4955
    %4957 = vrot.lane.b32.xlu0 %v4910, 96
    %v4958 = vpop.permute.xlu0 %4957
    %s4975 = scalar_lea.vmem [#allocation3], 128
    %4976 = vst.msk [vmem:[%s4975] sm:$0xff] %vm155, %v4928
    %4977 = vst.msk [vmem:[%s4975 + $0x8] sm:$0xff] %vm155, %v4930
    %4978 = vst.msk [vmem:[%s4975 + $0x10] sm:$0xff] %vm155, %v4932
    %4979 = vst.msk [vmem:[%s4975 + $0x18] sm:$0xff] %vm155, %v4934
    %4980 = vst.msk [vmem:[%s4975 + $0x20] sm:$0xff] %vm155, %v4936
    %4981 = vst.msk [vmem:[%s4975 + $0x28] sm:$0xff] %vm155, %v4938
    %4982 = vst.msk [vmem:[%s4975 + $0x30] sm:$0xff] %vm155, %v4940
    %4983 = vst.msk [vmem:[%s4975 + $0x38] sm:$0xff] %vm155, %v4942
    %4984 = vst.msk [vmem:[%s4975 + $0x40] sm:$0xff] %vm155, %v4944
    %4985 = vst.msk [vmem:[%s4975 + $0x48] sm:$0xff] %vm155, %v4946
    %4986 = vst.msk [vmem:[%s4975 + $0x50] sm:$0xff] %vm155, %v4948
    %4987 = vst.msk [vmem:[%s4975 + $0x58] sm:$0xff] %vm155, %v4950
    %4988 = vst.msk [vmem:[%s4975 + $0x60] sm:$0xff] %vm155, %v4952
    %4989 = vst.msk [vmem:[%s4975 + $0x68] sm:$0xff] %vm155, %v4954
    %4990 = vst.msk [vmem:[%s4975 + $0x70] sm:$0xff] %vm155, %v4956
    %4991 = vst.msk [vmem:[%s4975 + $0x78] sm:$0xff] %vm155, %v4958
    %v4992 = vld [vmem:[%s3] sm:$0x1]
    %v4994 = vperm.slane %v4992, 0
    %v4996 = vld [vmem:[%s349] sm:$0xff]
    %v4997 = vld [vmem:[%s349 + $0x8] sm:$0xff]
    %v4998 = vld [vmem:[%s349 + $0x18] sm:$0xff]
    %v4999 = vld [vmem:[%s349 + $0x20] sm:$0xff]
    %v5000 = vld [vmem:[%s349 + $0x30] sm:$0xff]
    %v5001 = vld [vmem:[%s349 + $0x38] sm:$0xff]
    %v5002 = vld [vmem:[%s349 + $0x48] sm:$0xff]
    %v5003 = vld [vmem:[%s349 + $0x50] sm:$0xff]
    %v5004 = vld [vmem:[%s349 + $0x60] sm:$0xff]
    %v5005 = vld [vmem:[%s349 + $0x68] sm:$0xff]
    %v5006 = vld [vmem:[%s349 + $0x78] sm:$0xff]
    %v5007 = vld [vmem:[%s349 + $0x80] sm:$0xff]
    %v5008 = vld [vmem:[%s349 + $0x90] sm:$0xff]
    %v5009 = vld [vmem:[%s349 + $0x98] sm:$0xff]
    %v5010 = vld [vmem:[%s349 + $0xa8] sm:$0xff]
    %v5011 = vld [vmem:[%s349 + $0xb0] sm:$0xff]
    %v5012 = vpack.c.bf16 %v4997, %v4996
    %v5013 = vpack.c.bf16 %v4999, %v4998
    %v5014 = vpack.c.bf16 %v5001, %v5000
    %v5015 = vpack.c.bf16 %v5003, %v5002
    %v5016 = vpack.c.bf16 %v5005, %v5004
    %v5017 = vpack.c.bf16 %v5007, %v5006
    %v5018 = vpack.c.bf16 %v5009, %v5008
    %v5019 = vpack.c.bf16 %v5011, %v5010
    %v5020 = vld [vmem:[%s2] sm:$0xf]
    %v5021 = vld [vmem:[%s2 + $0x4] sm:$0xf]
    %v5022 = vld [vmem:[%s2 + $0x8] sm:$0xf]
    %v5023 = vld [vmem:[%s2 + $0xc] sm:$0xf]
    %v5024 = vld [vmem:[%s2 + $0x10] sm:$0xf]
    %v5025 = vld [vmem:[%s2 + $0x14] sm:$0xf]
    %v5026 = vld [vmem:[%s2 + $0x18] sm:$0xf]
    %v5027 = vld [vmem:[%s2 + $0x1c] sm:$0xf]
    %v5028 = vld [vmem:[%s2 + $0x20] sm:$0xf]
    %v5029 = vld [vmem:[%s2 + $0x24] sm:$0xf]
    %v5030 = vld [vmem:[%s2 + $0x28] sm:$0xf]
    %v5031 = vld [vmem:[%s2 + $0x2c] sm:$0xf]
    %v5032 = vld [vmem:[%s2 + $0x30] sm:$0xf]
    %v5033 = vld [vmem:[%s2 + $0x34] sm:$0xf]
    %v5034 = vld [vmem:[%s2 + $0x38] sm:$0xf]
    %v5035 = vld [vmem:[%s2 + $0x3c] sm:$0xf]
    %v5052 = vunpack.c.l.b16 %v5020
    %v5053 = vunpack.c.l.b16 %v5021
    %v5054 = vunpack.c.l.b16 %v5022
    %v5055 = vunpack.c.l.b16 %v5023
    %v5056 = vunpack.c.l.b16 %v5024
    %v5057 = vunpack.c.l.b16 %v5025
    %v5058 = vunpack.c.l.b16 %v5026
    %v5059 = vunpack.c.l.b16 %v5027
    %v5060 = vunpack.c.l.b16 %v5028
    %v5061 = vunpack.c.l.b16 %v5029
    %v5062 = vunpack.c.l.b16 %v5030
    %v5063 = vunpack.c.l.b16 %v5031
    %v5064 = vunpack.c.l.b16 %v5032
    %v5065 = vunpack.c.l.b16 %v5033
    %v5066 = vunpack.c.l.b16 %v5034
    %v5067 = vunpack.c.l.b16 %v5035
    %v5068 = vpack.c.b16 %v5053, %v5052
    %v5069 = vpack.c.b16 %v5055, %v5054
    %v5070 = vpack.c.b16 %v5057, %v5056
    %v5071 = vpack.c.b16 %v5059, %v5058
    %v5072 = vpack.c.b16 %v5061, %v5060
    %v5073 = vpack.c.b16 %v5063, %v5062
    %v5074 = vpack.c.b16 %v5065, %v5064
    %v5075 = vpack.c.b16 %v5067, %v5066
    %5084 = vmatpush.bf16.msra.mxu0 %v5075
    %5085 = vmatpush.bf16.msra.mxu0 %v5074
    %5086 = vmatpush.bf16.msra.mxu0 %v5073
    %5087 = vmatpush.bf16.msra.mxu0 %v5072
    %5088 = vmatpush.bf16.msra.mxu0 %v5071
    %5089 = vmatpush.bf16.msra.mxu0 %v5070
    %5090 = vmatpush.bf16.msra.mxu0 %v5069
    %5091 = vmatpush.bf16.msra.mxu0 %v5068
    %5092 = vmatmul.bf16.gmra.mxu0 %v5012
    %v5093 = vpop.f32.mrf.mxu0
    %v5094 = vadd.f32 0.0, %v5093
    %v5095 = vpop.f32.mrf.mxu0
    %v5096 = vadd.f32 0.0, %v5095
    %5097 = vmatmul.bf16.gmra.mxu0 %v5013
    %v5098 = vpop.f32.mrf.mxu0
    %v5099 = vadd.f32 0.0, %v5098
    %v5100 = vpop.f32.mrf.mxu0
    %v5101 = vadd.f32 0.0, %v5100
    %5102 = vmatmul.bf16.gmra.mxu0 %v5014
    %v5103 = vpop.f32.mrf.mxu0
    %v5104 = vadd.f32 0.0, %v5103
    %v5105 = vpop.f32.mrf.mxu0
    %v5106 = vadd.f32 0.0, %v5105
    %5107 = vmatmul.bf16.gmra.mxu0 %v5015
    %v5108 = vpop.f32.mrf.mxu0
    %v5109 = vadd.f32 0.0, %v5108
    %v5110 = vpop.f32.mrf.mxu0
    %v5111 = vadd.f32 0.0, %v5110
    %5112 = vmatmul.bf16.gmra.mxu0 %v5016
    %v5113 = vpop.f32.mrf.mxu0
    %v5114 = vadd.f32 0.0, %v5113
    %v5115 = vpop.f32.mrf.mxu0
    %v5116 = vadd.f32 0.0, %v5115
    %5117 = vmatmul.bf16.gmra.mxu0 %v5017
    %v5118 = vpop.f32.mrf.mxu0
    %v5119 = vadd.f32 0.0, %v5118
    %v5120 = vpop.f32.mrf.mxu0
    %v5121 = vadd.f32 0.0, %v5120
    %5122 = vmatmul.bf16.gmra.mxu0 %v5018
    %v5123 = vpop.f32.mrf.mxu0
    %v5124 = vadd.f32 0.0, %v5123
    %v5125 = vpop.f32.mrf.mxu0
    %v5126 = vadd.f32 0.0, %v5125
    %5127 = vmatmul.bf16.gmra.mxu0 %v5019
    %v5128 = vpop.f32.mrf.mxu0
    %v5129 = vadd.f32 0.0, %v5128
    %v5130 = vpop.f32.mrf.mxu0
    %v5131 = vadd.f32 0.0, %v5130
    %5132 = vdwg.mxu0
    %v5133 = vadd.f32 %v4994, %v5094
    %v5134 = vadd.f32 %v4994, %v5096
    %v5135 = vadd.f32 %v4994, %v5099
    %v5136 = vadd.f32 %v4994, %v5101
    %v5137 = vadd.f32 %v4994, %v5104
    %v5138 = vadd.f32 %v4994, %v5106
    %v5139 = vadd.f32 %v4994, %v5109
    %v5140 = vadd.f32 %v4994, %v5111
    %v5141 = vadd.f32 %v4994, %v5114
    %v5142 = vadd.f32 %v4994, %v5116
    %v5143 = vadd.f32 %v4994, %v5119
    %v5144 = vadd.f32 %v4994, %v5121
    %v5145 = vadd.f32 %v4994, %v5124
    %v5146 = vadd.f32 %v4994, %v5126
    %v5147 = vadd.f32 %v4994, %v5129
    %v5148 = vadd.f32 %v4994, %v5131
    %v5149 = vld [vmem:[%s349 + $0x1] sm:$0xff]
    %v5150 = vld [vmem:[%s349 + $0x9] sm:$0xff]
    %v5151 = vld [vmem:[%s349 + $0x19] sm:$0xff]
    %v5152 = vld [vmem:[%s349 + $0x21] sm:$0xff]
    %v5153 = vld [vmem:[%s349 + $0x31] sm:$0xff]
    %v5154 = vld [vmem:[%s349 + $0x39] sm:$0xff]
    %v5155 = vld [vmem:[%s349 + $0x49] sm:$0xff]
    %v5156 = vld [vmem:[%s349 + $0x51] sm:$0xff]
    %v5157 = vld [vmem:[%s349 + $0x61] sm:$0xff]
    %v5158 = vld [vmem:[%s349 + $0x69] sm:$0xff]
    %v5159 = vld [vmem:[%s349 + $0x79] sm:$0xff]
    %v5160 = vld [vmem:[%s349 + $0x81] sm:$0xff]
    %v5161 = vld [vmem:[%s349 + $0x91] sm:$0xff]
    %v5162 = vld [vmem:[%s349 + $0x99] sm:$0xff]
    %v5163 = vld [vmem:[%s349 + $0xa9] sm:$0xff]
    %v5164 = vld [vmem:[%s349 + $0xb1] sm:$0xff]
    %v5165 = vpack.c.bf16 %v5150, %v5149
    %v5166 = vpack.c.bf16 %v5152, %v5151
    %v5167 = vpack.c.bf16 %v5154, %v5153
    %v5168 = vpack.c.bf16 %v5156, %v5155
    %v5169 = vpack.c.bf16 %v5158, %v5157
    %v5170 = vpack.c.bf16 %v5160, %v5159
    %v5171 = vpack.c.bf16 %v5162, %v5161
    %v5172 = vpack.c.bf16 %v5164, %v5163
    %v5173 = vld [vmem:[%s861] sm:$0xf]
    %v5174 = vld [vmem:[%s861 + $0x4] sm:$0xf]
    %v5175 = vld [vmem:[%s861 + $0x8] sm:$0xf]
    %v5176 = vld [vmem:[%s861 + $0xc] sm:$0xf]
    %v5177 = vld [vmem:[%s861 + $0x10] sm:$0xf]
    %v5178 = vld [vmem:[%s861 + $0x14] sm:$0xf]
    %v5179 = vld [vmem:[%s861 + $0x18] sm:$0xf]
    %v5180 = vld [vmem:[%s861 + $0x1c] sm:$0xf]
    %v5181 = vld [vmem:[%s861 + $0x20] sm:$0xf]
    %v5182 = vld [vmem:[%s861 + $0x24] sm:$0xf]
    %v5183 = vld [vmem:[%s861 + $0x28] sm:$0xf]
    %v5184 = vld [vmem:[%s861 + $0x2c] sm:$0xf]
    %v5185 = vld [vmem:[%s861 + $0x30] sm:$0xf]
    %v5186 = vld [vmem:[%s861 + $0x34] sm:$0xf]
    %v5187 = vld [vmem:[%s861 + $0x38] sm:$0xf]
    %v5188 = vld [vmem:[%s861 + $0x3c] sm:$0xf]
    %v5205 = vunpack.c.l.b16 %v5173
    %v5206 = vunpack.c.l.b16 %v5174
    %v5207 = vunpack.c.l.b16 %v5175
    %v5208 = vunpack.c.l.b16 %v5176
    %v5209 = vunpack.c.l.b16 %v5177
    %v5210 = vunpack.c.l.b16 %v5178
    %v5211 = vunpack.c.l.b16 %v5179
    %v5212 = vunpack.c.l.b16 %v5180
    %v5213 = vunpack.c.l.b16 %v5181
    %v5214 = vunpack.c.l.b16 %v5182
    %v5215 = vunpack.c.l.b16 %v5183
    %v5216 = vunpack.c.l.b16 %v5184
    %v5217 = vunpack.c.l.b16 %v5185
    %v5218 = vunpack.c.l.b16 %v5186
    %v5219 = vunpack.c.l.b16 %v5187
    %v5220 = vunpack.c.l.b16 %v5188
    %v5221 = vpack.c.b16 %v5206, %v5205
    %v5222 = vpack.c.b16 %v5208, %v5207
    %v5223 = vpack.c.b16 %v5210, %v5209
    %v5224 = vpack.c.b16 %v5212, %v5211
    %v5225 = vpack.c.b16 %v5214, %v5213
    %v5226 = vpack.c.b16 %v5216, %v5215
    %v5227 = vpack.c.b16 %v5218, %v5217
    %v5228 = vpack.c.b16 %v5220, %v5219
    %5237 = vmatpush.bf16.msra.mxu0 %v5228
    %5238 = vmatpush.bf16.msra.mxu0 %v5227
    %5239 = vmatpush.bf16.msra.mxu0 %v5226
    %5240 = vmatpush.bf16.msra.mxu0 %v5225
    %5241 = vmatpush.bf16.msra.mxu0 %v5224
    %5242 = vmatpush.bf16.msra.mxu0 %v5223
    %5243 = vmatpush.bf16.msra.mxu0 %v5222
    %5244 = vmatpush.bf16.msra.mxu0 %v5221
    %5245 = vmatmul.bf16.gmra.mxu0 %v5165
    %v5246 = vpop.f32.mrf.mxu0
    %v5247 = vadd.f32 0.0, %v5246
    %v5248 = vpop.f32.mrf.mxu0
    %v5249 = vadd.f32 0.0, %v5248
    %5250 = vmatmul.bf16.gmra.mxu0 %v5166
    %v5251 = vpop.f32.mrf.mxu0
    %v5252 = vadd.f32 0.0, %v5251
    %v5253 = vpop.f32.mrf.mxu0
    %v5254 = vadd.f32 0.0, %v5253
    %5255 = vmatmul.bf16.gmra.mxu0 %v5167
    %v5256 = vpop.f32.mrf.mxu0
    %v5257 = vadd.f32 0.0, %v5256
    %v5258 = vpop.f32.mrf.mxu0
    %v5259 = vadd.f32 0.0, %v5258
    %5260 = vmatmul.bf16.gmra.mxu0 %v5168
    %v5261 = vpop.f32.mrf.mxu0
    %v5262 = vadd.f32 0.0, %v5261
    %v5263 = vpop.f32.mrf.mxu0
    %v5264 = vadd.f32 0.0, %v5263
    %5265 = vmatmul.bf16.gmra.mxu0 %v5169
    %v5266 = vpop.f32.mrf.mxu0
    %v5267 = vadd.f32 0.0, %v5266
    %v5268 = vpop.f32.mrf.mxu0
    %v5269 = vadd.f32 0.0, %v5268
    %5270 = vmatmul.bf16.gmra.mxu0 %v5170
    %v5271 = vpop.f32.mrf.mxu0
    %v5272 = vadd.f32 0.0, %v5271
    %v5273 = vpop.f32.mrf.mxu0
    %v5274 = vadd.f32 0.0, %v5273
    %5275 = vmatmul.bf16.gmra.mxu0 %v5171
    %v5276 = vpop.f32.mrf.mxu0
    %v5277 = vadd.f32 0.0, %v5276
    %v5278 = vpop.f32.mrf.mxu0
    %v5279 = vadd.f32 0.0, %v5278
    %5280 = vmatmul.bf16.gmra.mxu0 %v5172
    %v5281 = vpop.f32.mrf.mxu0
    %v5282 = vadd.f32 0.0, %v5281
    %v5283 = vpop.f32.mrf.mxu0
    %v5284 = vadd.f32 0.0, %v5283
    %5285 = vdwg.mxu0
    %v5286 = vadd.f32 %v5133, %v5247
    %v5287 = vadd.f32 %v5134, %v5249
    %v5288 = vadd.f32 %v5135, %v5252
    %v5289 = vadd.f32 %v5136, %v5254
    %v5290 = vadd.f32 %v5137, %v5257
    %v5291 = vadd.f32 %v5138, %v5259
    %v5292 = vadd.f32 %v5139, %v5262
    %v5293 = vadd.f32 %v5140, %v5264
    %v5294 = vadd.f32 %v5141, %v5267
    %v5295 = vadd.f32 %v5142, %v5269
    %v5296 = vadd.f32 %v5143, %v5272
    %v5297 = vadd.f32 %v5144, %v5274
    %v5298 = vadd.f32 %v5145, %v5277
    %v5299 = vadd.f32 %v5146, %v5279
    %v5300 = vadd.f32 %v5147, %v5282
    %v5301 = vadd.f32 %v5148, %v5284
    %v5302 = vld [vmem:[%s349 + $0x2] sm:$0xff]
    %v5303 = vld [vmem:[%s349 + $0xa] sm:$0xff]
    %v5304 = vld [vmem:[%s349 + $0x1a] sm:$0xff]
    %v5305 = vld [vmem:[%s349 + $0x22] sm:$0xff]
    %v5306 = vld [vmem:[%s349 + $0x32] sm:$0xff]
    %v5307 = vld [vmem:[%s349 + $0x3a] sm:$0xff]
    %v5308 = vld [vmem:[%s349 + $0x4a] sm:$0xff]
    %v5309 = vld [vmem:[%s349 + $0x52] sm:$0xff]
    %v5310 = vld [vmem:[%s349 + $0x62] sm:$0xff]
    %v5311 = vld [vmem:[%s349 + $0x6a] sm:$0xff]
    %v5312 = vld [vmem:[%s349 + $0x7a] sm:$0xff]
    %v5313 = vld [vmem:[%s349 + $0x82] sm:$0xff]
    %v5314 = vld [vmem:[%s349 + $0x92] sm:$0xff]
    %v5315 = vld [vmem:[%s349 + $0x9a] sm:$0xff]
    %v5316 = vld [vmem:[%s349 + $0xaa] sm:$0xff]
    %v5317 = vld [vmem:[%s349 + $0xb2] sm:$0xff]
    %v5318 = vpack.c.bf16 %v5303, %v5302
    %v5319 = vpack.c.bf16 %v5305, %v5304
    %v5320 = vpack.c.bf16 %v5307, %v5306
    %v5321 = vpack.c.bf16 %v5309, %v5308
    %v5322 = vpack.c.bf16 %v5311, %v5310
    %v5323 = vpack.c.bf16 %v5313, %v5312
    %v5324 = vpack.c.bf16 %v5315, %v5314
    %v5325 = vpack.c.bf16 %v5317, %v5316
    %v5326 = vld [vmem:[%s1015] sm:$0xf]
    %v5327 = vld [vmem:[%s1015 + $0x4] sm:$0xf]
    %v5328 = vld [vmem:[%s1015 + $0x8] sm:$0xf]
    %v5329 = vld [vmem:[%s1015 + $0xc] sm:$0xf]
    %v5330 = vld [vmem:[%s1015 + $0x10] sm:$0xf]
    %v5331 = vld [vmem:[%s1015 + $0x14] sm:$0xf]
    %v5332 = vld [vmem:[%s1015 + $0x18] sm:$0xf]
    %v5333 = vld [vmem:[%s1015 + $0x1c] sm:$0xf]
    %v5334 = vld [vmem:[%s1015 + $0x20] sm:$0xf]
    %v5335 = vld [vmem:[%s1015 + $0x24] sm:$0xf]
    %v5336 = vld [vmem:[%s1015 + $0x28] sm:$0xf]
    %v5337 = vld [vmem:[%s1015 + $0x2c] sm:$0xf]
    %v5338 = vld [vmem:[%s1015 + $0x30] sm:$0xf]
    %v5339 = vld [vmem:[%s1015 + $0x34] sm:$0xf]
    %v5340 = vld [vmem:[%s1015 + $0x38] sm:$0xf]
    %v5341 = vld [vmem:[%s1015 + $0x3c] sm:$0xf]
    %v5358 = vunpack.c.l.b16 %v5326
    %v5359 = vunpack.c.l.b16 %v5327
    %v5360 = vunpack.c.l.b16 %v5328
    %v5361 = vunpack.c.l.b16 %v5329
    %v5362 = vunpack.c.l.b16 %v5330
    %v5363 = vunpack.c.l.b16 %v5331
    %v5364 = vunpack.c.l.b16 %v5332
    %v5365 = vunpack.c.l.b16 %v5333
    %v5366 = vunpack.c.l.b16 %v5334
    %v5367 = vunpack.c.l.b16 %v5335
    %v5368 = vunpack.c.l.b16 %v5336
    %v5369 = vunpack.c.l.b16 %v5337
    %v5370 = vunpack.c.l.b16 %v5338
    %v5371 = vunpack.c.l.b16 %v5339
    %v5372 = vunpack.c.l.b16 %v5340
    %v5373 = vunpack.c.l.b16 %v5341
    %v5374 = vpack.c.b16 %v5359, %v5358
    %v5375 = vpack.c.b16 %v5361, %v5360
    %v5376 = vpack.c.b16 %v5363, %v5362
    %v5377 = vpack.c.b16 %v5365, %v5364
    %v5378 = vpack.c.b16 %v5367, %v5366
    %v5379 = vpack.c.b16 %v5369, %v5368
    %v5380 = vpack.c.b16 %v5371, %v5370
    %v5381 = vpack.c.b16 %v5373, %v5372
    %5390 = vmatpush.bf16.msra.mxu0 %v5381
    %5391 = vmatpush.bf16.msra.mxu0 %v5380
    %5392 = vmatpush.bf16.msra.mxu0 %v5379
    %5393 = vmatpush.bf16.msra.mxu0 %v5378
    %5394 = vmatpush.bf16.msra.mxu0 %v5377
    %5395 = vmatpush.bf16.msra.mxu0 %v5376
    %5396 = vmatpush.bf16.msra.mxu0 %v5375
    %5397 = vmatpush.bf16.msra.mxu0 %v5374
    %5398 = vmatmul.bf16.gmra.mxu0 %v5318
    %v5399 = vpop.f32.mrf.mxu0
    %v5400 = vadd.f32 0.0, %v5399
    %v5401 = vpop.f32.mrf.mxu0
    %v5402 = vadd.f32 0.0, %v5401
    %5403 = vmatmul.bf16.gmra.mxu0 %v5319
    %v5404 = vpop.f32.mrf.mxu0
    %v5405 = vadd.f32 0.0, %v5404
    %v5406 = vpop.f32.mrf.mxu0
    %v5407 = vadd.f32 0.0, %v5406
    %5408 = vmatmul.bf16.gmra.mxu0 %v5320
    %v5409 = vpop.f32.mrf.mxu0
    %v5410 = vadd.f32 0.0, %v5409
    %v5411 = vpop.f32.mrf.mxu0
    %v5412 = vadd.f32 0.0, %v5411
    %5413 = vmatmul.bf16.gmra.mxu0 %v5321
    %v5414 = vpop.f32.mrf.mxu0
    %v5415 = vadd.f32 0.0, %v5414
    %v5416 = vpop.f32.mrf.mxu0
    %v5417 = vadd.f32 0.0, %v5416
    %5418 = vmatmul.bf16.gmra.mxu0 %v5322
    %v5419 = vpop.f32.mrf.mxu0
    %v5420 = vadd.f32 0.0, %v5419
    %v5421 = vpop.f32.mrf.mxu0
    %v5422 = vadd.f32 0.0, %v5421
    %5423 = vmatmul.bf16.gmra.mxu0 %v5323
    %v5424 = vpop.f32.mrf.mxu0
    %v5425 = vadd.f32 0.0, %v5424
    %v5426 = vpop.f32.mrf.mxu0
    %v5427 = vadd.f32 0.0, %v5426
    %5428 = vmatmul.bf16.gmra.mxu0 %v5324
    %v5429 = vpop.f32.mrf.mxu0
    %v5430 = vadd.f32 0.0, %v5429
    %v5431 = vpop.f32.mrf.mxu0
    %v5432 = vadd.f32 0.0, %v5431
    %5433 = vmatmul.bf16.gmra.mxu0 %v5325
    %v5434 = vpop.f32.mrf.mxu0
    %v5435 = vadd.f32 0.0, %v5434
    %v5436 = vpop.f32.mrf.mxu0
    %v5437 = vadd.f32 0.0, %v5436
    %5438 = vdwg.mxu0
    %v5439 = vadd.f32 %v5286, %v5400
    %v5440 = vadd.f32 %v5287, %v5402
    %v5441 = vadd.f32 %v5288, %v5405
    %v5442 = vadd.f32 %v5289, %v5407
    %v5443 = vadd.f32 %v5290, %v5410
    %v5444 = vadd.f32 %v5291, %v5412
    %v5445 = vadd.f32 %v5292, %v5415
    %v5446 = vadd.f32 %v5293, %v5417
    %v5447 = vadd.f32 %v5294, %v5420
    %v5448 = vadd.f32 %v5295, %v5422
    %v5449 = vadd.f32 %v5296, %v5425
    %v5450 = vadd.f32 %v5297, %v5427
    %v5451 = vadd.f32 %v5298, %v5430
    %v5452 = vadd.f32 %v5299, %v5432
    %v5453 = vadd.f32 %v5300, %v5435
    %v5454 = vadd.f32 %v5301, %v5437
    %v5455 = vld [vmem:[%s357] sm:$0xff]
    %v5456 = vld [vmem:[%s357 + $0x8] sm:$0xff]
    %v5457 = vld [vmem:[%s357 + $0x18] sm:$0xff]
    %v5458 = vld [vmem:[%s357 + $0x20] sm:$0xff]
    %v5459 = vld [vmem:[%s357 + $0x30] sm:$0xff]
    %v5460 = vld [vmem:[%s357 + $0x38] sm:$0xff]
    %v5461 = vld [vmem:[%s357 + $0x48] sm:$0xff]
    %v5462 = vld [vmem:[%s357 + $0x50] sm:$0xff]
    %v5463 = vld [vmem:[%s357 + $0x60] sm:$0xff]
    %v5464 = vld [vmem:[%s357 + $0x68] sm:$0xff]
    %v5465 = vld [vmem:[%s357 + $0x78] sm:$0xff]
    %v5466 = vld [vmem:[%s357 + $0x80] sm:$0xff]
    %v5467 = vld [vmem:[%s357 + $0x90] sm:$0xff]
    %v5468 = vld [vmem:[%s357 + $0x98] sm:$0xff]
    %v5469 = vld [vmem:[%s357 + $0xa8] sm:$0xff]
    %v5470 = vld [vmem:[%s357 + $0xb0] sm:$0xff]
    %v5471 = vpack.c.bf16 %v5456, %v5455
    %v5472 = vpack.c.bf16 %v5458, %v5457
    %v5473 = vpack.c.bf16 %v5460, %v5459
    %v5474 = vpack.c.bf16 %v5462, %v5461
    %v5475 = vpack.c.bf16 %v5464, %v5463
    %v5476 = vpack.c.bf16 %v5466, %v5465
    %v5477 = vpack.c.bf16 %v5468, %v5467
    %v5478 = vpack.c.bf16 %v5470, %v5469
    %v5479 = vld [vmem:[%s1169] sm:$0xf]
    %v5480 = vld [vmem:[%s1169 + $0x4] sm:$0xf]
    %v5481 = vld [vmem:[%s1169 + $0x8] sm:$0xf]
    %v5482 = vld [vmem:[%s1169 + $0xc] sm:$0xf]
    %v5483 = vld [vmem:[%s1169 + $0x10] sm:$0xf]
    %v5484 = vld [vmem:[%s1169 + $0x14] sm:$0xf]
    %v5485 = vld [vmem:[%s1169 + $0x18] sm:$0xf]
    %v5486 = vld [vmem:[%s1169 + $0x1c] sm:$0xf]
    %v5487 = vld [vmem:[%s1169 + $0x20] sm:$0xf]
    %v5488 = vld [vmem:[%s1169 + $0x24] sm:$0xf]
    %v5489 = vld [vmem:[%s1169 + $0x28] sm:$0xf]
    %v5490 = vld [vmem:[%s1169 + $0x2c] sm:$0xf]
    %v5491 = vld [vmem:[%s1169 + $0x30] sm:$0xf]
    %v5492 = vld [vmem:[%s1169 + $0x34] sm:$0xf]
    %v5493 = vld [vmem:[%s1169 + $0x38] sm:$0xf]
    %v5494 = vld [vmem:[%s1169 + $0x3c] sm:$0xf]
    %v5511 = vunpack.c.l.b16 %v5479
    %v5512 = vunpack.c.l.b16 %v5480
    %v5513 = vunpack.c.l.b16 %v5481
    %v5514 = vunpack.c.l.b16 %v5482
    %v5515 = vunpack.c.l.b16 %v5483
    %v5516 = vunpack.c.l.b16 %v5484
    %v5517 = vunpack.c.l.b16 %v5485
    %v5518 = vunpack.c.l.b16 %v5486
    %v5519 = vunpack.c.l.b16 %v5487
    %v5520 = vunpack.c.l.b16 %v5488
    %v5521 = vunpack.c.l.b16 %v5489
    %v5522 = vunpack.c.l.b16 %v5490
    %v5523 = vunpack.c.l.b16 %v5491
    %v5524 = vunpack.c.l.b16 %v5492
    %v5525 = vunpack.c.l.b16 %v5493
    %v5526 = vunpack.c.l.b16 %v5494
    %v5527 = vpack.c.b16 %v5512, %v5511
    %v5528 = vpack.c.b16 %v5514, %v5513
    %v5529 = vpack.c.b16 %v5516, %v5515
    %v5530 = vpack.c.b16 %v5518, %v5517
    %v5531 = vpack.c.b16 %v5520, %v5519
    %v5532 = vpack.c.b16 %v5522, %v5521
    %v5533 = vpack.c.b16 %v5524, %v5523
    %v5534 = vpack.c.b16 %v5526, %v5525
    %5543 = vmatpush.bf16.msra.mxu0 %v5534
    %5544 = vmatpush.bf16.msra.mxu0 %v5533
    %5545 = vmatpush.bf16.msra.mxu0 %v5532
    %5546 = vmatpush.bf16.msra.mxu0 %v5531
    %5547 = vmatpush.bf16.msra.mxu0 %v5530
    %5548 = vmatpush.bf16.msra.mxu0 %v5529
    %5549 = vmatpush.bf16.msra.mxu0 %v5528
    %5550 = vmatpush.bf16.msra.mxu0 %v5527
    %5551 = vmatmul.bf16.gmra.mxu0 %v5471
    %v5552 = vpop.f32.mrf.mxu0
    %v5553 = vadd.f32 0.0, %v5552
    %v5554 = vpop.f32.mrf.mxu0
    %v5555 = vadd.f32 0.0, %v5554
    %5556 = vmatmul.bf16.gmra.mxu0 %v5472
    %v5557 = vpop.f32.mrf.mxu0
    %v5558 = vadd.f32 0.0, %v5557
    %v5559 = vpop.f32.mrf.mxu0
    %v5560 = vadd.f32 0.0, %v5559
    %5561 = vmatmul.bf16.gmra.mxu0 %v5473
    %v5562 = vpop.f32.mrf.mxu0
    %v5563 = vadd.f32 0.0, %v5562
    %v5564 = vpop.f32.mrf.mxu0
    %v5565 = vadd.f32 0.0, %v5564
    %5566 = vmatmul.bf16.gmra.mxu0 %v5474
    %v5567 = vpop.f32.mrf.mxu0
    %v5568 = vadd.f32 0.0, %v5567
    %v5569 = vpop.f32.mrf.mxu0
    %v5570 = vadd.f32 0.0, %v5569
    %5571 = vmatmul.bf16.gmra.mxu0 %v5475
    %v5572 = vpop.f32.mrf.mxu0
    %v5573 = vadd.f32 0.0, %v5572
    %v5574 = vpop.f32.mrf.mxu0
    %v5575 = vadd.f32 0.0, %v5574
    %5576 = vmatmul.bf16.gmra.mxu0 %v5476
    %v5577 = vpop.f32.mrf.mxu0
    %v5578 = vadd.f32 0.0, %v5577
    %v5579 = vpop.f32.mrf.mxu0
    %v5580 = vadd.f32 0.0, %v5579
    %5581 = vmatmul.bf16.gmra.mxu0 %v5477
    %v5582 = vpop.f32.mrf.mxu0
    %v5583 = vadd.f32 0.0, %v5582
    %v5584 = vpop.f32.mrf.mxu0
    %v5585 = vadd.f32 0.0, %v5584
    %5586 = vmatmul.bf16.gmra.mxu0 %v5478
    %v5587 = vpop.f32.mrf.mxu0
    %v5588 = vadd.f32 0.0, %v5587
    %v5589 = vpop.f32.mrf.mxu0
    %v5590 = vadd.f32 0.0, %v5589
    %5591 = vdwg.mxu0
    %v5592 = vadd.f32 %v5439, %v5553
    %v5593 = vadd.f32 %v5440, %v5555
    %v5594 = vadd.f32 %v5441, %v5558
    %v5595 = vadd.f32 %v5442, %v5560
    %v5596 = vadd.f32 %v5443, %v5563
    %v5597 = vadd.f32 %v5444, %v5565
    %v5598 = vadd.f32 %v5445, %v5568
    %v5599 = vadd.f32 %v5446, %v5570
    %v5600 = vadd.f32 %v5447, %v5573
    %v5601 = vadd.f32 %v5448, %v5575
    %v5602 = vadd.f32 %v5449, %v5578
    %v5603 = vadd.f32 %v5450, %v5580
    %v5604 = vadd.f32 %v5451, %v5583
    %v5605 = vadd.f32 %v5452, %v5585
    %v5606 = vadd.f32 %v5453, %v5588
    %v5607 = vadd.f32 %v5454, %v5590
    %v5608 = vld [vmem:[%s357 + $0x1] sm:$0xff]
    %v5609 = vld [vmem:[%s357 + $0x9] sm:$0xff]
    %v5610 = vld [vmem:[%s357 + $0x19] sm:$0xff]
    %v5611 = vld [vmem:[%s357 + $0x21] sm:$0xff]
    %v5612 = vld [vmem:[%s357 + $0x31] sm:$0xff]
    %v5613 = vld [vmem:[%s357 + $0x39] sm:$0xff]
    %v5614 = vld [vmem:[%s357 + $0x49] sm:$0xff]
    %v5615 = vld [vmem:[%s357 + $0x51] sm:$0xff]
    %v5616 = vld [vmem:[%s357 + $0x61] sm:$0xff]
    %v5617 = vld [vmem:[%s357 + $0x69] sm:$0xff]
    %v5618 = vld [vmem:[%s357 + $0x79] sm:$0xff]
    %v5619 = vld [vmem:[%s357 + $0x81] sm:$0xff]
    %v5620 = vld [vmem:[%s357 + $0x91] sm:$0xff]
    %v5621 = vld [vmem:[%s357 + $0x99] sm:$0xff]
    %v5622 = vld [vmem:[%s357 + $0xa9] sm:$0xff]
    %v5623 = vld [vmem:[%s357 + $0xb1] sm:$0xff]
    %v5624 = vpack.c.bf16 %v5609, %v5608
    %v5625 = vpack.c.bf16 %v5611, %v5610
    %v5626 = vpack.c.bf16 %v5613, %v5612
    %v5627 = vpack.c.bf16 %v5615, %v5614
    %v5628 = vpack.c.bf16 %v5617, %v5616
    %v5629 = vpack.c.bf16 %v5619, %v5618
    %v5630 = vpack.c.bf16 %v5621, %v5620
    %v5631 = vpack.c.bf16 %v5623, %v5622
    %v5632 = vld [vmem:[%s1323] sm:$0xf]
    %v5633 = vld [vmem:[%s1323 + $0x4] sm:$0xf]
    %v5634 = vld [vmem:[%s1323 + $0x8] sm:$0xf]
    %v5635 = vld [vmem:[%s1323 + $0xc] sm:$0xf]
    %v5636 = vld [vmem:[%s1323 + $0x10] sm:$0xf]
    %v5637 = vld [vmem:[%s1323 + $0x14] sm:$0xf]
    %v5638 = vld [vmem:[%s1323 + $0x18] sm:$0xf]
    %v5639 = vld [vmem:[%s1323 + $0x1c] sm:$0xf]
    %v5640 = vld [vmem:[%s1323 + $0x20] sm:$0xf]
    %v5641 = vld [vmem:[%s1323 + $0x24] sm:$0xf]
    %v5642 = vld [vmem:[%s1323 + $0x28] sm:$0xf]
    %v5643 = vld [vmem:[%s1323 + $0x2c] sm:$0xf]
    %v5644 = vld [vmem:[%s1323 + $0x30] sm:$0xf]
    %v5645 = vld [vmem:[%s1323 + $0x34] sm:$0xf]
    %v5646 = vld [vmem:[%s1323 + $0x38] sm:$0xf]
    %v5647 = vld [vmem:[%s1323 + $0x3c] sm:$0xf]
    %v5664 = vunpack.c.l.b16 %v5632
    %v5665 = vunpack.c.l.b16 %v5633
    %v5666 = vunpack.c.l.b16 %v5634
    %v5667 = vunpack.c.l.b16 %v5635
    %v5668 = vunpack.c.l.b16 %v5636
    %v5669 = vunpack.c.l.b16 %v5637
    %v5670 = vunpack.c.l.b16 %v5638
    %v5671 = vunpack.c.l.b16 %v5639
    %v5672 = vunpack.c.l.b16 %v5640
    %v5673 = vunpack.c.l.b16 %v5641
    %v5674 = vunpack.c.l.b16 %v5642
    %v5675 = vunpack.c.l.b16 %v5643
    %v5676 = vunpack.c.l.b16 %v5644
    %v5677 = vunpack.c.l.b16 %v5645
    %v5678 = vunpack.c.l.b16 %v5646
    %v5679 = vunpack.c.l.b16 %v5647
    %v5680 = vpack.c.b16 %v5665, %v5664
    %v5681 = vpack.c.b16 %v5667, %v5666
    %v5682 = vpack.c.b16 %v5669, %v5668
    %v5683 = vpack.c.b16 %v5671, %v5670
    %v5684 = vpack.c.b16 %v5673, %v5672
    %v5685 = vpack.c.b16 %v5675, %v5674
    %v5686 = vpack.c.b16 %v5677, %v5676
    %v5687 = vpack.c.b16 %v5679, %v5678
    %5696 = vmatpush.bf16.msra.mxu0 %v5687
    %5697 = vmatpush.bf16.msra.mxu0 %v5686
    %5698 = vmatpush.bf16.msra.mxu0 %v5685
    %5699 = vmatpush.bf16.msra.mxu0 %v5684
    %5700 = vmatpush.bf16.msra.mxu0 %v5683
    %5701 = vmatpush.bf16.msra.mxu0 %v5682
    %5702 = vmatpush.bf16.msra.mxu0 %v5681
    %5703 = vmatpush.bf16.msra.mxu0 %v5680
    %5704 = vmatmul.bf16.gmra.mxu0 %v5624
    %v5705 = vpop.f32.mrf.mxu0
    %v5706 = vadd.f32 0.0, %v5705
    %v5707 = vpop.f32.mrf.mxu0
    %v5708 = vadd.f32 0.0, %v5707
    %5709 = vmatmul.bf16.gmra.mxu0 %v5625
    %v5710 = vpop.f32.mrf.mxu0
    %v5711 = vadd.f32 0.0, %v5710
    %v5712 = vpop.f32.mrf.mxu0
    %v5713 = vadd.f32 0.0, %v5712
    %5714 = vmatmul.bf16.gmra.mxu0 %v5626
    %v5715 = vpop.f32.mrf.mxu0
    %v5716 = vadd.f32 0.0, %v5715
    %v5717 = vpop.f32.mrf.mxu0
    %v5718 = vadd.f32 0.0, %v5717
    %5719 = vmatmul.bf16.gmra.mxu0 %v5627
    %v5720 = vpop.f32.mrf.mxu0
    %v5721 = vadd.f32 0.0, %v5720
    %v5722 = vpop.f32.mrf.mxu0
    %v5723 = vadd.f32 0.0, %v5722
    %5724 = vmatmul.bf16.gmra.mxu0 %v5628
    %v5725 = vpop.f32.mrf.mxu0
    %v5726 = vadd.f32 0.0, %v5725
    %v5727 = vpop.f32.mrf.mxu0
    %v5728 = vadd.f32 0.0, %v5727
    %5729 = vmatmul.bf16.gmra.mxu0 %v5629
    %v5730 = vpop.f32.mrf.mxu0
    %v5731 = vadd.f32 0.0, %v5730
    %v5732 = vpop.f32.mrf.mxu0
    %v5733 = vadd.f32 0.0, %v5732
    %5734 = vmatmul.bf16.gmra.mxu0 %v5630
    %v5735 = vpop.f32.mrf.mxu0
    %v5736 = vadd.f32 0.0, %v5735
    %v5737 = vpop.f32.mrf.mxu0
    %v5738 = vadd.f32 0.0, %v5737
    %5739 = vmatmul.bf16.gmra.mxu0 %v5631
    %v5740 = vpop.f32.mrf.mxu0
    %v5741 = vadd.f32 0.0, %v5740
    %v5742 = vpop.f32.mrf.mxu0
    %v5743 = vadd.f32 0.0, %v5742
    %5744 = vdwg.mxu0
    %v5745 = vadd.f32 %v5592, %v5706
    %v5746 = vadd.f32 %v5593, %v5708
    %v5747 = vadd.f32 %v5594, %v5711
    %v5748 = vadd.f32 %v5595, %v5713
    %v5749 = vadd.f32 %v5596, %v5716
    %v5750 = vadd.f32 %v5597, %v5718
    %v5751 = vadd.f32 %v5598, %v5721
    %v5752 = vadd.f32 %v5599, %v5723
    %v5753 = vadd.f32 %v5600, %v5726
    %v5754 = vadd.f32 %v5601, %v5728
    %v5755 = vadd.f32 %v5602, %v5731
    %v5756 = vadd.f32 %v5603, %v5733
    %v5757 = vadd.f32 %v5604, %v5736
    %v5758 = vadd.f32 %v5605, %v5738
    %v5759 = vadd.f32 %v5606, %v5741
    %v5760 = vadd.f32 %v5607, %v5743
    %v5761 = vld [vmem:[%s357 + $0x2] sm:$0xff]
    %v5762 = vld [vmem:[%s357 + $0xa] sm:$0xff]
    %v5763 = vld [vmem:[%s357 + $0x1a] sm:$0xff]
    %v5764 = vld [vmem:[%s357 + $0x22] sm:$0xff]
    %v5765 = vld [vmem:[%s357 + $0x32] sm:$0xff]
    %v5766 = vld [vmem:[%s357 + $0x3a] sm:$0xff]
    %v5767 = vld [vmem:[%s357 + $0x4a] sm:$0xff]
    %v5768 = vld [vmem:[%s357 + $0x52] sm:$0xff]
    %v5769 = vld [vmem:[%s357 + $0x62] sm:$0xff]
    %v5770 = vld [vmem:[%s357 + $0x6a] sm:$0xff]
    %v5771 = vld [vmem:[%s357 + $0x7a] sm:$0xff]
    %v5772 = vld [vmem:[%s357 + $0x82] sm:$0xff]
    %v5773 = vld [vmem:[%s357 + $0x92] sm:$0xff]
    %v5774 = vld [vmem:[%s357 + $0x9a] sm:$0xff]
    %v5775 = vld [vmem:[%s357 + $0xaa] sm:$0xff]
    %v5776 = vld [vmem:[%s357 + $0xb2] sm:$0xff]
    %v5777 = vpack.c.bf16 %v5762, %v5761
    %v5778 = vpack.c.bf16 %v5764, %v5763
    %v5779 = vpack.c.bf16 %v5766, %v5765
    %v5780 = vpack.c.bf16 %v5768, %v5767
    %v5781 = vpack.c.bf16 %v5770, %v5769
    %v5782 = vpack.c.bf16 %v5772, %v5771
    %v5783 = vpack.c.bf16 %v5774, %v5773
    %v5784 = vpack.c.bf16 %v5776, %v5775
    %v5785 = vld [vmem:[%s1477] sm:$0xf]
    %v5786 = vld [vmem:[%s1477 + $0x4] sm:$0xf]
    %v5787 = vld [vmem:[%s1477 + $0x8] sm:$0xf]
    %v5788 = vld [vmem:[%s1477 + $0xc] sm:$0xf]
    %v5789 = vld [vmem:[%s1477 + $0x10] sm:$0xf]
    %v5790 = vld [vmem:[%s1477 + $0x14] sm:$0xf]
    %v5791 = vld [vmem:[%s1477 + $0x18] sm:$0xf]
    %v5792 = vld [vmem:[%s1477 + $0x1c] sm:$0xf]
    %v5793 = vld [vmem:[%s1477 + $0x20] sm:$0xf]
    %v5794 = vld [vmem:[%s1477 + $0x24] sm:$0xf]
    %v5795 = vld [vmem:[%s1477 + $0x28] sm:$0xf]
    %v5796 = vld [vmem:[%s1477 + $0x2c] sm:$0xf]
    %v5797 = vld [vmem:[%s1477 + $0x30] sm:$0xf]
    %v5798 = vld [vmem:[%s1477 + $0x34] sm:$0xf]
    %v5799 = vld [vmem:[%s1477 + $0x38] sm:$0xf]
    %v5800 = vld [vmem:[%s1477 + $0x3c] sm:$0xf]
    %v5817 = vunpack.c.l.b16 %v5785
    %v5818 = vunpack.c.l.b16 %v5786
    %v5819 = vunpack.c.l.b16 %v5787
    %v5820 = vunpack.c.l.b16 %v5788
    %v5821 = vunpack.c.l.b16 %v5789
    %v5822 = vunpack.c.l.b16 %v5790
    %v5823 = vunpack.c.l.b16 %v5791
    %v5824 = vunpack.c.l.b16 %v5792
    %v5825 = vunpack.c.l.b16 %v5793
    %v5826 = vunpack.c.l.b16 %v5794
    %v5827 = vunpack.c.l.b16 %v5795
    %v5828 = vunpack.c.l.b16 %v5796
    %v5829 = vunpack.c.l.b16 %v5797
    %v5830 = vunpack.c.l.b16 %v5798
    %v5831 = vunpack.c.l.b16 %v5799
    %v5832 = vunpack.c.l.b16 %v5800
    %v5833 = vpack.c.b16 %v5818, %v5817
    %v5834 = vpack.c.b16 %v5820, %v5819
    %v5835 = vpack.c.b16 %v5822, %v5821
    %v5836 = vpack.c.b16 %v5824, %v5823
    %v5837 = vpack.c.b16 %v5826, %v5825
    %v5838 = vpack.c.b16 %v5828, %v5827
    %v5839 = vpack.c.b16 %v5830, %v5829
    %v5840 = vpack.c.b16 %v5832, %v5831
    %5849 = vmatpush.bf16.msra.mxu0 %v5840
    %5850 = vmatpush.bf16.msra.mxu0 %v5839
    %5851 = vmatpush.bf16.msra.mxu0 %v5838
    %5852 = vmatpush.bf16.msra.mxu0 %v5837
    %5853 = vmatpush.bf16.msra.mxu0 %v5836
    %5854 = vmatpush.bf16.msra.mxu0 %v5835
    %5855 = vmatpush.bf16.msra.mxu0 %v5834
    %5856 = vmatpush.bf16.msra.mxu0 %v5833
    %5857 = vmatmul.bf16.gmra.mxu0 %v5777
    %v5858 = vpop.f32.mrf.mxu0
    %v5859 = vadd.f32 0.0, %v5858
    %v5860 = vpop.f32.mrf.mxu0
    %v5861 = vadd.f32 0.0, %v5860
    %5862 = vmatmul.bf16.gmra.mxu0 %v5778
    %v5863 = vpop.f32.mrf.mxu0
    %v5864 = vadd.f32 0.0, %v5863
    %v5865 = vpop.f32.mrf.mxu0
    %v5866 = vadd.f32 0.0, %v5865
    %5867 = vmatmul.bf16.gmra.mxu0 %v5779
    %v5868 = vpop.f32.mrf.mxu0
    %v5869 = vadd.f32 0.0, %v5868
    %v5870 = vpop.f32.mrf.mxu0
    %v5871 = vadd.f32 0.0, %v5870
    %5872 = vmatmul.bf16.gmra.mxu0 %v5780
    %v5873 = vpop.f32.mrf.mxu0
    %v5874 = vadd.f32 0.0, %v5873
    %v5875 = vpop.f32.mrf.mxu0
    %v5876 = vadd.f32 0.0, %v5875
    %5877 = vmatmul.bf16.gmra.mxu0 %v5781
    %v5878 = vpop.f32.mrf.mxu0
    %v5879 = vadd.f32 0.0, %v5878
    %v5880 = vpop.f32.mrf.mxu0
    %v5881 = vadd.f32 0.0, %v5880
    %5882 = vmatmul.bf16.gmra.mxu0 %v5782
    %v5883 = vpop.f32.mrf.mxu0
    %v5884 = vadd.f32 0.0, %v5883
    %v5885 = vpop.f32.mrf.mxu0
    %v5886 = vadd.f32 0.0, %v5885
    %5887 = vmatmul.bf16.gmra.mxu0 %v5783
    %v5888 = vpop.f32.mrf.mxu0
    %v5889 = vadd.f32 0.0, %v5888
    %v5890 = vpop.f32.mrf.mxu0
    %v5891 = vadd.f32 0.0, %v5890
    %5892 = vmatmul.bf16.gmra.mxu0 %v5784
    %v5893 = vpop.f32.mrf.mxu0
    %v5894 = vadd.f32 0.0, %v5893
    %v5895 = vpop.f32.mrf.mxu0
    %v5896 = vadd.f32 0.0, %v5895
    %5897 = vdwg.mxu0
    %v5898 = vadd.f32 %v5745, %v5859
    %v5899 = vadd.f32 %v5746, %v5861
    %v5900 = vadd.f32 %v5747, %v5864
    %v5901 = vadd.f32 %v5748, %v5866
    %v5902 = vadd.f32 %v5749, %v5869
    %v5903 = vadd.f32 %v5750, %v5871
    %v5904 = vadd.f32 %v5751, %v5874
    %v5905 = vadd.f32 %v5752, %v5876
    %v5906 = vadd.f32 %v5753, %v5879
    %v5907 = vadd.f32 %v5754, %v5881
    %v5908 = vadd.f32 %v5755, %v5884
    %v5909 = vadd.f32 %v5756, %v5886
    %v5910 = vadd.f32 %v5757, %v5889
    %v5911 = vadd.f32 %v5758, %v5891
    %v5912 = vadd.f32 %v5759, %v5894
    %v5913 = vadd.f32 %v5760, %v5896
    %s5914 = scalar_lea.vmem [#allocation2], 480
    %v5915 = vld [vmem:[%s5914] sm:$0xff]
    %v5916 = vld [vmem:[%s5914 + $0x8] sm:$0xff]
    %v5917 = vld [vmem:[%s5914 + $0x18] sm:$0xff]
    %v5918 = vld [vmem:[%s5914 + $0x20] sm:$0xff]
    %v5919 = vld [vmem:[%s5914 + $0x30] sm:$0xff]
    %v5920 = vld [vmem:[%s5914 + $0x38] sm:$0xff]
    %v5921 = vld [vmem:[%s5914 + $0x48] sm:$0xff]
    %v5922 = vld [vmem:[%s5914 + $0x50] sm:$0xff]
    %v5923 = vld [vmem:[%s5914 + $0x60] sm:$0xff]
    %v5924 = vld [vmem:[%s5914 + $0x68] sm:$0xff]
    %v5925 = vld [vmem:[%s5914 + $0x78] sm:$0xff]
    %v5926 = vld [vmem:[%s5914 + $0x80] sm:$0xff]
    %v5927 = vld [vmem:[%s5914 + $0x90] sm:$0xff]
    %v5928 = vld [vmem:[%s5914 + $0x98] sm:$0xff]
    %v5929 = vld [vmem:[%s5914 + $0xa8] sm:$0xff]
    %v5930 = vld [vmem:[%s5914 + $0xb0] sm:$0xff]
    %v5931 = vpack.c.bf16 %v5916, %v5915
    %v5932 = vpack.c.bf16 %v5918, %v5917
    %v5933 = vpack.c.bf16 %v5920, %v5919
    %v5934 = vpack.c.bf16 %v5922, %v5921
    %v5935 = vpack.c.bf16 %v5924, %v5923
    %v5936 = vpack.c.bf16 %v5926, %v5925
    %v5937 = vpack.c.bf16 %v5928, %v5927
    %v5938 = vpack.c.bf16 %v5930, %v5929
    %v5939 = vld [vmem:[%s1632] sm:$0xf]
    %v5940 = vld [vmem:[%s1632 + $0x4] sm:$0xf]
    %v5941 = vld [vmem:[%s1632 + $0x8] sm:$0xf]
    %v5942 = vld [vmem:[%s1632 + $0xc] sm:$0xf]
    %v5943 = vld [vmem:[%s1632 + $0x10] sm:$0xf]
    %v5944 = vld [vmem:[%s1632 + $0x14] sm:$0xf]
    %v5945 = vld [vmem:[%s1632 + $0x18] sm:$0xf]
    %v5946 = vld [vmem:[%s1632 + $0x1c] sm:$0xf]
    %v5947 = vld [vmem:[%s1632 + $0x20] sm:$0xf]
    %v5948 = vld [vmem:[%s1632 + $0x24] sm:$0xf]
    %v5949 = vld [vmem:[%s1632 + $0x28] sm:$0xf]
    %v5950 = vld [vmem:[%s1632 + $0x2c] sm:$0xf]
    %v5951 = vld [vmem:[%s1632 + $0x30] sm:$0xf]
    %v5952 = vld [vmem:[%s1632 + $0x34] sm:$0xf]
    %v5953 = vld [vmem:[%s1632 + $0x38] sm:$0xf]
    %v5954 = vld [vmem:[%s1632 + $0x3c] sm:$0xf]
    %v5971 = vunpack.c.l.b16 %v5939
    %v5972 = vunpack.c.l.b16 %v5940
    %v5973 = vunpack.c.l.b16 %v5941
    %v5974 = vunpack.c.l.b16 %v5942
    %v5975 = vunpack.c.l.b16 %v5943
    %v5976 = vunpack.c.l.b16 %v5944
    %v5977 = vunpack.c.l.b16 %v5945
    %v5978 = vunpack.c.l.b16 %v5946
    %v5979 = vunpack.c.l.b16 %v5947
    %v5980 = vunpack.c.l.b16 %v5948
    %v5981 = vunpack.c.l.b16 %v5949
    %v5982 = vunpack.c.l.b16 %v5950
    %v5983 = vunpack.c.l.b16 %v5951
    %v5984 = vunpack.c.l.b16 %v5952
    %v5985 = vunpack.c.l.b16 %v5953
    %v5986 = vunpack.c.l.b16 %v5954
    %v5987 = vpack.c.b16 %v5972, %v5971
    %v5988 = vpack.c.b16 %v5974, %v5973
    %v5989 = vpack.c.b16 %v5976, %v5975
    %v5990 = vpack.c.b16 %v5978, %v5977
    %v5991 = vpack.c.b16 %v5980, %v5979
    %v5992 = vpack.c.b16 %v5982, %v5981
    %v5993 = vpack.c.b16 %v5984, %v5983
    %v5994 = vpack.c.b16 %v5986, %v5985
    %6003 = vmatpush.bf16.msra.mxu0 %v5994
    %6004 = vmatpush.bf16.msra.mxu0 %v5993
    %6005 = vmatpush.bf16.msra.mxu0 %v5992
    %6006 = vmatpush.bf16.msra.mxu0 %v5991
    %6007 = vmatpush.bf16.msra.mxu0 %v5990
    %6008 = vmatpush.bf16.msra.mxu0 %v5989
    %6009 = vmatpush.bf16.msra.mxu0 %v5988
    %6010 = vmatpush.bf16.msra.mxu0 %v5987
    %6011 = vmatmul.bf16.gmra.mxu0 %v5931
    %v6012 = vpop.f32.mrf.mxu0
    %v6013 = vadd.f32 0.0, %v6012
    %v6014 = vpop.f32.mrf.mxu0
    %v6015 = vadd.f32 0.0, %v6014
    %6016 = vmatmul.bf16.gmra.mxu0 %v5932
    %v6017 = vpop.f32.mrf.mxu0
    %v6018 = vadd.f32 0.0, %v6017
    %v6019 = vpop.f32.mrf.mxu0
    %v6020 = vadd.f32 0.0, %v6019
    %6021 = vmatmul.bf16.gmra.mxu0 %v5933
    %v6022 = vpop.f32.mrf.mxu0
    %v6023 = vadd.f32 0.0, %v6022
    %v6024 = vpop.f32.mrf.mxu0
    %v6025 = vadd.f32 0.0, %v6024
    %6026 = vmatmul.bf16.gmra.mxu0 %v5934
    %v6027 = vpop.f32.mrf.mxu0
    %v6028 = vadd.f32 0.0, %v6027
    %v6029 = vpop.f32.mrf.mxu0
    %v6030 = vadd.f32 0.0, %v6029
    %6031 = vmatmul.bf16.gmra.mxu0 %v5935
    %v6032 = vpop.f32.mrf.mxu0
    %v6033 = vadd.f32 0.0, %v6032
    %v6034 = vpop.f32.mrf.mxu0
    %v6035 = vadd.f32 0.0, %v6034
    %6036 = vmatmul.bf16.gmra.mxu0 %v5936
    %v6037 = vpop.f32.mrf.mxu0
    %v6038 = vadd.f32 0.0, %v6037
    %v6039 = vpop.f32.mrf.mxu0
    %v6040 = vadd.f32 0.0, %v6039
    %6041 = vmatmul.bf16.gmra.mxu0 %v5937
    %v6042 = vpop.f32.mrf.mxu0
    %v6043 = vadd.f32 0.0, %v6042
    %v6044 = vpop.f32.mrf.mxu0
    %v6045 = vadd.f32 0.0, %v6044
    %6046 = vmatmul.bf16.gmra.mxu0 %v5938
    %v6047 = vpop.f32.mrf.mxu0
    %v6048 = vadd.f32 0.0, %v6047
    %v6049 = vpop.f32.mrf.mxu0
    %v6050 = vadd.f32 0.0, %v6049
    %6051 = vdwg.mxu0
    %v6052 = vadd.f32 %v5898, %v6013
    %v6053 = vadd.f32 %v5899, %v6015
    %v6054 = vadd.f32 %v5900, %v6018
    %v6055 = vadd.f32 %v5901, %v6020
    %v6056 = vadd.f32 %v5902, %v6023
    %v6057 = vadd.f32 %v5903, %v6025
    %v6058 = vadd.f32 %v5904, %v6028
    %v6059 = vadd.f32 %v5905, %v6030
    %v6060 = vadd.f32 %v5906, %v6033
    %v6061 = vadd.f32 %v5907, %v6035
    %v6062 = vadd.f32 %v5908, %v6038
    %v6063 = vadd.f32 %v5909, %v6040
    %v6064 = vadd.f32 %v5910, %v6043
    %v6065 = vadd.f32 %v5911, %v6045
    %v6066 = vadd.f32 %v5912, %v6048
    %v6067 = vadd.f32 %v5913, %v6050
    %v6068 = vld [vmem:[%s5914 + $0x1] sm:$0xff]
    %v6069 = vld [vmem:[%s5914 + $0x9] sm:$0xff]
    %v6070 = vld [vmem:[%s5914 + $0x19] sm:$0xff]
    %v6071 = vld [vmem:[%s5914 + $0x21] sm:$0xff]
    %v6072 = vld [vmem:[%s5914 + $0x31] sm:$0xff]
    %v6073 = vld [vmem:[%s5914 + $0x39] sm:$0xff]
    %v6074 = vld [vmem:[%s5914 + $0x49] sm:$0xff]
    %v6075 = vld [vmem:[%s5914 + $0x51] sm:$0xff]
    %v6076 = vld [vmem:[%s5914 + $0x61] sm:$0xff]
    %v6077 = vld [vmem:[%s5914 + $0x69] sm:$0xff]
    %v6078 = vld [vmem:[%s5914 + $0x79] sm:$0xff]
    %v6079 = vld [vmem:[%s5914 + $0x81] sm:$0xff]
    %v6080 = vld [vmem:[%s5914 + $0x91] sm:$0xff]
    %v6081 = vld [vmem:[%s5914 + $0x99] sm:$0xff]
    %v6082 = vld [vmem:[%s5914 + $0xa9] sm:$0xff]
    %v6083 = vld [vmem:[%s5914 + $0xb1] sm:$0xff]
    %v6084 = vpack.c.bf16 %v6069, %v6068
    %v6085 = vpack.c.bf16 %v6071, %v6070
    %v6086 = vpack.c.bf16 %v6073, %v6072
    %v6087 = vpack.c.bf16 %v6075, %v6074
    %v6088 = vpack.c.bf16 %v6077, %v6076
    %v6089 = vpack.c.bf16 %v6079, %v6078
    %v6090 = vpack.c.bf16 %v6081, %v6080
    %v6091 = vpack.c.bf16 %v6083, %v6082
    %v6092 = vld [vmem:[%s1786] sm:$0xf]
    %v6093 = vld [vmem:[%s1786 + $0x4] sm:$0xf]
    %v6094 = vld [vmem:[%s1786 + $0x8] sm:$0xf]
    %v6095 = vld [vmem:[%s1786 + $0xc] sm:$0xf]
    %v6096 = vld [vmem:[%s1786 + $0x10] sm:$0xf]
    %v6097 = vld [vmem:[%s1786 + $0x14] sm:$0xf]
    %v6098 = vld [vmem:[%s1786 + $0x18] sm:$0xf]
    %v6099 = vld [vmem:[%s1786 + $0x1c] sm:$0xf]
    %v6100 = vld [vmem:[%s1786 + $0x20] sm:$0xf]
    %v6101 = vld [vmem:[%s1786 + $0x24] sm:$0xf]
    %v6102 = vld [vmem:[%s1786 + $0x28] sm:$0xf]
    %v6103 = vld [vmem:[%s1786 + $0x2c] sm:$0xf]
    %v6104 = vld [vmem:[%s1786 + $0x30] sm:$0xf]
    %v6105 = vld [vmem:[%s1786 + $0x34] sm:$0xf]
    %v6106 = vld [vmem:[%s1786 + $0x38] sm:$0xf]
    %v6107 = vld [vmem:[%s1786 + $0x3c] sm:$0xf]
    %v6124 = vunpack.c.l.b16 %v6092
    %v6125 = vunpack.c.l.b16 %v6093
    %v6126 = vunpack.c.l.b16 %v6094
    %v6127 = vunpack.c.l.b16 %v6095
    %v6128 = vunpack.c.l.b16 %v6096
    %v6129 = vunpack.c.l.b16 %v6097
    %v6130 = vunpack.c.l.b16 %v6098
    %v6131 = vunpack.c.l.b16 %v6099
    %v6132 = vunpack.c.l.b16 %v6100
    %v6133 = vunpack.c.l.b16 %v6101
    %v6134 = vunpack.c.l.b16 %v6102
    %v6135 = vunpack.c.l.b16 %v6103
    %v6136 = vunpack.c.l.b16 %v6104
    %v6137 = vunpack.c.l.b16 %v6105
    %v6138 = vunpack.c.l.b16 %v6106
    %v6139 = vunpack.c.l.b16 %v6107
    %v6140 = vpack.c.b16 %v6125, %v6124
    %v6141 = vpack.c.b16 %v6127, %v6126
    %v6142 = vpack.c.b16 %v6129, %v6128
    %v6143 = vpack.c.b16 %v6131, %v6130
    %v6144 = vpack.c.b16 %v6133, %v6132
    %v6145 = vpack.c.b16 %v6135, %v6134
    %v6146 = vpack.c.b16 %v6137, %v6136
    %v6147 = vpack.c.b16 %v6139, %v6138
    %6156 = vmatpush.bf16.msra.mxu0 %v6147
    %6157 = vmatpush.bf16.msra.mxu0 %v6146
    %6158 = vmatpush.bf16.msra.mxu0 %v6145
    %6159 = vmatpush.bf16.msra.mxu0 %v6144
    %6160 = vmatpush.bf16.msra.mxu0 %v6143
    %6161 = vmatpush.bf16.msra.mxu0 %v6142
    %6162 = vmatpush.bf16.msra.mxu0 %v6141
    %6163 = vmatpush.bf16.msra.mxu0 %v6140
    %6164 = vmatmul.bf16.gmra.mxu0 %v6084
    %v6165 = vpop.f32.mrf.mxu0
    %v6166 = vadd.f32 0.0, %v6165
    %v6167 = vpop.f32.mrf.mxu0
    %v6168 = vadd.f32 0.0, %v6167
    %6169 = vmatmul.bf16.gmra.mxu0 %v6085
    %v6170 = vpop.f32.mrf.mxu0
    %v6171 = vadd.f32 0.0, %v6170
    %v6172 = vpop.f32.mrf.mxu0
    %v6173 = vadd.f32 0.0, %v6172
    %6174 = vmatmul.bf16.gmra.mxu0 %v6086
    %v6175 = vpop.f32.mrf.mxu0
    %v6176 = vadd.f32 0.0, %v6175
    %v6177 = vpop.f32.mrf.mxu0
    %v6178 = vadd.f32 0.0, %v6177
    %6179 = vmatmul.bf16.gmra.mxu0 %v6087
    %v6180 = vpop.f32.mrf.mxu0
    %v6181 = vadd.f32 0.0, %v6180
    %v6182 = vpop.f32.mrf.mxu0
    %v6183 = vadd.f32 0.0, %v6182
    %6184 = vmatmul.bf16.gmra.mxu0 %v6088
    %v6185 = vpop.f32.mrf.mxu0
    %v6186 = vadd.f32 0.0, %v6185
    %v6187 = vpop.f32.mrf.mxu0
    %v6188 = vadd.f32 0.0, %v6187
    %6189 = vmatmul.bf16.gmra.mxu0 %v6089
    %v6190 = vpop.f32.mrf.mxu0
    %v6191 = vadd.f32 0.0, %v6190
    %v6192 = vpop.f32.mrf.mxu0
    %v6193 = vadd.f32 0.0, %v6192
    %6194 = vmatmul.bf16.gmra.mxu0 %v6090
    %v6195 = vpop.f32.mrf.mxu0
    %v6196 = vadd.f32 0.0, %v6195
    %v6197 = vpop.f32.mrf.mxu0
    %v6198 = vadd.f32 0.0, %v6197
    %6199 = vmatmul.bf16.gmra.mxu0 %v6091
    %v6200 = vpop.f32.mrf.mxu0
    %v6201 = vadd.f32 0.0, %v6200
    %v6202 = vpop.f32.mrf.mxu0
    %v6203 = vadd.f32 0.0, %v6202
    %6204 = vdwg.mxu0
    %v6205 = vadd.f32 %v6052, %v6166
    %v6206 = vadd.f32 %v6053, %v6168
    %v6207 = vadd.f32 %v6054, %v6171
    %v6208 = vadd.f32 %v6055, %v6173
    %v6209 = vadd.f32 %v6056, %v6176
    %v6210 = vadd.f32 %v6057, %v6178
    %v6211 = vadd.f32 %v6058, %v6181
    %v6212 = vadd.f32 %v6059, %v6183
    %v6213 = vadd.f32 %v6060, %v6186
    %v6214 = vadd.f32 %v6061, %v6188
    %v6215 = vadd.f32 %v6062, %v6191
    %v6216 = vadd.f32 %v6063, %v6193
    %v6217 = vadd.f32 %v6064, %v6196
    %v6218 = vadd.f32 %v6065, %v6198
    %v6219 = vadd.f32 %v6066, %v6201
    %v6220 = vadd.f32 %v6067, %v6203
    %v6221 = vld [vmem:[%s5914 + $0x2] sm:$0xff]
    %v6222 = vld [vmem:[%s5914 + $0xa] sm:$0xff]
    %v6223 = vld [vmem:[%s5914 + $0x1a] sm:$0xff]
    %v6224 = vld [vmem:[%s5914 + $0x22] sm:$0xff]
    %v6225 = vld [vmem:[%s5914 + $0x32] sm:$0xff]
    %v6226 = vld [vmem:[%s5914 + $0x3a] sm:$0xff]
    %v6227 = vld [vmem:[%s5914 + $0x4a] sm:$0xff]
    %v6228 = vld [vmem:[%s5914 + $0x52] sm:$0xff]
    %v6229 = vld [vmem:[%s5914 + $0x62] sm:$0xff]
    %v6230 = vld [vmem:[%s5914 + $0x6a] sm:$0xff]
    %v6231 = vld [vmem:[%s5914 + $0x7a] sm:$0xff]
    %v6232 = vld [vmem:[%s5914 + $0x82] sm:$0xff]
    %v6233 = vld [vmem:[%s5914 + $0x92] sm:$0xff]
    %v6234 = vld [vmem:[%s5914 + $0x9a] sm:$0xff]
    %v6235 = vld [vmem:[%s5914 + $0xaa] sm:$0xff]
    %v6236 = vld [vmem:[%s5914 + $0xb2] sm:$0xff]
    %v6237 = vpack.c.bf16 %v6222, %v6221
    %v6238 = vpack.c.bf16 %v6224, %v6223
    %v6239 = vpack.c.bf16 %v6226, %v6225
    %v6240 = vpack.c.bf16 %v6228, %v6227
    %v6241 = vpack.c.bf16 %v6230, %v6229
    %v6242 = vpack.c.bf16 %v6232, %v6231
    %v6243 = vpack.c.bf16 %v6234, %v6233
    %v6244 = vpack.c.bf16 %v6236, %v6235
    %v6245 = vld [vmem:[%s1940] sm:$0xf]
    %v6246 = vld [vmem:[%s1940 + $0x4] sm:$0xf]
    %v6247 = vld [vmem:[%s1940 + $0x8] sm:$0xf]
    %v6248 = vld [vmem:[%s1940 + $0xc] sm:$0xf]
    %v6249 = vld [vmem:[%s1940 + $0x10] sm:$0xf]
    %v6250 = vld [vmem:[%s1940 + $0x14] sm:$0xf]
    %v6251 = vld [vmem:[%s1940 + $0x18] sm:$0xf]
    %v6252 = vld [vmem:[%s1940 + $0x1c] sm:$0xf]
    %v6253 = vld [vmem:[%s1940 + $0x20] sm:$0xf]
    %v6254 = vld [vmem:[%s1940 + $0x24] sm:$0xf]
    %v6255 = vld [vmem:[%s1940 + $0x28] sm:$0xf]
    %v6256 = vld [vmem:[%s1940 + $0x2c] sm:$0xf]
    %v6257 = vld [vmem:[%s1940 + $0x30] sm:$0xf]
    %v6258 = vld [vmem:[%s1940 + $0x34] sm:$0xf]
    %v6259 = vld [vmem:[%s1940 + $0x38] sm:$0xf]
    %v6260 = vld [vmem:[%s1940 + $0x3c] sm:$0xf]
    %v6277 = vunpack.c.l.b16 %v6245
    %v6278 = vunpack.c.l.b16 %v6246
    %v6279 = vunpack.c.l.b16 %v6247
    %v6280 = vunpack.c.l.b16 %v6248
    %v6281 = vunpack.c.l.b16 %v6249
    %v6282 = vunpack.c.l.b16 %v6250
    %v6283 = vunpack.c.l.b16 %v6251
    %v6284 = vunpack.c.l.b16 %v6252
    %v6285 = vunpack.c.l.b16 %v6253
    %v6286 = vunpack.c.l.b16 %v6254
    %v6287 = vunpack.c.l.b16 %v6255
    %v6288 = vunpack.c.l.b16 %v6256
    %v6289 = vunpack.c.l.b16 %v6257
    %v6290 = vunpack.c.l.b16 %v6258
    %v6291 = vunpack.c.l.b16 %v6259
    %v6292 = vunpack.c.l.b16 %v6260
    %v6293 = vpack.c.b16 %v6278, %v6277
    %v6294 = vpack.c.b16 %v6280, %v6279
    %v6295 = vpack.c.b16 %v6282, %v6281
    %v6296 = vpack.c.b16 %v6284, %v6283
    %v6297 = vpack.c.b16 %v6286, %v6285
    %v6298 = vpack.c.b16 %v6288, %v6287
    %v6299 = vpack.c.b16 %v6290, %v6289
    %v6300 = vpack.c.b16 %v6292, %v6291
    %6309 = vmatpush.bf16.msra.mxu0 %v6300
    %6310 = vmatpush.bf16.msra.mxu0 %v6299
    %6311 = vmatpush.bf16.msra.mxu0 %v6298
    %6312 = vmatpush.bf16.msra.mxu0 %v6297
    %6313 = vmatpush.bf16.msra.mxu0 %v6296
    %6314 = vmatpush.bf16.msra.mxu0 %v6295
    %6315 = vmatpush.bf16.msra.mxu0 %v6294
    %6316 = vmatpush.bf16.msra.mxu0 %v6293
    %6317 = vmatmul.bf16.gmra.mxu0 %v6237
    %v6318 = vpop.f32.mrf.mxu0
    %v6319 = vadd.f32 0.0, %v6318
    %v6320 = vpop.f32.mrf.mxu0
    %v6321 = vadd.f32 0.0, %v6320
    %6322 = vmatmul.bf16.gmra.mxu0 %v6238
    %v6323 = vpop.f32.mrf.mxu0
    %v6324 = vadd.f32 0.0, %v6323
    %v6325 = vpop.f32.mrf.mxu0
    %v6326 = vadd.f32 0.0, %v6325
    %6327 = vmatmul.bf16.gmra.mxu0 %v6239
    %v6328 = vpop.f32.mrf.mxu0
    %v6329 = vadd.f32 0.0, %v6328
    %v6330 = vpop.f32.mrf.mxu0
    %v6331 = vadd.f32 0.0, %v6330
    %6332 = vmatmul.bf16.gmra.mxu0 %v6240
    %v6333 = vpop.f32.mrf.mxu0
    %v6334 = vadd.f32 0.0, %v6333
    %v6335 = vpop.f32.mrf.mxu0
    %v6336 = vadd.f32 0.0, %v6335
    %6337 = vmatmul.bf16.gmra.mxu0 %v6241
    %v6338 = vpop.f32.mrf.mxu0
    %v6339 = vadd.f32 0.0, %v6338
    %v6340 = vpop.f32.mrf.mxu0
    %v6341 = vadd.f32 0.0, %v6340
    %6342 = vmatmul.bf16.gmra.mxu0 %v6242
    %v6343 = vpop.f32.mrf.mxu0
    %v6344 = vadd.f32 0.0, %v6343
    %v6345 = vpop.f32.mrf.mxu0
    %v6346 = vadd.f32 0.0, %v6345
    %6347 = vmatmul.bf16.gmra.mxu0 %v6243
    %v6348 = vpop.f32.mrf.mxu0
    %v6349 = vadd.f32 0.0, %v6348
    %v6350 = vpop.f32.mrf.mxu0
    %v6351 = vadd.f32 0.0, %v6350
    %6352 = vmatmul.bf16.gmra.mxu0 %v6244
    %v6353 = vpop.f32.mrf.mxu0
    %v6354 = vadd.f32 0.0, %v6353
    %v6355 = vpop.f32.mrf.mxu0
    %v6356 = vadd.f32 0.0, %v6355
    %6357 = vdwg.mxu0
    %v6358 = vadd.f32 %v6205, %v6319
    %v6359 = vadd.f32 %v6206, %v6321
    %v6360 = vadd.f32 %v6207, %v6324
    %v6361 = vadd.f32 %v6208, %v6326
    %v6362 = vadd.f32 %v6209, %v6329
    %v6363 = vadd.f32 %v6210, %v6331
    %v6364 = vadd.f32 %v6211, %v6334
    %v6365 = vadd.f32 %v6212, %v6336
    %v6366 = vadd.f32 %v6213, %v6339
    %v6367 = vadd.f32 %v6214, %v6341
    %v6368 = vadd.f32 %v6215, %v6344
    %v6369 = vadd.f32 %v6216, %v6346
    %v6370 = vadd.f32 %v6217, %v6349
    %v6371 = vadd.f32 %v6218, %v6351
    %v6372 = vadd.f32 %v6219, %v6354
    %v6373 = vadd.f32 %v6220, %v6356
    %v6374 = vxor.u32 %v6358, 2147483648
    %v6375 = vxor.u32 %v6359, 2147483648
    %v6376 = vxor.u32 %v6360, 2147483648
    %v6377 = vxor.u32 %v6361, 2147483648
    %v6378 = vxor.u32 %v6362, 2147483648
    %v6379 = vxor.u32 %v6363, 2147483648
    %v6380 = vxor.u32 %v6364, 2147483648
    %v6381 = vxor.u32 %v6365, 2147483648
    %v6382 = vxor.u32 %v6366, 2147483648
    %v6383 = vxor.u32 %v6367, 2147483648
    %v6384 = vxor.u32 %v6368, 2147483648
    %v6385 = vxor.u32 %v6369, 2147483648
    %v6386 = vxor.u32 %v6370, 2147483648
    %v6387 = vxor.u32 %v6371, 2147483648
    %v6388 = vxor.u32 %v6372, 2147483648
    %v6389 = vxor.u32 %v6373, 2147483648
    %v6390 = vmul.f32 %v6374, 1.442695
    %v6391 = vpow.pop %v6390
    %v6392 = vmul.f32 %v6375, 1.442695
    %v6393 = vpow.pop %v6392
    %v6394 = vmul.f32 %v6376, 1.442695
    %v6395 = vpow.pop %v6394
    %v6396 = vmul.f32 %v6377, 1.442695
    %v6397 = vpow.pop %v6396
    %v6398 = vmul.f32 %v6378, 1.442695
    %v6399 = vpow.pop %v6398
    %v6400 = vmul.f32 %v6379, 1.442695
    %v6401 = vpow.pop %v6400
    %v6402 = vmul.f32 %v6380, 1.442695
    %v6403 = vpow.pop %v6402
    %v6404 = vmul.f32 %v6381, 1.442695
    %v6405 = vpow.pop %v6404
    %v6406 = vmul.f32 %v6382, 1.442695
    %v6407 = vpow.pop %v6406
    %v6408 = vmul.f32 %v6383, 1.442695
    %v6409 = vpow.pop %v6408
    %v6410 = vmul.f32 %v6384, 1.442695
    %v6411 = vpow.pop %v6410
    %v6412 = vmul.f32 %v6385, 1.442695
    %v6413 = vpow.pop %v6412
    %v6414 = vmul.f32 %v6386, 1.442695
    %v6415 = vpow.pop %v6414
    %v6416 = vmul.f32 %v6387, 1.442695
    %v6417 = vpow.pop %v6416
    %v6418 = vmul.f32 %v6388, 1.442695
    %v6419 = vpow.pop %v6418
    %v6420 = vmul.f32 %v6389, 1.442695
    %v6421 = vpow.pop %v6420
    %v6422 = vadd.f32 %v6391, 1.0
    %v6423 = vadd.f32 %v6393, 1.0
    %v6424 = vadd.f32 %v6395, 1.0
    %v6425 = vadd.f32 %v6397, 1.0
    %v6426 = vadd.f32 %v6399, 1.0
    %v6427 = vadd.f32 %v6401, 1.0
    %v6428 = vadd.f32 %v6403, 1.0
    %v6429 = vadd.f32 %v6405, 1.0
    %v6430 = vadd.f32 %v6407, 1.0
    %v6431 = vadd.f32 %v6409, 1.0
    %v6432 = vadd.f32 %v6411, 1.0
    %v6433 = vadd.f32 %v6413, 1.0
    %v6434 = vadd.f32 %v6415, 1.0
    %v6435 = vadd.f32 %v6417, 1.0
    %v6436 = vadd.f32 %v6419, 1.0
    %v6437 = vadd.f32 %v6421, 1.0
    %v6438 = vrcp.pop %v6422
    %v6439 = vmul.f32 %v6422, %v6438
    %v6440 = vsub.f32 1.0, %v6439
    %v6441 = vmul.f32 %v6438, %v6440
    %v6442 = vadd.f32 %v6438, %v6441
    %vm6443 = vweird.f32 %v6422
    %vm6444 = vweird.f32 %v6438
    %vm6445 = vmor %vm6443, %vm6444
    %v6446 = vsel %vm6445, %v6438, %v6442
    %v6447 = vand.u32 2147483647, %v6422
    %vm6448 = vcmp.eq.f32.partialorder %v6447, 8.507059e+37
    %v6449 = vand.u32 %v6422, 2147483648
    %v6450 = vor.u32 1.1754944e-38, %v6449
    %v6451 = vsel %vm6448, %v6450, %v6446
    %v6452 = vmul.f32 1.0, %v6451
    %v6453 = vrcp.pop %v6423
    %v6454 = vmul.f32 %v6423, %v6453
    %v6455 = vsub.f32 1.0, %v6454
    %v6456 = vmul.f32 %v6453, %v6455
    %v6457 = vadd.f32 %v6453, %v6456
    %vm6458 = vweird.f32 %v6423
    %vm6459 = vweird.f32 %v6453
    %vm6460 = vmor %vm6458, %vm6459
    %v6461 = vsel %vm6460, %v6453, %v6457
    %v6462 = vand.u32 2147483647, %v6423
    %vm6463 = vcmp.eq.f32.partialorder %v6462, 8.507059e+37
    %v6464 = vand.u32 %v6423, 2147483648
    %v6465 = vor.u32 1.1754944e-38, %v6464
    %v6466 = vsel %vm6463, %v6465, %v6461
    %v6467 = vmul.f32 1.0, %v6466
    %v6468 = vrcp.pop %v6424
    %v6469 = vmul.f32 %v6424, %v6468
    %v6470 = vsub.f32 1.0, %v6469
    %v6471 = vmul.f32 %v6468, %v6470
    %v6472 = vadd.f32 %v6468, %v6471
    %vm6473 = vweird.f32 %v6424
    %vm6474 = vweird.f32 %v6468
    %vm6475 = vmor %vm6473, %vm6474
    %v6476 = vsel %vm6475, %v6468, %v6472
    %v6477 = vand.u32 2147483647, %v6424
    %vm6478 = vcmp.eq.f32.partialorder %v6477, 8.507059e+37
    %v6479 = vand.u32 %v6424, 2147483648
    %v6480 = vor.u32 1.1754944e-38, %v6479
    %v6481 = vsel %vm6478, %v6480, %v6476
    %v6482 = vmul.f32 1.0, %v6481
    %v6483 = vrcp.pop %v6425
    %v6484 = vmul.f32 %v6425, %v6483
    %v6485 = vsub.f32 1.0, %v6484
    %v6486 = vmul.f32 %v6483, %v6485
    %v6487 = vadd.f32 %v6483, %v6486
    %vm6488 = vweird.f32 %v6425
    %vm6489 = vweird.f32 %v6483
    %vm6490 = vmor %vm6488, %vm6489
    %v6491 = vsel %vm6490, %v6483, %v6487
    %v6492 = vand.u32 2147483647, %v6425
    %vm6493 = vcmp.eq.f32.partialorder %v6492, 8.507059e+37
    %v6494 = vand.u32 %v6425, 2147483648
    %v6495 = vor.u32 1.1754944e-38, %v6494
    %v6496 = vsel %vm6493, %v6495, %v6491
    %v6497 = vmul.f32 1.0, %v6496
    %v6498 = vrcp.pop %v6426
    %v6499 = vmul.f32 %v6426, %v6498
    %v6500 = vsub.f32 1.0, %v6499
    %v6501 = vmul.f32 %v6498, %v6500
    %v6502 = vadd.f32 %v6498, %v6501
    %vm6503 = vweird.f32 %v6426
    %vm6504 = vweird.f32 %v6498
    %vm6505 = vmor %vm6503, %vm6504
    %v6506 = vsel %vm6505, %v6498, %v6502
    %v6507 = vand.u32 2147483647, %v6426
    %vm6508 = vcmp.eq.f32.partialorder %v6507, 8.507059e+37
    %v6509 = vand.u32 %v6426, 2147483648
    %v6510 = vor.u32 1.1754944e-38, %v6509
    %v6511 = vsel %vm6508, %v6510, %v6506
    %v6512 = vmul.f32 1.0, %v6511
    %v6513 = vrcp.pop %v6427
    %v6514 = vmul.f32 %v6427, %v6513
    %v6515 = vsub.f32 1.0, %v6514
    %v6516 = vmul.f32 %v6513, %v6515
    %v6517 = vadd.f32 %v6513, %v6516
    %vm6518 = vweird.f32 %v6427
    %vm6519 = vweird.f32 %v6513
    %vm6520 = vmor %vm6518, %vm6519
    %v6521 = vsel %vm6520, %v6513, %v6517
    %v6522 = vand.u32 2147483647, %v6427
    %vm6523 = vcmp.eq.f32.partialorder %v6522, 8.507059e+37
    %v6524 = vand.u32 %v6427, 2147483648
    %v6525 = vor.u32 1.1754944e-38, %v6524
    %v6526 = vsel %vm6523, %v6525, %v6521
    %v6527 = vmul.f32 1.0, %v6526
    %v6528 = vrcp.pop %v6428
    %v6529 = vmul.f32 %v6428, %v6528
    %v6530 = vsub.f32 1.0, %v6529
    %v6531 = vmul.f32 %v6528, %v6530
    %v6532 = vadd.f32 %v6528, %v6531
    %vm6533 = vweird.f32 %v6428
    %vm6534 = vweird.f32 %v6528
    %vm6535 = vmor %vm6533, %vm6534
    %v6536 = vsel %vm6535, %v6528, %v6532
    %v6537 = vand.u32 2147483647, %v6428
    %vm6538 = vcmp.eq.f32.partialorder %v6537, 8.507059e+37
    %v6539 = vand.u32 %v6428, 2147483648
    %v6540 = vor.u32 1.1754944e-38, %v6539
    %v6541 = vsel %vm6538, %v6540, %v6536
    %v6542 = vmul.f32 1.0, %v6541
    %v6543 = vrcp.pop %v6429
    %v6544 = vmul.f32 %v6429, %v6543
    %v6545 = vsub.f32 1.0, %v6544
    %v6546 = vmul.f32 %v6543, %v6545
    %v6547 = vadd.f32 %v6543, %v6546
    %vm6548 = vweird.f32 %v6429
    %vm6549 = vweird.f32 %v6543
    %vm6550 = vmor %vm6548, %vm6549
    %v6551 = vsel %vm6550, %v6543, %v6547
    %v6552 = vand.u32 2147483647, %v6429
    %vm6553 = vcmp.eq.f32.partialorder %v6552, 8.507059e+37
    %v6554 = vand.u32 %v6429, 2147483648
    %v6555 = vor.u32 1.1754944e-38, %v6554
    %v6556 = vsel %vm6553, %v6555, %v6551
    %v6557 = vmul.f32 1.0, %v6556
    %v6558 = vrcp.pop %v6430
    %v6559 = vmul.f32 %v6430, %v6558
    %v6560 = vsub.f32 1.0, %v6559
    %v6561 = vmul.f32 %v6558, %v6560
    %v6562 = vadd.f32 %v6558, %v6561
    %vm6563 = vweird.f32 %v6430
    %vm6564 = vweird.f32 %v6558
    %vm6565 = vmor %vm6563, %vm6564
    %v6566 = vsel %vm6565, %v6558, %v6562
    %v6567 = vand.u32 2147483647, %v6430
    %vm6568 = vcmp.eq.f32.partialorder %v6567, 8.507059e+37
    %v6569 = vand.u32 %v6430, 2147483648
    %v6570 = vor.u32 1.1754944e-38, %v6569
    %v6571 = vsel %vm6568, %v6570, %v6566
    %v6572 = vmul.f32 1.0, %v6571
    %v6573 = vrcp.pop %v6431
    %v6574 = vmul.f32 %v6431, %v6573
    %v6575 = vsub.f32 1.0, %v6574
    %v6576 = vmul.f32 %v6573, %v6575
    %v6577 = vadd.f32 %v6573, %v6576
    %vm6578 = vweird.f32 %v6431
    %vm6579 = vweird.f32 %v6573
    %vm6580 = vmor %vm6578, %vm6579
    %v6581 = vsel %vm6580, %v6573, %v6577
    %v6582 = vand.u32 2147483647, %v6431
    %vm6583 = vcmp.eq.f32.partialorder %v6582, 8.507059e+37
    %v6584 = vand.u32 %v6431, 2147483648
    %v6585 = vor.u32 1.1754944e-38, %v6584
    %v6586 = vsel %vm6583, %v6585, %v6581
    %v6587 = vmul.f32 1.0, %v6586
    %v6588 = vrcp.pop %v6432
    %v6589 = vmul.f32 %v6432, %v6588
    %v6590 = vsub.f32 1.0, %v6589
    %v6591 = vmul.f32 %v6588, %v6590
    %v6592 = vadd.f32 %v6588, %v6591
    %vm6593 = vweird.f32 %v6432
    %vm6594 = vweird.f32 %v6588
    %vm6595 = vmor %vm6593, %vm6594
    %v6596 = vsel %vm6595, %v6588, %v6592
    %v6597 = vand.u32 2147483647, %v6432
    %vm6598 = vcmp.eq.f32.partialorder %v6597, 8.507059e+37
    %v6599 = vand.u32 %v6432, 2147483648
    %v6600 = vor.u32 1.1754944e-38, %v6599
    %v6601 = vsel %vm6598, %v6600, %v6596
    %v6602 = vmul.f32 1.0, %v6601
    %v6603 = vrcp.pop %v6433
    %v6604 = vmul.f32 %v6433, %v6603
    %v6605 = vsub.f32 1.0, %v6604
    %v6606 = vmul.f32 %v6603, %v6605
    %v6607 = vadd.f32 %v6603, %v6606
    %vm6608 = vweird.f32 %v6433
    %vm6609 = vweird.f32 %v6603
    %vm6610 = vmor %vm6608, %vm6609
    %v6611 = vsel %vm6610, %v6603, %v6607
    %v6612 = vand.u32 2147483647, %v6433
    %vm6613 = vcmp.eq.f32.partialorder %v6612, 8.507059e+37
    %v6614 = vand.u32 %v6433, 2147483648
    %v6615 = vor.u32 1.1754944e-38, %v6614
    %v6616 = vsel %vm6613, %v6615, %v6611
    %v6617 = vmul.f32 1.0, %v6616
    %v6618 = vrcp.pop %v6434
    %v6619 = vmul.f32 %v6434, %v6618
    %v6620 = vsub.f32 1.0, %v6619
    %v6621 = vmul.f32 %v6618, %v6620
    %v6622 = vadd.f32 %v6618, %v6621
    %vm6623 = vweird.f32 %v6434
    %vm6624 = vweird.f32 %v6618
    %vm6625 = vmor %vm6623, %vm6624
    %v6626 = vsel %vm6625, %v6618, %v6622
    %v6627 = vand.u32 2147483647, %v6434
    %vm6628 = vcmp.eq.f32.partialorder %v6627, 8.507059e+37
    %v6629 = vand.u32 %v6434, 2147483648
    %v6630 = vor.u32 1.1754944e-38, %v6629
    %v6631 = vsel %vm6628, %v6630, %v6626
    %v6632 = vmul.f32 1.0, %v6631
    %v6633 = vrcp.pop %v6435
    %v6634 = vmul.f32 %v6435, %v6633
    %v6635 = vsub.f32 1.0, %v6634
    %v6636 = vmul.f32 %v6633, %v6635
    %v6637 = vadd.f32 %v6633, %v6636
    %vm6638 = vweird.f32 %v6435
    %vm6639 = vweird.f32 %v6633
    %vm6640 = vmor %vm6638, %vm6639
    %v6641 = vsel %vm6640, %v6633, %v6637
    %v6642 = vand.u32 2147483647, %v6435
    %vm6643 = vcmp.eq.f32.partialorder %v6642, 8.507059e+37
    %v6644 = vand.u32 %v6435, 2147483648
    %v6645 = vor.u32 1.1754944e-38, %v6644
    %v6646 = vsel %vm6643, %v6645, %v6641
    %v6647 = vmul.f32 1.0, %v6646
    %v6648 = vrcp.pop %v6436
    %v6649 = vmul.f32 %v6436, %v6648
    %v6650 = vsub.f32 1.0, %v6649
    %v6651 = vmul.f32 %v6648, %v6650
    %v6652 = vadd.f32 %v6648, %v6651
    %vm6653 = vweird.f32 %v6436
    %vm6654 = vweird.f32 %v6648
    %vm6655 = vmor %vm6653, %vm6654
    %v6656 = vsel %vm6655, %v6648, %v6652
    %v6657 = vand.u32 2147483647, %v6436
    %vm6658 = vcmp.eq.f32.partialorder %v6657, 8.507059e+37
    %v6659 = vand.u32 %v6436, 2147483648
    %v6660 = vor.u32 1.1754944e-38, %v6659
    %v6661 = vsel %vm6658, %v6660, %v6656
    %v6662 = vmul.f32 1.0, %v6661
    %v6663 = vrcp.pop %v6437
    %v6664 = vmul.f32 %v6437, %v6663
    %v6665 = vsub.f32 1.0, %v6664
    %v6666 = vmul.f32 %v6663, %v6665
    %v6667 = vadd.f32 %v6663, %v6666
    %vm6668 = vweird.f32 %v6437
    %vm6669 = vweird.f32 %v6663
    %vm6670 = vmor %vm6668, %vm6669
    %v6671 = vsel %vm6670, %v6663, %v6667
    %v6672 = vand.u32 2147483647, %v6437
    %vm6673 = vcmp.eq.f32.partialorder %v6672, 8.507059e+37
    %v6674 = vand.u32 %v6437, 2147483648
    %v6675 = vor.u32 1.1754944e-38, %v6674
    %v6676 = vsel %vm6673, %v6675, %v6671
    %v6677 = vmul.f32 1.0, %v6676
    %6694 = vrot.lane.b32.xlu0 %v6358, 32
    %v6695 = vpop.permute.xlu0 %6694
    %6696 = vrot.lane.b32.xlu0 %v6359, 32
    %v6697 = vpop.permute.xlu0 %6696
    %6698 = vrot.lane.b32.xlu0 %v6360, 32
    %v6699 = vpop.permute.xlu0 %6698
    %6700 = vrot.lane.b32.xlu0 %v6361, 32
    %v6701 = vpop.permute.xlu0 %6700
    %6702 = vrot.lane.b32.xlu0 %v6362, 32
    %v6703 = vpop.permute.xlu0 %6702
    %6704 = vrot.lane.b32.xlu0 %v6363, 32
    %v6705 = vpop.permute.xlu0 %6704
    %6706 = vrot.lane.b32.xlu0 %v6364, 32
    %v6707 = vpop.permute.xlu0 %6706
    %6708 = vrot.lane.b32.xlu0 %v6365, 32
    %v6709 = vpop.permute.xlu0 %6708
    %6710 = vrot.lane.b32.xlu0 %v6366, 32
    %v6711 = vpop.permute.xlu0 %6710
    %6712 = vrot.lane.b32.xlu0 %v6367, 32
    %v6713 = vpop.permute.xlu0 %6712
    %6714 = vrot.lane.b32.xlu0 %v6368, 32
    %v6715 = vpop.permute.xlu0 %6714
    %6716 = vrot.lane.b32.xlu0 %v6369, 32
    %v6717 = vpop.permute.xlu0 %6716
    %6718 = vrot.lane.b32.xlu0 %v6370, 32
    %v6719 = vpop.permute.xlu0 %6718
    %6720 = vrot.lane.b32.xlu0 %v6371, 32
    %v6721 = vpop.permute.xlu0 %6720
    %6722 = vrot.lane.b32.xlu0 %v6372, 32
    %v6723 = vpop.permute.xlu0 %6722
    %6724 = vrot.lane.b32.xlu0 %v6373, 32
    %v6725 = vpop.permute.xlu0 %6724
    %v6742 = vmul.f32 %v6452, %v6695
    %v6743 = vmul.f32 %v6467, %v6697
    %v6744 = vmul.f32 %v6482, %v6699
    %v6745 = vmul.f32 %v6497, %v6701
    %v6746 = vmul.f32 %v6512, %v6703
    %v6747 = vmul.f32 %v6527, %v6705
    %v6748 = vmul.f32 %v6542, %v6707
    %v6749 = vmul.f32 %v6557, %v6709
    %v6750 = vmul.f32 %v6572, %v6711
    %v6751 = vmul.f32 %v6587, %v6713
    %v6752 = vmul.f32 %v6602, %v6715
    %v6753 = vmul.f32 %v6617, %v6717
    %v6754 = vmul.f32 %v6632, %v6719
    %v6755 = vmul.f32 %v6647, %v6721
    %v6756 = vmul.f32 %v6662, %v6723
    %v6757 = vmul.f32 %v6677, %v6725
    %6774 = vrot.lane.b32.xlu0 %v6742, 64
    %v6775 = vpop.permute.xlu0 %6774
    %6776 = vrot.lane.b32.xlu0 %v6743, 64
    %v6777 = vpop.permute.xlu0 %6776
    %6778 = vrot.lane.b32.xlu0 %v6744, 64
    %v6779 = vpop.permute.xlu0 %6778
    %6780 = vrot.lane.b32.xlu0 %v6745, 64
    %v6781 = vpop.permute.xlu0 %6780
    %6782 = vrot.lane.b32.xlu0 %v6746, 64
    %v6783 = vpop.permute.xlu0 %6782
    %6784 = vrot.lane.b32.xlu0 %v6747, 64
    %v6785 = vpop.permute.xlu0 %6784
    %6786 = vrot.lane.b32.xlu0 %v6748, 64
    %v6787 = vpop.permute.xlu0 %6786
    %6788 = vrot.lane.b32.xlu0 %v6749, 64
    %v6789 = vpop.permute.xlu0 %6788
    %6790 = vrot.lane.b32.xlu0 %v6750, 64
    %v6791 = vpop.permute.xlu0 %6790
    %6792 = vrot.lane.b32.xlu0 %v6751, 64
    %v6793 = vpop.permute.xlu0 %6792
    %6794 = vrot.lane.b32.xlu0 %v6752, 64
    %v6795 = vpop.permute.xlu0 %6794
    %6796 = vrot.lane.b32.xlu0 %v6753, 64
    %v6797 = vpop.permute.xlu0 %6796
    %6798 = vrot.lane.b32.xlu0 %v6754, 64
    %v6799 = vpop.permute.xlu0 %6798
    %6800 = vrot.lane.b32.xlu0 %v6755, 64
    %v6801 = vpop.permute.xlu0 %6800
    %6802 = vrot.lane.b32.xlu0 %v6756, 64
    %v6803 = vpop.permute.xlu0 %6802
    %6804 = vrot.lane.b32.xlu0 %v6757, 64
    %v6805 = vpop.permute.xlu0 %6804
    %v6822 = vadd.f32 %v6358, %v6775
    %v6823 = vadd.f32 %v6359, %v6777
    %v6824 = vadd.f32 %v6360, %v6779
    %v6825 = vadd.f32 %v6361, %v6781
    %v6826 = vadd.f32 %v6362, %v6783
    %v6827 = vadd.f32 %v6363, %v6785
    %v6828 = vadd.f32 %v6364, %v6787
    %v6829 = vadd.f32 %v6365, %v6789
    %v6830 = vadd.f32 %v6366, %v6791
    %v6831 = vadd.f32 %v6367, %v6793
    %v6832 = vadd.f32 %v6368, %v6795
    %v6833 = vadd.f32 %v6369, %v6797
    %v6834 = vadd.f32 %v6370, %v6799
    %v6835 = vadd.f32 %v6371, %v6801
    %v6836 = vadd.f32 %v6372, %v6803
    %v6837 = vadd.f32 %v6373, %v6805
    %v6838 = vtanh.pop %v6822
    %v6839 = vtanh.pop %v6823
    %v6840 = vtanh.pop %v6824
    %v6841 = vtanh.pop %v6825
    %v6842 = vtanh.pop %v6826
    %v6843 = vtanh.pop %v6827
    %v6844 = vtanh.pop %v6828
    %v6845 = vtanh.pop %v6829
    %v6846 = vtanh.pop %v6830
    %v6847 = vtanh.pop %v6831
    %v6848 = vtanh.pop %v6832
    %v6849 = vtanh.pop %v6833
    %v6850 = vtanh.pop %v6834
    %v6851 = vtanh.pop %v6835
    %v6852 = vtanh.pop %v6836
    %v6853 = vtanh.pop %v6837
    %v6854 = vld [vmem:[%s455] sm:$0xff]
    %v6855 = vld [vmem:[%s455 + $0x8] sm:$0xff]
    %v6856 = vld [vmem:[%s455 + $0x10] sm:$0xff]
    %v6857 = vld [vmem:[%s455 + $0x18] sm:$0xff]
    %v6858 = vld [vmem:[%s455 + $0x20] sm:$0xff]
    %v6859 = vld [vmem:[%s455 + $0x28] sm:$0xff]
    %v6860 = vld [vmem:[%s455 + $0x30] sm:$0xff]
    %v6861 = vld [vmem:[%s455 + $0x38] sm:$0xff]
    %v6862 = vld [vmem:[%s455 + $0x40] sm:$0xff]
    %v6863 = vld [vmem:[%s455 + $0x48] sm:$0xff]
    %v6864 = vld [vmem:[%s455 + $0x50] sm:$0xff]
    %v6865 = vld [vmem:[%s455 + $0x58] sm:$0xff]
    %v6866 = vld [vmem:[%s455 + $0x60] sm:$0xff]
    %v6867 = vld [vmem:[%s455 + $0x68] sm:$0xff]
    %v6868 = vld [vmem:[%s455 + $0x70] sm:$0xff]
    %v6869 = vld [vmem:[%s455 + $0x78] sm:$0xff]
    %6886 = vrot.lane.b32.xlu0 %v6854, 32
    %v6887 = vpop.permute.xlu0 %6886
    %6888 = vrot.lane.b32.xlu0 %v6855, 32
    %v6889 = vpop.permute.xlu0 %6888
    %6890 = vrot.lane.b32.xlu0 %v6856, 32
    %v6891 = vpop.permute.xlu0 %6890
    %6892 = vrot.lane.b32.xlu0 %v6857, 32
    %v6893 = vpop.permute.xlu0 %6892
    %6894 = vrot.lane.b32.xlu0 %v6858, 32
    %v6895 = vpop.permute.xlu0 %6894
    %6896 = vrot.lane.b32.xlu0 %v6859, 32
    %v6897 = vpop.permute.xlu0 %6896
    %6898 = vrot.lane.b32.xlu0 %v6860, 32
    %v6899 = vpop.permute.xlu0 %6898
    %6900 = vrot.lane.b32.xlu0 %v6861, 32
    %v6901 = vpop.permute.xlu0 %6900
    %6902 = vrot.lane.b32.xlu0 %v6862, 32
    %v6903 = vpop.permute.xlu0 %6902
    %6904 = vrot.lane.b32.xlu0 %v6863, 32
    %v6905 = vpop.permute.xlu0 %6904
    %6906 = vrot.lane.b32.xlu0 %v6864, 32
    %v6907 = vpop.permute.xlu0 %6906
    %6908 = vrot.lane.b32.xlu0 %v6865, 32
    %v6909 = vpop.permute.xlu0 %6908
    %6910 = vrot.lane.b32.xlu0 %v6866, 32
    %v6911 = vpop.permute.xlu0 %6910
    %6912 = vrot.lane.b32.xlu0 %v6867, 32
    %v6913 = vpop.permute.xlu0 %6912
    %6914 = vrot.lane.b32.xlu0 %v6868, 32
    %v6915 = vpop.permute.xlu0 %6914
    %6916 = vrot.lane.b32.xlu0 %v6869, 32
    %v6917 = vpop.permute.xlu0 %6916
    %v6934 = vmul.f32 %v6452, %v6887
    %v6935 = vmul.f32 %v6467, %v6889
    %v6936 = vmul.f32 %v6482, %v6891
    %v6937 = vmul.f32 %v6497, %v6893
    %v6938 = vmul.f32 %v6512, %v6895
    %v6939 = vmul.f32 %v6527, %v6897
    %v6940 = vmul.f32 %v6542, %v6899
    %v6941 = vmul.f32 %v6557, %v6901
    %v6942 = vmul.f32 %v6572, %v6903
    %v6943 = vmul.f32 %v6587, %v6905
    %v6944 = vmul.f32 %v6602, %v6907
    %v6945 = vmul.f32 %v6617, %v6909
    %v6946 = vmul.f32 %v6632, %v6911
    %v6947 = vmul.f32 %v6647, %v6913
    %v6948 = vmul.f32 %v6662, %v6915
    %v6949 = vmul.f32 %v6677, %v6917
    %v6950 = vsub.f32 1.0, %v6452
    %v6951 = vsub.f32 1.0, %v6467
    %v6952 = vsub.f32 1.0, %v6482
    %v6953 = vsub.f32 1.0, %v6497
    %v6954 = vsub.f32 1.0, %v6512
    %v6955 = vsub.f32 1.0, %v6527
    %v6956 = vsub.f32 1.0, %v6542
    %v6957 = vsub.f32 1.0, %v6557
    %v6958 = vsub.f32 1.0, %v6572
    %v6959 = vsub.f32 1.0, %v6587
    %v6960 = vsub.f32 1.0, %v6602
    %v6961 = vsub.f32 1.0, %v6617
    %v6962 = vsub.f32 1.0, %v6632
    %v6963 = vsub.f32 1.0, %v6647
    %v6964 = vsub.f32 1.0, %v6662
    %v6965 = vsub.f32 1.0, %v6677
    %6982 = vrot.lane.b32.xlu0 %v6838, 96
    %v6983 = vpop.permute.xlu0 %6982
    %6984 = vrot.lane.b32.xlu0 %v6839, 96
    %v6985 = vpop.permute.xlu0 %6984
    %6986 = vrot.lane.b32.xlu0 %v6840, 96
    %v6987 = vpop.permute.xlu0 %6986
    %6988 = vrot.lane.b32.xlu0 %v6841, 96
    %v6989 = vpop.permute.xlu0 %6988
    %6990 = vrot.lane.b32.xlu0 %v6842, 96
    %v6991 = vpop.permute.xlu0 %6990
    %6992 = vrot.lane.b32.xlu0 %v6843, 96
    %v6993 = vpop.permute.xlu0 %6992
    %6994 = vrot.lane.b32.xlu0 %v6844, 96
    %v6995 = vpop.permute.xlu0 %6994
    %6996 = vrot.lane.b32.xlu0 %v6845, 96
    %v6997 = vpop.permute.xlu0 %6996
    %6998 = vrot.lane.b32.xlu0 %v6846, 96
    %v6999 = vpop.permute.xlu0 %6998
    %7000 = vrot.lane.b32.xlu0 %v6847, 96
    %v7001 = vpop.permute.xlu0 %7000
    %7002 = vrot.lane.b32.xlu0 %v6848, 96
    %v7003 = vpop.permute.xlu0 %7002
    %7004 = vrot.lane.b32.xlu0 %v6849, 96
    %v7005 = vpop.permute.xlu0 %7004
    %7006 = vrot.lane.b32.xlu0 %v6850, 96
    %v7007 = vpop.permute.xlu0 %7006
    %7008 = vrot.lane.b32.xlu0 %v6851, 96
    %v7009 = vpop.permute.xlu0 %7008
    %7010 = vrot.lane.b32.xlu0 %v6852, 96
    %v7011 = vpop.permute.xlu0 %7010
    %7012 = vrot.lane.b32.xlu0 %v6853, 96
    %v7013 = vpop.permute.xlu0 %7012
    %v7030 = vmul.f32 %v6950, %v6983
    %v7031 = vmul.f32 %v6951, %v6985
    %v7032 = vmul.f32 %v6952, %v6987
    %v7033 = vmul.f32 %v6953, %v6989
    %v7034 = vmul.f32 %v6954, %v6991
    %v7035 = vmul.f32 %v6955, %v6993
    %v7036 = vmul.f32 %v6956, %v6995
    %v7037 = vmul.f32 %v6957, %v6997
    %v7038 = vmul.f32 %v6958, %v6999
    %v7039 = vmul.f32 %v6959, %v7001
    %v7040 = vmul.f32 %v6960, %v7003
    %v7041 = vmul.f32 %v6961, %v7005
    %v7042 = vmul.f32 %v6962, %v7007
    %v7043 = vmul.f32 %v6963, %v7009
    %v7044 = vmul.f32 %v6964, %v7011
    %v7045 = vmul.f32 %v6965, %v7013
    %v7046 = vadd.f32 %v6934, %v7030
    %v7047 = vadd.f32 %v6935, %v7031
    %v7048 = vadd.f32 %v6936, %v7032
    %v7049 = vadd.f32 %v6937, %v7033
    %v7050 = vadd.f32 %v6938, %v7034
    %v7051 = vadd.f32 %v6939, %v7035
    %v7052 = vadd.f32 %v6940, %v7036
    %v7053 = vadd.f32 %v6941, %v7037
    %v7054 = vadd.f32 %v6942, %v7038
    %v7055 = vadd.f32 %v6943, %v7039
    %v7056 = vadd.f32 %v6944, %v7040
    %v7057 = vadd.f32 %v6945, %v7041
    %v7058 = vadd.f32 %v6946, %v7042
    %v7059 = vadd.f32 %v6947, %v7043
    %v7060 = vadd.f32 %v6948, %v7044
    %v7061 = vadd.f32 %v6949, %v7045
    %7078 = vrot.lane.b32.xlu0 %v7046, 96
    %v7079 = vpop.permute.xlu0 %7078
    %7080 = vrot.lane.b32.xlu0 %v7047, 96
    %v7081 = vpop.permute.xlu0 %7080
    %7082 = vrot.lane.b32.xlu0 %v7048, 96
    %v7083 = vpop.permute.xlu0 %7082
    %7084 = vrot.lane.b32.xlu0 %v7049, 96
    %v7085 = vpop.permute.xlu0 %7084
    %7086 = vrot.lane.b32.xlu0 %v7050, 96
    %v7087 = vpop.permute.xlu0 %7086
    %7088 = vrot.lane.b32.xlu0 %v7051, 96
    %v7089 = vpop.permute.xlu0 %7088
    %7090 = vrot.lane.b32.xlu0 %v7052, 96
    %v7091 = vpop.permute.xlu0 %7090
    %7092 = vrot.lane.b32.xlu0 %v7053, 96
    %v7093 = vpop.permute.xlu0 %7092
    %7094 = vrot.lane.b32.xlu0 %v7054, 96
    %v7095 = vpop.permute.xlu0 %7094
    %7096 = vrot.lane.b32.xlu0 %v7055, 96
    %v7097 = vpop.permute.xlu0 %7096
    %7098 = vrot.lane.b32.xlu0 %v7056, 96
    %v7099 = vpop.permute.xlu0 %7098
    %7100 = vrot.lane.b32.xlu0 %v7057, 96
    %v7101 = vpop.permute.xlu0 %7100
    %7102 = vrot.lane.b32.xlu0 %v7058, 96
    %v7103 = vpop.permute.xlu0 %7102
    %7104 = vrot.lane.b32.xlu0 %v7059, 96
    %v7105 = vpop.permute.xlu0 %7104
    %7106 = vrot.lane.b32.xlu0 %v7060, 96
    %v7107 = vpop.permute.xlu0 %7106
    %7108 = vrot.lane.b32.xlu0 %v7061, 96
    %v7109 = vpop.permute.xlu0 %7108
    %s7126 = scalar_lea.vmem [#allocation3], 256
    %7127 = vst.msk [vmem:[%s7126] sm:$0xff] %vm155, %v7079
    %7128 = vst.msk [vmem:[%s7126 + $0x8] sm:$0xff] %vm155, %v7081
    %7129 = vst.msk [vmem:[%s7126 + $0x10] sm:$0xff] %vm155, %v7083
    %7130 = vst.msk [vmem:[%s7126 + $0x18] sm:$0xff] %vm155, %v7085
    %7131 = vst.msk [vmem:[%s7126 + $0x20] sm:$0xff] %vm155, %v7087
    %7132 = vst.msk [vmem:[%s7126 + $0x28] sm:$0xff] %vm155, %v7089
    %7133 = vst.msk [vmem:[%s7126 + $0x30] sm:$0xff] %vm155, %v7091
    %7134 = vst.msk [vmem:[%s7126 + $0x38] sm:$0xff] %vm155, %v7093
    %7135 = vst.msk [vmem:[%s7126 + $0x40] sm:$0xff] %vm155, %v7095
    %7136 = vst.msk [vmem:[%s7126 + $0x48] sm:$0xff] %vm155, %v7097
    %7137 = vst.msk [vmem:[%s7126 + $0x50] sm:$0xff] %vm155, %v7099
    %7138 = vst.msk [vmem:[%s7126 + $0x58] sm:$0xff] %vm155, %v7101
    %7139 = vst.msk [vmem:[%s7126 + $0x60] sm:$0xff] %vm155, %v7103
    %7140 = vst.msk [vmem:[%s7126 + $0x68] sm:$0xff] %vm155, %v7105
    %7141 = vst.msk [vmem:[%s7126 + $0x70] sm:$0xff] %vm155, %v7107
    %7142 = vst.msk [vmem:[%s7126 + $0x78] sm:$0xff] %vm155, %v7109
    %v7143 = vld [vmem:[%s3] sm:$0x1]
    %v7145 = vperm.slane %v7143, 0
    %s7147 = scalar_lea.vmem [#allocation2], 624
    %v7148 = vld [vmem:[%s7147] sm:$0xff]
    %v7149 = vld [vmem:[%s7147 + $0x8] sm:$0xff]
    %v7150 = vld [vmem:[%s7147 + $0x18] sm:$0xff]
    %v7151 = vld [vmem:[%s7147 + $0x20] sm:$0xff]
    %v7152 = vld [vmem:[%s7147 + $0x30] sm:$0xff]
    %v7153 = vld [vmem:[%s7147 + $0x38] sm:$0xff]
    %v7154 = vld [vmem:[%s7147 + $0x48] sm:$0xff]
    %v7155 = vld [vmem:[%s7147 + $0x50] sm:$0xff]
    %v7156 = vld [vmem:[%s7147 + $0x60] sm:$0xff]
    %v7157 = vld [vmem:[%s7147 + $0x68] sm:$0xff]
    %v7158 = vld [vmem:[%s7147 + $0x78] sm:$0xff]
    %v7159 = vld [vmem:[%s7147 + $0x80] sm:$0xff]
    %v7160 = vld [vmem:[%s7147 + $0x90] sm:$0xff]
    %v7161 = vld [vmem:[%s7147 + $0x98] sm:$0xff]
    %v7162 = vld [vmem:[%s7147 + $0xa8] sm:$0xff]
    %v7163 = vld [vmem:[%s7147 + $0xb0] sm:$0xff]
    %v7164 = vpack.c.bf16 %v7149, %v7148
    %v7165 = vpack.c.bf16 %v7151, %v7150
    %v7166 = vpack.c.bf16 %v7153, %v7152
    %v7167 = vpack.c.bf16 %v7155, %v7154
    %v7168 = vpack.c.bf16 %v7157, %v7156
    %v7169 = vpack.c.bf16 %v7159, %v7158
    %v7170 = vpack.c.bf16 %v7161, %v7160
    %v7171 = vpack.c.bf16 %v7163, %v7162
    %v7172 = vld [vmem:[%s2] sm:$0xf]
    %v7173 = vld [vmem:[%s2 + $0x4] sm:$0xf]
    %v7174 = vld [vmem:[%s2 + $0x8] sm:$0xf]
    %v7175 = vld [vmem:[%s2 + $0xc] sm:$0xf]
    %v7176 = vld [vmem:[%s2 + $0x10] sm:$0xf]
    %v7177 = vld [vmem:[%s2 + $0x14] sm:$0xf]
    %v7178 = vld [vmem:[%s2 + $0x18] sm:$0xf]
    %v7179 = vld [vmem:[%s2 + $0x1c] sm:$0xf]
    %v7180 = vld [vmem:[%s2 + $0x20] sm:$0xf]
    %v7181 = vld [vmem:[%s2 + $0x24] sm:$0xf]
    %v7182 = vld [vmem:[%s2 + $0x28] sm:$0xf]
    %v7183 = vld [vmem:[%s2 + $0x2c] sm:$0xf]
    %v7184 = vld [vmem:[%s2 + $0x30] sm:$0xf]
    %v7185 = vld [vmem:[%s2 + $0x34] sm:$0xf]
    %v7186 = vld [vmem:[%s2 + $0x38] sm:$0xf]
    %v7187 = vld [vmem:[%s2 + $0x3c] sm:$0xf]
    %v7204 = vunpack.c.l.b16 %v7172
    %v7205 = vunpack.c.l.b16 %v7173
    %v7206 = vunpack.c.l.b16 %v7174
    %v7207 = vunpack.c.l.b16 %v7175
    %v7208 = vunpack.c.l.b16 %v7176
    %v7209 = vunpack.c.l.b16 %v7177
    %v7210 = vunpack.c.l.b16 %v7178
    %v7211 = vunpack.c.l.b16 %v7179
    %v7212 = vunpack.c.l.b16 %v7180
    %v7213 = vunpack.c.l.b16 %v7181
    %v7214 = vunpack.c.l.b16 %v7182
    %v7215 = vunpack.c.l.b16 %v7183
    %v7216 = vunpack.c.l.b16 %v7184
    %v7217 = vunpack.c.l.b16 %v7185
    %v7218 = vunpack.c.l.b16 %v7186
    %v7219 = vunpack.c.l.b16 %v7187
    %v7220 = vpack.c.b16 %v7205, %v7204
    %v7221 = vpack.c.b16 %v7207, %v7206
    %v7222 = vpack.c.b16 %v7209, %v7208
    %v7223 = vpack.c.b16 %v7211, %v7210
    %v7224 = vpack.c.b16 %v7213, %v7212
    %v7225 = vpack.c.b16 %v7215, %v7214
    %v7226 = vpack.c.b16 %v7217, %v7216
    %v7227 = vpack.c.b16 %v7219, %v7218
    %7236 = vmatpush.bf16.msra.mxu0 %v7227
    %7237 = vmatpush.bf16.msra.mxu0 %v7226
    %7238 = vmatpush.bf16.msra.mxu0 %v7225
    %7239 = vmatpush.bf16.msra.mxu0 %v7224
    %7240 = vmatpush.bf16.msra.mxu0 %v7223
    %7241 = vmatpush.bf16.msra.mxu0 %v7222
    %7242 = vmatpush.bf16.msra.mxu0 %v7221
    %7243 = vmatpush.bf16.msra.mxu0 %v7220
    %7244 = vmatmul.bf16.gmra.mxu0 %v7164
    %v7245 = vpop.f32.mrf.mxu0
    %v7246 = vadd.f32 0.0, %v7245
    %v7247 = vpop.f32.mrf.mxu0
    %v7248 = vadd.f32 0.0, %v7247
    %7249 = vmatmul.bf16.gmra.mxu0 %v7165
    %v7250 = vpop.f32.mrf.mxu0
    %v7251 = vadd.f32 0.0, %v7250
    %v7252 = vpop.f32.mrf.mxu0
    %v7253 = vadd.f32 0.0, %v7252
    %7254 = vmatmul.bf16.gmra.mxu0 %v7166
    %v7255 = vpop.f32.mrf.mxu0
    %v7256 = vadd.f32 0.0, %v7255
    %v7257 = vpop.f32.mrf.mxu0
    %v7258 = vadd.f32 0.0, %v7257
    %7259 = vmatmul.bf16.gmra.mxu0 %v7167
    %v7260 = vpop.f32.mrf.mxu0
    %v7261 = vadd.f32 0.0, %v7260
    %v7262 = vpop.f32.mrf.mxu0
    %v7263 = vadd.f32 0.0, %v7262
    %7264 = vmatmul.bf16.gmra.mxu0 %v7168
    %v7265 = vpop.f32.mrf.mxu0
    %v7266 = vadd.f32 0.0, %v7265
    %v7267 = vpop.f32.mrf.mxu0
    %v7268 = vadd.f32 0.0, %v7267
    %7269 = vmatmul.bf16.gmra.mxu0 %v7169
    %v7270 = vpop.f32.mrf.mxu0
    %v7271 = vadd.f32 0.0, %v7270
    %v7272 = vpop.f32.mrf.mxu0
    %v7273 = vadd.f32 0.0, %v7272
    %7274 = vmatmul.bf16.gmra.mxu0 %v7170
    %v7275 = vpop.f32.mrf.mxu0
    %v7276 = vadd.f32 0.0, %v7275
    %v7277 = vpop.f32.mrf.mxu0
    %v7278 = vadd.f32 0.0, %v7277
    %7279 = vmatmul.bf16.gmra.mxu0 %v7171
    %v7280 = vpop.f32.mrf.mxu0
    %v7281 = vadd.f32 0.0, %v7280
    %v7282 = vpop.f32.mrf.mxu0
    %v7283 = vadd.f32 0.0, %v7282
    %7284 = vdwg.mxu0
    %v7285 = vadd.f32 %v7145, %v7246
    %v7286 = vadd.f32 %v7145, %v7248
    %v7287 = vadd.f32 %v7145, %v7251
    %v7288 = vadd.f32 %v7145, %v7253
    %v7289 = vadd.f32 %v7145, %v7256
    %v7290 = vadd.f32 %v7145, %v7258
    %v7291 = vadd.f32 %v7145, %v7261
    %v7292 = vadd.f32 %v7145, %v7263
    %v7293 = vadd.f32 %v7145, %v7266
    %v7294 = vadd.f32 %v7145, %v7268
    %v7295 = vadd.f32 %v7145, %v7271
    %v7296 = vadd.f32 %v7145, %v7273
    %v7297 = vadd.f32 %v7145, %v7276
    %v7298 = vadd.f32 %v7145, %v7278
    %v7299 = vadd.f32 %v7145, %v7281
    %v7300 = vadd.f32 %v7145, %v7283
    %v7301 = vld [vmem:[%s7147 + $0x1] sm:$0xff]
    %v7302 = vld [vmem:[%s7147 + $0x9] sm:$0xff]
    %v7303 = vld [vmem:[%s7147 + $0x19] sm:$0xff]
    %v7304 = vld [vmem:[%s7147 + $0x21] sm:$0xff]
    %v7305 = vld [vmem:[%s7147 + $0x31] sm:$0xff]
    %v7306 = vld [vmem:[%s7147 + $0x39] sm:$0xff]
    %v7307 = vld [vmem:[%s7147 + $0x49] sm:$0xff]
    %v7308 = vld [vmem:[%s7147 + $0x51] sm:$0xff]
    %v7309 = vld [vmem:[%s7147 + $0x61] sm:$0xff]
    %v7310 = vld [vmem:[%s7147 + $0x69] sm:$0xff]
    %v7311 = vld [vmem:[%s7147 + $0x79] sm:$0xff]
    %v7312 = vld [vmem:[%s7147 + $0x81] sm:$0xff]
    %v7313 = vld [vmem:[%s7147 + $0x91] sm:$0xff]
    %v7314 = vld [vmem:[%s7147 + $0x99] sm:$0xff]
    %v7315 = vld [vmem:[%s7147 + $0xa9] sm:$0xff]
    %v7316 = vld [vmem:[%s7147 + $0xb1] sm:$0xff]
    %v7317 = vpack.c.bf16 %v7302, %v7301
    %v7318 = vpack.c.bf16 %v7304, %v7303
    %v7319 = vpack.c.bf16 %v7306, %v7305
    %v7320 = vpack.c.bf16 %v7308, %v7307
    %v7321 = vpack.c.bf16 %v7310, %v7309
    %v7322 = vpack.c.bf16 %v7312, %v7311
    %v7323 = vpack.c.bf16 %v7314, %v7313
    %v7324 = vpack.c.bf16 %v7316, %v7315
    %v7325 = vld [vmem:[%s861] sm:$0xf]
    %v7326 = vld [vmem:[%s861 + $0x4] sm:$0xf]
    %v7327 = vld [vmem:[%s861 + $0x8] sm:$0xf]
    %v7328 = vld [vmem:[%s861 + $0xc] sm:$0xf]
    %v7329 = vld [vmem:[%s861 + $0x10] sm:$0xf]
    %v7330 = vld [vmem:[%s861 + $0x14] sm:$0xf]
    %v7331 = vld [vmem:[%s861 + $0x18] sm:$0xf]
    %v7332 = vld [vmem:[%s861 + $0x1c] sm:$0xf]
    %v7333 = vld [vmem:[%s861 + $0x20] sm:$0xf]
    %v7334 = vld [vmem:[%s861 + $0x24] sm:$0xf]
    %v7335 = vld [vmem:[%s861 + $0x28] sm:$0xf]
    %v7336 = vld [vmem:[%s861 + $0x2c] sm:$0xf]
    %v7337 = vld [vmem:[%s861 + $0x30] sm:$0xf]
    %v7338 = vld [vmem:[%s861 + $0x34] sm:$0xf]
    %v7339 = vld [vmem:[%s861 + $0x38] sm:$0xf]
    %v7340 = vld [vmem:[%s861 + $0x3c] sm:$0xf]
    %v7357 = vunpack.c.l.b16 %v7325
    %v7358 = vunpack.c.l.b16 %v7326
    %v7359 = vunpack.c.l.b16 %v7327
    %v7360 = vunpack.c.l.b16 %v7328
    %v7361 = vunpack.c.l.b16 %v7329
    %v7362 = vunpack.c.l.b16 %v7330
    %v7363 = vunpack.c.l.b16 %v7331
    %v7364 = vunpack.c.l.b16 %v7332
    %v7365 = vunpack.c.l.b16 %v7333
    %v7366 = vunpack.c.l.b16 %v7334
    %v7367 = vunpack.c.l.b16 %v7335
    %v7368 = vunpack.c.l.b16 %v7336
    %v7369 = vunpack.c.l.b16 %v7337
    %v7370 = vunpack.c.l.b16 %v7338
    %v7371 = vunpack.c.l.b16 %v7339
    %v7372 = vunpack.c.l.b16 %v7340
    %v7373 = vpack.c.b16 %v7358, %v7357
    %v7374 = vpack.c.b16 %v7360, %v7359
    %v7375 = vpack.c.b16 %v7362, %v7361
    %v7376 = vpack.c.b16 %v7364, %v7363
    %v7377 = vpack.c.b16 %v7366, %v7365
    %v7378 = vpack.c.b16 %v7368, %v7367
    %v7379 = vpack.c.b16 %v7370, %v7369
    %v7380 = vpack.c.b16 %v7372, %v7371
    %7389 = vmatpush.bf16.msra.mxu0 %v7380
    %7390 = vmatpush.bf16.msra.mxu0 %v7379
    %7391 = vmatpush.bf16.msra.mxu0 %v7378
    %7392 = vmatpush.bf16.msra.mxu0 %v7377
    %7393 = vmatpush.bf16.msra.mxu0 %v7376
    %7394 = vmatpush.bf16.msra.mxu0 %v7375
    %7395 = vmatpush.bf16.msra.mxu0 %v7374
    %7396 = vmatpush.bf16.msra.mxu0 %v7373
    %7397 = vmatmul.bf16.gmra.mxu0 %v7317
    %v7398 = vpop.f32.mrf.mxu0
    %v7399 = vadd.f32 0.0, %v7398
    %v7400 = vpop.f32.mrf.mxu0
    %v7401 = vadd.f32 0.0, %v7400
    %7402 = vmatmul.bf16.gmra.mxu0 %v7318
    %v7403 = vpop.f32.mrf.mxu0
    %v7404 = vadd.f32 0.0, %v7403
    %v7405 = vpop.f32.mrf.mxu0
    %v7406 = vadd.f32 0.0, %v7405
    %7407 = vmatmul.bf16.gmra.mxu0 %v7319
    %v7408 = vpop.f32.mrf.mxu0
    %v7409 = vadd.f32 0.0, %v7408
    %v7410 = vpop.f32.mrf.mxu0
    %v7411 = vadd.f32 0.0, %v7410
    %7412 = vmatmul.bf16.gmra.mxu0 %v7320
    %v7413 = vpop.f32.mrf.mxu0
    %v7414 = vadd.f32 0.0, %v7413
    %v7415 = vpop.f32.mrf.mxu0
    %v7416 = vadd.f32 0.0, %v7415
    %7417 = vmatmul.bf16.gmra.mxu0 %v7321
    %v7418 = vpop.f32.mrf.mxu0
    %v7419 = vadd.f32 0.0, %v7418
    %v7420 = vpop.f32.mrf.mxu0
    %v7421 = vadd.f32 0.0, %v7420
    %7422 = vmatmul.bf16.gmra.mxu0 %v7322
    %v7423 = vpop.f32.mrf.mxu0
    %v7424 = vadd.f32 0.0, %v7423
    %v7425 = vpop.f32.mrf.mxu0
    %v7426 = vadd.f32 0.0, %v7425
    %7427 = vmatmul.bf16.gmra.mxu0 %v7323
    %v7428 = vpop.f32.mrf.mxu0
    %v7429 = vadd.f32 0.0, %v7428
    %v7430 = vpop.f32.mrf.mxu0
    %v7431 = vadd.f32 0.0, %v7430
    %7432 = vmatmul.bf16.gmra.mxu0 %v7324
    %v7433 = vpop.f32.mrf.mxu0
    %v7434 = vadd.f32 0.0, %v7433
    %v7435 = vpop.f32.mrf.mxu0
    %v7436 = vadd.f32 0.0, %v7435
    %7437 = vdwg.mxu0
    %v7438 = vadd.f32 %v7285, %v7399
    %v7439 = vadd.f32 %v7286, %v7401
    %v7440 = vadd.f32 %v7287, %v7404
    %v7441 = vadd.f32 %v7288, %v7406
    %v7442 = vadd.f32 %v7289, %v7409
    %v7443 = vadd.f32 %v7290, %v7411
    %v7444 = vadd.f32 %v7291, %v7414
    %v7445 = vadd.f32 %v7292, %v7416
    %v7446 = vadd.f32 %v7293, %v7419
    %v7447 = vadd.f32 %v7294, %v7421
    %v7448 = vadd.f32 %v7295, %v7424
    %v7449 = vadd.f32 %v7296, %v7426
    %v7450 = vadd.f32 %v7297, %v7429
    %v7451 = vadd.f32 %v7298, %v7431
    %v7452 = vadd.f32 %v7299, %v7434
    %v7453 = vadd.f32 %v7300, %v7436
    %v7454 = vld [vmem:[%s7147 + $0x2] sm:$0xff]
    %v7455 = vld [vmem:[%s7147 + $0xa] sm:$0xff]
    %v7456 = vld [vmem:[%s7147 + $0x1a] sm:$0xff]
    %v7457 = vld [vmem:[%s7147 + $0x22] sm:$0xff]
    %v7458 = vld [vmem:[%s7147 + $0x32] sm:$0xff]
    %v7459 = vld [vmem:[%s7147 + $0x3a] sm:$0xff]
    %v7460 = vld [vmem:[%s7147 + $0x4a] sm:$0xff]
    %v7461 = vld [vmem:[%s7147 + $0x52] sm:$0xff]
    %v7462 = vld [vmem:[%s7147 + $0x62] sm:$0xff]
    %v7463 = vld [vmem:[%s7147 + $0x6a] sm:$0xff]
    %v7464 = vld [vmem:[%s7147 + $0x7a] sm:$0xff]
    %v7465 = vld [vmem:[%s7147 + $0x82] sm:$0xff]
    %v7466 = vld [vmem:[%s7147 + $0x92] sm:$0xff]
    %v7467 = vld [vmem:[%s7147 + $0x9a] sm:$0xff]
    %v7468 = vld [vmem:[%s7147 + $0xaa] sm:$0xff]
    %v7469 = vld [vmem:[%s7147 + $0xb2] sm:$0xff]
    %v7470 = vpack.c.bf16 %v7455, %v7454
    %v7471 = vpack.c.bf16 %v7457, %v7456
    %v7472 = vpack.c.bf16 %v7459, %v7458
    %v7473 = vpack.c.bf16 %v7461, %v7460
    %v7474 = vpack.c.bf16 %v7463, %v7462
    %v7475 = vpack.c.bf16 %v7465, %v7464
    %v7476 = vpack.c.bf16 %v7467, %v7466
    %v7477 = vpack.c.bf16 %v7469, %v7468
    %v7478 = vld [vmem:[%s1015] sm:$0xf]
    %v7479 = vld [vmem:[%s1015 + $0x4] sm:$0xf]
    %v7480 = vld [vmem:[%s1015 + $0x8] sm:$0xf]
    %v7481 = vld [vmem:[%s1015 + $0xc] sm:$0xf]
    %v7482 = vld [vmem:[%s1015 + $0x10] sm:$0xf]
    %v7483 = vld [vmem:[%s1015 + $0x14] sm:$0xf]
    %v7484 = vld [vmem:[%s1015 + $0x18] sm:$0xf]
    %v7485 = vld [vmem:[%s1015 + $0x1c] sm:$0xf]
    %v7486 = vld [vmem:[%s1015 + $0x20] sm:$0xf]
    %v7487 = vld [vmem:[%s1015 + $0x24] sm:$0xf]
    %v7488 = vld [vmem:[%s1015 + $0x28] sm:$0xf]
    %v7489 = vld [vmem:[%s1015 + $0x2c] sm:$0xf]
    %v7490 = vld [vmem:[%s1015 + $0x30] sm:$0xf]
    %v7491 = vld [vmem:[%s1015 + $0x34] sm:$0xf]
    %v7492 = vld [vmem:[%s1015 + $0x38] sm:$0xf]
    %v7493 = vld [vmem:[%s1015 + $0x3c] sm:$0xf]
    %v7510 = vunpack.c.l.b16 %v7478
    %v7511 = vunpack.c.l.b16 %v7479
    %v7512 = vunpack.c.l.b16 %v7480
    %v7513 = vunpack.c.l.b16 %v7481
    %v7514 = vunpack.c.l.b16 %v7482
    %v7515 = vunpack.c.l.b16 %v7483
    %v7516 = vunpack.c.l.b16 %v7484
    %v7517 = vunpack.c.l.b16 %v7485
    %v7518 = vunpack.c.l.b16 %v7486
    %v7519 = vunpack.c.l.b16 %v7487
    %v7520 = vunpack.c.l.b16 %v7488
    %v7521 = vunpack.c.l.b16 %v7489
    %v7522 = vunpack.c.l.b16 %v7490
    %v7523 = vunpack.c.l.b16 %v7491
    %v7524 = vunpack.c.l.b16 %v7492
    %v7525 = vunpack.c.l.b16 %v7493
    %v7526 = vpack.c.b16 %v7511, %v7510
    %v7527 = vpack.c.b16 %v7513, %v7512
    %v7528 = vpack.c.b16 %v7515, %v7514
    %v7529 = vpack.c.b16 %v7517, %v7516
    %v7530 = vpack.c.b16 %v7519, %v7518
    %v7531 = vpack.c.b16 %v7521, %v7520
    %v7532 = vpack.c.b16 %v7523, %v7522
    %v7533 = vpack.c.b16 %v7525, %v7524
    %7542 = vmatpush.bf16.msra.mxu0 %v7533
    %7543 = vmatpush.bf16.msra.mxu0 %v7532
    %7544 = vmatpush.bf16.msra.mxu0 %v7531
    %7545 = vmatpush.bf16.msra.mxu0 %v7530
    %7546 = vmatpush.bf16.msra.mxu0 %v7529
    %7547 = vmatpush.bf16.msra.mxu0 %v7528
    %7548 = vmatpush.bf16.msra.mxu0 %v7527
    %7549 = vmatpush.bf16.msra.mxu0 %v7526
    %7550 = vmatmul.bf16.gmra.mxu0 %v7470
    %v7551 = vpop.f32.mrf.mxu0
    %v7552 = vadd.f32 0.0, %v7551
    %v7553 = vpop.f32.mrf.mxu0
    %v7554 = vadd.f32 0.0, %v7553
    %7555 = vmatmul.bf16.gmra.mxu0 %v7471
    %v7556 = vpop.f32.mrf.mxu0
    %v7557 = vadd.f32 0.0, %v7556
    %v7558 = vpop.f32.mrf.mxu0
    %v7559 = vadd.f32 0.0, %v7558
    %7560 = vmatmul.bf16.gmra.mxu0 %v7472
    %v7561 = vpop.f32.mrf.mxu0
    %v7562 = vadd.f32 0.0, %v7561
    %v7563 = vpop.f32.mrf.mxu0
    %v7564 = vadd.f32 0.0, %v7563
    %7565 = vmatmul.bf16.gmra.mxu0 %v7473
    %v7566 = vpop.f32.mrf.mxu0
    %v7567 = vadd.f32 0.0, %v7566
    %v7568 = vpop.f32.mrf.mxu0
    %v7569 = vadd.f32 0.0, %v7568
    %7570 = vmatmul.bf16.gmra.mxu0 %v7474
    %v7571 = vpop.f32.mrf.mxu0
    %v7572 = vadd.f32 0.0, %v7571
    %v7573 = vpop.f32.mrf.mxu0
    %v7574 = vadd.f32 0.0, %v7573
    %7575 = vmatmul.bf16.gmra.mxu0 %v7475
    %v7576 = vpop.f32.mrf.mxu0
    %v7577 = vadd.f32 0.0, %v7576
    %v7578 = vpop.f32.mrf.mxu0
    %v7579 = vadd.f32 0.0, %v7578
    %7580 = vmatmul.bf16.gmra.mxu0 %v7476
    %v7581 = vpop.f32.mrf.mxu0
    %v7582 = vadd.f32 0.0, %v7581
    %v7583 = vpop.f32.mrf.mxu0
    %v7584 = vadd.f32 0.0, %v7583
    %7585 = vmatmul.bf16.gmra.mxu0 %v7477
    %v7586 = vpop.f32.mrf.mxu0
    %v7587 = vadd.f32 0.0, %v7586
    %v7588 = vpop.f32.mrf.mxu0
    %v7589 = vadd.f32 0.0, %v7588
    %7590 = vdwg.mxu0
    %v7591 = vadd.f32 %v7438, %v7552
    %v7592 = vadd.f32 %v7439, %v7554
    %v7593 = vadd.f32 %v7440, %v7557
    %v7594 = vadd.f32 %v7441, %v7559
    %v7595 = vadd.f32 %v7442, %v7562
    %v7596 = vadd.f32 %v7443, %v7564
    %v7597 = vadd.f32 %v7444, %v7567
    %v7598 = vadd.f32 %v7445, %v7569
    %v7599 = vadd.f32 %v7446, %v7572
    %v7600 = vadd.f32 %v7447, %v7574
    %v7601 = vadd.f32 %v7448, %v7577
    %v7602 = vadd.f32 %v7449, %v7579
    %v7603 = vadd.f32 %v7450, %v7582
    %v7604 = vadd.f32 %v7451, %v7584
    %v7605 = vadd.f32 %v7452, %v7587
    %v7606 = vadd.f32 %v7453, %v7589
    %s7607 = scalar_lea.vmem [#allocation2], 648
    %v7608 = vld [vmem:[%s7607] sm:$0xff]
    %v7609 = vld [vmem:[%s7607 + $0x8] sm:$0xff]
    %v7610 = vld [vmem:[%s7607 + $0x18] sm:$0xff]
    %v7611 = vld [vmem:[%s7607 + $0x20] sm:$0xff]
    %v7612 = vld [vmem:[%s7607 + $0x30] sm:$0xff]
    %v7613 = vld [vmem:[%s7607 + $0x38] sm:$0xff]
    %v7614 = vld [vmem:[%s7607 + $0x48] sm:$0xff]
    %v7615 = vld [vmem:[%s7607 + $0x50] sm:$0xff]
    %v7616 = vld [vmem:[%s7607 + $0x60] sm:$0xff]
    %v7617 = vld [vmem:[%s7607 + $0x68] sm:$0xff]
    %v7618 = vld [vmem:[%s7607 + $0x78] sm:$0xff]
    %v7619 = vld [vmem:[%s7607 + $0x80] sm:$0xff]
    %v7620 = vld [vmem:[%s7607 + $0x90] sm:$0xff]
    %v7621 = vld [vmem:[%s7607 + $0x98] sm:$0xff]
    %v7622 = vld [vmem:[%s7607 + $0xa8] sm:$0xff]
    %v7623 = vld [vmem:[%s7607 + $0xb0] sm:$0xff]
    %v7624 = vpack.c.bf16 %v7609, %v7608
    %v7625 = vpack.c.bf16 %v7611, %v7610
    %v7626 = vpack.c.bf16 %v7613, %v7612
    %v7627 = vpack.c.bf16 %v7615, %v7614
    %v7628 = vpack.c.bf16 %v7617, %v7616
    %v7629 = vpack.c.bf16 %v7619, %v7618
    %v7630 = vpack.c.bf16 %v7621, %v7620
    %v7631 = vpack.c.bf16 %v7623, %v7622
    %v7632 = vld [vmem:[%s1169] sm:$0xf]
    %v7633 = vld [vmem:[%s1169 + $0x4] sm:$0xf]
    %v7634 = vld [vmem:[%s1169 + $0x8] sm:$0xf]
    %v7635 = vld [vmem:[%s1169 + $0xc] sm:$0xf]
    %v7636 = vld [vmem:[%s1169 + $0x10] sm:$0xf]
    %v7637 = vld [vmem:[%s1169 + $0x14] sm:$0xf]
    %v7638 = vld [vmem:[%s1169 + $0x18] sm:$0xf]
    %v7639 = vld [vmem:[%s1169 + $0x1c] sm:$0xf]
    %v7640 = vld [vmem:[%s1169 + $0x20] sm:$0xf]
    %v7641 = vld [vmem:[%s1169 + $0x24] sm:$0xf]
    %v7642 = vld [vmem:[%s1169 + $0x28] sm:$0xf]
    %v7643 = vld [vmem:[%s1169 + $0x2c] sm:$0xf]
    %v7644 = vld [vmem:[%s1169 + $0x30] sm:$0xf]
    %v7645 = vld [vmem:[%s1169 + $0x34] sm:$0xf]
    %v7646 = vld [vmem:[%s1169 + $0x38] sm:$0xf]
    %v7647 = vld [vmem:[%s1169 + $0x3c] sm:$0xf]
    %v7664 = vunpack.c.l.b16 %v7632
    %v7665 = vunpack.c.l.b16 %v7633
    %v7666 = vunpack.c.l.b16 %v7634
    %v7667 = vunpack.c.l.b16 %v7635
    %v7668 = vunpack.c.l.b16 %v7636
    %v7669 = vunpack.c.l.b16 %v7637
    %v7670 = vunpack.c.l.b16 %v7638
    %v7671 = vunpack.c.l.b16 %v7639
    %v7672 = vunpack.c.l.b16 %v7640
    %v7673 = vunpack.c.l.b16 %v7641
    %v7674 = vunpack.c.l.b16 %v7642
    %v7675 = vunpack.c.l.b16 %v7643
    %v7676 = vunpack.c.l.b16 %v7644
    %v7677 = vunpack.c.l.b16 %v7645
    %v7678 = vunpack.c.l.b16 %v7646
    %v7679 = vunpack.c.l.b16 %v7647
    %v7680 = vpack.c.b16 %v7665, %v7664
    %v7681 = vpack.c.b16 %v7667, %v7666
    %v7682 = vpack.c.b16 %v7669, %v7668
    %v7683 = vpack.c.b16 %v7671, %v7670
    %v7684 = vpack.c.b16 %v7673, %v7672
    %v7685 = vpack.c.b16 %v7675, %v7674
    %v7686 = vpack.c.b16 %v7677, %v7676
    %v7687 = vpack.c.b16 %v7679, %v7678
    %7696 = vmatpush.bf16.msra.mxu0 %v7687
    %7697 = vmatpush.bf16.msra.mxu0 %v7686
    %7698 = vmatpush.bf16.msra.mxu0 %v7685
    %7699 = vmatpush.bf16.msra.mxu0 %v7684
    %7700 = vmatpush.bf16.msra.mxu0 %v7683
    %7701 = vmatpush.bf16.msra.mxu0 %v7682
    %7702 = vmatpush.bf16.msra.mxu0 %v7681
    %7703 = vmatpush.bf16.msra.mxu0 %v7680
    %7704 = vmatmul.bf16.gmra.mxu0 %v7624
    %v7705 = vpop.f32.mrf.mxu0
    %v7706 = vadd.f32 0.0, %v7705
    %v7707 = vpop.f32.mrf.mxu0
    %v7708 = vadd.f32 0.0, %v7707
    %7709 = vmatmul.bf16.gmra.mxu0 %v7625
    %v7710 = vpop.f32.mrf.mxu0
    %v7711 = vadd.f32 0.0, %v7710
    %v7712 = vpop.f32.mrf.mxu0
    %v7713 = vadd.f32 0.0, %v7712
    %7714 = vmatmul.bf16.gmra.mxu0 %v7626
    %v7715 = vpop.f32.mrf.mxu0
    %v7716 = vadd.f32 0.0, %v7715
    %v7717 = vpop.f32.mrf.mxu0
    %v7718 = vadd.f32 0.0, %v7717
    %7719 = vmatmul.bf16.gmra.mxu0 %v7627
    %v7720 = vpop.f32.mrf.mxu0
    %v7721 = vadd.f32 0.0, %v7720
    %v7722 = vpop.f32.mrf.mxu0
    %v7723 = vadd.f32 0.0, %v7722
    %7724 = vmatmul.bf16.gmra.mxu0 %v7628
    %v7725 = vpop.f32.mrf.mxu0
    %v7726 = vadd.f32 0.0, %v7725
    %v7727 = vpop.f32.mrf.mxu0
    %v7728 = vadd.f32 0.0, %v7727
    %7729 = vmatmul.bf16.gmra.mxu0 %v7629
    %v7730 = vpop.f32.mrf.mxu0
    %v7731 = vadd.f32 0.0, %v7730
    %v7732 = vpop.f32.mrf.mxu0
    %v7733 = vadd.f32 0.0, %v7732
    %7734 = vmatmul.bf16.gmra.mxu0 %v7630
    %v7735 = vpop.f32.mrf.mxu0
    %v7736 = vadd.f32 0.0, %v7735
    %v7737 = vpop.f32.mrf.mxu0
    %v7738 = vadd.f32 0.0, %v7737
    %7739 = vmatmul.bf16.gmra.mxu0 %v7631
    %v7740 = vpop.f32.mrf.mxu0
    %v7741 = vadd.f32 0.0, %v7740
    %v7742 = vpop.f32.mrf.mxu0
    %v7743 = vadd.f32 0.0, %v7742
    %7744 = vdwg.mxu0
    %v7745 = vadd.f32 %v7591, %v7706
    %v7746 = vadd.f32 %v7592, %v7708
    %v7747 = vadd.f32 %v7593, %v7711
    %v7748 = vadd.f32 %v7594, %v7713
    %v7749 = vadd.f32 %v7595, %v7716
    %v7750 = vadd.f32 %v7596, %v7718
    %v7751 = vadd.f32 %v7597, %v7721
    %v7752 = vadd.f32 %v7598, %v7723
    %v7753 = vadd.f32 %v7599, %v7726
    %v7754 = vadd.f32 %v7600, %v7728
    %v7755 = vadd.f32 %v7601, %v7731
    %v7756 = vadd.f32 %v7602, %v7733
    %v7757 = vadd.f32 %v7603, %v7736
    %v7758 = vadd.f32 %v7604, %v7738
    %v7759 = vadd.f32 %v7605, %v7741
    %v7760 = vadd.f32 %v7606, %v7743
    %v7761 = vld [vmem:[%s7607 + $0x1] sm:$0xff]
    %v7762 = vld [vmem:[%s7607 + $0x9] sm:$0xff]
    %v7763 = vld [vmem:[%s7607 + $0x19] sm:$0xff]
    %v7764 = vld [vmem:[%s7607 + $0x21] sm:$0xff]
    %v7765 = vld [vmem:[%s7607 + $0x31] sm:$0xff]
    %v7766 = vld [vmem:[%s7607 + $0x39] sm:$0xff]
    %v7767 = vld [vmem:[%s7607 + $0x49] sm:$0xff]
    %v7768 = vld [vmem:[%s7607 + $0x51] sm:$0xff]
    %v7769 = vld [vmem:[%s7607 + $0x61] sm:$0xff]
    %v7770 = vld [vmem:[%s7607 + $0x69] sm:$0xff]
    %v7771 = vld [vmem:[%s7607 + $0x79] sm:$0xff]
    %v7772 = vld [vmem:[%s7607 + $0x81] sm:$0xff]
    %v7773 = vld [vmem:[%s7607 + $0x91] sm:$0xff]
    %v7774 = vld [vmem:[%s7607 + $0x99] sm:$0xff]
    %v7775 = vld [vmem:[%s7607 + $0xa9] sm:$0xff]
    %v7776 = vld [vmem:[%s7607 + $0xb1] sm:$0xff]
    %v7777 = vpack.c.bf16 %v7762, %v7761
    %v7778 = vpack.c.bf16 %v7764, %v7763
    %v7779 = vpack.c.bf16 %v7766, %v7765
    %v7780 = vpack.c.bf16 %v7768, %v7767
    %v7781 = vpack.c.bf16 %v7770, %v7769
    %v7782 = vpack.c.bf16 %v7772, %v7771
    %v7783 = vpack.c.bf16 %v7774, %v7773
    %v7784 = vpack.c.bf16 %v7776, %v7775
    %v7785 = vld [vmem:[%s1323] sm:$0xf]
    %v7786 = vld [vmem:[%s1323 + $0x4] sm:$0xf]
    %v7787 = vld [vmem:[%s1323 + $0x8] sm:$0xf]
    %v7788 = vld [vmem:[%s1323 + $0xc] sm:$0xf]
    %v7789 = vld [vmem:[%s1323 + $0x10] sm:$0xf]
    %v7790 = vld [vmem:[%s1323 + $0x14] sm:$0xf]
    %v7791 = vld [vmem:[%s1323 + $0x18] sm:$0xf]
    %v7792 = vld [vmem:[%s1323 + $0x1c] sm:$0xf]
    %v7793 = vld [vmem:[%s1323 + $0x20] sm:$0xf]
    %v7794 = vld [vmem:[%s1323 + $0x24] sm:$0xf]
    %v7795 = vld [vmem:[%s1323 + $0x28] sm:$0xf]
    %v7796 = vld [vmem:[%s1323 + $0x2c] sm:$0xf]
    %v7797 = vld [vmem:[%s1323 + $0x30] sm:$0xf]
    %v7798 = vld [vmem:[%s1323 + $0x34] sm:$0xf]
    %v7799 = vld [vmem:[%s1323 + $0x38] sm:$0xf]
    %v7800 = vld [vmem:[%s1323 + $0x3c] sm:$0xf]
    %v7817 = vunpack.c.l.b16 %v7785
    %v7818 = vunpack.c.l.b16 %v7786
    %v7819 = vunpack.c.l.b16 %v7787
    %v7820 = vunpack.c.l.b16 %v7788
    %v7821 = vunpack.c.l.b16 %v7789
    %v7822 = vunpack.c.l.b16 %v7790
    %v7823 = vunpack.c.l.b16 %v7791
    %v7824 = vunpack.c.l.b16 %v7792
    %v7825 = vunpack.c.l.b16 %v7793
    %v7826 = vunpack.c.l.b16 %v7794
    %v7827 = vunpack.c.l.b16 %v7795
    %v7828 = vunpack.c.l.b16 %v7796
    %v7829 = vunpack.c.l.b16 %v7797
    %v7830 = vunpack.c.l.b16 %v7798
    %v7831 = vunpack.c.l.b16 %v7799
    %v7832 = vunpack.c.l.b16 %v7800
    %v7833 = vpack.c.b16 %v7818, %v7817
    %v7834 = vpack.c.b16 %v7820, %v7819
    %v7835 = vpack.c.b16 %v7822, %v7821
    %v7836 = vpack.c.b16 %v7824, %v7823
    %v7837 = vpack.c.b16 %v7826, %v7825
    %v7838 = vpack.c.b16 %v7828, %v7827
    %v7839 = vpack.c.b16 %v7830, %v7829
    %v7840 = vpack.c.b16 %v7832, %v7831
    %7849 = vmatpush.bf16.msra.mxu0 %v7840
    %7850 = vmatpush.bf16.msra.mxu0 %v7839
    %7851 = vmatpush.bf16.msra.mxu0 %v7838
    %7852 = vmatpush.bf16.msra.mxu0 %v7837
    %7853 = vmatpush.bf16.msra.mxu0 %v7836
    %7854 = vmatpush.bf16.msra.mxu0 %v7835
    %7855 = vmatpush.bf16.msra.mxu0 %v7834
    %7856 = vmatpush.bf16.msra.mxu0 %v7833
    %7857 = vmatmul.bf16.gmra.mxu0 %v7777
    %v7858 = vpop.f32.mrf.mxu0
    %v7859 = vadd.f32 0.0, %v7858
    %v7860 = vpop.f32.mrf.mxu0
    %v7861 = vadd.f32 0.0, %v7860
    %7862 = vmatmul.bf16.gmra.mxu0 %v7778
    %v7863 = vpop.f32.mrf.mxu0
    %v7864 = vadd.f32 0.0, %v7863
    %v7865 = vpop.f32.mrf.mxu0
    %v7866 = vadd.f32 0.0, %v7865
    %7867 = vmatmul.bf16.gmra.mxu0 %v7779
    %v7868 = vpop.f32.mrf.mxu0
    %v7869 = vadd.f32 0.0, %v7868
    %v7870 = vpop.f32.mrf.mxu0
    %v7871 = vadd.f32 0.0, %v7870
    %7872 = vmatmul.bf16.gmra.mxu0 %v7780
    %v7873 = vpop.f32.mrf.mxu0
    %v7874 = vadd.f32 0.0, %v7873
    %v7875 = vpop.f32.mrf.mxu0
    %v7876 = vadd.f32 0.0, %v7875
    %7877 = vmatmul.bf16.gmra.mxu0 %v7781
    %v7878 = vpop.f32.mrf.mxu0
    %v7879 = vadd.f32 0.0, %v7878
    %v7880 = vpop.f32.mrf.mxu0
    %v7881 = vadd.f32 0.0, %v7880
    %7882 = vmatmul.bf16.gmra.mxu0 %v7782
    %v7883 = vpop.f32.mrf.mxu0
    %v7884 = vadd.f32 0.0, %v7883
    %v7885 = vpop.f32.mrf.mxu0
    %v7886 = vadd.f32 0.0, %v7885
    %7887 = vmatmul.bf16.gmra.mxu0 %v7783
    %v7888 = vpop.f32.mrf.mxu0
    %v7889 = vadd.f32 0.0, %v7888
    %v7890 = vpop.f32.mrf.mxu0
    %v7891 = vadd.f32 0.0, %v7890
    %7892 = vmatmul.bf16.gmra.mxu0 %v7784
    %v7893 = vpop.f32.mrf.mxu0
    %v7894 = vadd.f32 0.0, %v7893
    %v7895 = vpop.f32.mrf.mxu0
    %v7896 = vadd.f32 0.0, %v7895
    %7897 = vdwg.mxu0
    %v7898 = vadd.f32 %v7745, %v7859
    %v7899 = vadd.f32 %v7746, %v7861
    %v7900 = vadd.f32 %v7747, %v7864
    %v7901 = vadd.f32 %v7748, %v7866
    %v7902 = vadd.f32 %v7749, %v7869
    %v7903 = vadd.f32 %v7750, %v7871
    %v7904 = vadd.f32 %v7751, %v7874
    %v7905 = vadd.f32 %v7752, %v7876
    %v7906 = vadd.f32 %v7753, %v7879
    %v7907 = vadd.f32 %v7754, %v7881
    %v7908 = vadd.f32 %v7755, %v7884
    %v7909 = vadd.f32 %v7756, %v7886
    %v7910 = vadd.f32 %v7757, %v7889
    %v7911 = vadd.f32 %v7758, %v7891
    %v7912 = vadd.f32 %v7759, %v7894
    %v7913 = vadd.f32 %v7760, %v7896
    %v7914 = vld [vmem:[%s7607 + $0x2] sm:$0xff]
    %v7915 = vld [vmem:[%s7607 + $0xa] sm:$0xff]
    %v7916 = vld [vmem:[%s7607 + $0x1a] sm:$0xff]
    %v7917 = vld [vmem:[%s7607 + $0x22] sm:$0xff]
    %v7918 = vld [vmem:[%s7607 + $0x32] sm:$0xff]
    %v7919 = vld [vmem:[%s7607 + $0x3a] sm:$0xff]
    %v7920 = vld [vmem:[%s7607 + $0x4a] sm:$0xff]
    %v7921 = vld [vmem:[%s7607 + $0x52] sm:$0xff]
    %v7922 = vld [vmem:[%s7607 + $0x62] sm:$0xff]
    %v7923 = vld [vmem:[%s7607 + $0x6a] sm:$0xff]
    %v7924 = vld [vmem:[%s7607 + $0x7a] sm:$0xff]
    %v7925 = vld [vmem:[%s7607 + $0x82] sm:$0xff]
    %v7926 = vld [vmem:[%s7607 + $0x92] sm:$0xff]
    %v7927 = vld [vmem:[%s7607 + $0x9a] sm:$0xff]
    %v7928 = vld [vmem:[%s7607 + $0xaa] sm:$0xff]
    %v7929 = vld [vmem:[%s7607 + $0xb2] sm:$0xff]
    %v7930 = vpack.c.bf16 %v7915, %v7914
    %v7931 = vpack.c.bf16 %v7917, %v7916
    %v7932 = vpack.c.bf16 %v7919, %v7918
    %v7933 = vpack.c.bf16 %v7921, %v7920
    %v7934 = vpack.c.bf16 %v7923, %v7922
    %v7935 = vpack.c.bf16 %v7925, %v7924
    %v7936 = vpack.c.bf16 %v7927, %v7926
    %v7937 = vpack.c.bf16 %v7929, %v7928
    %v7938 = vld [vmem:[%s1477] sm:$0xf]
    %v7939 = vld [vmem:[%s1477 + $0x4] sm:$0xf]
    %v7940 = vld [vmem:[%s1477 + $0x8] sm:$0xf]
    %v7941 = vld [vmem:[%s1477 + $0xc] sm:$0xf]
    %v7942 = vld [vmem:[%s1477 + $0x10] sm:$0xf]
    %v7943 = vld [vmem:[%s1477 + $0x14] sm:$0xf]
    %v7944 = vld [vmem:[%s1477 + $0x18] sm:$0xf]
    %v7945 = vld [vmem:[%s1477 + $0x1c] sm:$0xf]
    %v7946 = vld [vmem:[%s1477 + $0x20] sm:$0xf]
    %v7947 = vld [vmem:[%s1477 + $0x24] sm:$0xf]
    %v7948 = vld [vmem:[%s1477 + $0x28] sm:$0xf]
    %v7949 = vld [vmem:[%s1477 + $0x2c] sm:$0xf]
    %v7950 = vld [vmem:[%s1477 + $0x30] sm:$0xf]
    %v7951 = vld [vmem:[%s1477 + $0x34] sm:$0xf]
    %v7952 = vld [vmem:[%s1477 + $0x38] sm:$0xf]
    %v7953 = vld [vmem:[%s1477 + $0x3c] sm:$0xf]
    %v7970 = vunpack.c.l.b16 %v7938
    %v7971 = vunpack.c.l.b16 %v7939
    %v7972 = vunpack.c.l.b16 %v7940
    %v7973 = vunpack.c.l.b16 %v7941
    %v7974 = vunpack.c.l.b16 %v7942
    %v7975 = vunpack.c.l.b16 %v7943
    %v7976 = vunpack.c.l.b16 %v7944
    %v7977 = vunpack.c.l.b16 %v7945
    %v7978 = vunpack.c.l.b16 %v7946
    %v7979 = vunpack.c.l.b16 %v7947
    %v7980 = vunpack.c.l.b16 %v7948
    %v7981 = vunpack.c.l.b16 %v7949
    %v7982 = vunpack.c.l.b16 %v7950
    %v7983 = vunpack.c.l.b16 %v7951
    %v7984 = vunpack.c.l.b16 %v7952
    %v7985 = vunpack.c.l.b16 %v7953
    %v7986 = vpack.c.b16 %v7971, %v7970
    %v7987 = vpack.c.b16 %v7973, %v7972
    %v7988 = vpack.c.b16 %v7975, %v7974
    %v7989 = vpack.c.b16 %v7977, %v7976
    %v7990 = vpack.c.b16 %v7979, %v7978
    %v7991 = vpack.c.b16 %v7981, %v7980
    %v7992 = vpack.c.b16 %v7983, %v7982
    %v7993 = vpack.c.b16 %v7985, %v7984
    %8002 = vmatpush.bf16.msra.mxu0 %v7993
    %8003 = vmatpush.bf16.msra.mxu0 %v7992
    %8004 = vmatpush.bf16.msra.mxu0 %v7991
    %8005 = vmatpush.bf16.msra.mxu0 %v7990
    %8006 = vmatpush.bf16.msra.mxu0 %v7989
    %8007 = vmatpush.bf16.msra.mxu0 %v7988
    %8008 = vmatpush.bf16.msra.mxu0 %v7987
    %8009 = vmatpush.bf16.msra.mxu0 %v7986
    %8010 = vmatmul.bf16.gmra.mxu0 %v7930
    %v8011 = vpop.f32.mrf.mxu0
    %v8012 = vadd.f32 0.0, %v8011
    %v8013 = vpop.f32.mrf.mxu0
    %v8014 = vadd.f32 0.0, %v8013
    %8015 = vmatmul.bf16.gmra.mxu0 %v7931
    %v8016 = vpop.f32.mrf.mxu0
    %v8017 = vadd.f32 0.0, %v8016
    %v8018 = vpop.f32.mrf.mxu0
    %v8019 = vadd.f32 0.0, %v8018
    %8020 = vmatmul.bf16.gmra.mxu0 %v7932
    %v8021 = vpop.f32.mrf.mxu0
    %v8022 = vadd.f32 0.0, %v8021
    %v8023 = vpop.f32.mrf.mxu0
    %v8024 = vadd.f32 0.0, %v8023
    %8025 = vmatmul.bf16.gmra.mxu0 %v7933
    %v8026 = vpop.f32.mrf.mxu0
    %v8027 = vadd.f32 0.0, %v8026
    %v8028 = vpop.f32.mrf.mxu0
    %v8029 = vadd.f32 0.0, %v8028
    %8030 = vmatmul.bf16.gmra.mxu0 %v7934
    %v8031 = vpop.f32.mrf.mxu0
    %v8032 = vadd.f32 0.0, %v8031
    %v8033 = vpop.f32.mrf.mxu0
    %v8034 = vadd.f32 0.0, %v8033
    %8035 = vmatmul.bf16.gmra.mxu0 %v7935
    %v8036 = vpop.f32.mrf.mxu0
    %v8037 = vadd.f32 0.0, %v8036
    %v8038 = vpop.f32.mrf.mxu0
    %v8039 = vadd.f32 0.0, %v8038
    %8040 = vmatmul.bf16.gmra.mxu0 %v7936
    %v8041 = vpop.f32.mrf.mxu0
    %v8042 = vadd.f32 0.0, %v8041
    %v8043 = vpop.f32.mrf.mxu0
    %v8044 = vadd.f32 0.0, %v8043
    %8045 = vmatmul.bf16.gmra.mxu0 %v7937
    %v8046 = vpop.f32.mrf.mxu0
    %v8047 = vadd.f32 0.0, %v8046
    %v8048 = vpop.f32.mrf.mxu0
    %v8049 = vadd.f32 0.0, %v8048
    %8050 = vdwg.mxu0
    %v8051 = vadd.f32 %v7898, %v8012
    %v8052 = vadd.f32 %v7899, %v8014
    %v8053 = vadd.f32 %v7900, %v8017
    %v8054 = vadd.f32 %v7901, %v8019
    %v8055 = vadd.f32 %v7902, %v8022
    %v8056 = vadd.f32 %v7903, %v8024
    %v8057 = vadd.f32 %v7904, %v8027
    %v8058 = vadd.f32 %v7905, %v8029
    %v8059 = vadd.f32 %v7906, %v8032
    %v8060 = vadd.f32 %v7907, %v8034
    %v8061 = vadd.f32 %v7908, %v8037
    %v8062 = vadd.f32 %v7909, %v8039
    %v8063 = vadd.f32 %v7910, %v8042
    %v8064 = vadd.f32 %v7911, %v8044
    %v8065 = vadd.f32 %v7912, %v8047
    %v8066 = vadd.f32 %v7913, %v8049
    %s8067 = scalar_lea.vmem [#allocation2], 672
    %v8068 = vld [vmem:[%s8067] sm:$0xff]
    %v8069 = vld [vmem:[%s8067 + $0x8] sm:$0xff]
    %v8070 = vld [vmem:[%s8067 + $0x18] sm:$0xff]
    %v8071 = vld [vmem:[%s8067 + $0x20] sm:$0xff]
    %v8072 = vld [vmem:[%s8067 + $0x30] sm:$0xff]
    %v8073 = vld [vmem:[%s8067 + $0x38] sm:$0xff]
    %v8074 = vld [vmem:[%s8067 + $0x48] sm:$0xff]
    %v8075 = vld [vmem:[%s8067 + $0x50] sm:$0xff]
    %v8076 = vld [vmem:[%s8067 + $0x60] sm:$0xff]
    %v8077 = vld [vmem:[%s8067 + $0x68] sm:$0xff]
    %v8078 = vld [vmem:[%s8067 + $0x78] sm:$0xff]
    %v8079 = vld [vmem:[%s8067 + $0x80] sm:$0xff]
    %v8080 = vld [vmem:[%s8067 + $0x90] sm:$0xff]
    %v8081 = vld [vmem:[%s8067 + $0x98] sm:$0xff]
    %v8082 = vld [vmem:[%s8067 + $0xa8] sm:$0xff]
    %v8083 = vld [vmem:[%s8067 + $0xb0] sm:$0xff]
    %v8084 = vpack.c.bf16 %v8069, %v8068
    %v8085 = vpack.c.bf16 %v8071, %v8070
    %v8086 = vpack.c.bf16 %v8073, %v8072
    %v8087 = vpack.c.bf16 %v8075, %v8074
    %v8088 = vpack.c.bf16 %v8077, %v8076
    %v8089 = vpack.c.bf16 %v8079, %v8078
    %v8090 = vpack.c.bf16 %v8081, %v8080
    %v8091 = vpack.c.bf16 %v8083, %v8082
    %v8092 = vld [vmem:[%s1632] sm:$0xf]
    %v8093 = vld [vmem:[%s1632 + $0x4] sm:$0xf]
    %v8094 = vld [vmem:[%s1632 + $0x8] sm:$0xf]
    %v8095 = vld [vmem:[%s1632 + $0xc] sm:$0xf]
    %v8096 = vld [vmem:[%s1632 + $0x10] sm:$0xf]
    %v8097 = vld [vmem:[%s1632 + $0x14] sm:$0xf]
    %v8098 = vld [vmem:[%s1632 + $0x18] sm:$0xf]
    %v8099 = vld [vmem:[%s1632 + $0x1c] sm:$0xf]
    %v8100 = vld [vmem:[%s1632 + $0x20] sm:$0xf]
    %v8101 = vld [vmem:[%s1632 + $0x24] sm:$0xf]
    %v8102 = vld [vmem:[%s1632 + $0x28] sm:$0xf]
    %v8103 = vld [vmem:[%s1632 + $0x2c] sm:$0xf]
    %v8104 = vld [vmem:[%s1632 + $0x30] sm:$0xf]
    %v8105 = vld [vmem:[%s1632 + $0x34] sm:$0xf]
    %v8106 = vld [vmem:[%s1632 + $0x38] sm:$0xf]
    %v8107 = vld [vmem:[%s1632 + $0x3c] sm:$0xf]
    %v8124 = vunpack.c.l.b16 %v8092
    %v8125 = vunpack.c.l.b16 %v8093
    %v8126 = vunpack.c.l.b16 %v8094
    %v8127 = vunpack.c.l.b16 %v8095
    %v8128 = vunpack.c.l.b16 %v8096
    %v8129 = vunpack.c.l.b16 %v8097
    %v8130 = vunpack.c.l.b16 %v8098
    %v8131 = vunpack.c.l.b16 %v8099
    %v8132 = vunpack.c.l.b16 %v8100
    %v8133 = vunpack.c.l.b16 %v8101
    %v8134 = vunpack.c.l.b16 %v8102
    %v8135 = vunpack.c.l.b16 %v8103
    %v8136 = vunpack.c.l.b16 %v8104
    %v8137 = vunpack.c.l.b16 %v8105
    %v8138 = vunpack.c.l.b16 %v8106
    %v8139 = vunpack.c.l.b16 %v8107
    %v8140 = vpack.c.b16 %v8125, %v8124
    %v8141 = vpack.c.b16 %v8127, %v8126
    %v8142 = vpack.c.b16 %v8129, %v8128
    %v8143 = vpack.c.b16 %v8131, %v8130
    %v8144 = vpack.c.b16 %v8133, %v8132
    %v8145 = vpack.c.b16 %v8135, %v8134
    %v8146 = vpack.c.b16 %v8137, %v8136
    %v8147 = vpack.c.b16 %v8139, %v8138
    %8156 = vmatpush.bf16.msra.mxu0 %v8147
    %8157 = vmatpush.bf16.msra.mxu0 %v8146
    %8158 = vmatpush.bf16.msra.mxu0 %v8145
    %8159 = vmatpush.bf16.msra.mxu0 %v8144
    %8160 = vmatpush.bf16.msra.mxu0 %v8143
    %8161 = vmatpush.bf16.msra.mxu0 %v8142
    %8162 = vmatpush.bf16.msra.mxu0 %v8141
    %8163 = vmatpush.bf16.msra.mxu0 %v8140
    %8164 = vmatmul.bf16.gmra.mxu0 %v8084
    %v8165 = vpop.f32.mrf.mxu0
    %v8166 = vadd.f32 0.0, %v8165
    %v8167 = vpop.f32.mrf.mxu0
    %v8168 = vadd.f32 0.0, %v8167
    %8169 = vmatmul.bf16.gmra.mxu0 %v8085
    %v8170 = vpop.f32.mrf.mxu0
    %v8171 = vadd.f32 0.0, %v8170
    %v8172 = vpop.f32.mrf.mxu0
    %v8173 = vadd.f32 0.0, %v8172
    %8174 = vmatmul.bf16.gmra.mxu0 %v8086
    %v8175 = vpop.f32.mrf.mxu0
    %v8176 = vadd.f32 0.0, %v8175
    %v8177 = vpop.f32.mrf.mxu0
    %v8178 = vadd.f32 0.0, %v8177
    %8179 = vmatmul.bf16.gmra.mxu0 %v8087
    %v8180 = vpop.f32.mrf.mxu0
    %v8181 = vadd.f32 0.0, %v8180
    %v8182 = vpop.f32.mrf.mxu0
    %v8183 = vadd.f32 0.0, %v8182
    %8184 = vmatmul.bf16.gmra.mxu0 %v8088
    %v8185 = vpop.f32.mrf.mxu0
    %v8186 = vadd.f32 0.0, %v8185
    %v8187 = vpop.f32.mrf.mxu0
    %v8188 = vadd.f32 0.0, %v8187
    %8189 = vmatmul.bf16.gmra.mxu0 %v8089
    %v8190 = vpop.f32.mrf.mxu0
    %v8191 = vadd.f32 0.0, %v8190
    %v8192 = vpop.f32.mrf.mxu0
    %v8193 = vadd.f32 0.0, %v8192
    %8194 = vmatmul.bf16.gmra.mxu0 %v8090
    %v8195 = vpop.f32.mrf.mxu0
    %v8196 = vadd.f32 0.0, %v8195
    %v8197 = vpop.f32.mrf.mxu0
    %v8198 = vadd.f32 0.0, %v8197
    %8199 = vmatmul.bf16.gmra.mxu0 %v8091
    %v8200 = vpop.f32.mrf.mxu0
    %v8201 = vadd.f32 0.0, %v8200
    %v8202 = vpop.f32.mrf.mxu0
    %v8203 = vadd.f32 0.0, %v8202
    %8204 = vdwg.mxu0
    %v8205 = vadd.f32 %v8051, %v8166
    %v8206 = vadd.f32 %v8052, %v8168
    %v8207 = vadd.f32 %v8053, %v8171
    %v8208 = vadd.f32 %v8054, %v8173
    %v8209 = vadd.f32 %v8055, %v8176
    %v8210 = vadd.f32 %v8056, %v8178
    %v8211 = vadd.f32 %v8057, %v8181
    %v8212 = vadd.f32 %v8058, %v8183
    %v8213 = vadd.f32 %v8059, %v8186
    %v8214 = vadd.f32 %v8060, %v8188
    %v8215 = vadd.f32 %v8061, %v8191
    %v8216 = vadd.f32 %v8062, %v8193
    %v8217 = vadd.f32 %v8063, %v8196
    %v8218 = vadd.f32 %v8064, %v8198
    %v8219 = vadd.f32 %v8065, %v8201
    %v8220 = vadd.f32 %v8066, %v8203
    %v8221 = vld [vmem:[%s8067 + $0x1] sm:$0xff]
    %v8222 = vld [vmem:[%s8067 + $0x9] sm:$0xff]
    %v8223 = vld [vmem:[%s8067 + $0x19] sm:$0xff]
    %v8224 = vld [vmem:[%s8067 + $0x21] sm:$0xff]
    %v8225 = vld [vmem:[%s8067 + $0x31] sm:$0xff]
    %v8226 = vld [vmem:[%s8067 + $0x39] sm:$0xff]
    %v8227 = vld [vmem:[%s8067 + $0x49] sm:$0xff]
    %v8228 = vld [vmem:[%s8067 + $0x51] sm:$0xff]
    %v8229 = vld [vmem:[%s8067 + $0x61] sm:$0xff]
    %v8230 = vld [vmem:[%s8067 + $0x69] sm:$0xff]
    %v8231 = vld [vmem:[%s8067 + $0x79] sm:$0xff]
    %v8232 = vld [vmem:[%s8067 + $0x81] sm:$0xff]
    %v8233 = vld [vmem:[%s8067 + $0x91] sm:$0xff]
    %v8234 = vld [vmem:[%s8067 + $0x99] sm:$0xff]
    %v8235 = vld [vmem:[%s8067 + $0xa9] sm:$0xff]
    %v8236 = vld [vmem:[%s8067 + $0xb1] sm:$0xff]
    %v8237 = vpack.c.bf16 %v8222, %v8221
    %v8238 = vpack.c.bf16 %v8224, %v8223
    %v8239 = vpack.c.bf16 %v8226, %v8225
    %v8240 = vpack.c.bf16 %v8228, %v8227
    %v8241 = vpack.c.bf16 %v8230, %v8229
    %v8242 = vpack.c.bf16 %v8232, %v8231
    %v8243 = vpack.c.bf16 %v8234, %v8233
    %v8244 = vpack.c.bf16 %v8236, %v8235
    %v8245 = vld [vmem:[%s1786] sm:$0xf]
    %v8246 = vld [vmem:[%s1786 + $0x4] sm:$0xf]
    %v8247 = vld [vmem:[%s1786 + $0x8] sm:$0xf]
    %v8248 = vld [vmem:[%s1786 + $0xc] sm:$0xf]
    %v8249 = vld [vmem:[%s1786 + $0x10] sm:$0xf]
    %v8250 = vld [vmem:[%s1786 + $0x14] sm:$0xf]
    %v8251 = vld [vmem:[%s1786 + $0x18] sm:$0xf]
    %v8252 = vld [vmem:[%s1786 + $0x1c] sm:$0xf]
    %v8253 = vld [vmem:[%s1786 + $0x20] sm:$0xf]
    %v8254 = vld [vmem:[%s1786 + $0x24] sm:$0xf]
    %v8255 = vld [vmem:[%s1786 + $0x28] sm:$0xf]
    %v8256 = vld [vmem:[%s1786 + $0x2c] sm:$0xf]
    %v8257 = vld [vmem:[%s1786 + $0x30] sm:$0xf]
    %v8258 = vld [vmem:[%s1786 + $0x34] sm:$0xf]
    %v8259 = vld [vmem:[%s1786 + $0x38] sm:$0xf]
    %v8260 = vld [vmem:[%s1786 + $0x3c] sm:$0xf]
    %v8277 = vunpack.c.l.b16 %v8245
    %v8278 = vunpack.c.l.b16 %v8246
    %v8279 = vunpack.c.l.b16 %v8247
    %v8280 = vunpack.c.l.b16 %v8248
    %v8281 = vunpack.c.l.b16 %v8249
    %v8282 = vunpack.c.l.b16 %v8250
    %v8283 = vunpack.c.l.b16 %v8251
    %v8284 = vunpack.c.l.b16 %v8252
    %v8285 = vunpack.c.l.b16 %v8253
    %v8286 = vunpack.c.l.b16 %v8254
    %v8287 = vunpack.c.l.b16 %v8255
    %v8288 = vunpack.c.l.b16 %v8256
    %v8289 = vunpack.c.l.b16 %v8257
    %v8290 = vunpack.c.l.b16 %v8258
    %v8291 = vunpack.c.l.b16 %v8259
    %v8292 = vunpack.c.l.b16 %v8260
    %v8293 = vpack.c.b16 %v8278, %v8277
    %v8294 = vpack.c.b16 %v8280, %v8279
    %v8295 = vpack.c.b16 %v8282, %v8281
    %v8296 = vpack.c.b16 %v8284, %v8283
    %v8297 = vpack.c.b16 %v8286, %v8285
    %v8298 = vpack.c.b16 %v8288, %v8287
    %v8299 = vpack.c.b16 %v8290, %v8289
    %v8300 = vpack.c.b16 %v8292, %v8291
    %8309 = vmatpush.bf16.msra.mxu0 %v8300
    %8310 = vmatpush.bf16.msra.mxu0 %v8299
    %8311 = vmatpush.bf16.msra.mxu0 %v8298
    %8312 = vmatpush.bf16.msra.mxu0 %v8297
    %8313 = vmatpush.bf16.msra.mxu0 %v8296
    %8314 = vmatpush.bf16.msra.mxu0 %v8295
    %8315 = vmatpush.bf16.msra.mxu0 %v8294
    %8316 = vmatpush.bf16.msra.mxu0 %v8293
    %8317 = vmatmul.bf16.gmra.mxu0 %v8237
    %v8318 = vpop.f32.mrf.mxu0
    %v8319 = vadd.f32 0.0, %v8318
    %v8320 = vpop.f32.mrf.mxu0
    %v8321 = vadd.f32 0.0, %v8320
    %8322 = vmatmul.bf16.gmra.mxu0 %v8238
    %v8323 = vpop.f32.mrf.mxu0
    %v8324 = vadd.f32 0.0, %v8323
    %v8325 = vpop.f32.mrf.mxu0
    %v8326 = vadd.f32 0.0, %v8325
    %8327 = vmatmul.bf16.gmra.mxu0 %v8239
    %v8328 = vpop.f32.mrf.mxu0
    %v8329 = vadd.f32 0.0, %v8328
    %v8330 = vpop.f32.mrf.mxu0
    %v8331 = vadd.f32 0.0, %v8330
    %8332 = vmatmul.bf16.gmra.mxu0 %v8240
    %v8333 = vpop.f32.mrf.mxu0
    %v8334 = vadd.f32 0.0, %v8333
    %v8335 = vpop.f32.mrf.mxu0
    %v8336 = vadd.f32 0.0, %v8335
    %8337 = vmatmul.bf16.gmra.mxu0 %v8241
    %v8338 = vpop.f32.mrf.mxu0
    %v8339 = vadd.f32 0.0, %v8338
    %v8340 = vpop.f32.mrf.mxu0
    %v8341 = vadd.f32 0.0, %v8340
    %8342 = vmatmul.bf16.gmra.mxu0 %v8242
    %v8343 = vpop.f32.mrf.mxu0
    %v8344 = vadd.f32 0.0, %v8343
    %v8345 = vpop.f32.mrf.mxu0
    %v8346 = vadd.f32 0.0, %v8345
    %8347 = vmatmul.bf16.gmra.mxu0 %v8243
    %v8348 = vpop.f32.mrf.mxu0
    %v8349 = vadd.f32 0.0, %v8348
    %v8350 = vpop.f32.mrf.mxu0
    %v8351 = vadd.f32 0.0, %v8350
    %8352 = vmatmul.bf16.gmra.mxu0 %v8244
    %v8353 = vpop.f32.mrf.mxu0
    %v8354 = vadd.f32 0.0, %v8353
    %v8355 = vpop.f32.mrf.mxu0
    %v8356 = vadd.f32 0.0, %v8355
    %8357 = vdwg.mxu0
    %v8358 = vadd.f32 %v8205, %v8319
    %v8359 = vadd.f32 %v8206, %v8321
    %v8360 = vadd.f32 %v8207, %v8324
    %v8361 = vadd.f32 %v8208, %v8326
    %v8362 = vadd.f32 %v8209, %v8329
    %v8363 = vadd.f32 %v8210, %v8331
    %v8364 = vadd.f32 %v8211, %v8334
    %v8365 = vadd.f32 %v8212, %v8336
    %v8366 = vadd.f32 %v8213, %v8339
    %v8367 = vadd.f32 %v8214, %v8341
    %v8368 = vadd.f32 %v8215, %v8344
    %v8369 = vadd.f32 %v8216, %v8346
    %v8370 = vadd.f32 %v8217, %v8349
    %v8371 = vadd.f32 %v8218, %v8351
    %v8372 = vadd.f32 %v8219, %v8354
    %v8373 = vadd.f32 %v8220, %v8356
    %v8374 = vld [vmem:[%s8067 + $0x2] sm:$0xff]
    %v8375 = vld [vmem:[%s8067 + $0xa] sm:$0xff]
    %v8376 = vld [vmem:[%s8067 + $0x1a] sm:$0xff]
    %v8377 = vld [vmem:[%s8067 + $0x22] sm:$0xff]
    %v8378 = vld [vmem:[%s8067 + $0x32] sm:$0xff]
    %v8379 = vld [vmem:[%s8067 + $0x3a] sm:$0xff]
    %v8380 = vld [vmem:[%s8067 + $0x4a] sm:$0xff]
    %v8381 = vld [vmem:[%s8067 + $0x52] sm:$0xff]
    %v8382 = vld [vmem:[%s8067 + $0x62] sm:$0xff]
    %v8383 = vld [vmem:[%s8067 + $0x6a] sm:$0xff]
    %v8384 = vld [vmem:[%s8067 + $0x7a] sm:$0xff]
    %v8385 = vld [vmem:[%s8067 + $0x82] sm:$0xff]
    %v8386 = vld [vmem:[%s8067 + $0x92] sm:$0xff]
    %v8387 = vld [vmem:[%s8067 + $0x9a] sm:$0xff]
    %v8388 = vld [vmem:[%s8067 + $0xaa] sm:$0xff]
    %v8389 = vld [vmem:[%s8067 + $0xb2] sm:$0xff]
    %v8390 = vpack.c.bf16 %v8375, %v8374
    %v8391 = vpack.c.bf16 %v8377, %v8376
    %v8392 = vpack.c.bf16 %v8379, %v8378
    %v8393 = vpack.c.bf16 %v8381, %v8380
    %v8394 = vpack.c.bf16 %v8383, %v8382
    %v8395 = vpack.c.bf16 %v8385, %v8384
    %v8396 = vpack.c.bf16 %v8387, %v8386
    %v8397 = vpack.c.bf16 %v8389, %v8388
    %v8398 = vld [vmem:[%s1940] sm:$0xf]
    %v8399 = vld [vmem:[%s1940 + $0x4] sm:$0xf]
    %v8400 = vld [vmem:[%s1940 + $0x8] sm:$0xf]
    %v8401 = vld [vmem:[%s1940 + $0xc] sm:$0xf]
    %v8402 = vld [vmem:[%s1940 + $0x10] sm:$0xf]
    %v8403 = vld [vmem:[%s1940 + $0x14] sm:$0xf]
    %v8404 = vld [vmem:[%s1940 + $0x18] sm:$0xf]
    %v8405 = vld [vmem:[%s1940 + $0x1c] sm:$0xf]
    %v8406 = vld [vmem:[%s1940 + $0x20] sm:$0xf]
    %v8407 = vld [vmem:[%s1940 + $0x24] sm:$0xf]
    %v8408 = vld [vmem:[%s1940 + $0x28] sm:$0xf]
    %v8409 = vld [vmem:[%s1940 + $0x2c] sm:$0xf]
    %v8410 = vld [vmem:[%s1940 + $0x30] sm:$0xf]
    %v8411 = vld [vmem:[%s1940 + $0x34] sm:$0xf]
    %v8412 = vld [vmem:[%s1940 + $0x38] sm:$0xf]
    %v8413 = vld [vmem:[%s1940 + $0x3c] sm:$0xf]
    %v8430 = vunpack.c.l.b16 %v8398
    %v8431 = vunpack.c.l.b16 %v8399
    %v8432 = vunpack.c.l.b16 %v8400
    %v8433 = vunpack.c.l.b16 %v8401
    %v8434 = vunpack.c.l.b16 %v8402
    %v8435 = vunpack.c.l.b16 %v8403
    %v8436 = vunpack.c.l.b16 %v8404
    %v8437 = vunpack.c.l.b16 %v8405
    %v8438 = vunpack.c.l.b16 %v8406
    %v8439 = vunpack.c.l.b16 %v8407
    %v8440 = vunpack.c.l.b16 %v8408
    %v8441 = vunpack.c.l.b16 %v8409
    %v8442 = vunpack.c.l.b16 %v8410
    %v8443 = vunpack.c.l.b16 %v8411
    %v8444 = vunpack.c.l.b16 %v8412
    %v8445 = vunpack.c.l.b16 %v8413
    %v8446 = vpack.c.b16 %v8431, %v8430
    %v8447 = vpack.c.b16 %v8433, %v8432
    %v8448 = vpack.c.b16 %v8435, %v8434
    %v8449 = vpack.c.b16 %v8437, %v8436
    %v8450 = vpack.c.b16 %v8439, %v8438
    %v8451 = vpack.c.b16 %v8441, %v8440
    %v8452 = vpack.c.b16 %v8443, %v8442
    %v8453 = vpack.c.b16 %v8445, %v8444
    %8462 = vmatpush.bf16.msra.mxu0 %v8453
    %8463 = vmatpush.bf16.msra.mxu0 %v8452
    %8464 = vmatpush.bf16.msra.mxu0 %v8451
    %8465 = vmatpush.bf16.msra.mxu0 %v8450
    %8466 = vmatpush.bf16.msra.mxu0 %v8449
    %8467 = vmatpush.bf16.msra.mxu0 %v8448
    %8468 = vmatpush.bf16.msra.mxu0 %v8447
    %8469 = vmatpush.bf16.msra.mxu0 %v8446
    %8470 = vmatmul.bf16.gmra.mxu0 %v8390
    %v8471 = vpop.f32.mrf.mxu0
    %v8472 = vadd.f32 0.0, %v8471
    %v8473 = vpop.f32.mrf.mxu0
    %v8474 = vadd.f32 0.0, %v8473
    %8475 = vmatmul.bf16.gmra.mxu0 %v8391
    %v8476 = vpop.f32.mrf.mxu0
    %v8477 = vadd.f32 0.0, %v8476
    %v8478 = vpop.f32.mrf.mxu0
    %v8479 = vadd.f32 0.0, %v8478
    %8480 = vmatmul.bf16.gmra.mxu0 %v8392
    %v8481 = vpop.f32.mrf.mxu0
    %v8482 = vadd.f32 0.0, %v8481
    %v8483 = vpop.f32.mrf.mxu0
    %v8484 = vadd.f32 0.0, %v8483
    %8485 = vmatmul.bf16.gmra.mxu0 %v8393
    %v8486 = vpop.f32.mrf.mxu0
    %v8487 = vadd.f32 0.0, %v8486
    %v8488 = vpop.f32.mrf.mxu0
    %v8489 = vadd.f32 0.0, %v8488
    %8490 = vmatmul.bf16.gmra.mxu0 %v8394
    %v8491 = vpop.f32.mrf.mxu0
    %v8492 = vadd.f32 0.0, %v8491
    %v8493 = vpop.f32.mrf.mxu0
    %v8494 = vadd.f32 0.0, %v8493
    %8495 = vmatmul.bf16.gmra.mxu0 %v8395
    %v8496 = vpop.f32.mrf.mxu0
    %v8497 = vadd.f32 0.0, %v8496
    %v8498 = vpop.f32.mrf.mxu0
    %v8499 = vadd.f32 0.0, %v8498
    %8500 = vmatmul.bf16.gmra.mxu0 %v8396
    %v8501 = vpop.f32.mrf.mxu0
    %v8502 = vadd.f32 0.0, %v8501
    %v8503 = vpop.f32.mrf.mxu0
    %v8504 = vadd.f32 0.0, %v8503
    %8505 = vmatmul.bf16.gmra.mxu0 %v8397
    %v8506 = vpop.f32.mrf.mxu0
    %v8507 = vadd.f32 0.0, %v8506
    %v8508 = vpop.f32.mrf.mxu0
    %v8509 = vadd.f32 0.0, %v8508
    %8510 = vdwg.mxu0
    %v8511 = vadd.f32 %v8358, %v8472
    %v8512 = vadd.f32 %v8359, %v8474
    %v8513 = vadd.f32 %v8360, %v8477
    %v8514 = vadd.f32 %v8361, %v8479
    %v8515 = vadd.f32 %v8362, %v8482
    %v8516 = vadd.f32 %v8363, %v8484
    %v8517 = vadd.f32 %v8364, %v8487
    %v8518 = vadd.f32 %v8365, %v8489
    %v8519 = vadd.f32 %v8366, %v8492
    %v8520 = vadd.f32 %v8367, %v8494
    %v8521 = vadd.f32 %v8368, %v8497
    %v8522 = vadd.f32 %v8369, %v8499
    %v8523 = vadd.f32 %v8370, %v8502
    %v8524 = vadd.f32 %v8371, %v8504
    %v8525 = vadd.f32 %v8372, %v8507
    %v8526 = vadd.f32 %v8373, %v8509
    %v8527 = vxor.u32 %v8511, 2147483648
    %v8528 = vxor.u32 %v8512, 2147483648
    %v8529 = vxor.u32 %v8513, 2147483648
    %v8530 = vxor.u32 %v8514, 2147483648
    %v8531 = vxor.u32 %v8515, 2147483648
    %v8532 = vxor.u32 %v8516, 2147483648
    %v8533 = vxor.u32 %v8517, 2147483648
    %v8534 = vxor.u32 %v8518, 2147483648
    %v8535 = vxor.u32 %v8519, 2147483648
    %v8536 = vxor.u32 %v8520, 2147483648
    %v8537 = vxor.u32 %v8521, 2147483648
    %v8538 = vxor.u32 %v8522, 2147483648
    %v8539 = vxor.u32 %v8523, 2147483648
    %v8540 = vxor.u32 %v8524, 2147483648
    %v8541 = vxor.u32 %v8525, 2147483648
    %v8542 = vxor.u32 %v8526, 2147483648
    %v8543 = vmul.f32 %v8527, 1.442695
    %v8544 = vpow.pop %v8543
    %v8545 = vmul.f32 %v8528, 1.442695
    %v8546 = vpow.pop %v8545
    %v8547 = vmul.f32 %v8529, 1.442695
    %v8548 = vpow.pop %v8547
    %v8549 = vmul.f32 %v8530, 1.442695
    %v8550 = vpow.pop %v8549
    %v8551 = vmul.f32 %v8531, 1.442695
    %v8552 = vpow.pop %v8551
    %v8553 = vmul.f32 %v8532, 1.442695
    %v8554 = vpow.pop %v8553
    %v8555 = vmul.f32 %v8533, 1.442695
    %v8556 = vpow.pop %v8555
    %v8557 = vmul.f32 %v8534, 1.442695
    %v8558 = vpow.pop %v8557
    %v8559 = vmul.f32 %v8535, 1.442695
    %v8560 = vpow.pop %v8559
    %v8561 = vmul.f32 %v8536, 1.442695
    %v8562 = vpow.pop %v8561
    %v8563 = vmul.f32 %v8537, 1.442695
    %v8564 = vpow.pop %v8563
    %v8565 = vmul.f32 %v8538, 1.442695
    %v8566 = vpow.pop %v8565
    %v8567 = vmul.f32 %v8539, 1.442695
    %v8568 = vpow.pop %v8567
    %v8569 = vmul.f32 %v8540, 1.442695
    %v8570 = vpow.pop %v8569
    %v8571 = vmul.f32 %v8541, 1.442695
    %v8572 = vpow.pop %v8571
    %v8573 = vmul.f32 %v8542, 1.442695
    %v8574 = vpow.pop %v8573
    %v8575 = vadd.f32 %v8544, 1.0
    %v8576 = vadd.f32 %v8546, 1.0
    %v8577 = vadd.f32 %v8548, 1.0
    %v8578 = vadd.f32 %v8550, 1.0
    %v8579 = vadd.f32 %v8552, 1.0
    %v8580 = vadd.f32 %v8554, 1.0
    %v8581 = vadd.f32 %v8556, 1.0
    %v8582 = vadd.f32 %v8558, 1.0
    %v8583 = vadd.f32 %v8560, 1.0
    %v8584 = vadd.f32 %v8562, 1.0
    %v8585 = vadd.f32 %v8564, 1.0
    %v8586 = vadd.f32 %v8566, 1.0
    %v8587 = vadd.f32 %v8568, 1.0
    %v8588 = vadd.f32 %v8570, 1.0
    %v8589 = vadd.f32 %v8572, 1.0
    %v8590 = vadd.f32 %v8574, 1.0
    %v8591 = vrcp.pop %v8575
    %v8592 = vmul.f32 %v8575, %v8591
    %v8593 = vsub.f32 1.0, %v8592
    %v8594 = vmul.f32 %v8591, %v8593
    %v8595 = vadd.f32 %v8591, %v8594
    %vm8596 = vweird.f32 %v8575
    %vm8597 = vweird.f32 %v8591
    %vm8598 = vmor %vm8596, %vm8597
    %v8599 = vsel %vm8598, %v8591, %v8595
    %v8600 = vand.u32 2147483647, %v8575
    %vm8601 = vcmp.eq.f32.partialorder %v8600, 8.507059e+37
    %v8602 = vand.u32 %v8575, 2147483648
    %v8603 = vor.u32 1.1754944e-38, %v8602
    %v8604 = vsel %vm8601, %v8603, %v8599
    %v8605 = vmul.f32 1.0, %v8604
    %v8606 = vrcp.pop %v8576
    %v8607 = vmul.f32 %v8576, %v8606
    %v8608 = vsub.f32 1.0, %v8607
    %v8609 = vmul.f32 %v8606, %v8608
    %v8610 = vadd.f32 %v8606, %v8609
    %vm8611 = vweird.f32 %v8576
    %vm8612 = vweird.f32 %v8606
    %vm8613 = vmor %vm8611, %vm8612
    %v8614 = vsel %vm8613, %v8606, %v8610
    %v8615 = vand.u32 2147483647, %v8576
    %vm8616 = vcmp.eq.f32.partialorder %v8615, 8.507059e+37
    %v8617 = vand.u32 %v8576, 2147483648
    %v8618 = vor.u32 1.1754944e-38, %v8617
    %v8619 = vsel %vm8616, %v8618, %v8614
    %v8620 = vmul.f32 1.0, %v8619
    %v8621 = vrcp.pop %v8577
    %v8622 = vmul.f32 %v8577, %v8621
    %v8623 = vsub.f32 1.0, %v8622
    %v8624 = vmul.f32 %v8621, %v8623
    %v8625 = vadd.f32 %v8621, %v8624
    %vm8626 = vweird.f32 %v8577
    %vm8627 = vweird.f32 %v8621
    %vm8628 = vmor %vm8626, %vm8627
    %v8629 = vsel %vm8628, %v8621, %v8625
    %v8630 = vand.u32 2147483647, %v8577
    %vm8631 = vcmp.eq.f32.partialorder %v8630, 8.507059e+37
    %v8632 = vand.u32 %v8577, 2147483648
    %v8633 = vor.u32 1.1754944e-38, %v8632
    %v8634 = vsel %vm8631, %v8633, %v8629
    %v8635 = vmul.f32 1.0, %v8634
    %v8636 = vrcp.pop %v8578
    %v8637 = vmul.f32 %v8578, %v8636
    %v8638 = vsub.f32 1.0, %v8637
    %v8639 = vmul.f32 %v8636, %v8638
    %v8640 = vadd.f32 %v8636, %v8639
    %vm8641 = vweird.f32 %v8578
    %vm8642 = vweird.f32 %v8636
    %vm8643 = vmor %vm8641, %vm8642
    %v8644 = vsel %vm8643, %v8636, %v8640
    %v8645 = vand.u32 2147483647, %v8578
    %vm8646 = vcmp.eq.f32.partialorder %v8645, 8.507059e+37
    %v8647 = vand.u32 %v8578, 2147483648
    %v8648 = vor.u32 1.1754944e-38, %v8647
    %v8649 = vsel %vm8646, %v8648, %v8644
    %v8650 = vmul.f32 1.0, %v8649
    %v8651 = vrcp.pop %v8579
    %v8652 = vmul.f32 %v8579, %v8651
    %v8653 = vsub.f32 1.0, %v8652
    %v8654 = vmul.f32 %v8651, %v8653
    %v8655 = vadd.f32 %v8651, %v8654
    %vm8656 = vweird.f32 %v8579
    %vm8657 = vweird.f32 %v8651
    %vm8658 = vmor %vm8656, %vm8657
    %v8659 = vsel %vm8658, %v8651, %v8655
    %v8660 = vand.u32 2147483647, %v8579
    %vm8661 = vcmp.eq.f32.partialorder %v8660, 8.507059e+37
    %v8662 = vand.u32 %v8579, 2147483648
    %v8663 = vor.u32 1.1754944e-38, %v8662
    %v8664 = vsel %vm8661, %v8663, %v8659
    %v8665 = vmul.f32 1.0, %v8664
    %v8666 = vrcp.pop %v8580
    %v8667 = vmul.f32 %v8580, %v8666
    %v8668 = vsub.f32 1.0, %v8667
    %v8669 = vmul.f32 %v8666, %v8668
    %v8670 = vadd.f32 %v8666, %v8669
    %vm8671 = vweird.f32 %v8580
    %vm8672 = vweird.f32 %v8666
    %vm8673 = vmor %vm8671, %vm8672
    %v8674 = vsel %vm8673, %v8666, %v8670
    %v8675 = vand.u32 2147483647, %v8580
    %vm8676 = vcmp.eq.f32.partialorder %v8675, 8.507059e+37
    %v8677 = vand.u32 %v8580, 2147483648
    %v8678 = vor.u32 1.1754944e-38, %v8677
    %v8679 = vsel %vm8676, %v8678, %v8674
    %v8680 = vmul.f32 1.0, %v8679
    %v8681 = vrcp.pop %v8581
    %v8682 = vmul.f32 %v8581, %v8681
    %v8683 = vsub.f32 1.0, %v8682
    %v8684 = vmul.f32 %v8681, %v8683
    %v8685 = vadd.f32 %v8681, %v8684
    %vm8686 = vweird.f32 %v8581
    %vm8687 = vweird.f32 %v8681
    %vm8688 = vmor %vm8686, %vm8687
    %v8689 = vsel %vm8688, %v8681, %v8685
    %v8690 = vand.u32 2147483647, %v8581
    %vm8691 = vcmp.eq.f32.partialorder %v8690, 8.507059e+37
    %v8692 = vand.u32 %v8581, 2147483648
    %v8693 = vor.u32 1.1754944e-38, %v8692
    %v8694 = vsel %vm8691, %v8693, %v8689
    %v8695 = vmul.f32 1.0, %v8694
    %v8696 = vrcp.pop %v8582
    %v8697 = vmul.f32 %v8582, %v8696
    %v8698 = vsub.f32 1.0, %v8697
    %v8699 = vmul.f32 %v8696, %v8698
    %v8700 = vadd.f32 %v8696, %v8699
    %vm8701 = vweird.f32 %v8582
    %vm8702 = vweird.f32 %v8696
    %vm8703 = vmor %vm8701, %vm8702
    %v8704 = vsel %vm8703, %v8696, %v8700
    %v8705 = vand.u32 2147483647, %v8582
    %vm8706 = vcmp.eq.f32.partialorder %v8705, 8.507059e+37
    %v8707 = vand.u32 %v8582, 2147483648
    %v8708 = vor.u32 1.1754944e-38, %v8707
    %v8709 = vsel %vm8706, %v8708, %v8704
    %v8710 = vmul.f32 1.0, %v8709
    %v8711 = vrcp.pop %v8583
    %v8712 = vmul.f32 %v8583, %v8711
    %v8713 = vsub.f32 1.0, %v8712
    %v8714 = vmul.f32 %v8711, %v8713
    %v8715 = vadd.f32 %v8711, %v8714
    %vm8716 = vweird.f32 %v8583
    %vm8717 = vweird.f32 %v8711
    %vm8718 = vmor %vm8716, %vm8717
    %v8719 = vsel %vm8718, %v8711, %v8715
    %v8720 = vand.u32 2147483647, %v8583
    %vm8721 = vcmp.eq.f32.partialorder %v8720, 8.507059e+37
    %v8722 = vand.u32 %v8583, 2147483648
    %v8723 = vor.u32 1.1754944e-38, %v8722
    %v8724 = vsel %vm8721, %v8723, %v8719
    %v8725 = vmul.f32 1.0, %v8724
    %v8726 = vrcp.pop %v8584
    %v8727 = vmul.f32 %v8584, %v8726
    %v8728 = vsub.f32 1.0, %v8727
    %v8729 = vmul.f32 %v8726, %v8728
    %v8730 = vadd.f32 %v8726, %v8729
    %vm8731 = vweird.f32 %v8584
    %vm8732 = vweird.f32 %v8726
    %vm8733 = vmor %vm8731, %vm8732
    %v8734 = vsel %vm8733, %v8726, %v8730
    %v8735 = vand.u32 2147483647, %v8584
    %vm8736 = vcmp.eq.f32.partialorder %v8735, 8.507059e+37
    %v8737 = vand.u32 %v8584, 2147483648
    %v8738 = vor.u32 1.1754944e-38, %v8737
    %v8739 = vsel %vm8736, %v8738, %v8734
    %v8740 = vmul.f32 1.0, %v8739
    %v8741 = vrcp.pop %v8585
    %v8742 = vmul.f32 %v8585, %v8741
    %v8743 = vsub.f32 1.0, %v8742
    %v8744 = vmul.f32 %v8741, %v8743
    %v8745 = vadd.f32 %v8741, %v8744
    %vm8746 = vweird.f32 %v8585
    %vm8747 = vweird.f32 %v8741
    %vm8748 = vmor %vm8746, %vm8747
    %v8749 = vsel %vm8748, %v8741, %v8745
    %v8750 = vand.u32 2147483647, %v8585
    %vm8751 = vcmp.eq.f32.partialorder %v8750, 8.507059e+37
    %v8752 = vand.u32 %v8585, 2147483648
    %v8753 = vor.u32 1.1754944e-38, %v8752
    %v8754 = vsel %vm8751, %v8753, %v8749
    %v8755 = vmul.f32 1.0, %v8754
    %v8756 = vrcp.pop %v8586
    %v8757 = vmul.f32 %v8586, %v8756
    %v8758 = vsub.f32 1.0, %v8757
    %v8759 = vmul.f32 %v8756, %v8758
    %v8760 = vadd.f32 %v8756, %v8759
    %vm8761 = vweird.f32 %v8586
    %vm8762 = vweird.f32 %v8756
    %vm8763 = vmor %vm8761, %vm8762
    %v8764 = vsel %vm8763, %v8756, %v8760
    %v8765 = vand.u32 2147483647, %v8586
    %vm8766 = vcmp.eq.f32.partialorder %v8765, 8.507059e+37
    %v8767 = vand.u32 %v8586, 2147483648
    %v8768 = vor.u32 1.1754944e-38, %v8767
    %v8769 = vsel %vm8766, %v8768, %v8764
    %v8770 = vmul.f32 1.0, %v8769
    %v8771 = vrcp.pop %v8587
    %v8772 = vmul.f32 %v8587, %v8771
    %v8773 = vsub.f32 1.0, %v8772
    %v8774 = vmul.f32 %v8771, %v8773
    %v8775 = vadd.f32 %v8771, %v8774
    %vm8776 = vweird.f32 %v8587
    %vm8777 = vweird.f32 %v8771
    %vm8778 = vmor %vm8776, %vm8777
    %v8779 = vsel %vm8778, %v8771, %v8775
    %v8780 = vand.u32 2147483647, %v8587
    %vm8781 = vcmp.eq.f32.partialorder %v8780, 8.507059e+37
    %v8782 = vand.u32 %v8587, 2147483648
    %v8783 = vor.u32 1.1754944e-38, %v8782
    %v8784 = vsel %vm8781, %v8783, %v8779
    %v8785 = vmul.f32 1.0, %v8784
    %v8786 = vrcp.pop %v8588
    %v8787 = vmul.f32 %v8588, %v8786
    %v8788 = vsub.f32 1.0, %v8787
    %v8789 = vmul.f32 %v8786, %v8788
    %v8790 = vadd.f32 %v8786, %v8789
    %vm8791 = vweird.f32 %v8588
    %vm8792 = vweird.f32 %v8786
    %vm8793 = vmor %vm8791, %vm8792
    %v8794 = vsel %vm8793, %v8786, %v8790
    %v8795 = vand.u32 2147483647, %v8588
    %vm8796 = vcmp.eq.f32.partialorder %v8795, 8.507059e+37
    %v8797 = vand.u32 %v8588, 2147483648
    %v8798 = vor.u32 1.1754944e-38, %v8797
    %v8799 = vsel %vm8796, %v8798, %v8794
    %v8800 = vmul.f32 1.0, %v8799
    %v8801 = vrcp.pop %v8589
    %v8802 = vmul.f32 %v8589, %v8801
    %v8803 = vsub.f32 1.0, %v8802
    %v8804 = vmul.f32 %v8801, %v8803
    %v8805 = vadd.f32 %v8801, %v8804
    %vm8806 = vweird.f32 %v8589
    %vm8807 = vweird.f32 %v8801
    %vm8808 = vmor %vm8806, %vm8807
    %v8809 = vsel %vm8808, %v8801, %v8805
    %v8810 = vand.u32 2147483647, %v8589
    %vm8811 = vcmp.eq.f32.partialorder %v8810, 8.507059e+37
    %v8812 = vand.u32 %v8589, 2147483648
    %v8813 = vor.u32 1.1754944e-38, %v8812
    %v8814 = vsel %vm8811, %v8813, %v8809
    %v8815 = vmul.f32 1.0, %v8814
    %v8816 = vrcp.pop %v8590
    %v8817 = vmul.f32 %v8590, %v8816
    %v8818 = vsub.f32 1.0, %v8817
    %v8819 = vmul.f32 %v8816, %v8818
    %v8820 = vadd.f32 %v8816, %v8819
    %vm8821 = vweird.f32 %v8590
    %vm8822 = vweird.f32 %v8816
    %vm8823 = vmor %vm8821, %vm8822
    %v8824 = vsel %vm8823, %v8816, %v8820
    %v8825 = vand.u32 2147483647, %v8590
    %vm8826 = vcmp.eq.f32.partialorder %v8825, 8.507059e+37
    %v8827 = vand.u32 %v8590, 2147483648
    %v8828 = vor.u32 1.1754944e-38, %v8827
    %v8829 = vsel %vm8826, %v8828, %v8824
    %v8830 = vmul.f32 1.0, %v8829
    %8847 = vrot.lane.b32.xlu0 %v8511, 32
    %v8848 = vpop.permute.xlu0 %8847
    %8849 = vrot.lane.b32.xlu0 %v8512, 32
    %v8850 = vpop.permute.xlu0 %8849
    %8851 = vrot.lane.b32.xlu0 %v8513, 32
    %v8852 = vpop.permute.xlu0 %8851
    %8853 = vrot.lane.b32.xlu0 %v8514, 32
    %v8854 = vpop.permute.xlu0 %8853
    %8855 = vrot.lane.b32.xlu0 %v8515, 32
    %v8856 = vpop.permute.xlu0 %8855
    %8857 = vrot.lane.b32.xlu0 %v8516, 32
    %v8858 = vpop.permute.xlu0 %8857
    %8859 = vrot.lane.b32.xlu0 %v8517, 32
    %v8860 = vpop.permute.xlu0 %8859
    %8861 = vrot.lane.b32.xlu0 %v8518, 32
    %v8862 = vpop.permute.xlu0 %8861
    %8863 = vrot.lane.b32.xlu0 %v8519, 32
    %v8864 = vpop.permute.xlu0 %8863
    %8865 = vrot.lane.b32.xlu0 %v8520, 32
    %v8866 = vpop.permute.xlu0 %8865
    %8867 = vrot.lane.b32.xlu0 %v8521, 32
    %v8868 = vpop.permute.xlu0 %8867
    %8869 = vrot.lane.b32.xlu0 %v8522, 32
    %v8870 = vpop.permute.xlu0 %8869
    %8871 = vrot.lane.b32.xlu0 %v8523, 32
    %v8872 = vpop.permute.xlu0 %8871
    %8873 = vrot.lane.b32.xlu0 %v8524, 32
    %v8874 = vpop.permute.xlu0 %8873
    %8875 = vrot.lane.b32.xlu0 %v8525, 32
    %v8876 = vpop.permute.xlu0 %8875
    %8877 = vrot.lane.b32.xlu0 %v8526, 32
    %v8878 = vpop.permute.xlu0 %8877
    %v8895 = vmul.f32 %v8605, %v8848
    %v8896 = vmul.f32 %v8620, %v8850
    %v8897 = vmul.f32 %v8635, %v8852
    %v8898 = vmul.f32 %v8650, %v8854
    %v8899 = vmul.f32 %v8665, %v8856
    %v8900 = vmul.f32 %v8680, %v8858
    %v8901 = vmul.f32 %v8695, %v8860
    %v8902 = vmul.f32 %v8710, %v8862
    %v8903 = vmul.f32 %v8725, %v8864
    %v8904 = vmul.f32 %v8740, %v8866
    %v8905 = vmul.f32 %v8755, %v8868
    %v8906 = vmul.f32 %v8770, %v8870
    %v8907 = vmul.f32 %v8785, %v8872
    %v8908 = vmul.f32 %v8800, %v8874
    %v8909 = vmul.f32 %v8815, %v8876
    %v8910 = vmul.f32 %v8830, %v8878
    %8927 = vrot.lane.b32.xlu0 %v8895, 64
    %v8928 = vpop.permute.xlu0 %8927
    %8929 = vrot.lane.b32.xlu0 %v8896, 64
    %v8930 = vpop.permute.xlu0 %8929
    %8931 = vrot.lane.b32.xlu0 %v8897, 64
    %v8932 = vpop.permute.xlu0 %8931
    %8933 = vrot.lane.b32.xlu0 %v8898, 64
    %v8934 = vpop.permute.xlu0 %8933
    %8935 = vrot.lane.b32.xlu0 %v8899, 64
    %v8936 = vpop.permute.xlu0 %8935
    %8937 = vrot.lane.b32.xlu0 %v8900, 64
    %v8938 = vpop.permute.xlu0 %8937
    %8939 = vrot.lane.b32.xlu0 %v8901, 64
    %v8940 = vpop.permute.xlu0 %8939
    %8941 = vrot.lane.b32.xlu0 %v8902, 64
    %v8942 = vpop.permute.xlu0 %8941
    %8943 = vrot.lane.b32.xlu0 %v8903, 64
    %v8944 = vpop.permute.xlu0 %8943
    %8945 = vrot.lane.b32.xlu0 %v8904, 64
    %v8946 = vpop.permute.xlu0 %8945
    %8947 = vrot.lane.b32.xlu0 %v8905, 64
    %v8948 = vpop.permute.xlu0 %8947
    %8949 = vrot.lane.b32.xlu0 %v8906, 64
    %v8950 = vpop.permute.xlu0 %8949
    %8951 = vrot.lane.b32.xlu0 %v8907, 64
    %v8952 = vpop.permute.xlu0 %8951
    %8953 = vrot.lane.b32.xlu0 %v8908, 64
    %v8954 = vpop.permute.xlu0 %8953
    %8955 = vrot.lane.b32.xlu0 %v8909, 64
    %v8956 = vpop.permute.xlu0 %8955
    %8957 = vrot.lane.b32.xlu0 %v8910, 64
    %v8958 = vpop.permute.xlu0 %8957
    %v8975 = vadd.f32 %v8511, %v8928
    %v8976 = vadd.f32 %v8512, %v8930
    %v8977 = vadd.f32 %v8513, %v8932
    %v8978 = vadd.f32 %v8514, %v8934
    %v8979 = vadd.f32 %v8515, %v8936
    %v8980 = vadd.f32 %v8516, %v8938
    %v8981 = vadd.f32 %v8517, %v8940
    %v8982 = vadd.f32 %v8518, %v8942
    %v8983 = vadd.f32 %v8519, %v8944
    %v8984 = vadd.f32 %v8520, %v8946
    %v8985 = vadd.f32 %v8521, %v8948
    %v8986 = vadd.f32 %v8522, %v8950
    %v8987 = vadd.f32 %v8523, %v8952
    %v8988 = vadd.f32 %v8524, %v8954
    %v8989 = vadd.f32 %v8525, %v8956
    %v8990 = vadd.f32 %v8526, %v8958
    %v8991 = vtanh.pop %v8975
    %v8992 = vtanh.pop %v8976
    %v8993 = vtanh.pop %v8977
    %v8994 = vtanh.pop %v8978
    %v8995 = vtanh.pop %v8979
    %v8996 = vtanh.pop %v8980
    %v8997 = vtanh.pop %v8981
    %v8998 = vtanh.pop %v8982
    %v8999 = vtanh.pop %v8983
    %v9000 = vtanh.pop %v8984
    %v9001 = vtanh.pop %v8985
    %v9002 = vtanh.pop %v8986
    %v9003 = vtanh.pop %v8987
    %v9004 = vtanh.pop %v8988
    %v9005 = vtanh.pop %v8989
    %v9006 = vtanh.pop %v8990
    %s9007 = scalar_lea.vmem %s1, 384
    %v9008 = vld [vmem:[%s9007] sm:$0xff]
    %v9009 = vld [vmem:[%s9007 + $0x8] sm:$0xff]
    %v9010 = vld [vmem:[%s9007 + $0x10] sm:$0xff]
    %v9011 = vld [vmem:[%s9007 + $0x18] sm:$0xff]
    %v9012 = vld [vmem:[%s9007 + $0x20] sm:$0xff]
    %v9013 = vld [vmem:[%s9007 + $0x28] sm:$0xff]
    %v9014 = vld [vmem:[%s9007 + $0x30] sm:$0xff]
    %v9015 = vld [vmem:[%s9007 + $0x38] sm:$0xff]
    %v9016 = vld [vmem:[%s9007 + $0x40] sm:$0xff]
    %v9017 = vld [vmem:[%s9007 + $0x48] sm:$0xff]
    %v9018 = vld [vmem:[%s9007 + $0x50] sm:$0xff]
    %v9019 = vld [vmem:[%s9007 + $0x58] sm:$0xff]
    %v9020 = vld [vmem:[%s9007 + $0x60] sm:$0xff]
    %v9021 = vld [vmem:[%s9007 + $0x68] sm:$0xff]
    %v9022 = vld [vmem:[%s9007 + $0x70] sm:$0xff]
    %v9023 = vld [vmem:[%s9007 + $0x78] sm:$0xff]
    %9040 = vrot.lane.b32.xlu0 %v9008, 32
    %v9041 = vpop.permute.xlu0 %9040
    %9042 = vrot.lane.b32.xlu0 %v9009, 32
    %v9043 = vpop.permute.xlu0 %9042
    %9044 = vrot.lane.b32.xlu0 %v9010, 32
    %v9045 = vpop.permute.xlu0 %9044
    %9046 = vrot.lane.b32.xlu0 %v9011, 32
    %v9047 = vpop.permute.xlu0 %9046
    %9048 = vrot.lane.b32.xlu0 %v9012, 32
    %v9049 = vpop.permute.xlu0 %9048
    %9050 = vrot.lane.b32.xlu0 %v9013, 32
    %v9051 = vpop.permute.xlu0 %9050
    %9052 = vrot.lane.b32.xlu0 %v9014, 32
    %v9053 = vpop.permute.xlu0 %9052
    %9054 = vrot.lane.b32.xlu0 %v9015, 32
    %v9055 = vpop.permute.xlu0 %9054
    %9056 = vrot.lane.b32.xlu0 %v9016, 32
    %v9057 = vpop.permute.xlu0 %9056
    %9058 = vrot.lane.b32.xlu0 %v9017, 32
    %v9059 = vpop.permute.xlu0 %9058
    %9060 = vrot.lane.b32.xlu0 %v9018, 32
    %v9061 = vpop.permute.xlu0 %9060
    %9062 = vrot.lane.b32.xlu0 %v9019, 32
    %v9063 = vpop.permute.xlu0 %9062
    %9064 = vrot.lane.b32.xlu0 %v9020, 32
    %v9065 = vpop.permute.xlu0 %9064
    %9066 = vrot.lane.b32.xlu0 %v9021, 32
    %v9067 = vpop.permute.xlu0 %9066
    %9068 = vrot.lane.b32.xlu0 %v9022, 32
    %v9069 = vpop.permute.xlu0 %9068
    %9070 = vrot.lane.b32.xlu0 %v9023, 32
    %v9071 = vpop.permute.xlu0 %9070
    %v9088 = vmul.f32 %v8605, %v9041
    %v9089 = vmul.f32 %v8620, %v9043
    %v9090 = vmul.f32 %v8635, %v9045
    %v9091 = vmul.f32 %v8650, %v9047
    %v9092 = vmul.f32 %v8665, %v9049
    %v9093 = vmul.f32 %v8680, %v9051
    %v9094 = vmul.f32 %v8695, %v9053
    %v9095 = vmul.f32 %v8710, %v9055
    %v9096 = vmul.f32 %v8725, %v9057
    %v9097 = vmul.f32 %v8740, %v9059
    %v9098 = vmul.f32 %v8755, %v9061
    %v9099 = vmul.f32 %v8770, %v9063
    %v9100 = vmul.f32 %v8785, %v9065
    %v9101 = vmul.f32 %v8800, %v9067
    %v9102 = vmul.f32 %v8815, %v9069
    %v9103 = vmul.f32 %v8830, %v9071
    %v9104 = vsub.f32 1.0, %v8605
    %v9105 = vsub.f32 1.0, %v8620
    %v9106 = vsub.f32 1.0, %v8635
    %v9107 = vsub.f32 1.0, %v8650
    %v9108 = vsub.f32 1.0, %v8665
    %v9109 = vsub.f32 1.0, %v8680
    %v9110 = vsub.f32 1.0, %v8695
    %v9111 = vsub.f32 1.0, %v8710
    %v9112 = vsub.f32 1.0, %v8725
    %v9113 = vsub.f32 1.0, %v8740
    %v9114 = vsub.f32 1.0, %v8755
    %v9115 = vsub.f32 1.0, %v8770
    %v9116 = vsub.f32 1.0, %v8785
    %v9117 = vsub.f32 1.0, %v8800
    %v9118 = vsub.f32 1.0, %v8815
    %v9119 = vsub.f32 1.0, %v8830
    %9136 = vrot.lane.b32.xlu0 %v8991, 96
    %v9137 = vpop.permute.xlu0 %9136
    %9138 = vrot.lane.b32.xlu0 %v8992, 96
    %v9139 = vpop.permute.xlu0 %9138
    %9140 = vrot.lane.b32.xlu0 %v8993, 96
    %v9141 = vpop.permute.xlu0 %9140
    %9142 = vrot.lane.b32.xlu0 %v8994, 96
    %v9143 = vpop.permute.xlu0 %9142
    %9144 = vrot.lane.b32.xlu0 %v8995, 96
    %v9145 = vpop.permute.xlu0 %9144
    %9146 = vrot.lane.b32.xlu0 %v8996, 96
    %v9147 = vpop.permute.xlu0 %9146
    %9148 = vrot.lane.b32.xlu0 %v8997, 96
    %v9149 = vpop.permute.xlu0 %9148
    %9150 = vrot.lane.b32.xlu0 %v8998, 96
    %v9151 = vpop.permute.xlu0 %9150
    %9152 = vrot.lane.b32.xlu0 %v8999, 96
    %v9153 = vpop.permute.xlu0 %9152
    %9154 = vrot.lane.b32.xlu0 %v9000, 96
    %v9155 = vpop.permute.xlu0 %9154
    %9156 = vrot.lane.b32.xlu0 %v9001, 96
    %v9157 = vpop.permute.xlu0 %9156
    %9158 = vrot.lane.b32.xlu0 %v9002, 96
    %v9159 = vpop.permute.xlu0 %9158
    %9160 = vrot.lane.b32.xlu0 %v9003, 96
    %v9161 = vpop.permute.xlu0 %9160
    %9162 = vrot.lane.b32.xlu0 %v9004, 96
    %v9163 = vpop.permute.xlu0 %9162
    %9164 = vrot.lane.b32.xlu0 %v9005, 96
    %v9165 = vpop.permute.xlu0 %9164
    %9166 = vrot.lane.b32.xlu0 %v9006, 96
    %v9167 = vpop.permute.xlu0 %9166
    %v9184 = vmul.f32 %v9104, %v9137
    %v9185 = vmul.f32 %v9105, %v9139
    %v9186 = vmul.f32 %v9106, %v9141
    %v9187 = vmul.f32 %v9107, %v9143
    %v9188 = vmul.f32 %v9108, %v9145
    %v9189 = vmul.f32 %v9109, %v9147
    %v9190 = vmul.f32 %v9110, %v9149
    %v9191 = vmul.f32 %v9111, %v9151
    %v9192 = vmul.f32 %v9112, %v9153
    %v9193 = vmul.f32 %v9113, %v9155
    %v9194 = vmul.f32 %v9114, %v9157
    %v9195 = vmul.f32 %v9115, %v9159
    %v9196 = vmul.f32 %v9116, %v9161
    %v9197 = vmul.f32 %v9117, %v9163
    %v9198 = vmul.f32 %v9118, %v9165
    %v9199 = vmul.f32 %v9119, %v9167
    %v9200 = vadd.f32 %v9088, %v9184
    %v9201 = vadd.f32 %v9089, %v9185
    %v9202 = vadd.f32 %v9090, %v9186
    %v9203 = vadd.f32 %v9091, %v9187
    %v9204 = vadd.f32 %v9092, %v9188
    %v9205 = vadd.f32 %v9093, %v9189
    %v9206 = vadd.f32 %v9094, %v9190
    %v9207 = vadd.f32 %v9095, %v9191
    %v9208 = vadd.f32 %v9096, %v9192
    %v9209 = vadd.f32 %v9097, %v9193
    %v9210 = vadd.f32 %v9098, %v9194
    %v9211 = vadd.f32 %v9099, %v9195
    %v9212 = vadd.f32 %v9100, %v9196
    %v9213 = vadd.f32 %v9101, %v9197
    %v9214 = vadd.f32 %v9102, %v9198
    %v9215 = vadd.f32 %v9103, %v9199
    %9232 = vrot.lane.b32.xlu0 %v9200, 96
    %v9233 = vpop.permute.xlu0 %9232
    %9234 = vrot.lane.b32.xlu0 %v9201, 96
    %v9235 = vpop.permute.xlu0 %9234
    %9236 = vrot.lane.b32.xlu0 %v9202, 96
    %v9237 = vpop.permute.xlu0 %9236
    %9238 = vrot.lane.b32.xlu0 %v9203, 96
    %v9239 = vpop.permute.xlu0 %9238
    %9240 = vrot.lane.b32.xlu0 %v9204, 96
    %v9241 = vpop.permute.xlu0 %9240
    %9242 = vrot.lane.b32.xlu0 %v9205, 96
    %v9243 = vpop.permute.xlu0 %9242
    %9244 = vrot.lane.b32.xlu0 %v9206, 96
    %v9245 = vpop.permute.xlu0 %9244
    %9246 = vrot.lane.b32.xlu0 %v9207, 96
    %v9247 = vpop.permute.xlu0 %9246
    %9248 = vrot.lane.b32.xlu0 %v9208, 96
    %v9249 = vpop.permute.xlu0 %9248
    %9250 = vrot.lane.b32.xlu0 %v9209, 96
    %v9251 = vpop.permute.xlu0 %9250
    %9252 = vrot.lane.b32.xlu0 %v9210, 96
    %v9253 = vpop.permute.xlu0 %9252
    %9254 = vrot.lane.b32.xlu0 %v9211, 96
    %v9255 = vpop.permute.xlu0 %9254
    %9256 = vrot.lane.b32.xlu0 %v9212, 96
    %v9257 = vpop.permute.xlu0 %9256
    %9258 = vrot.lane.b32.xlu0 %v9213, 96
    %v9259 = vpop.permute.xlu0 %9258
    %9260 = vrot.lane.b32.xlu0 %v9214, 96
    %v9261 = vpop.permute.xlu0 %9260
    %9262 = vrot.lane.b32.xlu0 %v9215, 96
    %v9263 = vpop.permute.xlu0 %9262
    %s9280 = scalar_lea.vmem [#allocation3], 384
    %9281 = vst.msk [vmem:[%s9280] sm:$0xff] %vm155, %v9233
    %9282 = vst.msk [vmem:[%s9280 + $0x8] sm:$0xff] %vm155, %v9235
    %9283 = vst.msk [vmem:[%s9280 + $0x10] sm:$0xff] %vm155, %v9237
    %9284 = vst.msk [vmem:[%s9280 + $0x18] sm:$0xff] %vm155, %v9239
    %9285 = vst.msk [vmem:[%s9280 + $0x20] sm:$0xff] %vm155, %v9241
    %9286 = vst.msk [vmem:[%s9280 + $0x28] sm:$0xff] %vm155, %v9243
    %9287 = vst.msk [vmem:[%s9280 + $0x30] sm:$0xff] %vm155, %v9245
    %9288 = vst.msk [vmem:[%s9280 + $0x38] sm:$0xff] %vm155, %v9247
    %9289 = vst.msk [vmem:[%s9280 + $0x40] sm:$0xff] %vm155, %v9249
    %9290 = vst.msk [vmem:[%s9280 + $0x48] sm:$0xff] %vm155, %v9251
    %9291 = vst.msk [vmem:[%s9280 + $0x50] sm:$0xff] %vm155, %v9253
    %9292 = vst.msk [vmem:[%s9280 + $0x58] sm:$0xff] %vm155, %v9255
    %9293 = vst.msk [vmem:[%s9280 + $0x60] sm:$0xff] %vm155, %v9257
    %9294 = vst.msk [vmem:[%s9280 + $0x68] sm:$0xff] %vm155, %v9259
    %9295 = vst.msk [vmem:[%s9280 + $0x70] sm:$0xff] %vm155, %v9261
    %9296 = vst.msk [vmem:[%s9280 + $0x78] sm:$0xff] %vm155, %v9263
    // Predicated region
    $region18: #{conv2d_gru_cell.1} parent=1 // pred_check
      _
    $region19: #{conv2d_gru_cell.1} parent=1 // pred_check_branch
      %9298 = sbr.rel (0) target = $region21
    $region20: #{conv2d_gru_cell.1} parent=1 // pred_region
      %9300 = vsyncadd [#allocation4], 0
      %s9301 = sshll.u32 [#allocation3], 4
      %s9302 = int_to_ptr.vmem [resolvable:$true] %s9301
      %s9303 = sshll.u32 %s4, 4
      %s9304 = int_to_ptr.hbm [resolvable:$true] %s9303
      %9309 = dma.vmem_to_hbm [thread:$0]  %s9302, 8192, %s9304, [#allocation4], 128, 128, 8
    $region21: #{conv2d_gru_cell.1} parent=1 // pred_fallthru
      _
    // Predicated region
    $region22: #{conv2d_gru_cell.1} parent=1 // pred_check
      _
    $region23: #{conv2d_gru_cell.1} parent=1 // pred_check_branch
      %9311 = sbr.rel (0) target = $region25
    $region24: #{conv2d_gru_cell.1} parent=1 // pred_region
      %9313 = dma.done [#allocation4], 8192
    $region25: #{conv2d_gru_cell.1} parent=1 // pred_fallthru
      _
    %9314 = vsyncpa [#allocation4], 1

</llo_original>
